<compile_context>
chip_gen: v7x
topology: tpu7x:2x2x1
jax: 0.10.0
libtpu: 0.0.40
codegen_flags: <defaults>
</compile_context>

<pallas_src>
import functools

import jax
import jax.numpy as jnp
from jax.experimental import pallas as pl
from jax.experimental.pallas import tpu as pltpu


# -----------------------------------------------------------------------------
# Fully fused Up kernel
# -----------------------------------------------------------------------------
def _up_fused_kernel(x1_ref, x2_ref, wup_ref, bup_ref, w1_ref, b1_ref,
                     w2_ref, b2_ref, o_ref,
                     pad0_ref, shuf_ref, pad1_ref, pad2_ref, patch_ref,
                     *, h, w, cin, c2, cup, cmid, cout):
    h2, w2 = 2 * h, 2 * w
    m_up = h * w           # transpose-conv GEMM rows (coarse spatial)
    m = h2 * w2            # 3x3 conv GEMM rows (fine spatial)

    def im2col(xp, rows, chans):
        """Write the 9-tap patch matrix (rows, 9*chans) into patch_ref."""
        oh = xp.shape[0] - 2
        ow = xp.shape[1] - 2
        for ty in range(3):
            for tx in range(3):
                t = ty * 3 + tx
                patch_ref[0:rows, t * chans:(t + 1) * chans] = (
                    xp[ty:ty + oh, tx:tx + ow, :].reshape(rows, chans))

    # ---- 1. ConvTranspose2d(k=4,s=2,p=1) as ONE tap-folded GEMM --------------
    # (sub-pixel decomposition; the 4 output phases are 4 column blocks of the
    #  weight matrix; unused tap/phase combinations are zero)
    pad0_ref[...] = jnp.zeros_like(pad0_ref)
    pad0_ref[1:1 + h, 1:1 + w, :] = x1_ref[0].astype(jnp.bfloat16)
    im2col(pad0_ref[...], m_up, cin)
    y_up = jnp.dot(patch_ref[0:m_up, 0:9 * cin], wup_ref[...],
                   preferred_element_type=jnp.float32)          # (m_up, 4*cup)
    y_up = (y_up + bup_ref[...]).astype(jnp.bfloat16)

    # ---- 2. pixel shuffle (phase interleave) entirely in VMEM ----------------
    # shuf[hc, r, wc, c, :] == up(x1)[2*hc + r, 2*wc + c, :]
    for r in range(2):
        for c in range(2):
            p = 2 * r + c
            shuf_ref[:, r:r + 1, :, c:c + 1, :] = (
                y_up[:, p * cup:(p + 1) * cup].reshape(h, 1, w, 1, cup))
    x_up = shuf_ref[...].reshape(h2, w2, cup)

    # ---- 3. conv1: cat([x2, up], channel) folded into the padded scratch -----
    ctot = c2 + cup
    pad1_ref[...] = jnp.zeros_like(pad1_ref)
    pad1_ref[1:1 + h2, 1:1 + w2, 0:c2] = x2_ref[0].astype(jnp.bfloat16)
    pad1_ref[1:1 + h2, 1:1 + w2, c2:ctot] = x_up
    im2col(pad1_ref[...], m, ctot)
    y1 = jnp.dot(patch_ref[0:m, 0:9 * ctot], w1_ref[...],
                 preferred_element_type=jnp.float32)             # (m, cmid)
    y1 = y1 + b1_ref[...]                                        # folded BN bias
    y1 = jnp.where(y1 > 0, y1, 0.1 * y1)                         # LeakyReLU(0.1)

    # ---- 4. conv2 -------------------------------------------------------------
    pad2_ref[...] = jnp.zeros_like(pad2_ref)
    pad2_ref[1:1 + h2, 1:1 + w2, :] = (
        y1.reshape(h2, w2, cmid).astype(jnp.bfloat16))
    im2col(pad2_ref[...], m, cmid)
    y2 = jnp.dot(patch_ref[0:m, 0:9 * cmid], w2_ref[...],
                 preferred_element_type=jnp.float32)             # (m, cout)
    y2 = y2 + b2_ref[...]
    y2 = jnp.where(y2 > 0, y2, 0.1 * y2)
    o_ref[0] = y2.reshape(h2, w2, cout).astype(o_ref.dtype)


def up_forward_nhwc(x1, x2, params):
    """x1: [N,H,W,Cin] (to upsample), x2: [N,2H,2W,Cin//2] (skip). NHWC f32."""
    n, h, w, cin = x1.shape
    _, h2, w2, c2 = x2.shape
    assert h2 == 2 * h and w2 == 2 * w
    w_up, b_up = params["w_up"], params["b_up"]
    w1, b1 = params["w1"], params["b1"]
    w2p, b2 = params["w2"], params["b2"]
    cup = w_up.shape[1] // 4
    cmid = w1.shape[1]
    cout = w2p.shape[1]
    ctot = c2 + cup
    kmax = max(9 * cin, 9 * ctot, 9 * cmid)

    kernel = functools.partial(_up_fused_kernel, h=h, w=w, cin=cin, c2=c2,
                               cup=cup, cmid=cmid, cout=cout)
    return pl.pallas_call(
        kernel,
        out_shape=jax.ShapeDtypeStruct((n, h2, w2, cout), jnp.float32),
        grid=(n,),
        in_specs=[
            pl.BlockSpec((1, h, w, cin), lambda i: (i, 0, 0, 0)),
            pl.BlockSpec((1, h2, w2, c2), lambda i: (i, 0, 0, 0)),
            pl.BlockSpec(w_up.shape, lambda i: (0, 0)),
            pl.BlockSpec(b_up.shape, lambda i: (0, 0)),
            pl.BlockSpec(w1.shape, lambda i: (0, 0)),
            pl.BlockSpec(b1.shape, lambda i: (0, 0)),
            pl.BlockSpec(w2p.shape, lambda i: (0, 0)),
            pl.BlockSpec(b2.shape, lambda i: (0, 0)),
        ],
        out_specs=pl.BlockSpec((1, h2, w2, cout), lambda i: (i, 0, 0, 0)),
        scratch_shapes=[
            pltpu.VMEM((h + 2, w + 2, cin), jnp.bfloat16),        # padded x1
            pltpu.VMEM((h, 2, w, 2, cup), jnp.bfloat16),          # pixel shuffle
            pltpu.VMEM((h2 + 2, w2 + 2, ctot), jnp.bfloat16),     # padded concat
            pltpu.VMEM((h2 + 2, w2 + 2, cmid), jnp.bfloat16),     # padded mid
            pltpu.VMEM((h2 * w2, kmax), jnp.bfloat16),            # im2col patch
        ],
        compiler_params=pltpu.CompilerParams(
            dimension_semantics=("parallel",),
            vmem_limit_bytes=32 * 1024 * 1024),
    )(x1, x2, w_up, b_up, w1, b1, w2p, b2)


def up_forward(x1_nchw, x2_nchw, params):
    """NCHW interface matching the PyTorch module: Up.forward(x1, x2)."""
    x1 = jnp.transpose(x1_nchw, (0, 2, 3, 1))
    x2 = jnp.transpose(x2_nchw, (0, 2, 3, 1))
    y = up_forward_nhwc(x1, x2, params)
    return jnp.transpose(y, (0, 3, 1, 2))


# -----------------------------------------------------------------------------
# Parameter preparation (done ONCE, outside the forward pass)
# -----------------------------------------------------------------------------
# phase row/col r -> (tap offset dh in {0,1}) -> index into the 4x4 kernel
_KSEL = ((3, 1), (2, 0))


def prep_conv_transpose(wt, bias):
    """ConvTranspose2d(k=4,s=2,p=1) -> tap-folded subpixel GEMM weight.

    wt: [Cin, Cup, 4, 4] (PyTorch layout).
    Returns W [9*Cin, 4*Cup] bf16 (rows = (tap ty,tx, cin), cols = (r, c, co),
    zero where a tap is unused by a phase) and bias [1, 4*Cup] f32.
    """
    cin, cup = wt.shape[0], wt.shape[1]
    w = jnp.zeros((3, 3, cin, 2, 2, cup), jnp.float32)
    for r in range(2):
        for c in range(2):
            for dh in range(2):
                for dw in range(2):
                    w = w.at[r + dh, c + dw, :, r, c, :].set(
                        wt[:, :, _KSEL[r][dh], _KSEL[c][dw]])
    w = w.reshape(9 * cin, 4 * cup).astype(jnp.bfloat16)
    b = jnp.tile(bias, 4).reshape(1, 4 * cup).astype(jnp.float32)
    return w, b


def fold_conv_bn(w, b, gamma, beta, mean, var, eps=1e-5):
    """Conv2d(3x3,p=1) + BatchNorm2d(eval) -> GEMM weight [9*Cin,Cout] bf16 + bias."""
    s = gamma / jnp.sqrt(var + eps)
    bias = s * (b - mean) + beta
    w_f = w * s[:, None, None, None]                     # BN scale folded into W
    cout, cin, kh, kw = w.shape
    wg = w_f.transpose(2, 3, 1, 0).reshape(kh * kw * cin, cout)
    return wg.astype(jnp.bfloat16), bias.reshape(1, cout).astype(jnp.float32)


def prepare_up_params(raw):
    w_up, b_up = prep_conv_transpose(*raw["upT"])
    w1, b1 = fold_conv_bn(*raw["conv1"], *raw["bn1"])
    w2, b2 = fold_conv_bn(*raw["conv2"], *raw["bn2"])
    return dict(w_up=w_up, b_up=b_up, w1=w1, b1=b1, w2=w2, b2=b2)


# -----------------------------------------------------------------------------
# Pure-JAX (XLA) reference for correctness checking
# -----------------------------------------------------------------------------
def up_forward_ref(x1_nchw, x2_nchw, raw):
    hp = jax.lax.Precision.HIGHEST
    x1 = jnp.transpose(x1_nchw, (0, 2, 3, 1))
    x2 = jnp.transpose(x2_nchw, (0, 2, 3, 1))

    wt, bt = raw["upT"]                                  # [Cin, Cout, 4, 4]
    rhs = jnp.flip(wt, axis=(2, 3)).transpose(2, 3, 0, 1)      # HWIO
    xu = jax.lax.conv_general_dilated(
        x1, rhs, window_strides=(1, 1), padding=((2, 2), (2, 2)),
        lhs_dilation=(2, 2), dimension_numbers=("NHWC", "HWIO", "NHWC"),
        precision=hp) + bt

    x = jnp.concatenate([x2, xu], axis=-1)

    def conv_bn_lrelu(x, conv, bn):
        w, b = conv
        gamma, beta, mean, var = bn
        y = jax.lax.conv_general_dilated(
            x, w.transpose(2, 3, 1, 0), (1, 1), ((1, 1), (1, 1)),
            dimension_numbers=("NHWC", "HWIO", "NHWC"), precision=hp) + b
        y = (y - mean) / jnp.sqrt(var + 1e-5) * gamma + beta
        return jnp.where(y > 0, y, 0.1 * y)

    x = conv_bn_lrelu(x, raw["conv1"], raw["bn1"])
    x = conv_bn_lrelu(x, raw["conv2"], raw["bn2"])
    return jnp.transpose(x, (0, 3, 1, 2))


# -----------------------------------------------------------------------------
# Deterministic parameter init (PyTorch layouts)
# -----------------------------------------------------------------------------
def init_up(key, in_channels, out_channels):
    ks = jax.random.split(key, 5)

    def conv_init(k, cout, cin, kh, kw):
        k1, k2 = jax.random.split(k)
        w = jax.random.normal(k1, (cout, cin, kh, kw), jnp.float32)
        w = w * jnp.sqrt(2.0 / (cin * kh * kw))
        b = 0.01 * jax.random.normal(k2, (cout,), jnp.float32)
        return (w, b)

    def convT_init(k, cin, cout):
        k1, k2 = jax.random.split(k)
        w = jax.random.normal(k1, (cin, cout, 4, 4), jnp.float32)
        w = w * jnp.sqrt(2.0 / (cin * 16))
        b = 0.01 * jax.random.normal(k2, (cout,), jnp.float32)
        return (w, b)

    def bn_init(k, c):
        k1, k2, k3, k4 = jax.random.split(k, 4)
        gamma = 1.0 + 0.1 * jax.random.normal(k1, (c,), jnp.float32)
        beta = 0.1 * jax.random.normal(k2, (c,), jnp.float32)
        mean = 0.1 * jax.random.normal(k3, (c,), jnp.float32)
        var = 1.0 + 0.1 * jnp.abs(jax.random.normal(k4, (c,), jnp.float32))
        return (gamma, beta, mean, var)

    return {
        "upT": convT_init(ks[0], in_channels, in_channels // 2),
        "conv1": conv_init(ks[1], out_channels, in_channels, 3, 3),
        "bn1": bn_init(ks[2], out_channels),
        "conv2": conv_init(ks[3], out_channels, out_channels, 3, 3),
        "bn2": bn_init(ks[4], out_channels),
    }


# -----------------------------------------------------------------------------
if __name__ == "__main__":
    key = jax.random.PRNGKey(0)
    k_param, k_x1, k_x2 = jax.random.split(key, 3)

    N, IN_CH, OUT_CH, H, W = 2, 32, 16, 8, 8
    raw_params = init_up(k_param, IN_CH, OUT_CH)
    kernel_params = prepare_up_params(raw_params)        # fold BN, bf16, once

    x1 = jax.random.normal(k_x1, (N, IN_CH, H, W), jnp.float32)
    x2 = jax.random.normal(k_x2, (N, IN_CH // 2, 2 * H, 2 * W), jnp.float32)

    fwd = jax.jit(up_forward)
    y = fwd(x1, x2, kernel_params)
    jax.block_until_ready(y)

    assert y.shape == (N, OUT_CH, 2 * H, 2 * W), y.shape
    assert bool(jnp.all(jnp.isfinite(y)))

    y_ref = up_forward_ref(x1, x2, raw_params)
    rel_err = float(jnp.max(jnp.abs(y - y_ref)) /
                    (jnp.max(jnp.abs(y_ref)) + 1e-8))
    assert rel_err < 0.05, f"mismatch vs XLA reference: rel err {rel_err}"

    print("KERNEL_OK")
</pallas_src>

<mosaic_0001>
module attributes {stable_mosaic.version = 11 : i64} {
  func.func @_up_fused_kernel(%arg0: i32, %arg1: memref<1x8x8x32xf32, #tpu.memory_space<vmem>>, %arg2: memref<1x16x16x16xf32, #tpu.memory_space<vmem>>, %arg3: memref<288x64xbf16, #tpu.memory_space<vmem>>, %arg4: memref<1x64xf32, #tpu.memory_space<vmem>>, %arg5: memref<288x16xbf16, #tpu.memory_space<vmem>>, %arg6: memref<1x16xf32, #tpu.memory_space<vmem>>, %arg7: memref<144x16xbf16, #tpu.memory_space<vmem>>, %arg8: memref<1x16xf32, #tpu.memory_space<vmem>>, %arg9: memref<1x16x16x16xf32, #tpu.memory_space<vmem>>, %arg10: memref<10x10x32xbf16, #tpu.memory_space<vmem>>, %arg11: memref<8x2x8x2x16xbf16, #tpu.memory_space<vmem>>, %arg12: memref<18x18x32xbf16, #tpu.memory_space<vmem>>, %arg13: memref<18x18x16xbf16, #tpu.memory_space<vmem>>, %arg14: memref<256x288xbf16, #tpu.memory_space<vmem>>) attributes {dimension_semantics = [#tpu.dimension_semantics<parallel>], iteration_bounds = array<i64: 2>, scalar_prefetch = 0 : i64, scratch_operands = 5 : i64, tpu.core_type = #tpu.core_type<tc>, window_params = [{transform_indices = @transform_0, window_bounds = array<i64: 1, 8, 8, 32>}, {transform_indices = @transform_1, window_bounds = array<i64: 1, 16, 16, 16>}, {pipeline_mode = #tpu.pipeline_mode<synchronous>, transform_indices = @transform_2, window_bounds = array<i64: 288, 64>}, {pipeline_mode = #tpu.pipeline_mode<synchronous>, transform_indices = @transform_3, window_bounds = array<i64: 1, 64>}, {pipeline_mode = #tpu.pipeline_mode<synchronous>, transform_indices = @transform_4, window_bounds = array<i64: 288, 16>}, {pipeline_mode = #tpu.pipeline_mode<synchronous>, transform_indices = @transform_5, window_bounds = array<i64: 1, 16>}, {pipeline_mode = #tpu.pipeline_mode<synchronous>, transform_indices = @transform_6, window_bounds = array<i64: 144, 16>}, {pipeline_mode = #tpu.pipeline_mode<synchronous>, transform_indices = @transform_7, window_bounds = array<i64: 1, 16>}, {transform_indices = @transform_8, window_bounds = array<i64: 1, 16, 16, 16>}]} {
    %cst = arith.constant 0.000000e+00 : bf16
    %0 = vector.broadcast %cst : bf16 to vector<10x10x32xbf16>
    %c0 = arith.constant 0 : index
    %c0_0 = arith.constant 0 : index
    %c0_1 = arith.constant 0 : index
    %1 = vector.load %arg10[%c0, %c0_0, %c0_1] : memref<10x10x32xbf16, #tpu.memory_space<vmem>>, vector<10x10x32xbf16>
    tpu.vector_store %arg10[%c0, %c0_0, %c0_1], %0 {strides = array<i32>} : memref<10x10x32xbf16, #tpu.memory_space<vmem>>, vector<10x10x32xbf16>,
    %c0_2 = arith.constant 0 : index
    %c0_3 = arith.constant 0 : index
    %c0_4 = arith.constant 0 : index
    %c0_5 = arith.constant 0 : index
    %2 = vector.load %arg1[%c0_2, %c0_3, %c0_4, %c0_5] : memref<1x8x8x32xf32, #tpu.memory_space<vmem>>, vector<1x8x8x32xf32>
    %3 = vector.shape_cast %2 : vector<1x8x8x32xf32> to vector<8x8x32xf32>
    %4 = arith.truncf %3 : vector<8x8x32xf32> to vector<8x8x32xbf16>
    %c1 = arith.constant 1 : index
    %c1_6 = arith.constant 1 : index
    %c0_7 = arith.constant 0 : index
    %5 = vector.load %arg10[%c1, %c1_6, %c0_7] : memref<10x10x32xbf16, #tpu.memory_space<vmem>>, vector<8x8x32xbf16>
    tpu.vector_store %arg10[%c1, %c1_6, %c0_7], %4 {strides = array<i32>} : memref<10x10x32xbf16, #tpu.memory_space<vmem>>, vector<8x8x32xbf16>,
    %c0_8 = arith.constant 0 : index
    %c0_9 = arith.constant 0 : index
    %c0_10 = arith.constant 0 : index
    %6 = vector.load %arg10[%c0_8, %c0_9, %c0_10] : memref<10x10x32xbf16, #tpu.memory_space<vmem>>, vector<10x10x32xbf16>
    %7 = vector.extract_strided_slice %6 {offsets = [0, 0, 0], sizes = [8, 8, 32], strides = [1, 1, 1]} : vector<10x10x32xbf16> to vector<8x8x32xbf16>
    %8 = vector.shape_cast %7 : vector<8x8x32xbf16> to vector<64x32xbf16>
    %c0_11 = arith.constant 0 : index
    %c0_12 = arith.constant 0 : index
    %9 = vector.load %arg14[%c0_11, %c0_12] : memref<256x288xbf16, #tpu.memory_space<vmem>>, vector<64x32xbf16>
    tpu.vector_store %arg14[%c0_11, %c0_12], %8 {strides = array<i32>} : memref<256x288xbf16, #tpu.memory_space<vmem>>, vector<64x32xbf16>,
    %10 = vector.extract_strided_slice %6 {offsets = [0, 1, 0], sizes = [8, 8, 32], strides = [1, 1, 1]} : vector<10x10x32xbf16> to vector<8x8x32xbf16>
    %11 = vector.shape_cast %10 : vector<8x8x32xbf16> to vector<64x32xbf16>
    %c0_13 = arith.constant 0 : index
    %c32 = arith.constant 32 : index
    %12 = vector.load %arg14[%c0_13, %c32] : memref<256x288xbf16, #tpu.memory_space<vmem>>, vector<64x32xbf16>
    tpu.vector_store %arg14[%c0_13, %c32], %11 {strides = array<i32>} : memref<256x288xbf16, #tpu.memory_space<vmem>>, vector<64x32xbf16>,
    %13 = vector.extract_strided_slice %6 {offsets = [0, 2, 0], sizes = [8, 8, 32], strides = [1, 1, 1]} : vector<10x10x32xbf16> to vector<8x8x32xbf16>
    %14 = vector.shape_cast %13 : vector<8x8x32xbf16> to vector<64x32xbf16>
    %c0_14 = arith.constant 0 : index
    %c64 = arith.constant 64 : index
    %15 = vector.load %arg14[%c0_14, %c64] : memref<256x288xbf16, #tpu.memory_space<vmem>>, vector<64x32xbf16>
    tpu.vector_store %arg14[%c0_14, %c64], %14 {strides = array<i32>} : memref<256x288xbf16, #tpu.memory_space<vmem>>, vector<64x32xbf16>,
    %16 = vector.extract_strided_slice %6 {offsets = [1, 0, 0], sizes = [8, 8, 32], strides = [1, 1, 1]} : vector<10x10x32xbf16> to vector<8x8x32xbf16>
    %17 = vector.shape_cast %16 : vector<8x8x32xbf16> to vector<64x32xbf16>
    %c0_15 = arith.constant 0 : index
    %c96 = arith.constant 96 : index
    %18 = vector.load %arg14[%c0_15, %c96] : memref<256x288xbf16, #tpu.memory_space<vmem>>, vector<64x32xbf16>
    tpu.vector_store %arg14[%c0_15, %c96], %17 {strides = array<i32>} : memref<256x288xbf16, #tpu.memory_space<vmem>>, vector<64x32xbf16>,
    %19 = vector.extract_strided_slice %6 {offsets = [1, 1, 0], sizes = [8, 8, 32], strides = [1, 1, 1]} : vector<10x10x32xbf16> to vector<8x8x32xbf16>
    %20 = vector.shape_cast %19 : vector<8x8x32xbf16> to vector<64x32xbf16>
    %c0_16 = arith.constant 0 : index
    %c128 = arith.constant 128 : index
    %21 = vector.load %arg14[%c0_16, %c128] : memref<256x288xbf16, #tpu.memory_space<vmem>>, vector<64x32xbf16>
    tpu.vector_store %arg14[%c0_16, %c128], %20 {strides = array<i32>} : memref<256x288xbf16, #tpu.memory_space<vmem>>, vector<64x32xbf16>,
    %22 = vector.extract_strided_slice %6 {offsets = [1, 2, 0], sizes = [8, 8, 32], strides = [1, 1, 1]} : vector<10x10x32xbf16> to vector<8x8x32xbf16>
    %23 = vector.shape_cast %22 : vector<8x8x32xbf16> to vector<64x32xbf16>
    %c0_17 = arith.constant 0 : index
    %c160 = arith.constant 160 : index
    %24 = vector.load %arg14[%c0_17, %c160] : memref<256x288xbf16, #tpu.memory_space<vmem>>, vector<64x32xbf16>
    tpu.vector_store %arg14[%c0_17, %c160], %23 {strides = array<i32>} : memref<256x288xbf16, #tpu.memory_space<vmem>>, vector<64x32xbf16>,
    %25 = vector.extract_strided_slice %6 {offsets = [2, 0, 0], sizes = [8, 8, 32], strides = [1, 1, 1]} : vector<10x10x32xbf16> to vector<8x8x32xbf16>
    %26 = vector.shape_cast %25 : vector<8x8x32xbf16> to vector<64x32xbf16>
    %c0_18 = arith.constant 0 : index
    %c192 = arith.constant 192 : index
    %27 = vector.load %arg14[%c0_18, %c192] : memref<256x288xbf16, #tpu.memory_space<vmem>>, vector<64x32xbf16>
    tpu.vector_store %arg14[%c0_18, %c192], %26 {strides = array<i32>} : memref<256x288xbf16, #tpu.memory_space<vmem>>, vector<64x32xbf16>,
    %28 = vector.extract_strided_slice %6 {offsets = [2, 1, 0], sizes = [8, 8, 32], strides = [1, 1, 1]} : vector<10x10x32xbf16> to vector<8x8x32xbf16>
    %29 = vector.shape_cast %28 : vector<8x8x32xbf16> to vector<64x32xbf16>
    %c0_19 = arith.constant 0 : index
    %c224 = arith.constant 224 : index
    %30 = vector.load %arg14[%c0_19, %c224] : memref<256x288xbf16, #tpu.memory_space<vmem>>, vector<64x32xbf16>
    tpu.vector_store %arg14[%c0_19, %c224], %29 {strides = array<i32>} : memref<256x288xbf16, #tpu.memory_space<vmem>>, vector<64x32xbf16>,
    %31 = vector.extract_strided_slice %6 {offsets = [2, 2, 0], sizes = [8, 8, 32], strides = [1, 1, 1]} : vector<10x10x32xbf16> to vector<8x8x32xbf16>
    %32 = vector.shape_cast %31 : vector<8x8x32xbf16> to vector<64x32xbf16>
    %c0_20 = arith.constant 0 : index
    %c256 = arith.constant 256 : index
    %33 = vector.load %arg14[%c0_20, %c256] : memref<256x288xbf16, #tpu.memory_space<vmem>>, vector<64x32xbf16>
    tpu.vector_store %arg14[%c0_20, %c256], %32 {strides = array<i32>} : memref<256x288xbf16, #tpu.memory_space<vmem>>, vector<64x32xbf16>,
    %c0_21 = arith.constant 0 : index
    %c0_22 = arith.constant 0 : index
    %34 = vector.load %arg14[%c0_21, %c0_22] : memref<256x288xbf16, #tpu.memory_space<vmem>>, vector<64x288xbf16>
    %c0_23 = arith.constant 0 : index
    %c0_24 = arith.constant 0 : index
    %35 = vector.load %arg3[%c0_23, %c0_24] : memref<288x64xbf16, #tpu.memory_space<vmem>>, vector<288x64xbf16>
    %cst_25 = arith.constant dense<0.000000e+00> : vector<64x64xf32>
    %36 = tpu.matmul %34, %35, %cst_25 {dimension_numbers = #tpu.dot_dimension_numbers<[1], [0], [0], [1], [0, 0, 1, 1], [], []>} : vector<64x288xbf16>, vector<288x64xbf16>, vector<64x64xf32> -> vector<64x64xf32>
    %c0_26 = arith.constant 0 : index
    %c0_27 = arith.constant 0 : index
    %37 = vector.load %arg4[%c0_26, %c0_27] : memref<1x64xf32, #tpu.memory_space<vmem>>, vector<1x64xf32>
    %38 = vector.broadcast %37 : vector<1x64xf32> to vector<64x64xf32>
    %39 = arith.addf %36, %38 : vector<64x64xf32>
    %40 = arith.truncf %39 : vector<64x64xf32> to vector<64x64xbf16>
    %41 = vector.extract_strided_slice %40 {offsets = [0, 0], sizes = [64, 16], strides = [1, 1]} : vector<64x64xbf16> to vector<64x16xbf16>
    %42 = vector.shape_cast %41 : vector<64x16xbf16> to vector<8x1x8x1x16xbf16>
    %c0_28 = arith.constant 0 : index
    %c0_29 = arith.constant 0 : index
    %c0_30 = arith.constant 0 : index
    %c0_31 = arith.constant 0 : index
    %c0_32 = arith.constant 0 : index
    %43 = vector.load %arg11[%c0_28, %c0_29, %c0_30, %c0_31, %c0_32] : memref<8x2x8x2x16xbf16, #tpu.memory_space<vmem>>, vector<8x1x8x1x16xbf16>
    tpu.vector_store %arg11[%c0_28, %c0_29, %c0_30, %c0_31, %c0_32], %42 {strides = array<i32>} : memref<8x2x8x2x16xbf16, #tpu.memory_space<vmem>>, vector<8x1x8x1x16xbf16>,
    %44 = vector.extract_strided_slice %40 {offsets = [0, 16], sizes = [64, 16], strides = [1, 1]} : vector<64x64xbf16> to vector<64x16xbf16>
    %45 = vector.shape_cast %44 : vector<64x16xbf16> to vector<8x1x8x1x16xbf16>
    %c0_33 = arith.constant 0 : index
    %c0_34 = arith.constant 0 : index
    %c0_35 = arith.constant 0 : index
    %c1_36 = arith.constant 1 : index
    %c0_37 = arith.constant 0 : index
    %46 = vector.load %arg11[%c0_33, %c0_34, %c0_35, %c1_36, %c0_37] : memref<8x2x8x2x16xbf16, #tpu.memory_space<vmem>>, vector<8x1x8x1x16xbf16>
    tpu.vector_store %arg11[%c0_33, %c0_34, %c0_35, %c1_36, %c0_37], %45 {strides = array<i32>} : memref<8x2x8x2x16xbf16, #tpu.memory_space<vmem>>, vector<8x1x8x1x16xbf16>,
    %47 = vector.extract_strided_slice %40 {offsets = [0, 32], sizes = [64, 16], strides = [1, 1]} : vector<64x64xbf16> to vector<64x16xbf16>
    %48 = vector.shape_cast %47 : vector<64x16xbf16> to vector<8x1x8x1x16xbf16>
    %c0_38 = arith.constant 0 : index
    %c1_39 = arith.constant 1 : index
    %c0_40 = arith.constant 0 : index
    %c0_41 = arith.constant 0 : index
    %c0_42 = arith.constant 0 : index
    %49 = vector.load %arg11[%c0_38, %c1_39, %c0_40, %c0_41, %c0_42] : memref<8x2x8x2x16xbf16, #tpu.memory_space<vmem>>, vector<8x1x8x1x16xbf16>
    tpu.vector_store %arg11[%c0_38, %c1_39, %c0_40, %c0_41, %c0_42], %48 {strides = array<i32>} : memref<8x2x8x2x16xbf16, #tpu.memory_space<vmem>>, vector<8x1x8x1x16xbf16>,
    %50 = vector.extract_strided_slice %40 {offsets = [0, 48], sizes = [64, 16], strides = [1, 1]} : vector<64x64xbf16> to vector<64x16xbf16>
    %51 = vector.shape_cast %50 : vector<64x16xbf16> to vector<8x1x8x1x16xbf16>
    %c0_43 = arith.constant 0 : index
    %c1_44 = arith.constant 1 : index
    %c0_45 = arith.constant 0 : index
    %c1_46 = arith.constant 1 : index
    %c0_47 = arith.constant 0 : index
    %52 = vector.load %arg11[%c0_43, %c1_44, %c0_45, %c1_46, %c0_47] : memref<8x2x8x2x16xbf16, #tpu.memory_space<vmem>>, vector<8x1x8x1x16xbf16>
    tpu.vector_store %arg11[%c0_43, %c1_44, %c0_45, %c1_46, %c0_47], %51 {strides = array<i32>} : memref<8x2x8x2x16xbf16, #tpu.memory_space<vmem>>, vector<8x1x8x1x16xbf16>,
    %c0_48 = arith.constant 0 : index
    %c0_49 = arith.constant 0 : index
    %c0_50 = arith.constant 0 : index
    %c0_51 = arith.constant 0 : index
    %c0_52 = arith.constant 0 : index
    %53 = vector.load %arg11[%c0_48, %c0_49, %c0_50, %c0_51, %c0_52] : memref<8x2x8x2x16xbf16, #tpu.memory_space<vmem>>, vector<8x2x8x2x16xbf16>
    %54 = vector.shape_cast %53 : vector<8x2x8x2x16xbf16> to vector<16x16x16xbf16>
    %cst_53 = arith.constant 0.000000e+00 : bf16
    %55 = vector.broadcast %cst_53 : bf16 to vector<18x18x32xbf16>
    %c0_54 = arith.constant 0 : index
    %c0_55 = arith.constant 0 : index
    %c0_56 = arith.constant 0 : index
    %56 = vector.load %arg12[%c0_54, %c0_55, %c0_56] : memref<18x18x32xbf16, #tpu.memory_space<vmem>>, vector<18x18x32xbf16>
    tpu.vector_store %arg12[%c0_54, %c0_55, %c0_56], %55 {strides = array<i32>} : memref<18x18x32xbf16, #tpu.memory_space<vmem>>, vector<18x18x32xbf16>,
    %c0_57 = arith.constant 0 : index
    %c0_58 = arith.constant 0 : index
    %c0_59 = arith.constant 0 : index
    %c0_60 = arith.constant 0 : index
    %57 = vector.load %arg2[%c0_57, %c0_58, %c0_59, %c0_60] : memref<1x16x16x16xf32, #tpu.memory_space<vmem>>, vector<1x16x16x16xf32>
    %58 = vector.shape_cast %57 : vector<1x16x16x16xf32> to vector<16x16x16xf32>
    %59 = arith.truncf %58 : vector<16x16x16xf32> to vector<16x16x16xbf16>
    %c1_61 = arith.constant 1 : index
    %c1_62 = arith.constant 1 : index
    %c0_63 = arith.constant 0 : index
    %60 = vector.load %arg12[%c1_61, %c1_62, %c0_63] : memref<18x18x32xbf16, #tpu.memory_space<vmem>>, vector<16x16x16xbf16>
    tpu.vector_store %arg12[%c1_61, %c1_62, %c0_63], %59 {strides = array<i32>} : memref<18x18x32xbf16, #tpu.memory_space<vmem>>, vector<16x16x16xbf16>,
    %c1_64 = arith.constant 1 : index
    %c1_65 = arith.constant 1 : index
    %c16 = arith.constant 16 : index
    %61 = vector.load %arg12[%c1_64, %c1_65, %c16] : memref<18x18x32xbf16, #tpu.memory_space<vmem>>, vector<16x16x16xbf16>
    tpu.vector_store %arg12[%c1_64, %c1_65, %c16], %54 {strides = array<i32>} : memref<18x18x32xbf16, #tpu.memory_space<vmem>>, vector<16x16x16xbf16>,
    %c0_66 = arith.constant 0 : index
    %c0_67 = arith.constant 0 : index
    %c0_68 = arith.constant 0 : index
    %62 = vector.load %arg12[%c0_66, %c0_67, %c0_68] : memref<18x18x32xbf16, #tpu.memory_space<vmem>>, vector<18x18x32xbf16>
    %63 = vector.extract_strided_slice %62 {offsets = [0, 0, 0], sizes = [16, 16, 32], strides = [1, 1, 1]} : vector<18x18x32xbf16> to vector<16x16x32xbf16>
    %64 = vector.shape_cast %63 : vector<16x16x32xbf16> to vector<256x32xbf16>
    %c0_69 = arith.constant 0 : index
    %c0_70 = arith.constant 0 : index
    %65 = vector.load %arg14[%c0_69, %c0_70] : memref<256x288xbf16, #tpu.memory_space<vmem>>, vector<256x32xbf16>
    tpu.vector_store %arg14[%c0_69, %c0_70], %64 {strides = array<i32>} : memref<256x288xbf16, #tpu.memory_space<vmem>>, vector<256x32xbf16>,
    %66 = vector.extract_strided_slice %62 {offsets = [0, 1, 0], sizes = [16, 16, 32], strides = [1, 1, 1]} : vector<18x18x32xbf16> to vector<16x16x32xbf16>
    %67 = vector.shape_cast %66 : vector<16x16x32xbf16> to vector<256x32xbf16>
    %c0_71 = arith.constant 0 : index
    %c32_72 = arith.constant 32 : index
    %68 = vector.load %arg14[%c0_71, %c32_72] : memref<256x288xbf16, #tpu.memory_space<vmem>>, vector<256x32xbf16>
    tpu.vector_store %arg14[%c0_71, %c32_72], %67 {strides = array<i32>} : memref<256x288xbf16, #tpu.memory_space<vmem>>, vector<256x32xbf16>,
    %69 = vector.extract_strided_slice %62 {offsets = [0, 2, 0], sizes = [16, 16, 32], strides = [1, 1, 1]} : vector<18x18x32xbf16> to vector<16x16x32xbf16>
    %70 = vector.shape_cast %69 : vector<16x16x32xbf16> to vector<256x32xbf16>
    %c0_73 = arith.constant 0 : index
    %c64_74 = arith.constant 64 : index
    %71 = vector.load %arg14[%c0_73, %c64_74] : memref<256x288xbf16, #tpu.memory_space<vmem>>, vector<256x32xbf16>
    tpu.vector_store %arg14[%c0_73, %c64_74], %70 {strides = array<i32>} : memref<256x288xbf16, #tpu.memory_space<vmem>>, vector<256x32xbf16>,
    %72 = vector.extract_strided_slice %62 {offsets = [1, 0, 0], sizes = [16, 16, 32], strides = [1, 1, 1]} : vector<18x18x32xbf16> to vector<16x16x32xbf16>
    %73 = vector.shape_cast %72 : vector<16x16x32xbf16> to vector<256x32xbf16>
    %c0_75 = arith.constant 0 : index
    %c96_76 = arith.constant 96 : index
    %74 = vector.load %arg14[%c0_75, %c96_76] : memref<256x288xbf16, #tpu.memory_space<vmem>>, vector<256x32xbf16>
    tpu.vector_store %arg14[%c0_75, %c96_76], %73 {strides = array<i32>} : memref<256x288xbf16, #tpu.memory_space<vmem>>, vector<256x32xbf16>,
    %75 = vector.extract_strided_slice %62 {offsets = [1, 1, 0], sizes = [16, 16, 32], strides = [1, 1, 1]} : vector<18x18x32xbf16> to vector<16x16x32xbf16>
    %76 = vector.shape_cast %75 : vector<16x16x32xbf16> to vector<256x32xbf16>
    %c0_77 = arith.constant 0 : index
    %c128_78 = arith.constant 128 : index
    %77 = vector.load %arg14[%c0_77, %c128_78] : memref<256x288xbf16, #tpu.memory_space<vmem>>, vector<256x32xbf16>
    tpu.vector_store %arg14[%c0_77, %c128_78], %76 {strides = array<i32>} : memref<256x288xbf16, #tpu.memory_space<vmem>>, vector<256x32xbf16>,
    %78 = vector.extract_strided_slice %62 {offsets = [1, 2, 0], sizes = [16, 16, 32], strides = [1, 1, 1]} : vector<18x18x32xbf16> to vector<16x16x32xbf16>
    %79 = vector.shape_cast %78 : vector<16x16x32xbf16> to vector<256x32xbf16>
    %c0_79 = arith.constant 0 : index
    %c160_80 = arith.constant 160 : index
    %80 = vector.load %arg14[%c0_79, %c160_80] : memref<256x288xbf16, #tpu.memory_space<vmem>>, vector<256x32xbf16>
    tpu.vector_store %arg14[%c0_79, %c160_80], %79 {strides = array<i32>} : memref<256x288xbf16, #tpu.memory_space<vmem>>, vector<256x32xbf16>,
    %81 = vector.extract_strided_slice %62 {offsets = [2, 0, 0], sizes = [16, 16, 32], strides = [1, 1, 1]} : vector<18x18x32xbf16> to vector<16x16x32xbf16>
    %82 = vector.shape_cast %81 : vector<16x16x32xbf16> to vector<256x32xbf16>
    %c0_81 = arith.constant 0 : index
    %c192_82 = arith.constant 192 : index
    %83 = vector.load %arg14[%c0_81, %c192_82] : memref<256x288xbf16, #tpu.memory_space<vmem>>, vector<256x32xbf16>
    tpu.vector_store %arg14[%c0_81, %c192_82], %82 {strides = array<i32>} : memref<256x288xbf16, #tpu.memory_space<vmem>>, vector<256x32xbf16>,
    %84 = vector.extract_strided_slice %62 {offsets = [2, 1, 0], sizes = [16, 16, 32], strides = [1, 1, 1]} : vector<18x18x32xbf16> to vector<16x16x32xbf16>
    %85 = vector.shape_cast %84 : vector<16x16x32xbf16> to vector<256x32xbf16>
    %c0_83 = arith.constant 0 : index
    %c224_84 = arith.constant 224 : index
    %86 = vector.load %arg14[%c0_83, %c224_84] : memref<256x288xbf16, #tpu.memory_space<vmem>>, vector<256x32xbf16>
    tpu.vector_store %arg14[%c0_83, %c224_84], %85 {strides = array<i32>} : memref<256x288xbf16, #tpu.memory_space<vmem>>, vector<256x32xbf16>,
    %87 = vector.extract_strided_slice %62 {offsets = [2, 2, 0], sizes = [16, 16, 32], strides = [1, 1, 1]} : vector<18x18x32xbf16> to vector<16x16x32xbf16>
    %88 = vector.shape_cast %87 : vector<16x16x32xbf16> to vector<256x32xbf16>
    %c0_85 = arith.constant 0 : index
    %c256_86 = arith.constant 256 : index
    %89 = vector.load %arg14[%c0_85, %c256_86] : memref<256x288xbf16, #tpu.memory_space<vmem>>, vector<256x32xbf16>
    tpu.vector_store %arg14[%c0_85, %c256_86], %88 {strides = array<i32>} : memref<256x288xbf16, #tpu.memory_space<vmem>>, vector<256x32xbf16>,
    %c0_87 = arith.constant 0 : index
    %c0_88 = arith.constant 0 : index
    %90 = vector.load %arg14[%c0_87, %c0_88] : memref<256x288xbf16, #tpu.memory_space<vmem>>, vector<256x288xbf16>
    %c0_89 = arith.constant 0 : index
    %c0_90 = arith.constant 0 : index
    %91 = vector.load %arg5[%c0_89, %c0_90] : memref<288x16xbf16, #tpu.memory_space<vmem>>, vector<288x16xbf16>
    %cst_91 = arith.constant dense<0.000000e+00> : vector<256x16xf32>
    %92 = tpu.matmul %90, %91, %cst_91 {dimension_numbers = #tpu.dot_dimension_numbers<[1], [0], [0], [1], [0, 0, 1, 1], [], []>} : vector<256x288xbf16>, vector<288x16xbf16>, vector<256x16xf32> -> vector<256x16xf32>
    %c0_92 = arith.constant 0 : index
    %c0_93 = arith.constant 0 : index
    %93 = vector.load %arg6[%c0_92, %c0_93] : memref<1x16xf32, #tpu.memory_space<vmem>>, vector<1x16xf32>
    %94 = vector.broadcast %93 : vector<1x16xf32> to vector<256x16xf32>
    %95 = arith.addf %92, %94 : vector<256x16xf32>
    %cst_94 = arith.constant 0.000000e+00 : f32
    %96 = vector.broadcast %cst_94 : f32 to vector<256x16xf32>
    %97 = arith.cmpf ogt, %95, %96 : vector<256x16xf32>
    %cst_95 = arith.constant 1.000000e-01 : f32
    %98 = vector.broadcast %cst_95 : f32 to vector<256x16xf32>
    %99 = arith.mulf %98, %95 : vector<256x16xf32>
    %100 = arith.select %97, %95, %99 : vector<256x16xi1>, vector<256x16xf32>
    %cst_96 = arith.constant 0.000000e+00 : bf16
    %101 = vector.broadcast %cst_96 : bf16 to vector<18x18x16xbf16>
    %c0_97 = arith.constant 0 : index
    %c0_98 = arith.constant 0 : index
    %c0_99 = arith.constant 0 : index
    %102 = vector.load %arg13[%c0_97, %c0_98, %c0_99] : memref<18x18x16xbf16, #tpu.memory_space<vmem>>, vector<18x18x16xbf16>
    tpu.vector_store %arg13[%c0_97, %c0_98, %c0_99], %101 {strides = array<i32>} : memref<18x18x16xbf16, #tpu.memory_space<vmem>>, vector<18x18x16xbf16>,
    %103 = vector.shape_cast %100 : vector<256x16xf32> to vector<16x16x16xf32>
    %104 = arith.truncf %103 : vector<16x16x16xf32> to vector<16x16x16xbf16>
    %c1_100 = arith.constant 1 : index
    %c1_101 = arith.constant 1 : index
    %c0_102 = arith.constant 0 : index
    %105 = vector.load %arg13[%c1_100, %c1_101, %c0_102] : memref<18x18x16xbf16, #tpu.memory_space<vmem>>, vector<16x16x16xbf16>
    tpu.vector_store %arg13[%c1_100, %c1_101, %c0_102], %104 {strides = array<i32>} : memref<18x18x16xbf16, #tpu.memory_space<vmem>>, vector<16x16x16xbf16>,
    %c0_103 = arith.constant 0 : index
    %c0_104 = arith.constant 0 : index
    %c0_105 = arith.constant 0 : index
    %106 = vector.load %arg13[%c0_103, %c0_104, %c0_105] : memref<18x18x16xbf16, #tpu.memory_space<vmem>>, vector<18x18x16xbf16>
    %107 = vector.extract_strided_slice %106 {offsets = [0, 0, 0], sizes = [16, 16, 16], strides = [1, 1, 1]} : vector<18x18x16xbf16> to vector<16x16x16xbf16>
    %108 = vector.shape_cast %107 : vector<16x16x16xbf16> to vector<256x16xbf16>
    %c0_106 = arith.constant 0 : index
    %c0_107 = arith.constant 0 : index
    %109 = vector.load %arg14[%c0_106, %c0_107] : memref<256x288xbf16, #tpu.memory_space<vmem>>, vector<256x16xbf16>
    tpu.vector_store %arg14[%c0_106, %c0_107], %108 {strides = array<i32>} : memref<256x288xbf16, #tpu.memory_space<vmem>>, vector<256x16xbf16>,
    %110 = vector.extract_strided_slice %106 {offsets = [0, 1, 0], sizes = [16, 16, 16], strides = [1, 1, 1]} : vector<18x18x16xbf16> to vector<16x16x16xbf16>
    %111 = vector.shape_cast %110 : vector<16x16x16xbf16> to vector<256x16xbf16>
    %c0_108 = arith.constant 0 : index
    %c16_109 = arith.constant 16 : index
    %112 = vector.load %arg14[%c0_108, %c16_109] : memref<256x288xbf16, #tpu.memory_space<vmem>>, vector<256x16xbf16>
    tpu.vector_store %arg14[%c0_108, %c16_109], %111 {strides = array<i32>} : memref<256x288xbf16, #tpu.memory_space<vmem>>, vector<256x16xbf16>,
    %113 = vector.extract_strided_slice %106 {offsets = [0, 2, 0], sizes = [16, 16, 16], strides = [1, 1, 1]} : vector<18x18x16xbf16> to vector<16x16x16xbf16>
    %114 = vector.shape_cast %113 : vector<16x16x16xbf16> to vector<256x16xbf16>
    %c0_110 = arith.constant 0 : index
    %c32_111 = arith.constant 32 : index
    %115 = vector.load %arg14[%c0_110, %c32_111] : memref<256x288xbf16, #tpu.memory_space<vmem>>, vector<256x16xbf16>
    tpu.vector_store %arg14[%c0_110, %c32_111], %114 {strides = array<i32>} : memref<256x288xbf16, #tpu.memory_space<vmem>>, vector<256x16xbf16>,
    %116 = vector.extract_strided_slice %106 {offsets = [1, 0, 0], sizes = [16, 16, 16], strides = [1, 1, 1]} : vector<18x18x16xbf16> to vector<16x16x16xbf16>
    %117 = vector.shape_cast %116 : vector<16x16x16xbf16> to vector<256x16xbf16>
    %c0_112 = arith.constant 0 : index
    %c48 = arith.constant 48 : index
    %118 = vector.load %arg14[%c0_112, %c48] : memref<256x288xbf16, #tpu.memory_space<vmem>>, vector<256x16xbf16>
    tpu.vector_store %arg14[%c0_112, %c48], %117 {strides = array<i32>} : memref<256x288xbf16, #tpu.memory_space<vmem>>, vector<256x16xbf16>,
    %119 = vector.extract_strided_slice %106 {offsets = [1, 1, 0], sizes = [16, 16, 16], strides = [1, 1, 1]} : vector<18x18x16xbf16> to vector<16x16x16xbf16>
    %120 = vector.shape_cast %119 : vector<16x16x16xbf16> to vector<256x16xbf16>
    %c0_113 = arith.constant 0 : index
    %c64_114 = arith.constant 64 : index
    %121 = vector.load %arg14[%c0_113, %c64_114] : memref<256x288xbf16, #tpu.memory_space<vmem>>, vector<256x16xbf16>
    tpu.vector_store %arg14[%c0_113, %c64_114], %120 {strides = array<i32>} : memref<256x288xbf16, #tpu.memory_space<vmem>>, vector<256x16xbf16>,
    %122 = vector.extract_strided_slice %106 {offsets = [1, 2, 0], sizes = [16, 16, 16], strides = [1, 1, 1]} : vector<18x18x16xbf16> to vector<16x16x16xbf16>
    %123 = vector.shape_cast %122 : vector<16x16x16xbf16> to vector<256x16xbf16>
    %c0_115 = arith.constant 0 : index
    %c80 = arith.constant 80 : index
    %124 = vector.load %arg14[%c0_115, %c80] : memref<256x288xbf16, #tpu.memory_space<vmem>>, vector<256x16xbf16>
    tpu.vector_store %arg14[%c0_115, %c80], %123 {strides = array<i32>} : memref<256x288xbf16, #tpu.memory_space<vmem>>, vector<256x16xbf16>,
    %125 = vector.extract_strided_slice %106 {offsets = [2, 0, 0], sizes = [16, 16, 16], strides = [1, 1, 1]} : vector<18x18x16xbf16> to vector<16x16x16xbf16>
    %126 = vector.shape_cast %125 : vector<16x16x16xbf16> to vector<256x16xbf16>
    %c0_116 = arith.constant 0 : index
    %c96_117 = arith.constant 96 : index
    %127 = vector.load %arg14[%c0_116, %c96_117] : memref<256x288xbf16, #tpu.memory_space<vmem>>, vector<256x16xbf16>
    tpu.vector_store %arg14[%c0_116, %c96_117], %126 {strides = array<i32>} : memref<256x288xbf16, #tpu.memory_space<vmem>>, vector<256x16xbf16>,
    %128 = vector.extract_strided_slice %106 {offsets = [2, 1, 0], sizes = [16, 16, 16], strides = [1, 1, 1]} : vector<18x18x16xbf16> to vector<16x16x16xbf16>
    %129 = vector.shape_cast %128 : vector<16x16x16xbf16> to vector<256x16xbf16>
    %c0_118 = arith.constant 0 : index
    %c112 = arith.constant 112 : index
    %130 = vector.load %arg14[%c0_118, %c112] : memref<256x288xbf16, #tpu.memory_space<vmem>>, vector<256x16xbf16>
    tpu.vector_store %arg14[%c0_118, %c112], %129 {strides = array<i32>} : memref<256x288xbf16, #tpu.memory_space<vmem>>, vector<256x16xbf16>,
    %131 = vector.extract_strided_slice %106 {offsets = [2, 2, 0], sizes = [16, 16, 16], strides = [1, 1, 1]} : vector<18x18x16xbf16> to vector<16x16x16xbf16>
    %132 = vector.shape_cast %131 : vector<16x16x16xbf16> to vector<256x16xbf16>
    %c0_119 = arith.constant 0 : index
    %c128_120 = arith.constant 128 : index
    %133 = vector.load %arg14[%c0_119, %c128_120] : memref<256x288xbf16, #tpu.memory_space<vmem>>, vector<256x16xbf16>
    tpu.vector_store %arg14[%c0_119, %c128_120], %132 {strides = array<i32>} : memref<256x288xbf16, #tpu.memory_space<vmem>>, vector<256x16xbf16>,
    %c0_121 = arith.constant 0 : index
    %c0_122 = arith.constant 0 : index
    %134 = vector.load %arg14[%c0_121, %c0_122] : memref<256x288xbf16, #tpu.memory_space<vmem>>, vector<256x144xbf16>
    %c0_123 = arith.constant 0 : index
    %c0_124 = arith.constant 0 : index
    %135 = vector.load %arg7[%c0_123, %c0_124] : memref<144x16xbf16, #tpu.memory_space<vmem>>, vector<144x16xbf16>
    %cst_125 = arith.constant dense<0.000000e+00> : vector<256x16xf32>
    %136 = tpu.matmul %134, %135, %cst_125 {dimension_numbers = #tpu.dot_dimension_numbers<[1], [0], [0], [1], [0, 0, 1, 1], [], []>} : vector<256x144xbf16>, vector<144x16xbf16>, vector<256x16xf32> -> vector<256x16xf32>
    %c0_126 = arith.constant 0 : index
    %c0_127 = arith.constant 0 : index
    %137 = vector.load %arg8[%c0_126, %c0_127] : memref<1x16xf32, #tpu.memory_space<vmem>>, vector<1x16xf32>
    %138 = vector.broadcast %137 : vector<1x16xf32> to vector<256x16xf32>
    %139 = arith.addf %136, %138 : vector<256x16xf32>
    %cst_128 = arith.constant 0.000000e+00 : f32
    %140 = vector.broadcast %cst_128 : f32 to vector<256x16xf32>
    %141 = arith.cmpf ogt, %139, %140 : vector<256x16xf32>
    %cst_129 = arith.constant 1.000000e-01 : f32
    %142 = vector.broadcast %cst_129 : f32 to vector<256x16xf32>
    %143 = arith.mulf %142, %139 : vector<256x16xf32>
    %144 = arith.select %141, %139, %143 : vector<256x16xi1>, vector<256x16xf32>
    %145 = vector.shape_cast %144 : vector<256x16xf32> to vector<16x16x16xf32>
    %c0_130 = arith.constant 0 : index
    %c0_131 = arith.constant 0 : index
    %c0_132 = arith.constant 0 : index
    %c0_133 = arith.constant 0 : index
    %146 = vector.load %arg9[%c0_130, %c0_131, %c0_132, %c0_133] : memref<1x16x16x16xf32, #tpu.memory_space<vmem>>, vector<1x16x16x16xf32>
    %147 = vector.shape_cast %146 : vector<1x16x16x16xf32> to vector<16x16x16xf32>
    %148 = vector.shape_cast %145 : vector<16x16x16xf32> to vector<1x16x16x16xf32>
    tpu.vector_store %arg9[%c0_130, %c0_131, %c0_132, %c0_133], %148 {strides = array<i32>} : memref<1x16x16x16xf32, #tpu.memory_space<vmem>>, vector<1x16x16x16xf32>,
    return
  }
  func.func @transform_0(%arg0: i32) -> (i32, i32, i32, i32) {
    %c0_i32 = arith.constant 0 : i32
    %c0_i32_0 = arith.constant 0 : i32
    %c0_i32_1 = arith.constant 0 : i32
    %c0_i32_2 = arith.constant 0 : i32
    return %arg0, %c0_i32, %c0_i32_0, %c0_i32_1 : i32, i32, i32, i32
  }
  func.func @transform_1(%arg0: i32) -> (i32, i32, i32, i32) {
    %c0_i32 = arith.constant 0 : i32
    %c0_i32_0 = arith.constant 0 : i32
    %c0_i32_1 = arith.constant 0 : i32
    %c0_i32_2 = arith.constant 0 : i32
    return %arg0, %c0_i32, %c0_i32_0, %c0_i32_1 : i32, i32, i32, i32
  }
  func.func @transform_2(%arg0: i32) -> (i32, i32) {
    %c0_i32 = arith.constant 0 : i32
    %c0_i32_0 = arith.constant 0 : i32
    %c0_i32_1 = arith.constant 0 : i32
    return %c0_i32, %c0_i32_0 : i32, i32
  }
  func.func @transform_3(%arg0: i32) -> (i32, i32) {
    %c0_i32 = arith.constant 0 : i32
    %c0_i32_0 = arith.constant 0 : i32
    %c0_i32_1 = arith.constant 0 : i32
    return %c0_i32, %c0_i32_0 : i32, i32
  }
  func.func @transform_4(%arg0: i32) -> (i32, i32) {
    %c0_i32 = arith.constant 0 : i32
    %c0_i32_0 = arith.constant 0 : i32
    %c0_i32_1 = arith.constant 0 : i32
    return %c0_i32, %c0_i32_0 : i32, i32
  }
  func.func @transform_5(%arg0: i32) -> (i32, i32) {
    %c0_i32 = arith.constant 0 : i32
    %c0_i32_0 = arith.constant 0 : i32
    %c0_i32_1 = arith.constant 0 : i32
    return %c0_i32, %c0_i32_0 : i32, i32
  }
  func.func @transform_6(%arg0: i32) -> (i32, i32) {
    %c0_i32 = arith.constant 0 : i32
    %c0_i32_0 = arith.constant 0 : i32
    %c0_i32_1 = arith.constant 0 : i32
    return %c0_i32, %c0_i32_0 : i32, i32
  }
  func.func @transform_7(%arg0: i32) -> (i32, i32) {
    %c0_i32 = arith.constant 0 : i32
    %c0_i32_0 = arith.constant 0 : i32
    %c0_i32_1 = arith.constant 0 : i32
    return %c0_i32, %c0_i32_0 : i32, i32
  }
  func.func @transform_8(%arg0: i32) -> (i32, i32, i32, i32) {
    %c0_i32 = arith.constant 0 : i32
    %c0_i32_0 = arith.constant 0 : i32
    %c0_i32_1 = arith.constant 0 : i32
    %c0_i32_2 = arith.constant 0 : i32
    return %arg0, %c0_i32, %c0_i32_0, %c0_i32_1 : i32, i32, i32, i32
  }
}

</mosaic_0001>

<llo_original>
// kernel: up_forward.1
$region0: #{up_forward.1}
  #allocation0 [shape = 'u32[]', space=smem, size = 0x4, offset = 0x4, fixed_abs, tag = 'smem constant byte address 0x4 - core index']
  #allocation1 [shape = 'u32[144,128]{1,0:T(1,128)}', space=vmem, size = 0x12000, scoped, tag = 'internal scratch']
  #allocation2 [shape = 'bf16[10,10,32]{2,1,0:T(8,128)(2,1)}', space=vmem, size = 0xa000, scoped, tag = 'scratch operand']
  #allocation3 [shape = 'bf16[8,2,8,2,16]{4,3,2,1,0:T(2,128)(2,1)}', space=vmem, size = 0x10000, scoped, tag = 'scratch operand']
  #allocation4 [shape = 'bf16[18,18,32]{2,1,0:T(8,128)(2,1)}', space=vmem, size = 0x1b000, scoped, tag = 'scratch operand']
  #allocation5 [shape = 'bf16[18,18,16]{2,1,0:T(8,128)(2,1)}', space=vmem, size = 0x1b000, scoped, tag = 'scratch operand']
  #allocation6 [shape = 'bf16[256,288]{1,0:T(16,128)(2,1)}', space=vmem, size = 0x30000, scoped, tag = 'scratch operand']
  %s0 = inlined_call_operand.vmem [shape: f32[2,8,8,32], index: 0, kind: input, shape index: {}]
  %s1 = inlined_call_operand.vmem [shape: f32[2,16,16,16], index: 1, kind: input, shape index: {}]
  %s2 = inlined_call_operand.vmem [shape: bf16[288,64], index: 2, kind: input, shape index: {}]
  %s3 = inlined_call_operand.vmem [shape: f32[1,64], index: 3, kind: input, shape index: {}]
  %s4 = inlined_call_operand.vmem [shape: bf16[288,16], index: 4, kind: input, shape index: {}]
  %s5 = inlined_call_operand.vmem [shape: f32[1,16], index: 5, kind: input, shape index: {}]
  %s6 = inlined_call_operand.vmem [shape: bf16[144,16], index: 6, kind: input, shape index: {}]
  %s7 = inlined_call_operand.vmem [shape: f32[1,16], index: 7, kind: input, shape index: {}]
  %s8 = inlined_call_operand.vmem [shape: f32[2,16,16,16], index: 8, kind: output, shape index: {}]
  %s9 = sld [smem:[#allocation0]]
  $region65: #{up_forward.1} parent=0
    _
  %s11 = ssub.s32 1, %s9
  %s12 = scalar_select 0, %s11, %s9
  loop: start=0, step=1, limit=4
  $region2: #{up_forward.1} parent=0 // loop_pre_header
    _
  $region3: #{up_forward.1} parent=0 // loop_header
    %s14 = sphi 0, %s18
    %p15 = scmp.ge.s32.totalorder %s14, 4
    %s24 = sphi 0, %s26
    %s27 = sphi 0, %s24
    %s28 = sphi 0, %s27
    %s44 = sphi 0, %s28
    %s50 = sphi 0, %s52
    %s53 = sphi 0, %s50
    %s54 = sphi 0, %s53
    %s70 = sphi 0, %s54
    %s74 = sphi 0, %s74
    %s76 = sphi 0, %s74
    %s77 = sphi 0, %s76
    %s91 = sphi 0, %s77
    %s95 = sphi 0, %s95
    %s97 = sphi 0, %s95
    %s98 = sphi 0, %s97
    %s112 = sphi 0, %s98
    %s116 = sphi 0, %s116
    %s118 = sphi 0, %s116
    %s119 = sphi 0, %s118
    %s133 = sphi 0, %s119
    %s137 = sphi 0, %s137
    %s139 = sphi 0, %s137
    %s140 = sphi 0, %s139
    %s154 = sphi 0, %s140
    %s158 = sphi 0, %s158
    %s160 = sphi 0, %s158
    %s161 = sphi 0, %s160
    %s175 = sphi 0, %s161
    %s179 = sphi 0, %s179
    %s181 = sphi 0, %s179
    %s182 = sphi 0, %s181
    %s196 = sphi 0, %s182
    %s202 = sphi 0, %s204
    %s205 = sphi 0, %s202
    %s206 = sphi 0, %s205
    %s222 = sphi 0, %s206
  $region4: #{up_forward.1} parent=0 // loop_header_branch
    %17 = sbr.rel (%p15) target = $region8
  $region5: #{up_forward.1} parent=0 // loop_body
    %s19 = ssub.s32 %s14, 1
    %s20 = ssub.s32 %s14, 2
    %s21 = sadd.s32 %s14, 1
    %s22 = ssub.s32 %s14, %s21
    %p23 = scmp.eq.s32.totalorder %s22, 0
    %s25 = sadd.s32 %s24, 1
    %s26 = scalar_select %p23, %s24, %s25
    %p29 = pneg %p23
    %p30 = scmp.eq.s32.totalorder %s14, 1
    %p31 = por %p29, %p30
    %p32 = scmp.ne.s32.totalorder %s24, %s27
    %p33 = scmp.eq.s32.totalorder %s14, 0
    %p34 = por %p32, %p33
    %p35 = scmp.ne.s32.totalorder %s24, %s27
    %p36 = scmp.eq.s32.totalorder %s19, 1
    %p37 = por %p35, %p36
    %p38 = scmp.ne.s32.totalorder %s27, %s28
    %p39 = scmp.eq.s32.totalorder %s19, 0
    %p40 = por %p38, %p39
    %p41 = scmp.ne.s32.totalorder %s27, %s28
    %p42 = scmp.eq.s32.totalorder %s20, 1
    %p43 = por %p41, %p42
    %p45 = scmp.ne.s32.totalorder %s28, %s44
    %p46 = scmp.eq.s32.totalorder %s20, 0
    %p47 = por %p45, %p46
    %s48 = ssub.s32 %s14, %s21
    %p49 = scmp.eq.s32.totalorder %s48, 0
    %s51 = sadd.s32 %s50, 1
    %s52 = scalar_select %p49, %s50, %s51
    %p55 = pneg %p49
    %p56 = scmp.eq.s32.totalorder %s14, 1
    %p57 = por %p55, %p56
    %p58 = scmp.ne.s32.totalorder %s50, %s53
    %p59 = scmp.eq.s32.totalorder %s14, 0
    %p60 = por %p58, %p59
    %p61 = scmp.ne.s32.totalorder %s50, %s53
    %p62 = scmp.eq.s32.totalorder %s19, 1
    %p63 = por %p61, %p62
    %p64 = scmp.ne.s32.totalorder %s53, %s54
    %p65 = scmp.eq.s32.totalorder %s19, 0
    %p66 = por %p64, %p65
    %p67 = scmp.ne.s32.totalorder %s53, %s54
    %p68 = scmp.eq.s32.totalorder %s20, 1
    %p69 = por %p67, %p68
    %p71 = scmp.ne.s32.totalorder %s54, %s70
    %p72 = scmp.eq.s32.totalorder %s20, 0
    %p73 = por %p71, %p72
    %s75 = sadd.s32 %s74, 1
    %p78 = scmp.eq.s32.totalorder %s14, 1
    %p79 = scmp.ne.s32.totalorder %s74, %s76
    %p80 = scmp.eq.s32.totalorder %s14, 0
    %p81 = por %p79, %p80
    %p82 = scmp.ne.s32.totalorder %s74, %s76
    %p83 = scmp.eq.s32.totalorder %s19, 1
    %p84 = por %p82, %p83
    %p85 = scmp.ne.s32.totalorder %s76, %s77
    %p86 = scmp.eq.s32.totalorder %s19, 0
    %p87 = por %p85, %p86
    %p88 = scmp.ne.s32.totalorder %s76, %s77
    %p89 = scmp.eq.s32.totalorder %s20, 1
    %p90 = por %p88, %p89
    %p92 = scmp.ne.s32.totalorder %s77, %s91
    %p93 = scmp.eq.s32.totalorder %s20, 0
    %p94 = por %p92, %p93
    %s96 = sadd.s32 %s95, 1
    %p99 = scmp.eq.s32.totalorder %s14, 1
    %p100 = scmp.ne.s32.totalorder %s95, %s97
    %p101 = scmp.eq.s32.totalorder %s14, 0
    %p102 = por %p100, %p101
    %p103 = scmp.ne.s32.totalorder %s95, %s97
    %p104 = scmp.eq.s32.totalorder %s19, 1
    %p105 = por %p103, %p104
    %p106 = scmp.ne.s32.totalorder %s97, %s98
    %p107 = scmp.eq.s32.totalorder %s19, 0
    %p108 = por %p106, %p107
    %p109 = scmp.ne.s32.totalorder %s97, %s98
    %p110 = scmp.eq.s32.totalorder %s20, 1
    %p111 = por %p109, %p110
    %p113 = scmp.ne.s32.totalorder %s98, %s112
    %p114 = scmp.eq.s32.totalorder %s20, 0
    %p115 = por %p113, %p114
    %s117 = sadd.s32 %s116, 1
    %p120 = scmp.eq.s32.totalorder %s14, 1
    %p121 = scmp.ne.s32.totalorder %s116, %s118
    %p122 = scmp.eq.s32.totalorder %s14, 0
    %p123 = por %p121, %p122
    %p124 = scmp.ne.s32.totalorder %s116, %s118
    %p125 = scmp.eq.s32.totalorder %s19, 1
    %p126 = por %p124, %p125
    %p127 = scmp.ne.s32.totalorder %s118, %s119
    %p128 = scmp.eq.s32.totalorder %s19, 0
    %p129 = por %p127, %p128
    %p130 = scmp.ne.s32.totalorder %s118, %s119
    %p131 = scmp.eq.s32.totalorder %s20, 1
    %p132 = por %p130, %p131
    %p134 = scmp.ne.s32.totalorder %s119, %s133
    %p135 = scmp.eq.s32.totalorder %s20, 0
    %p136 = por %p134, %p135
    %s138 = sadd.s32 %s137, 1
    %p141 = scmp.eq.s32.totalorder %s14, 1
    %p142 = scmp.ne.s32.totalorder %s137, %s139
    %p143 = scmp.eq.s32.totalorder %s14, 0
    %p144 = por %p142, %p143
    %p145 = scmp.ne.s32.totalorder %s137, %s139
    %p146 = scmp.eq.s32.totalorder %s19, 1
    %p147 = por %p145, %p146
    %p148 = scmp.ne.s32.totalorder %s139, %s140
    %p149 = scmp.eq.s32.totalorder %s19, 0
    %p150 = por %p148, %p149
    %p151 = scmp.ne.s32.totalorder %s139, %s140
    %p152 = scmp.eq.s32.totalorder %s20, 1
    %p153 = por %p151, %p152
    %p155 = scmp.ne.s32.totalorder %s140, %s154
    %p156 = scmp.eq.s32.totalorder %s20, 0
    %p157 = por %p155, %p156
    %s159 = sadd.s32 %s158, 1
    %p162 = scmp.eq.s32.totalorder %s14, 1
    %p163 = scmp.ne.s32.totalorder %s158, %s160
    %p164 = scmp.eq.s32.totalorder %s14, 0
    %p165 = por %p163, %p164
    %p166 = scmp.ne.s32.totalorder %s158, %s160
    %p167 = scmp.eq.s32.totalorder %s19, 1
    %p168 = por %p166, %p167
    %p169 = scmp.ne.s32.totalorder %s160, %s161
    %p170 = scmp.eq.s32.totalorder %s19, 0
    %p171 = por %p169, %p170
    %p172 = scmp.ne.s32.totalorder %s160, %s161
    %p173 = scmp.eq.s32.totalorder %s20, 1
    %p174 = por %p172, %p173
    %p176 = scmp.ne.s32.totalorder %s161, %s175
    %p177 = scmp.eq.s32.totalorder %s20, 0
    %p178 = por %p176, %p177
    %s180 = sadd.s32 %s179, 1
    %p183 = scmp.eq.s32.totalorder %s14, 1
    %p184 = scmp.ne.s32.totalorder %s179, %s181
    %p185 = scmp.eq.s32.totalorder %s14, 0
    %p186 = por %p184, %p185
    %p187 = scmp.ne.s32.totalorder %s179, %s181
    %p188 = scmp.eq.s32.totalorder %s19, 1
    %p189 = por %p187, %p188
    %p190 = scmp.ne.s32.totalorder %s181, %s182
    %p191 = scmp.eq.s32.totalorder %s19, 0
    %p192 = por %p190, %p191
    %p193 = scmp.ne.s32.totalorder %s181, %s182
    %p194 = scmp.eq.s32.totalorder %s20, 1
    %p195 = por %p193, %p194
    %p197 = scmp.ne.s32.totalorder %s182, %s196
    %p198 = scmp.eq.s32.totalorder %s20, 0
    %p199 = por %p197, %p198
    %s200 = ssub.s32 %s14, %s21
    %p201 = scmp.eq.s32.totalorder %s200, 0
    %s203 = sadd.s32 %s202, 1
    %s204 = scalar_select %p201, %s202, %s203
    %p207 = pneg %p201
    %p208 = scmp.eq.s32.totalorder %s14, 1
    %p209 = por %p207, %p208
    %p210 = scmp.ne.s32.totalorder %s202, %s205
    %p211 = scmp.eq.s32.totalorder %s14, 0
    %p212 = por %p210, %p211
    %p213 = scmp.ne.s32.totalorder %s202, %s205
    %p214 = scmp.eq.s32.totalorder %s19, 1
    %p215 = por %p213, %p214
    %p216 = scmp.ne.s32.totalorder %s205, %s206
    %p217 = scmp.eq.s32.totalorder %s19, 0
    %p218 = por %p216, %p217
    %p219 = scmp.ne.s32.totalorder %s205, %s206
    %p220 = scmp.eq.s32.totalorder %s20, 1
    %p221 = por %p219, %p220
    %p223 = scmp.ne.s32.totalorder %s206, %s222
    %p224 = scmp.eq.s32.totalorder %s20, 0
    %p225 = por %p223, %p224
    %p226 = scmp.le.s32.totalorder 1, %s14
    %p227 = scmp.lt.s32.totalorder %s14, 3
    %p228 = pnand %p226, %p227
    %p229 = pneg %p228
    // Predicated region
    $region9: #{up_forward.1} parent=5 // pred_check
      _
    $region10: #{up_forward.1} parent=5 // pred_check_branch
      %231 = sbr.rel (%p228) target = $region12
    $region11: #{up_forward.1} parent=5 // pred_region
      %s232 = ssub.s32 %s14, 1
      // Predicated region
      $region13: #{up_forward.1} parent=11 // pred_check
        %p233 = pneg %p87
      $region14: #{up_forward.1} parent=11 // pred_check_branch
        %235 = sbr.rel (%p233) target = $region16
      $region15: #{up_forward.1} parent=11 // pred_region
        _
      $region16: #{up_forward.1} parent=11 // pred_fallthru
        _
      // Predicated region
      $region17: #{up_forward.1} parent=11 // pred_check
        %p236 = pneg %p108
      $region18: #{up_forward.1} parent=11 // pred_check_branch
        %238 = sbr.rel (%p236) target = $region20
      $region19: #{up_forward.1} parent=11 // pred_region
        _
      $region20: #{up_forward.1} parent=11 // pred_fallthru
        _
      // Predicated region
      $region21: #{up_forward.1} parent=11 // pred_check
        %p239 = pneg %p129
      $region22: #{up_forward.1} parent=11 // pred_check_branch
        %241 = sbr.rel (%p239) target = $region24
      $region23: #{up_forward.1} parent=11 // pred_region
        _
      $region24: #{up_forward.1} parent=11 // pred_fallthru
        _
      // Predicated region
      $region25: #{up_forward.1} parent=11 // pred_check
        %p242 = pneg %p150
      $region26: #{up_forward.1} parent=11 // pred_check_branch
        %244 = sbr.rel (%p242) target = $region28
      $region27: #{up_forward.1} parent=11 // pred_region
        _
      $region28: #{up_forward.1} parent=11 // pred_fallthru
        _
      // Predicated region
      $region29: #{up_forward.1} parent=11 // pred_check
        %p245 = pneg %p171
      $region30: #{up_forward.1} parent=11 // pred_check_branch
        %247 = sbr.rel (%p245) target = $region32
      $region31: #{up_forward.1} parent=11 // pred_region
        _
      $region32: #{up_forward.1} parent=11 // pred_fallthru
        _
      // Predicated region
      $region33: #{up_forward.1} parent=11 // pred_check
        %p248 = pneg %p192
      $region34: #{up_forward.1} parent=11 // pred_check_branch
        %250 = sbr.rel (%p248) target = $region36
      $region35: #{up_forward.1} parent=11 // pred_region
        _
      $region36: #{up_forward.1} parent=11 // pred_fallthru
        _
    $region12: #{up_forward.1} parent=5 // pred_fallthru
      _
    %p251 = scmp.lt.s32.totalorder %s14, 2
    // Predicated region
    $region37: #{up_forward.1} parent=5 // pred_check
      %p252 = pneg %p251
    $region38: #{up_forward.1} parent=5 // pred_check_branch
      %254 = sbr.rel (%p252) target = $region40
    $region39: #{up_forward.1} parent=5 // pred_region
      // Predicated region
      $region41: #{up_forward.1} parent=39 // pred_check
        %p255 = pneg %p34
      $region42: #{up_forward.1} parent=39 // pred_check_branch
        %257 = sbr.rel (%p255) target = $region44
      $region43: #{up_forward.1} parent=39 // pred_region
        %p258 = scmp.lt.s32.totalorder %s14, 1
        %s259 = scalar_select %p258, %s14, 1
        %s260 = smul.addr %s259, 8
        %s261 = smul.addr %s260, 8
        %s262 = scalar_lea.vmem %s0, %s261
      $region44: #{up_forward.1} parent=39 // pred_fallthru
        _
      // Predicated region
      $region45: #{up_forward.1} parent=39 // pred_check
        %p263 = pneg %p60
      $region46: #{up_forward.1} parent=39 // pred_check_branch
        %265 = sbr.rel (%p263) target = $region48
      $region47: #{up_forward.1} parent=39 // pred_region
        %p266 = scmp.lt.s32.totalorder %s14, 1
        %s267 = scalar_select %p266, %s14, 1
        %s268 = smul.addr %s267, 32
        %s269 = smul.addr %s268, 8
        %s270 = scalar_lea.vmem %s1, %s269
      $region48: #{up_forward.1} parent=39 // pred_fallthru
        _
    $region40: #{up_forward.1} parent=5 // pred_fallthru
      _
    %p271 = scmp.le.s32.totalorder 1, %s14
    %p272 = scmp.lt.s32.totalorder %s14, 3
    %p273 = pnand %p271, %p272
    %p274 = pneg %p273
    // Predicated region
    $region49: #{up_forward.1} parent=5 // pred_check
      _
    $region50: #{up_forward.1} parent=5 // pred_check_branch
      %276 = sbr.rel (%p273) target = $region52
    $region51: #{up_forward.1} parent=5 // pred_region
      %s277 = ssub.s32 %s14, 1
      %p278 = scmp.lt.s32.totalorder %s19, 1
      %s279 = scalar_select %p278, %s19, 1
      %s280 = smul.addr %s279, 8
      %s281 = smul.addr %s280, 8
      %s282 = scalar_lea.vmem %s0, %s281
      %p283 = pneg %p40
      %p284 = pneg %p37
      %p285 = scmp.lt.s32.totalorder %s19, 1
      %s286 = scalar_select %p285, %s19, 1
      %s287 = smul.addr %s286, 32
      %s288 = smul.addr %s287, 8
      %s289 = scalar_lea.vmem %s1, %s288
      %p290 = pneg %p66
      %p291 = pneg %p63
      %p292 = pneg %p87
      %p293 = pneg %p84
      %p294 = pneg %p108
      %p295 = pneg %p105
      %p296 = pneg %p129
      %p297 = pneg %p126
      %p298 = pneg %p150
      %p299 = pneg %p147
      %p300 = pneg %p171
      %p301 = pneg %p168
      %p302 = pneg %p192
      %p303 = pneg %p189
      %p304 = pneg %p218
      %p305 = pneg %p215
      %p306 = scmp.lt.s32.totalorder %s19, 1
      %s307 = scalar_select %p306, %s19, 1
      %s308 = smul.addr %s307, 32
      %s309 = smul.addr %s308, 8
      %s310 = scalar_lea.vmem %s8, %s309
      %p311 = scmp.lt.s32.totalorder %s19, 1
      %s312 = scalar_select %p311, %s19, 1
      %s313 = smul.addr %s312, 8
      %s314 = smul.addr %s313, 8
      %s315 = scalar_lea.vmem %s0, %s314
      %p316 = scmp.lt.s32.totalorder %s19, 1
      %s317 = scalar_select %p316, %s19, 1
      %s318 = smul.addr %s317, 32
      %s319 = smul.addr %s318, 8
      %s320 = scalar_lea.vmem %s1, %s319
      %p321 = scmp.lt.s32.totalorder %s19, 1
      %s322 = scalar_select %p321, %s19, 1
      %s323 = smul.addr %s322, 32
      %s324 = smul.addr %s323, 8
      %s325 = scalar_lea.vmem %s8, %s324
      %vm327 = vcmask 257024
      %328 = vst.msk [vmem:[#allocation2] sm:$0xf] %vm327, 0
      %vm329 = vcmask 253952
      %330 = vst.msk [vmem:[#allocation2 + $0x4] sm:$0x1] %vm329, 0
      %331 = vst.msk [vmem:[#allocation2 + $0x8] sm:$0xf] %vm327, 0
      %332 = vst.msk [vmem:[#allocation2 + $0xc] sm:$0x1] %vm329, 0
      %333 = vst.msk [vmem:[#allocation2 + $0x10] sm:$0xf] %vm327, 0
      %334 = vst.msk [vmem:[#allocation2 + $0x14] sm:$0x1] %vm329, 0
      %335 = vst.msk [vmem:[#allocation2 + $0x18] sm:$0xf] %vm327, 0
      %336 = vst.msk [vmem:[#allocation2 + $0x1c] sm:$0x1] %vm329, 0
      %337 = vst.msk [vmem:[#allocation2 + $0x20] sm:$0xf] %vm327, 0
      %338 = vst.msk [vmem:[#allocation2 + $0x24] sm:$0x1] %vm329, 0
      %339 = vst.msk [vmem:[#allocation2 + $0x28] sm:$0xf] %vm327, 0
      %340 = vst.msk [vmem:[#allocation2 + $0x2c] sm:$0x1] %vm329, 0
      %341 = vst.msk [vmem:[#allocation2 + $0x30] sm:$0xf] %vm327, 0
      %342 = vst.msk [vmem:[#allocation2 + $0x34] sm:$0x1] %vm329, 0
      %343 = vst.msk [vmem:[#allocation2 + $0x38] sm:$0xf] %vm327, 0
      %344 = vst.msk [vmem:[#allocation2 + $0x3c] sm:$0x1] %vm329, 0
      %345 = vst.msk [vmem:[#allocation2 + $0x40] sm:$0xf] %vm327, 0
      %346 = vst.msk [vmem:[#allocation2 + $0x44] sm:$0x1] %vm329, 0
      %347 = vst.msk [vmem:[#allocation2 + $0x48] sm:$0xf] %vm327, 0
      %348 = vst.msk [vmem:[#allocation2 + $0x4c] sm:$0x1] %vm329, 0
      %v349 = vld [vmem:[%s315] sm:$0xff]
      %v350 = vld [vmem:[%s315 + $0x8] sm:$0xff]
      %v351 = vld [vmem:[%s315 + $0x10] sm:$0xff]
      %v352 = vld [vmem:[%s315 + $0x18] sm:$0xff]
      %v353 = vld [vmem:[%s315 + $0x20] sm:$0xff]
      %v354 = vld [vmem:[%s315 + $0x28] sm:$0xff]
      %v355 = vld [vmem:[%s315 + $0x30] sm:$0xff]
      %v356 = vld [vmem:[%s315 + $0x38] sm:$0xff]
      %v357 = vpack.c.bf16 %v349, %v349
      %v358 = vpack.c.bf16 %v350, %v350
      %v359 = vpack.c.bf16 %v351, %v351
      %v360 = vpack.c.bf16 %v352, %v352
      %v361 = vpack.c.bf16 %v353, %v353
      %v362 = vpack.c.bf16 %v354, %v354
      %v363 = vpack.c.bf16 %v355, %v355
      %v364 = vpack.c.bf16 %v356, %v356
      %v373 = vunpack.c.l.b16 %v357
      %v374 = vunpack.c.l.b16 %v358
      %v375 = vunpack.c.l.b16 %v359
      %v376 = vunpack.c.l.b16 %v360
      %v377 = vunpack.c.l.b16 %v361
      %v378 = vunpack.c.l.b16 %v362
      %v379 = vunpack.c.l.b16 %v363
      %v380 = vunpack.c.l.b16 %v364
      %v381 = vpack.c.b16 %v373, %v373
      %v382 = vpack.c.b16 %v374, %v374
      %v383 = vpack.c.b16 %v375, %v375
      %v384 = vpack.c.b16 %v376, %v376
      %v385 = vpack.c.b16 %v377, %v377
      %v386 = vpack.c.b16 %v378, %v378
      %v387 = vpack.c.b16 %v379, %v379
      %v388 = vpack.c.b16 %v380, %v380
      %v390 = vshrl.u32 %v381, 16
      %v392 = vrot.slane %v390, 7
      %v393 = vshll.u32 %v381, 16
      %v395 = vor.u32 %v392, %v393
      %v396 = vrot.slane %v392, 4
      %v398 = vshrl.u32 %v382, 16
      %v400 = vrot.slane %v398, 7
      %v401 = vshll.u32 %v382, 16
      %v403 = vor.u32 %v400, %v401
      %v404 = vrot.slane %v400, 4
      %v406 = vshrl.u32 %v383, 16
      %v408 = vrot.slane %v406, 7
      %v409 = vshll.u32 %v383, 16
      %v411 = vor.u32 %v408, %v409
      %v412 = vrot.slane %v408, 4
      %v414 = vshrl.u32 %v384, 16
      %v416 = vrot.slane %v414, 7
      %v417 = vshll.u32 %v384, 16
      %v419 = vor.u32 %v416, %v417
      %v420 = vrot.slane %v416, 4
      %v422 = vshrl.u32 %v385, 16
      %v424 = vrot.slane %v422, 7
      %v425 = vshll.u32 %v385, 16
      %v427 = vor.u32 %v424, %v425
      %v428 = vrot.slane %v424, 4
      %v430 = vshrl.u32 %v386, 16
      %v432 = vrot.slane %v430, 7
      %v433 = vshll.u32 %v386, 16
      %v435 = vor.u32 %v432, %v433
      %v436 = vrot.slane %v432, 4
      %v438 = vshrl.u32 %v387, 16
      %v440 = vrot.slane %v438, 7
      %v441 = vshll.u32 %v387, 16
      %v443 = vor.u32 %v440, %v441
      %v444 = vrot.slane %v440, 4
      %v446 = vshrl.u32 %v388, 16
      %v448 = vrot.slane %v446, 7
      %v449 = vshll.u32 %v388, 16
      %v451 = vor.u32 %v448, %v449
      %v452 = vrot.slane %v448, 4
      %s469 = scalar_lea.vmem [#allocation2], 8
      %vm470 = vcmask 257024
      %vm471 = vsmask.f32 7938
      %vm472 = vmand %vm470, %vm471
      %v473 = vld [vmem:[%s469] sm:$0xf]
      %v474 = vsel %vm472, %v395, %v473
      %475 = vst [vmem:[%s469] sm:$0xf] %v474
      %vm476 = vcmask 253952
      %vm477 = vsmask.f32 256
      %vm478 = vmand %vm476, %vm477
      %v479 = vld [vmem:[%s469 + $0x4] sm:$0x1]
      %v480 = vsel %vm478, %v396, %v479
      %481 = vst [vmem:[%s469 + $0x4] sm:$0x1] %v480
      %v482 = vld [vmem:[%s469 + $0x8] sm:$0xf]
      %v483 = vsel %vm472, %v403, %v482
      %484 = vst [vmem:[%s469 + $0x8] sm:$0xf] %v483
      %v485 = vld [vmem:[%s469 + $0xc] sm:$0x1]
      %v486 = vsel %vm478, %v404, %v485
      %487 = vst [vmem:[%s469 + $0xc] sm:$0x1] %v486
      %v488 = vld [vmem:[%s469 + $0x10] sm:$0xf]
      %v489 = vsel %vm472, %v411, %v488
      %490 = vst [vmem:[%s469 + $0x10] sm:$0xf] %v489
      %v491 = vld [vmem:[%s469 + $0x14] sm:$0x1]
      %v492 = vsel %vm478, %v412, %v491
      %493 = vst [vmem:[%s469 + $0x14] sm:$0x1] %v492
      %v494 = vld [vmem:[%s469 + $0x18] sm:$0xf]
      %v495 = vsel %vm472, %v419, %v494
      %496 = vst [vmem:[%s469 + $0x18] sm:$0xf] %v495
      %v497 = vld [vmem:[%s469 + $0x1c] sm:$0x1]
      %v498 = vsel %vm478, %v420, %v497
      %499 = vst [vmem:[%s469 + $0x1c] sm:$0x1] %v498
      %v500 = vld [vmem:[%s469 + $0x20] sm:$0xf]
      %v501 = vsel %vm472, %v427, %v500
      %502 = vst [vmem:[%s469 + $0x20] sm:$0xf] %v501
      %v503 = vld [vmem:[%s469 + $0x24] sm:$0x1]
      %v504 = vsel %vm478, %v428, %v503
      %505 = vst [vmem:[%s469 + $0x24] sm:$0x1] %v504
      %v506 = vld [vmem:[%s469 + $0x28] sm:$0xf]
      %v507 = vsel %vm472, %v435, %v506
      %508 = vst [vmem:[%s469 + $0x28] sm:$0xf] %v507
      %v509 = vld [vmem:[%s469 + $0x2c] sm:$0x1]
      %v510 = vsel %vm478, %v436, %v509
      %511 = vst [vmem:[%s469 + $0x2c] sm:$0x1] %v510
      %v512 = vld [vmem:[%s469 + $0x30] sm:$0xf]
      %v513 = vsel %vm472, %v443, %v512
      %514 = vst [vmem:[%s469 + $0x30] sm:$0xf] %v513
      %v515 = vld [vmem:[%s469 + $0x34] sm:$0x1]
      %v516 = vsel %vm478, %v444, %v515
      %517 = vst [vmem:[%s469 + $0x34] sm:$0x1] %v516
      %v518 = vld [vmem:[%s469 + $0x38] sm:$0xf]
      %v519 = vsel %vm472, %v451, %v518
      %520 = vst [vmem:[%s469 + $0x38] sm:$0xf] %v519
      %v521 = vld [vmem:[%s469 + $0x3c] sm:$0x1]
      %v522 = vsel %vm478, %v452, %v521
      %523 = vst [vmem:[%s469 + $0x3c] sm:$0x1] %v522
      %v524 = vld [vmem:[#allocation2] sm:$0xf]
      %v525 = vld [vmem:[#allocation2 + $0x4] sm:$0x1]
      %v526 = vld [vmem:[#allocation2 + $0x8] sm:$0xf]
      %v527 = vld [vmem:[#allocation2 + $0xc] sm:$0x1]
      %v528 = vld [vmem:[#allocation2 + $0x10] sm:$0xf]
      %v529 = vld [vmem:[#allocation2 + $0x14] sm:$0x1]
      %v530 = vld [vmem:[#allocation2 + $0x18] sm:$0xf]
      %v531 = vld [vmem:[#allocation2 + $0x1c] sm:$0x1]
      %v532 = vld [vmem:[#allocation2 + $0x20] sm:$0xf]
      %v533 = vld [vmem:[#allocation2 + $0x24] sm:$0x1]
      %v534 = vld [vmem:[#allocation2 + $0x28] sm:$0xf]
      %v535 = vld [vmem:[#allocation2 + $0x2c] sm:$0x1]
      %v536 = vld [vmem:[#allocation2 + $0x30] sm:$0xf]
      %v537 = vld [vmem:[#allocation2 + $0x34] sm:$0x1]
      %v538 = vld [vmem:[#allocation2 + $0x38] sm:$0xf]
      %v539 = vld [vmem:[#allocation2 + $0x3c] sm:$0x1]
      %v540 = vld [vmem:[#allocation2 + $0x40] sm:$0xf]
      %v541 = vld [vmem:[#allocation2 + $0x44] sm:$0x1]
      %v542 = vld [vmem:[#allocation2 + $0x48] sm:$0xf]
      %v543 = vld [vmem:[#allocation2 + $0x4c] sm:$0x1]
      %v552 = vunpack.c.l.b16 %v524
      %v553 = vunpack.c.l.b16 %v526
      %v554 = vunpack.c.l.b16 %v528
      %v555 = vunpack.c.l.b16 %v530
      %v556 = vunpack.c.l.b16 %v532
      %v557 = vunpack.c.l.b16 %v534
      %v558 = vunpack.c.l.b16 %v536
      %v559 = vunpack.c.l.b16 %v538
      %v560 = vpack.c.b16 %v553, %v552
      %v561 = vpack.c.b16 %v555, %v554
      %v562 = vpack.c.b16 %v557, %v556
      %v563 = vpack.c.b16 %v559, %v558
      %vm568 = vcmask 261120
      %569 = vst.msk [vmem:[#allocation6] sm:$0xff] %vm568, %v560
      %570 = vst.msk [vmem:[#allocation6 + $0x18] sm:$0xff] %vm568, %v561
      %571 = vst.msk [vmem:[#allocation6 + $0x30] sm:$0xff] %vm568, %v562
      %572 = vst.msk [vmem:[#allocation6 + $0x48] sm:$0xff] %vm568, %v563
      %vm573 = vsmask.f32 3328
      %vm574 = vsmask.f32 7440
      %vm575 = vmor %vm573, %vm574
      %v577 = vshrl.u32 %v524, 16
      %v579 = vrot.slane %v577, 4
      %v580 = vshll.u32 %v524, 16
      %v582 = vrot.slane %v580, 5
      %v583 = vor.u32 %v579, %v582
      %v584 = vrot.slane %v583, 4
      %v586 = vshll.u32 %v525, 16
      %v588 = vrot.slane %v586, 5
      %v589 = vsel %vm575, %v584, %v588
      %v591 = vshrl.u32 %v526, 16
      %v593 = vrot.slane %v591, 4
      %v594 = vshll.u32 %v526, 16
      %v596 = vrot.slane %v594, 5
      %v597 = vor.u32 %v593, %v596
      %v598 = vrot.slane %v597, 4
      %v600 = vshll.u32 %v527, 16
      %v602 = vrot.slane %v600, 5
      %v603 = vsel %vm575, %v598, %v602
      %v605 = vshrl.u32 %v528, 16
      %v607 = vrot.slane %v605, 4
      %v608 = vshll.u32 %v528, 16
      %v610 = vrot.slane %v608, 5
      %v611 = vor.u32 %v607, %v610
      %v612 = vrot.slane %v611, 4
      %v614 = vshll.u32 %v529, 16
      %v616 = vrot.slane %v614, 5
      %v617 = vsel %vm575, %v612, %v616
      %v619 = vshrl.u32 %v530, 16
      %v621 = vrot.slane %v619, 4
      %v622 = vshll.u32 %v530, 16
      %v624 = vrot.slane %v622, 5
      %v625 = vor.u32 %v621, %v624
      %v626 = vrot.slane %v625, 4
      %v628 = vshll.u32 %v531, 16
      %v630 = vrot.slane %v628, 5
      %v631 = vsel %vm575, %v626, %v630
      %v633 = vshrl.u32 %v532, 16
      %v635 = vrot.slane %v633, 4
      %v636 = vshll.u32 %v532, 16
      %v638 = vrot.slane %v636, 5
      %v639 = vor.u32 %v635, %v638
      %v640 = vrot.slane %v639, 4
      %v642 = vshll.u32 %v533, 16
      %v644 = vrot.slane %v642, 5
      %v645 = vsel %vm575, %v640, %v644
      %v647 = vshrl.u32 %v534, 16
      %v649 = vrot.slane %v647, 4
      %v650 = vshll.u32 %v534, 16
      %v652 = vrot.slane %v650, 5
      %v653 = vor.u32 %v649, %v652
      %v654 = vrot.slane %v653, 4
      %v656 = vshll.u32 %v535, 16
      %v658 = vrot.slane %v656, 5
      %v659 = vsel %vm575, %v654, %v658
      %v661 = vshrl.u32 %v536, 16
      %v663 = vrot.slane %v661, 4
      %v664 = vshll.u32 %v536, 16
      %v666 = vrot.slane %v664, 5
      %v667 = vor.u32 %v663, %v666
      %v668 = vrot.slane %v667, 4
      %v670 = vshll.u32 %v537, 16
      %v672 = vrot.slane %v670, 5
      %v673 = vsel %vm575, %v668, %v672
      %v675 = vshrl.u32 %v538, 16
      %v677 = vrot.slane %v675, 4
      %v678 = vshll.u32 %v538, 16
      %v680 = vrot.slane %v678, 5
      %v681 = vor.u32 %v677, %v680
      %v682 = vrot.slane %v681, 4
      %v684 = vshll.u32 %v539, 16
      %v686 = vrot.slane %v684, 5
      %v687 = vsel %vm575, %v682, %v686
      %v688 = vunpack.c.l.b16 %v589
      %v689 = vunpack.c.l.b16 %v603
      %v690 = vunpack.c.l.b16 %v617
      %v691 = vunpack.c.l.b16 %v631
      %v692 = vunpack.c.l.b16 %v645
      %v693 = vunpack.c.l.b16 %v659
      %v694 = vunpack.c.l.b16 %v673
      %v695 = vunpack.c.l.b16 %v687
      %v696 = vpack.c.b16 %v689, %v688
      %v697 = vpack.c.b16 %v691, %v690
      %v698 = vpack.c.b16 %v693, %v692
      %v699 = vpack.c.b16 %v695, %v694
      %700 = vrot.lane.b32.xlu0 %v696, 32
      %v701 = vpop.permute.xlu0 %700
      %702 = vrot.lane.b32.xlu0 %v697, 32
      %v703 = vpop.permute.xlu0 %702
      %704 = vrot.lane.b32.xlu0 %v698, 32
      %v705 = vpop.permute.xlu0 %704
      %706 = vrot.lane.b32.xlu0 %v699, 32
      %v707 = vpop.permute.xlu0 %706
      %vm712 = vcmask 523520
      %713 = vst.msk [vmem:[#allocation6] sm:$0xff] %vm712, %v701
      %714 = vst.msk [vmem:[#allocation6 + $0x18] sm:$0xff] %vm712, %v703
      %715 = vst.msk [vmem:[#allocation6 + $0x30] sm:$0xff] %vm712, %v705
      %716 = vst.msk [vmem:[#allocation6 + $0x48] sm:$0xff] %vm712, %v707
      %vm725 = vcmask 1042432
      %vm726 = vcmask 1046532
      %vm727 = vmor %vm725, %vm726
      %v728 = vrot.slane %v524, 5
      %v729 = vrot.slane %v728, 4
      %v730 = vrot.slane %v525, 5
      %v731 = vsel %vm727, %v729, %v730
      %v732 = vrot.slane %v526, 5
      %v733 = vrot.slane %v732, 4
      %v734 = vrot.slane %v527, 5
      %v735 = vsel %vm727, %v733, %v734
      %v736 = vrot.slane %v528, 5
      %v737 = vrot.slane %v736, 4
      %v738 = vrot.slane %v529, 5
      %v739 = vsel %vm727, %v737, %v738
      %v740 = vrot.slane %v530, 5
      %v741 = vrot.slane %v740, 4
      %v742 = vrot.slane %v531, 5
      %v743 = vsel %vm727, %v741, %v742
      %v744 = vrot.slane %v532, 5
      %v745 = vrot.slane %v744, 4
      %v746 = vrot.slane %v533, 5
      %v747 = vsel %vm727, %v745, %v746
      %v748 = vrot.slane %v534, 5
      %v749 = vrot.slane %v748, 4
      %v750 = vrot.slane %v535, 5
      %v751 = vsel %vm727, %v749, %v750
      %v752 = vrot.slane %v536, 5
      %v753 = vrot.slane %v752, 4
      %v754 = vrot.slane %v537, 5
      %v755 = vsel %vm727, %v753, %v754
      %v756 = vrot.slane %v538, 5
      %v757 = vrot.slane %v756, 4
      %v758 = vrot.slane %v539, 5
      %v759 = vsel %vm727, %v757, %v758
      %v760 = vunpack.c.l.b16 %v731
      %v761 = vunpack.c.l.b16 %v735
      %v762 = vunpack.c.l.b16 %v739
      %v763 = vunpack.c.l.b16 %v743
      %v764 = vunpack.c.l.b16 %v747
      %v765 = vunpack.c.l.b16 %v751
      %v766 = vunpack.c.l.b16 %v755
      %v767 = vunpack.c.l.b16 %v759
      %v768 = vpack.c.b16 %v761, %v760
      %v769 = vpack.c.b16 %v763, %v762
      %v770 = vpack.c.b16 %v765, %v764
      %v771 = vpack.c.b16 %v767, %v766
      %772 = vrot.lane.b32.xlu0 %v768, 64
      %v773 = vpop.permute.xlu0 %772
      %774 = vrot.lane.b32.xlu0 %v769, 64
      %v775 = vpop.permute.xlu0 %774
      %776 = vrot.lane.b32.xlu0 %v770, 64
      %v777 = vpop.permute.xlu0 %776
      %778 = vrot.lane.b32.xlu0 %v771, 64
      %v779 = vpop.permute.xlu0 %778
      %vm784 = vcmask 785920
      %785 = vst.msk [vmem:[#allocation6] sm:$0xff] %vm784, %v773
      %786 = vst.msk [vmem:[#allocation6 + $0x18] sm:$0xff] %vm784, %v775
      %787 = vst.msk [vmem:[#allocation6 + $0x30] sm:$0xff] %vm784, %v777
      %788 = vst.msk [vmem:[#allocation6 + $0x48] sm:$0xff] %vm784, %v779
      %v790 = vunpack.c.l.b16 %v540
      %v791 = vpack.c.b16 %v554, %v553
      %v792 = vpack.c.b16 %v556, %v555
      %v793 = vpack.c.b16 %v558, %v557
      %v794 = vpack.c.b16 %v790, %v559
      %795 = vrot.lane.b32.xlu0 %v791, 96
      %v796 = vpop.permute.xlu0 %795
      %797 = vrot.lane.b32.xlu0 %v792, 96
      %v798 = vpop.permute.xlu0 %797
      %799 = vrot.lane.b32.xlu0 %v793, 96
      %v800 = vpop.permute.xlu0 %799
      %801 = vrot.lane.b32.xlu0 %v794, 96
      %v802 = vpop.permute.xlu0 %801
      %vm807 = vcmask 1048320
      %808 = vst.msk [vmem:[#allocation6] sm:$0xff] %vm807, %v796
      %809 = vst.msk [vmem:[#allocation6 + $0x18] sm:$0xff] %vm807, %v798
      %810 = vst.msk [vmem:[#allocation6 + $0x30] sm:$0xff] %vm807, %v800
      %811 = vst.msk [vmem:[#allocation6 + $0x48] sm:$0xff] %vm807, %v802
      %v813 = vshrl.u32 %v540, 16
      %v815 = vrot.slane %v813, 4
      %v816 = vshll.u32 %v540, 16
      %v818 = vrot.slane %v816, 5
      %v819 = vor.u32 %v815, %v818
      %v820 = vrot.slane %v819, 4
      %v822 = vshll.u32 %v541, 16
      %v824 = vrot.slane %v822, 5
      %v825 = vsel %vm575, %v820, %v824
      %v826 = vunpack.c.l.b16 %v825
      %v827 = vpack.c.b16 %v690, %v689
      %v828 = vpack.c.b16 %v692, %v691
      %v829 = vpack.c.b16 %v694, %v693
      %v830 = vpack.c.b16 %v826, %v695
      %835 = vst.msk [vmem:[#allocation6 + $0x8] sm:$0xff] %vm568, %v827
      %836 = vst.msk [vmem:[#allocation6 + $0x20] sm:$0xff] %vm568, %v828
      %837 = vst.msk [vmem:[#allocation6 + $0x38] sm:$0xff] %vm568, %v829
      %838 = vst.msk [vmem:[#allocation6 + $0x50] sm:$0xff] %vm568, %v830
      %v840 = vrot.slane %v540, 5
      %v841 = vrot.slane %v840, 4
      %v842 = vrot.slane %v541, 5
      %v843 = vsel %vm727, %v841, %v842
      %v844 = vunpack.c.l.b16 %v843
      %v845 = vpack.c.b16 %v762, %v761
      %v846 = vpack.c.b16 %v764, %v763
      %v847 = vpack.c.b16 %v766, %v765
      %v848 = vpack.c.b16 %v844, %v767
      %849 = vrot.lane.b32.xlu0 %v845, 32
      %v850 = vpop.permute.xlu0 %849
      %851 = vrot.lane.b32.xlu0 %v846, 32
      %v852 = vpop.permute.xlu0 %851
      %853 = vrot.lane.b32.xlu0 %v847, 32
      %v854 = vpop.permute.xlu0 %853
      %855 = vrot.lane.b32.xlu0 %v848, 32
      %v856 = vpop.permute.xlu0 %855
      %861 = vst.msk [vmem:[#allocation6 + $0x8] sm:$0xff] %vm712, %v850
      %862 = vst.msk [vmem:[#allocation6 + $0x20] sm:$0xff] %vm712, %v852
      %863 = vst.msk [vmem:[#allocation6 + $0x38] sm:$0xff] %vm712, %v854
      %864 = vst.msk [vmem:[#allocation6 + $0x50] sm:$0xff] %vm712, %v856
      %v866 = vunpack.c.l.b16 %v542
      %v867 = vpack.c.b16 %v866, %v790
      %868 = vrot.lane.b32.xlu0 %v561, 64
      %v869 = vpop.permute.xlu0 %868
      %870 = vrot.lane.b32.xlu0 %v562, 64
      %v871 = vpop.permute.xlu0 %870
      %872 = vrot.lane.b32.xlu0 %v563, 64
      %v873 = vpop.permute.xlu0 %872
      %874 = vrot.lane.b32.xlu0 %v867, 64
      %v875 = vpop.permute.xlu0 %874
      %880 = vst.msk [vmem:[#allocation6 + $0x8] sm:$0xff] %vm784, %v869
      %881 = vst.msk [vmem:[#allocation6 + $0x20] sm:$0xff] %vm784, %v871
      %882 = vst.msk [vmem:[#allocation6 + $0x38] sm:$0xff] %vm784, %v873
      %883 = vst.msk [vmem:[#allocation6 + $0x50] sm:$0xff] %vm784, %v875
      %v885 = vshrl.u32 %v542, 16
      %v887 = vrot.slane %v885, 4
      %v888 = vshll.u32 %v542, 16
      %v890 = vrot.slane %v888, 5
      %v891 = vor.u32 %v887, %v890
      %v892 = vrot.slane %v891, 4
      %v894 = vshll.u32 %v543, 16
      %v896 = vrot.slane %v894, 5
      %v897 = vsel %vm575, %v892, %v896
      %v898 = vunpack.c.l.b16 %v897
      %v899 = vpack.c.b16 %v898, %v826
      %900 = vrot.lane.b32.xlu0 %v697, 96
      %v901 = vpop.permute.xlu0 %900
      %902 = vrot.lane.b32.xlu0 %v698, 96
      %v903 = vpop.permute.xlu0 %902
      %904 = vrot.lane.b32.xlu0 %v699, 96
      %v905 = vpop.permute.xlu0 %904
      %906 = vrot.lane.b32.xlu0 %v899, 96
      %v907 = vpop.permute.xlu0 %906
      %912 = vst.msk [vmem:[#allocation6 + $0x8] sm:$0xff] %vm807, %v901
      %913 = vst.msk [vmem:[#allocation6 + $0x20] sm:$0xff] %vm807, %v903
      %914 = vst.msk [vmem:[#allocation6 + $0x38] sm:$0xff] %vm807, %v905
      %915 = vst.msk [vmem:[#allocation6 + $0x50] sm:$0xff] %vm807, %v907
      %v917 = vrot.slane %v542, 5
      %v918 = vrot.slane %v917, 4
      %v919 = vrot.slane %v543, 5
      %v920 = vsel %vm727, %v918, %v919
      %v921 = vunpack.c.l.b16 %v920
      %v922 = vpack.c.b16 %v921, %v844
      %927 = vst.msk [vmem:[#allocation6 + $0x10] sm:$0xff] %vm568, %v769
      %928 = vst.msk [vmem:[#allocation6 + $0x28] sm:$0xff] %vm568, %v770
      %929 = vst.msk [vmem:[#allocation6 + $0x40] sm:$0xff] %vm568, %v771
      %930 = vst.msk [vmem:[#allocation6 + $0x58] sm:$0xff] %vm568, %v922
      %v931 = vld [vmem:[#allocation6] sm:$0xff]
      %v932 = vld [vmem:[#allocation6 + $0x8] sm:$0xff]
      %v933 = vld [vmem:[#allocation6 + $0x10] sm:$0xff]
      %v934 = vld [vmem:[#allocation6 + $0x18] sm:$0xff]
      %v935 = vld [vmem:[#allocation6 + $0x20] sm:$0xff]
      %v936 = vld [vmem:[#allocation6 + $0x28] sm:$0xff]
      %v937 = vld [vmem:[#allocation6 + $0x30] sm:$0xff]
      %v938 = vld [vmem:[#allocation6 + $0x38] sm:$0xff]
      %v939 = vld [vmem:[#allocation6 + $0x40] sm:$0xff]
      %v940 = vld [vmem:[#allocation6 + $0x48] sm:$0xff]
      %v941 = vld [vmem:[#allocation6 + $0x50] sm:$0xff]
      %v942 = vld [vmem:[#allocation6 + $0x58] sm:$0xff]
      %v943 = vld [vmem:[%s2] sm:$0xf]
      %v944 = vld [vmem:[%s2 + $0x4] sm:$0xf]
      %v945 = vld [vmem:[%s2 + $0x8] sm:$0xf]
      %v946 = vld [vmem:[%s2 + $0xc] sm:$0xf]
      %v947 = vld [vmem:[%s2 + $0x10] sm:$0xf]
      %v948 = vld [vmem:[%s2 + $0x14] sm:$0xf]
      %v949 = vld [vmem:[%s2 + $0x18] sm:$0xf]
      %v950 = vld [vmem:[%s2 + $0x1c] sm:$0xf]
      %v951 = vld [vmem:[%s2 + $0x20] sm:$0xf]
      %v952 = vld [vmem:[%s2 + $0x24] sm:$0xf]
      %v953 = vld [vmem:[%s2 + $0x28] sm:$0xf]
      %v954 = vld [vmem:[%s2 + $0x2c] sm:$0xf]
      %v955 = vld [vmem:[%s2 + $0x30] sm:$0xf]
      %v956 = vld [vmem:[%s2 + $0x34] sm:$0xf]
      %v957 = vld [vmem:[%s2 + $0x38] sm:$0xf]
      %v958 = vld [vmem:[%s2 + $0x3c] sm:$0xf]
      %v959 = vld [vmem:[%s2 + $0x40] sm:$0xf]
      %v960 = vld [vmem:[%s2 + $0x44] sm:$0xf]
      %v961 = vld [vmem:[%s2 + $0x48] sm:$0xf]
      %v962 = vld [vmem:[%s2 + $0x4c] sm:$0xf]
      %v963 = vld [vmem:[%s2 + $0x50] sm:$0xf]
      %v964 = vld [vmem:[%s2 + $0x54] sm:$0xf]
      %v965 = vld [vmem:[%s2 + $0x58] sm:$0xf]
      %v966 = vld [vmem:[%s2 + $0x5c] sm:$0xf]
      %v967 = vld [vmem:[%s2 + $0x60] sm:$0xf]
      %v968 = vld [vmem:[%s2 + $0x64] sm:$0xf]
      %v969 = vld [vmem:[%s2 + $0x68] sm:$0xf]
      %v970 = vld [vmem:[%s2 + $0x6c] sm:$0xf]
      %v971 = vld [vmem:[%s2 + $0x70] sm:$0xf]
      %v972 = vld [vmem:[%s2 + $0x74] sm:$0xf]
      %v973 = vld [vmem:[%s2 + $0x78] sm:$0xf]
      %v974 = vld [vmem:[%s2 + $0x7c] sm:$0xf]
      %v975 = vld [vmem:[%s2 + $0x80] sm:$0xf]
      %v976 = vld [vmem:[%s2 + $0x84] sm:$0xf]
      %v977 = vld [vmem:[%s2 + $0x88] sm:$0xf]
      %v978 = vld [vmem:[%s2 + $0x8c] sm:$0xf]
      %v979 = vld [vmem:[%s3] sm:$0x1]
      %v981 = vlaneseq
      %v982 = vshrl.u32 %v981, 7
      %v983 = vsub.s32 0, %v982
      %v984 = vrot.slane %v979, %v983
      %v1022 = vunpack.c.l.b16 %v943
      %v1023 = vunpack.c.l.b16 %v944
      %v1024 = vunpack.c.l.b16 %v945
      %v1025 = vunpack.c.l.b16 %v946
      %v1026 = vunpack.c.l.b16 %v947
      %v1027 = vunpack.c.l.b16 %v948
      %v1028 = vunpack.c.l.b16 %v949
      %v1029 = vunpack.c.l.b16 %v950
      %v1030 = vunpack.c.l.b16 %v951
      %v1031 = vunpack.c.l.b16 %v952
      %v1032 = vunpack.c.l.b16 %v953
      %v1033 = vunpack.c.l.b16 %v954
      %v1034 = vunpack.c.l.b16 %v955
      %v1035 = vunpack.c.l.b16 %v956
      %v1036 = vunpack.c.l.b16 %v957
      %v1037 = vunpack.c.l.b16 %v958
      %v1038 = vunpack.c.l.b16 %v959
      %v1039 = vunpack.c.l.b16 %v960
      %v1040 = vunpack.c.l.b16 %v961
      %v1041 = vunpack.c.l.b16 %v962
      %v1042 = vunpack.c.l.b16 %v963
      %v1043 = vunpack.c.l.b16 %v964
      %v1044 = vunpack.c.l.b16 %v965
      %v1045 = vunpack.c.l.b16 %v966
      %v1046 = vunpack.c.l.b16 %v967
      %v1047 = vunpack.c.l.b16 %v968
      %v1048 = vunpack.c.l.b16 %v969
      %v1049 = vunpack.c.l.b16 %v970
      %v1050 = vunpack.c.l.b16 %v971
      %v1051 = vunpack.c.l.b16 %v972
      %v1052 = vunpack.c.l.b16 %v973
      %v1053 = vunpack.c.l.b16 %v974
      %v1054 = vunpack.c.l.b16 %v975
      %v1055 = vunpack.c.l.b16 %v976
      %v1056 = vunpack.c.l.b16 %v977
      %v1057 = vunpack.c.l.b16 %v978
      %v1058 = vpack.c.b16 %v1023, %v1022
      %v1059 = vpack.c.b16 %v1025, %v1024
      %v1060 = vpack.c.b16 %v1027, %v1026
      %v1061 = vpack.c.b16 %v1029, %v1028
      %v1062 = vpack.c.b16 %v1031, %v1030
      %v1063 = vpack.c.b16 %v1033, %v1032
      %v1064 = vpack.c.b16 %v1035, %v1034
      %v1065 = vpack.c.b16 %v1037, %v1036
      %v1066 = vpack.c.b16 %v1039, %v1038
      %v1067 = vpack.c.b16 %v1041, %v1040
      %v1068 = vpack.c.b16 %v1043, %v1042
      %v1069 = vpack.c.b16 %v1045, %v1044
      %v1070 = vpack.c.b16 %v1047, %v1046
      %v1071 = vpack.c.b16 %v1049, %v1048
      %v1072 = vpack.c.b16 %v1051, %v1050
      %v1073 = vpack.c.b16 %v1053, %v1052
      %v1074 = vpack.c.b16 %v1055, %v1054
      %v1075 = vpack.c.b16 %v1057, %v1056
      %v1095 = vsel %vm568, %v933, 0
      %v1098 = vsel %vm568, %v936, 0
      %v1101 = vsel %vm568, %v939, 0
      %v1104 = vsel %vm568, %v942, 0
      %1106 = vmatprep.subr.bf16.mxu0 0
      %1107 = vmatpush1.bf16.msra.mxu0 %v1058
      %1108 = vmatprep.subr.bf16.mxu0 0
      %1109 = vmatpush1.bf16.msra.mxu0 %v1059
      %1110 = vmatprep.subr.bf16.mxu0 0
      %1111 = vmatpush1.bf16.msra.mxu0 %v1060
      %1112 = vmatprep.subr.bf16.mxu0 0
      %1113 = vmatpush1.bf16.msra.mxu0 %v1061
      %1114 = vmatprep.subr.bf16.mxu0 0
      %1115 = vmatpush1.bf16.msra.mxu0 %v1062
      %1116 = vmatprep.subr.bf16.mxu0 0
      %1117 = vmatpush1.bf16.msra.mxu0 %v1063
      %1118 = vmatprep.subr.bf16.mxu0 0
      %1119 = vmatpush1.bf16.msra.mxu0 %v1064
      %1120 = vmatprep.subr.bf16.mxu0 0
      %1121 = vmatpush1.bf16.msra.mxu0 %v1065
      %1122 = vmatprep.subr.bf16.mxu0 0
      %1123 = vmatpush1.bf16.msra.mxu0 %v1066
      %1124 = vmatprep.subr.bf16.mxu0 0
      %1125 = vmatpush1.bf16.msra.mxu0 %v1067
      %1126 = vmatprep.subr.bf16.mxu0 0
      %1127 = vmatpush1.bf16.msra.mxu0 %v1068
      %1128 = vmatprep.subr.bf16.mxu0 0
      %1129 = vmatpush1.bf16.msra.mxu0 %v1069
      %1130 = vmatprep.subr.bf16.mxu0 0
      %1131 = vmatpush1.bf16.msra.mxu0 %v1070
      %1132 = vmatprep.subr.bf16.mxu0 0
      %1133 = vmatpush1.bf16.msra.mxu0 %v1071
      %1134 = vmatprep.subr.bf16.mxu0 0
      %1135 = vmatpush1.bf16.msra.mxu0 %v1072
      %1136 = vmatprep.subr.bf16.mxu0 0
      %1137 = vmatpush1.bf16.msra.mxu0 %v1073
      %1138 = vmatprep.mubr.bf16.mxu0 %v932
      %1139 = vmatmul.mubr.bf16.gmra.mrb[0].mxu0 %v931
      %v1140 = vpop.f32.mrb[0].mxu0
      %v1141 = vadd.f32 %v984, %v1140
      %v1142 = vpop.f32.mrb[0].mxu0
      %v1143 = vpop.f32.mrb[0].mxu0
      %v1144 = vadd.f32 %v984, %v1143
      %v1145 = vpop.f32.mrb[0].mxu0
      %1146 = vmatprep.mubr.bf16.mxu0 %v935
      %1147 = vmatmul.mubr.bf16.gmra.mrb[0].mxu0 %v934
      %v1148 = vpop.f32.mrb[0].mxu0
      %v1149 = vadd.f32 %v984, %v1148
      %v1150 = vpop.f32.mrb[0].mxu0
      %v1151 = vpop.f32.mrb[0].mxu0
      %v1152 = vadd.f32 %v984, %v1151
      %v1153 = vpop.f32.mrb[0].mxu0
      %1154 = vmatprep.mubr.bf16.mxu0 %v938
      %1155 = vmatmul.mubr.bf16.gmra.mrb[0].mxu0 %v937
      %v1156 = vpop.f32.mrb[0].mxu0
      %v1157 = vadd.f32 %v984, %v1156
      %v1158 = vpop.f32.mrb[0].mxu0
      %v1159 = vpop.f32.mrb[0].mxu0
      %v1160 = vadd.f32 %v984, %v1159
      %v1161 = vpop.f32.mrb[0].mxu0
      %1162 = vmatprep.mubr.bf16.mxu0 %v941
      %1163 = vmatmul.mubr.bf16.gmra.mrb[0].mxu0 %v940
      %v1164 = vpop.f32.mrb[0].mxu0
      %v1165 = vadd.f32 %v984, %v1164
      %v1166 = vpop.f32.mrb[0].mxu0
      %v1167 = vpop.f32.mrb[0].mxu0
      %v1168 = vadd.f32 %v984, %v1167
      %v1169 = vpop.f32.mrb[0].mxu0
      %1170 = vdwg.mxu0
      %1171 = vmatprep.subr.bf16.mxu0 0
      %1172 = vmatpush1.bf16.msra.mxu0 %v1074
      %1173 = vmatprep.subr.bf16.mxu0 0
      %1174 = vmatpush1.bf16.msra.mxu0 %v1075
      %1175 = vmatprep.subr.bf16.mxu0 0
      %1176 = vmatpush1.bf16.msra.mxu0 0
      %1177 = vmatprep.subr.bf16.mxu0 0
      %1178 = vmatpush1.bf16.msra.mxu0 0
      %1179 = vmatprep.subr.bf16.mxu0 0
      %1180 = vmatpush1.bf16.msra.mxu0 0
      %1181 = vmatprep.subr.bf16.mxu0 0
      %1182 = vmatpush1.bf16.msra.mxu0 0
      %1183 = vmatprep.subr.bf16.mxu0 0
      %1184 = vmatpush1.bf16.msra.mxu0 0
      %1185 = vmatprep.subr.bf16.mxu0 0
      %1186 = vmatpush1.bf16.msra.mxu0 0
      %1187 = vmatprep.subr.bf16.mxu0 0
      %1188 = vmatpush1.bf16.msra.mxu0 0
      %1189 = vmatprep.subr.bf16.mxu0 0
      %1190 = vmatpush1.bf16.msra.mxu0 0
      %1191 = vmatprep.subr.bf16.mxu0 0
      %1192 = vmatpush1.bf16.msra.mxu0 0
      %1193 = vmatprep.subr.bf16.mxu0 0
      %1194 = vmatpush1.bf16.msra.mxu0 0
      %1195 = vmatprep.subr.bf16.mxu0 0
      %1196 = vmatpush1.bf16.msra.mxu0 0
      %1197 = vmatprep.subr.bf16.mxu0 0
      %1198 = vmatpush1.bf16.msra.mxu0 0
      %1199 = vmatprep.subr.bf16.mxu0 0
      %1200 = vmatpush1.bf16.msra.mxu0 0
      %1201 = vmatprep.subr.bf16.mxu0 0
      %1202 = vmatpush1.bf16.msra.mxu0 0
      %1203 = vmatprep.mubr.bf16.mxu0 0
      %1204 = vmatmul.mubr.bf16.gmra.mrb[0].mxu0 %v1095
      %v1205 = vpop.f32.mrb[0].mxu0
      %v1206 = vadd.f32 %v1141, %v1205
      %v1207 = vpop.f32.mrb[0].mxu0
      %v1208 = vpop.f32.mrb[0].mxu0
      %v1209 = vadd.f32 %v1144, %v1208
      %v1210 = vpop.f32.mrb[0].mxu0
      %1211 = vmatprep.mubr.bf16.mxu0 0
      %1212 = vmatmul.mubr.bf16.gmra.mrb[0].mxu0 %v1098
      %v1213 = vpop.f32.mrb[0].mxu0
      %v1214 = vadd.f32 %v1149, %v1213
      %v1215 = vpop.f32.mrb[0].mxu0
      %v1216 = vpop.f32.mrb[0].mxu0
      %v1217 = vadd.f32 %v1152, %v1216
      %v1218 = vpop.f32.mrb[0].mxu0
      %1219 = vmatprep.mubr.bf16.mxu0 0
      %1220 = vmatmul.mubr.bf16.gmra.mrb[0].mxu0 %v1101
      %v1221 = vpop.f32.mrb[0].mxu0
      %v1222 = vadd.f32 %v1157, %v1221
      %v1223 = vpop.f32.mrb[0].mxu0
      %v1224 = vpop.f32.mrb[0].mxu0
      %v1225 = vadd.f32 %v1160, %v1224
      %v1226 = vpop.f32.mrb[0].mxu0
      %1227 = vmatprep.mubr.bf16.mxu0 0
      %1228 = vmatmul.mubr.bf16.gmra.mrb[0].mxu0 %v1104
      %v1229 = vpop.f32.mrb[0].mxu0
      %v1230 = vadd.f32 %v1165, %v1229
      %v1231 = vpop.f32.mrb[0].mxu0
      %v1232 = vpop.f32.mrb[0].mxu0
      %v1233 = vadd.f32 %v1168, %v1232
      %v1234 = vpop.f32.mrb[0].mxu0
      %1235 = vdwg.mxu0
      %v1236 = vpack.c.bf16 %v1209, %v1206
      %v1237 = vpack.c.bf16 %v1217, %v1214
      %v1238 = vpack.c.bf16 %v1225, %v1222
      %v1239 = vpack.c.bf16 %v1233, %v1230
      %v1244 = vcombine.high %v1236, %v1236
      %v1246 = vunpack.c.l.s4 1966171168
      %v1247 = vunpack.c.0.s8 %v1246
      %v1248 = vlaneseq
      %v1249 = vshrl.u32 %v1248, 7
      %v1250 = vsub.s32 %v1247, %v1249
      %v1251 = vrot.slane %v1236, %v1250
      %v1253 = vunpack.c.l.s4 1966171168
      %v1254 = vunpack.c.0.s8 %v1253
      %v1255 = vlaneseq
      %v1256 = vshrl.u32 %v1255, 7
      %v1257 = vsub.s32 %v1254, %v1256
      %v1258 = vrot.slane %v1244, %v1257
      %v1259 = vcombine.high %v1251, %v1251
      %v1260 = vcombine.high %v1258, %v1258
      %v1262 = vunpack.c.l.s4 1966171168
      %v1263 = vunpack.c.0.s8 %v1262
      %v1264 = vlaneseq
      %v1265 = vshrl.u32 %v1264, 7
      %v1266 = vsub.s32 %v1263, %v1265
      %v1267 = vrot.slane %v1251, %v1266
      %v1269 = vunpack.c.l.s4 1966171168
      %v1270 = vunpack.c.0.s8 %v1269
      %v1271 = vlaneseq
      %v1272 = vshrl.u32 %v1271, 7
      %v1273 = vsub.s32 %v1270, %v1272
      %v1274 = vrot.slane %v1258, %v1273
      %v1276 = vunpack.c.l.s4 1966171168
      %v1277 = vunpack.c.0.s8 %v1276
      %v1278 = vlaneseq
      %v1279 = vshrl.u32 %v1278, 7
      %v1280 = vsub.s32 %v1277, %v1279
      %v1281 = vrot.slane %v1259, %v1280
      %v1283 = vunpack.c.l.s4 1966171168
      %v1284 = vunpack.c.0.s8 %v1283
      %v1285 = vlaneseq
      %v1286 = vshrl.u32 %v1285, 7
      %v1287 = vsub.s32 %v1284, %v1286
      %v1288 = vrot.slane %v1260, %v1287
      %v1289 = vcombine.high %v1267, %v1267
      %v1290 = vcombine.high %v1274, %v1274
      %v1291 = vcombine.high %v1281, %v1281
      %v1292 = vcombine.high %v1288, %v1288
      %v1293 = vcombine.high %v1237, %v1237
      %v1295 = vunpack.c.l.s4 1966171168
      %v1296 = vunpack.c.0.s8 %v1295
      %v1297 = vlaneseq
      %v1298 = vshrl.u32 %v1297, 7
      %v1299 = vsub.s32 %v1296, %v1298
      %v1300 = vrot.slane %v1237, %v1299
      %v1302 = vunpack.c.l.s4 1966171168
      %v1303 = vunpack.c.0.s8 %v1302
      %v1304 = vlaneseq
      %v1305 = vshrl.u32 %v1304, 7
      %v1306 = vsub.s32 %v1303, %v1305
      %v1307 = vrot.slane %v1293, %v1306
      %v1308 = vcombine.high %v1300, %v1300
      %v1309 = vcombine.high %v1307, %v1307
      %v1311 = vunpack.c.l.s4 1966171168
      %v1312 = vunpack.c.0.s8 %v1311
      %v1313 = vlaneseq
      %v1314 = vshrl.u32 %v1313, 7
      %v1315 = vsub.s32 %v1312, %v1314
      %v1316 = vrot.slane %v1300, %v1315
      %v1318 = vunpack.c.l.s4 1966171168
      %v1319 = vunpack.c.0.s8 %v1318
      %v1320 = vlaneseq
      %v1321 = vshrl.u32 %v1320, 7
      %v1322 = vsub.s32 %v1319, %v1321
      %v1323 = vrot.slane %v1307, %v1322
      %v1325 = vunpack.c.l.s4 1966171168
      %v1326 = vunpack.c.0.s8 %v1325
      %v1327 = vlaneseq
      %v1328 = vshrl.u32 %v1327, 7
      %v1329 = vsub.s32 %v1326, %v1328
      %v1330 = vrot.slane %v1308, %v1329
      %v1332 = vunpack.c.l.s4 1966171168
      %v1333 = vunpack.c.0.s8 %v1332
      %v1334 = vlaneseq
      %v1335 = vshrl.u32 %v1334, 7
      %v1336 = vsub.s32 %v1333, %v1335
      %v1337 = vrot.slane %v1309, %v1336
      %v1338 = vcombine.high %v1316, %v1316
      %v1339 = vcombine.high %v1323, %v1323
      %v1340 = vcombine.high %v1330, %v1330
      %v1341 = vcombine.high %v1337, %v1337
      %v1342 = vcombine.high %v1238, %v1238
      %v1344 = vunpack.c.l.s4 1966171168
      %v1345 = vunpack.c.0.s8 %v1344
      %v1346 = vlaneseq
      %v1347 = vshrl.u32 %v1346, 7
      %v1348 = vsub.s32 %v1345, %v1347
      %v1349 = vrot.slane %v1238, %v1348
      %v1351 = vunpack.c.l.s4 1966171168
      %v1352 = vunpack.c.0.s8 %v1351
      %v1353 = vlaneseq
      %v1354 = vshrl.u32 %v1353, 7
      %v1355 = vsub.s32 %v1352, %v1354
      %v1356 = vrot.slane %v1342, %v1355
      %v1357 = vcombine.high %v1349, %v1349
      %v1358 = vcombine.high %v1356, %v1356
      %v1360 = vunpack.c.l.s4 1966171168
      %v1361 = vunpack.c.0.s8 %v1360
      %v1362 = vlaneseq
      %v1363 = vshrl.u32 %v1362, 7
      %v1364 = vsub.s32 %v1361, %v1363
      %v1365 = vrot.slane %v1349, %v1364
      %v1367 = vunpack.c.l.s4 1966171168
      %v1368 = vunpack.c.0.s8 %v1367
      %v1369 = vlaneseq
      %v1370 = vshrl.u32 %v1369, 7
      %v1371 = vsub.s32 %v1368, %v1370
      %v1372 = vrot.slane %v1356, %v1371
      %v1374 = vunpack.c.l.s4 1966171168
      %v1375 = vunpack.c.0.s8 %v1374
      %v1376 = vlaneseq
      %v1377 = vshrl.u32 %v1376, 7
      %v1378 = vsub.s32 %v1375, %v1377
      %v1379 = vrot.slane %v1357, %v1378
      %v1381 = vunpack.c.l.s4 1966171168
      %v1382 = vunpack.c.0.s8 %v1381
      %v1383 = vlaneseq
      %v1384 = vshrl.u32 %v1383, 7
      %v1385 = vsub.s32 %v1382, %v1384
      %v1386 = vrot.slane %v1358, %v1385
      %v1387 = vcombine.high %v1365, %v1365
      %v1388 = vcombine.high %v1372, %v1372
      %v1389 = vcombine.high %v1379, %v1379
      %v1390 = vcombine.high %v1386, %v1386
      %v1391 = vcombine.high %v1239, %v1239
      %v1393 = vunpack.c.l.s4 1966171168
      %v1394 = vunpack.c.0.s8 %v1393
      %v1395 = vlaneseq
      %v1396 = vshrl.u32 %v1395, 7
      %v1397 = vsub.s32 %v1394, %v1396
      %v1398 = vrot.slane %v1239, %v1397
      %v1400 = vunpack.c.l.s4 1966171168
      %v1401 = vunpack.c.0.s8 %v1400
      %v1402 = vlaneseq
      %v1403 = vshrl.u32 %v1402, 7
      %v1404 = vsub.s32 %v1401, %v1403
      %v1405 = vrot.slane %v1391, %v1404
      %v1406 = vcombine.high %v1398, %v1398
      %v1407 = vcombine.high %v1405, %v1405
      %v1409 = vunpack.c.l.s4 1966171168
      %v1410 = vunpack.c.0.s8 %v1409
      %v1411 = vlaneseq
      %v1412 = vshrl.u32 %v1411, 7
      %v1413 = vsub.s32 %v1410, %v1412
      %v1414 = vrot.slane %v1398, %v1413
      %v1416 = vunpack.c.l.s4 1966171168
      %v1417 = vunpack.c.0.s8 %v1416
      %v1418 = vlaneseq
      %v1419 = vshrl.u32 %v1418, 7
      %v1420 = vsub.s32 %v1417, %v1419
      %v1421 = vrot.slane %v1405, %v1420
      %v1423 = vunpack.c.l.s4 1966171168
      %v1424 = vunpack.c.0.s8 %v1423
      %v1425 = vlaneseq
      %v1426 = vshrl.u32 %v1425, 7
      %v1427 = vsub.s32 %v1424, %v1426
      %v1428 = vrot.slane %v1406, %v1427
      %v1430 = vunpack.c.l.s4 1966171168
      %v1431 = vunpack.c.0.s8 %v1430
      %v1432 = vlaneseq
      %v1433 = vshrl.u32 %v1432, 7
      %v1434 = vsub.s32 %v1431, %v1433
      %v1435 = vrot.slane %v1407, %v1434
      %v1436 = vcombine.high %v1414, %v1414
      %v1437 = vcombine.high %v1421, %v1421
      %v1438 = vcombine.high %v1428, %v1428
      %v1439 = vcombine.high %v1435, %v1435
      %v1440 = vunpack.i.l.s16 %v1267
      %v1441 = vunpack.i.h.s16 %v1267
      %v1442 = vunpack.i.l.s16 %v1281
      %v1443 = vunpack.i.h.s16 %v1281
      %v1444 = vunpack.i.l.s16 %v1289
      %v1445 = vunpack.i.h.s16 %v1289
      %v1446 = vunpack.i.l.s16 %v1291
      %v1447 = vunpack.i.h.s16 %v1291
      %v1448 = vunpack.i.l.s16 %v1274
      %v1449 = vunpack.i.h.s16 %v1274
      %v1450 = vunpack.i.l.s16 %v1288
      %v1451 = vunpack.i.h.s16 %v1288
      %v1452 = vunpack.i.l.s16 %v1290
      %v1453 = vunpack.i.h.s16 %v1290
      %v1454 = vunpack.i.l.s16 %v1292
      %v1455 = vunpack.i.h.s16 %v1292
      %v1456 = vunpack.i.l.s16 %v1316
      %v1457 = vunpack.i.h.s16 %v1316
      %v1458 = vunpack.i.l.s16 %v1330
      %v1459 = vunpack.i.h.s16 %v1330
      %v1460 = vunpack.i.l.s16 %v1338
      %v1461 = vunpack.i.h.s16 %v1338
      %v1462 = vunpack.i.l.s16 %v1340
      %v1463 = vunpack.i.h.s16 %v1340
      %v1464 = vunpack.i.l.s16 %v1323
      %v1465 = vunpack.i.h.s16 %v1323
      %v1466 = vunpack.i.l.s16 %v1337
      %v1467 = vunpack.i.h.s16 %v1337
      %v1468 = vunpack.i.l.s16 %v1339
      %v1469 = vunpack.i.h.s16 %v1339
      %v1470 = vunpack.i.l.s16 %v1341
      %v1471 = vunpack.i.h.s16 %v1341
      %v1472 = vunpack.i.l.s16 %v1365
      %v1473 = vunpack.i.h.s16 %v1365
      %v1474 = vunpack.i.l.s16 %v1379
      %v1475 = vunpack.i.h.s16 %v1379
      %v1476 = vunpack.i.l.s16 %v1387
      %v1477 = vunpack.i.h.s16 %v1387
      %v1478 = vunpack.i.l.s16 %v1389
      %v1479 = vunpack.i.h.s16 %v1389
      %v1480 = vunpack.i.l.s16 %v1372
      %v1481 = vunpack.i.h.s16 %v1372
      %v1482 = vunpack.i.l.s16 %v1386
      %v1483 = vunpack.i.h.s16 %v1386
      %v1484 = vunpack.i.l.s16 %v1388
      %v1485 = vunpack.i.h.s16 %v1388
      %v1486 = vunpack.i.l.s16 %v1390
      %v1487 = vunpack.i.h.s16 %v1390
      %v1488 = vunpack.i.l.s16 %v1414
      %v1489 = vunpack.i.h.s16 %v1414
      %v1490 = vunpack.i.l.s16 %v1428
      %v1491 = vunpack.i.h.s16 %v1428
      %v1492 = vunpack.i.l.s16 %v1436
      %v1493 = vunpack.i.h.s16 %v1436
      %v1494 = vunpack.i.l.s16 %v1438
      %v1495 = vunpack.i.h.s16 %v1438
      %v1496 = vunpack.i.l.s16 %v1421
      %v1497 = vunpack.i.h.s16 %v1421
      %v1498 = vunpack.i.l.s16 %v1435
      %v1499 = vunpack.i.h.s16 %v1435
      %v1500 = vunpack.i.l.s16 %v1437
      %v1501 = vunpack.i.h.s16 %v1437
      %v1502 = vunpack.i.l.s16 %v1439
      %v1503 = vunpack.i.h.s16 %v1439
      %v1504 = vpack.i.b16 %v1440, %v1440
      %v1505 = vpack.i.b16 %v1441, %v1441
      %v1506 = vpack.i.b16 %v1442, %v1442
      %v1507 = vpack.i.b16 %v1443, %v1443
      %v1508 = vpack.i.b16 %v1444, %v1444
      %v1509 = vpack.i.b16 %v1445, %v1445
      %v1510 = vpack.i.b16 %v1446, %v1446
      %v1511 = vpack.i.b16 %v1447, %v1447
      %v1512 = vpack.i.b16 %v1448, %v1448
      %v1513 = vpack.i.b16 %v1449, %v1449
      %v1514 = vpack.i.b16 %v1450, %v1450
      %v1515 = vpack.i.b16 %v1451, %v1451
      %v1516 = vpack.i.b16 %v1452, %v1452
      %v1517 = vpack.i.b16 %v1453, %v1453
      %v1518 = vpack.i.b16 %v1454, %v1454
      %v1519 = vpack.i.b16 %v1455, %v1455
      %v1520 = vpack.i.b16 %v1456, %v1456
      %v1521 = vpack.i.b16 %v1457, %v1457
      %v1522 = vpack.i.b16 %v1458, %v1458
      %v1523 = vpack.i.b16 %v1459, %v1459
      %v1524 = vpack.i.b16 %v1460, %v1460
      %v1525 = vpack.i.b16 %v1461, %v1461
      %v1526 = vpack.i.b16 %v1462, %v1462
      %v1527 = vpack.i.b16 %v1463, %v1463
      %v1528 = vpack.i.b16 %v1464, %v1464
      %v1529 = vpack.i.b16 %v1465, %v1465
      %v1530 = vpack.i.b16 %v1466, %v1466
      %v1531 = vpack.i.b16 %v1467, %v1467
      %v1532 = vpack.i.b16 %v1468, %v1468
      %v1533 = vpack.i.b16 %v1469, %v1469
      %v1534 = vpack.i.b16 %v1470, %v1470
      %v1535 = vpack.i.b16 %v1471, %v1471
      %v1536 = vpack.i.b16 %v1472, %v1472
      %v1537 = vpack.i.b16 %v1473, %v1473
      %v1538 = vpack.i.b16 %v1474, %v1474
      %v1539 = vpack.i.b16 %v1475, %v1475
      %v1540 = vpack.i.b16 %v1476, %v1476
      %v1541 = vpack.i.b16 %v1477, %v1477
      %v1542 = vpack.i.b16 %v1478, %v1478
      %v1543 = vpack.i.b16 %v1479, %v1479
      %v1544 = vpack.i.b16 %v1480, %v1480
      %v1545 = vpack.i.b16 %v1481, %v1481
      %v1546 = vpack.i.b16 %v1482, %v1482
      %v1547 = vpack.i.b16 %v1483, %v1483
      %v1548 = vpack.i.b16 %v1484, %v1484
      %v1549 = vpack.i.b16 %v1485, %v1485
      %v1550 = vpack.i.b16 %v1486, %v1486
      %v1551 = vpack.i.b16 %v1487, %v1487
      %v1552 = vpack.i.b16 %v1488, %v1488
      %v1553 = vpack.i.b16 %v1489, %v1489
      %v1554 = vpack.i.b16 %v1490, %v1490
      %v1555 = vpack.i.b16 %v1491, %v1491
      %v1556 = vpack.i.b16 %v1492, %v1492
      %v1557 = vpack.i.b16 %v1493, %v1493
      %v1558 = vpack.i.b16 %v1494, %v1494
      %v1559 = vpack.i.b16 %v1495, %v1495
      %v1560 = vpack.i.b16 %v1496, %v1496
      %v1561 = vpack.i.b16 %v1497, %v1497
      %v1562 = vpack.i.b16 %v1498, %v1498
      %v1563 = vpack.i.b16 %v1499, %v1499
      %v1564 = vpack.i.b16 %v1500, %v1500
      %v1565 = vpack.i.b16 %v1501, %v1501
      %v1566 = vpack.i.b16 %v1502, %v1502
      %v1567 = vpack.i.b16 %v1503, %v1503
      %vm1632 = vcmask 122880
      %vm1633 = vmand %vm1632, %vm477
      %v1634 = vld [vmem:[#allocation3] sm:$0x1]
      %v1635 = vsel %vm1633, %v1504, %v1634
      %1636 = vst [vmem:[#allocation3] sm:$0x1] %v1635
      %v1637 = vld [vmem:[#allocation3 + $0x1] sm:$0x1]
      %v1638 = vsel %vm1633, %v1505, %v1637
      %1639 = vst [vmem:[#allocation3 + $0x1] sm:$0x1] %v1638
      %v1640 = vld [vmem:[#allocation3 + $0x2] sm:$0x1]
      %v1641 = vsel %vm1633, %v1506, %v1640
      %1642 = vst [vmem:[#allocation3 + $0x2] sm:$0x1] %v1641
      %v1643 = vld [vmem:[#allocation3 + $0x3] sm:$0x1]
      %v1644 = vsel %vm1633, %v1507, %v1643
      %1645 = vst [vmem:[#allocation3 + $0x3] sm:$0x1] %v1644
      %v1646 = vld [vmem:[#allocation3 + $0x4] sm:$0x1]
      %v1647 = vsel %vm1633, %v1508, %v1646
      %1648 = vst [vmem:[#allocation3 + $0x4] sm:$0x1] %v1647
      %v1649 = vld [vmem:[#allocation3 + $0x5] sm:$0x1]
      %v1650 = vsel %vm1633, %v1509, %v1649
      %1651 = vst [vmem:[#allocation3 + $0x5] sm:$0x1] %v1650
      %v1652 = vld [vmem:[#allocation3 + $0x6] sm:$0x1]
      %v1653 = vsel %vm1633, %v1510, %v1652
      %1654 = vst [vmem:[#allocation3 + $0x6] sm:$0x1] %v1653
      %v1655 = vld [vmem:[#allocation3 + $0x7] sm:$0x1]
      %v1656 = vsel %vm1633, %v1511, %v1655
      %1657 = vst [vmem:[#allocation3 + $0x7] sm:$0x1] %v1656
      %v1658 = vld [vmem:[#allocation3 + $0x10] sm:$0x1]
      %v1659 = vsel %vm1633, %v1512, %v1658
      %1660 = vst [vmem:[#allocation3 + $0x10] sm:$0x1] %v1659
      %v1661 = vld [vmem:[#allocation3 + $0x11] sm:$0x1]
      %v1662 = vsel %vm1633, %v1513, %v1661
      %1663 = vst [vmem:[#allocation3 + $0x11] sm:$0x1] %v1662
      %v1664 = vld [vmem:[#allocation3 + $0x12] sm:$0x1]
      %v1665 = vsel %vm1633, %v1514, %v1664
      %1666 = vst [vmem:[#allocation3 + $0x12] sm:$0x1] %v1665
      %v1667 = vld [vmem:[#allocation3 + $0x13] sm:$0x1]
      %v1668 = vsel %vm1633, %v1515, %v1667
      %1669 = vst [vmem:[#allocation3 + $0x13] sm:$0x1] %v1668
      %v1670 = vld [vmem:[#allocation3 + $0x14] sm:$0x1]
      %v1671 = vsel %vm1633, %v1516, %v1670
      %1672 = vst [vmem:[#allocation3 + $0x14] sm:$0x1] %v1671
      %v1673 = vld [vmem:[#allocation3 + $0x15] sm:$0x1]
      %v1674 = vsel %vm1633, %v1517, %v1673
      %1675 = vst [vmem:[#allocation3 + $0x15] sm:$0x1] %v1674
      %v1676 = vld [vmem:[#allocation3 + $0x16] sm:$0x1]
      %v1677 = vsel %vm1633, %v1518, %v1676
      %1678 = vst [vmem:[#allocation3 + $0x16] sm:$0x1] %v1677
      %v1679 = vld [vmem:[#allocation3 + $0x17] sm:$0x1]
      %v1680 = vsel %vm1633, %v1519, %v1679
      %1681 = vst [vmem:[#allocation3 + $0x17] sm:$0x1] %v1680
      %v1682 = vld [vmem:[#allocation3 + $0x20] sm:$0x1]
      %v1683 = vsel %vm1633, %v1520, %v1682
      %1684 = vst [vmem:[#allocation3 + $0x20] sm:$0x1] %v1683
      %v1685 = vld [vmem:[#allocation3 + $0x21] sm:$0x1]
      %v1686 = vsel %vm1633, %v1521, %v1685
      %1687 = vst [vmem:[#allocation3 + $0x21] sm:$0x1] %v1686
      %v1688 = vld [vmem:[#allocation3 + $0x22] sm:$0x1]
      %v1689 = vsel %vm1633, %v1522, %v1688
      %1690 = vst [vmem:[#allocation3 + $0x22] sm:$0x1] %v1689
      %v1691 = vld [vmem:[#allocation3 + $0x23] sm:$0x1]
      %v1692 = vsel %vm1633, %v1523, %v1691
      %1693 = vst [vmem:[#allocation3 + $0x23] sm:$0x1] %v1692
      %v1694 = vld [vmem:[#allocation3 + $0x24] sm:$0x1]
      %v1695 = vsel %vm1633, %v1524, %v1694
      %1696 = vst [vmem:[#allocation3 + $0x24] sm:$0x1] %v1695
      %v1697 = vld [vmem:[#allocation3 + $0x25] sm:$0x1]
      %v1698 = vsel %vm1633, %v1525, %v1697
      %1699 = vst [vmem:[#allocation3 + $0x25] sm:$0x1] %v1698
      %v1700 = vld [vmem:[#allocation3 + $0x26] sm:$0x1]
      %v1701 = vsel %vm1633, %v1526, %v1700
      %1702 = vst [vmem:[#allocation3 + $0x26] sm:$0x1] %v1701
      %v1703 = vld [vmem:[#allocation3 + $0x27] sm:$0x1]
      %v1704 = vsel %vm1633, %v1527, %v1703
      %1705 = vst [vmem:[#allocation3 + $0x27] sm:$0x1] %v1704
      %v1706 = vld [vmem:[#allocation3 + $0x30] sm:$0x1]
      %v1707 = vsel %vm1633, %v1528, %v1706
      %1708 = vst [vmem:[#allocation3 + $0x30] sm:$0x1] %v1707
      %v1709 = vld [vmem:[#allocation3 + $0x31] sm:$0x1]
      %v1710 = vsel %vm1633, %v1529, %v1709
      %1711 = vst [vmem:[#allocation3 + $0x31] sm:$0x1] %v1710
      %v1712 = vld [vmem:[#allocation3 + $0x32] sm:$0x1]
      %v1713 = vsel %vm1633, %v1530, %v1712
      %1714 = vst [vmem:[#allocation3 + $0x32] sm:$0x1] %v1713
      %v1715 = vld [vmem:[#allocation3 + $0x33] sm:$0x1]
      %v1716 = vsel %vm1633, %v1531, %v1715
      %1717 = vst [vmem:[#allocation3 + $0x33] sm:$0x1] %v1716
      %v1718 = vld [vmem:[#allocation3 + $0x34] sm:$0x1]
      %v1719 = vsel %vm1633, %v1532, %v1718
      %1720 = vst [vmem:[#allocation3 + $0x34] sm:$0x1] %v1719
      %v1721 = vld [vmem:[#allocation3 + $0x35] sm:$0x1]
      %v1722 = vsel %vm1633, %v1533, %v1721
      %1723 = vst [vmem:[#allocation3 + $0x35] sm:$0x1] %v1722
      %v1724 = vld [vmem:[#allocation3 + $0x36] sm:$0x1]
      %v1725 = vsel %vm1633, %v1534, %v1724
      %1726 = vst [vmem:[#allocation3 + $0x36] sm:$0x1] %v1725
      %v1727 = vld [vmem:[#allocation3 + $0x37] sm:$0x1]
      %v1728 = vsel %vm1633, %v1535, %v1727
      %1729 = vst [vmem:[#allocation3 + $0x37] sm:$0x1] %v1728
      %v1730 = vld [vmem:[#allocation3 + $0x40] sm:$0x1]
      %v1731 = vsel %vm1633, %v1536, %v1730
      %1732 = vst [vmem:[#allocation3 + $0x40] sm:$0x1] %v1731
      %v1733 = vld [vmem:[#allocation3 + $0x41] sm:$0x1]
      %v1734 = vsel %vm1633, %v1537, %v1733
      %1735 = vst [vmem:[#allocation3 + $0x41] sm:$0x1] %v1734
      %v1736 = vld [vmem:[#allocation3 + $0x42] sm:$0x1]
      %v1737 = vsel %vm1633, %v1538, %v1736
      %1738 = vst [vmem:[#allocation3 + $0x42] sm:$0x1] %v1737
      %v1739 = vld [vmem:[#allocation3 + $0x43] sm:$0x1]
      %v1740 = vsel %vm1633, %v1539, %v1739
      %1741 = vst [vmem:[#allocation3 + $0x43] sm:$0x1] %v1740
      %v1742 = vld [vmem:[#allocation3 + $0x44] sm:$0x1]
      %v1743 = vsel %vm1633, %v1540, %v1742
      %1744 = vst [vmem:[#allocation3 + $0x44] sm:$0x1] %v1743
      %v1745 = vld [vmem:[#allocation3 + $0x45] sm:$0x1]
      %v1746 = vsel %vm1633, %v1541, %v1745
      %1747 = vst [vmem:[#allocation3 + $0x45] sm:$0x1] %v1746
      %v1748 = vld [vmem:[#allocation3 + $0x46] sm:$0x1]
      %v1749 = vsel %vm1633, %v1542, %v1748
      %1750 = vst [vmem:[#allocation3 + $0x46] sm:$0x1] %v1749
      %v1751 = vld [vmem:[#allocation3 + $0x47] sm:$0x1]
      %v1752 = vsel %vm1633, %v1543, %v1751
      %1753 = vst [vmem:[#allocation3 + $0x47] sm:$0x1] %v1752
      %v1754 = vld [vmem:[#allocation3 + $0x50] sm:$0x1]
      %v1755 = vsel %vm1633, %v1544, %v1754
      %1756 = vst [vmem:[#allocation3 + $0x50] sm:$0x1] %v1755
      %v1757 = vld [vmem:[#allocation3 + $0x51] sm:$0x1]
      %v1758 = vsel %vm1633, %v1545, %v1757
      %1759 = vst [vmem:[#allocation3 + $0x51] sm:$0x1] %v1758
      %v1760 = vld [vmem:[#allocation3 + $0x52] sm:$0x1]
      %v1761 = vsel %vm1633, %v1546, %v1760
      %1762 = vst [vmem:[#allocation3 + $0x52] sm:$0x1] %v1761
      %v1763 = vld [vmem:[#allocation3 + $0x53] sm:$0x1]
      %v1764 = vsel %vm1633, %v1547, %v1763
      %1765 = vst [vmem:[#allocation3 + $0x53] sm:$0x1] %v1764
      %v1766 = vld [vmem:[#allocation3 + $0x54] sm:$0x1]
      %v1767 = vsel %vm1633, %v1548, %v1766
      %1768 = vst [vmem:[#allocation3 + $0x54] sm:$0x1] %v1767
      %v1769 = vld [vmem:[#allocation3 + $0x55] sm:$0x1]
      %v1770 = vsel %vm1633, %v1549, %v1769
      %1771 = vst [vmem:[#allocation3 + $0x55] sm:$0x1] %v1770
      %v1772 = vld [vmem:[#allocation3 + $0x56] sm:$0x1]
      %v1773 = vsel %vm1633, %v1550, %v1772
      %1774 = vst [vmem:[#allocation3 + $0x56] sm:$0x1] %v1773
      %v1775 = vld [vmem:[#allocation3 + $0x57] sm:$0x1]
      %v1776 = vsel %vm1633, %v1551, %v1775
      %1777 = vst [vmem:[#allocation3 + $0x57] sm:$0x1] %v1776
      %v1778 = vld [vmem:[#allocation3 + $0x60] sm:$0x1]
      %v1779 = vsel %vm1633, %v1552, %v1778
      %1780 = vst [vmem:[#allocation3 + $0x60] sm:$0x1] %v1779
      %v1781 = vld [vmem:[#allocation3 + $0x61] sm:$0x1]
      %v1782 = vsel %vm1633, %v1553, %v1781
      %1783 = vst [vmem:[#allocation3 + $0x61] sm:$0x1] %v1782
      %v1784 = vld [vmem:[#allocation3 + $0x62] sm:$0x1]
      %v1785 = vsel %vm1633, %v1554, %v1784
      %1786 = vst [vmem:[#allocation3 + $0x62] sm:$0x1] %v1785
      %v1787 = vld [vmem:[#allocation3 + $0x63] sm:$0x1]
      %v1788 = vsel %vm1633, %v1555, %v1787
      %1789 = vst [vmem:[#allocation3 + $0x63] sm:$0x1] %v1788
      %v1790 = vld [vmem:[#allocation3 + $0x64] sm:$0x1]
      %v1791 = vsel %vm1633, %v1556, %v1790
      %1792 = vst [vmem:[#allocation3 + $0x64] sm:$0x1] %v1791
      %v1793 = vld [vmem:[#allocation3 + $0x65] sm:$0x1]
      %v1794 = vsel %vm1633, %v1557, %v1793
      %1795 = vst [vmem:[#allocation3 + $0x65] sm:$0x1] %v1794
      %v1796 = vld [vmem:[#allocation3 + $0x66] sm:$0x1]
      %v1797 = vsel %vm1633, %v1558, %v1796
      %1798 = vst [vmem:[#allocation3 + $0x66] sm:$0x1] %v1797
      %v1799 = vld [vmem:[#allocation3 + $0x67] sm:$0x1]
      %v1800 = vsel %vm1633, %v1559, %v1799
      %1801 = vst [vmem:[#allocation3 + $0x67] sm:$0x1] %v1800
      %v1802 = vld [vmem:[#allocation3 + $0x70] sm:$0x1]
      %v1803 = vsel %vm1633, %v1560, %v1802
      %1804 = vst [vmem:[#allocation3 + $0x70] sm:$0x1] %v1803
      %v1805 = vld [vmem:[#allocation3 + $0x71] sm:$0x1]
      %v1806 = vsel %vm1633, %v1561, %v1805
      %1807 = vst [vmem:[#allocation3 + $0x71] sm:$0x1] %v1806
      %v1808 = vld [vmem:[#allocation3 + $0x72] sm:$0x1]
      %v1809 = vsel %vm1633, %v1562, %v1808
      %1810 = vst [vmem:[#allocation3 + $0x72] sm:$0x1] %v1809
      %v1811 = vld [vmem:[#allocation3 + $0x73] sm:$0x1]
      %v1812 = vsel %vm1633, %v1563, %v1811
      %1813 = vst [vmem:[#allocation3 + $0x73] sm:$0x1] %v1812
      %v1814 = vld [vmem:[#allocation3 + $0x74] sm:$0x1]
      %v1815 = vsel %vm1633, %v1564, %v1814
      %1816 = vst [vmem:[#allocation3 + $0x74] sm:$0x1] %v1815
      %v1817 = vld [vmem:[#allocation3 + $0x75] sm:$0x1]
      %v1818 = vsel %vm1633, %v1565, %v1817
      %1819 = vst [vmem:[#allocation3 + $0x75] sm:$0x1] %v1818
      %v1820 = vld [vmem:[#allocation3 + $0x76] sm:$0x1]
      %v1821 = vsel %vm1633, %v1566, %v1820
      %1822 = vst [vmem:[#allocation3 + $0x76] sm:$0x1] %v1821
      %v1823 = vld [vmem:[#allocation3 + $0x77] sm:$0x1]
      %v1824 = vsel %vm1633, %v1567, %v1823
      %1825 = vst [vmem:[#allocation3 + $0x77] sm:$0x1] %v1824
      %1826 = vrot.lane.b32.xlu0 %v1504, 112
      %v1827 = vpop.permute.xlu0 %1826
      %1828 = vrot.lane.b32.xlu0 %v1505, 112
      %v1829 = vpop.permute.xlu0 %1828
      %1830 = vrot.lane.b32.xlu0 %v1506, 112
      %v1831 = vpop.permute.xlu0 %1830
      %1832 = vrot.lane.b32.xlu0 %v1507, 112
      %v1833 = vpop.permute.xlu0 %1832
      %1834 = vrot.lane.b32.xlu0 %v1508, 112
      %v1835 = vpop.permute.xlu0 %1834
      %1836 = vrot.lane.b32.xlu0 %v1509, 112
      %v1837 = vpop.permute.xlu0 %1836
      %1838 = vrot.lane.b32.xlu0 %v1510, 112
      %v1839 = vpop.permute.xlu0 %1838
      %1840 = vrot.lane.b32.xlu0 %v1511, 112
      %v1841 = vpop.permute.xlu0 %1840
      %1842 = vrot.lane.b32.xlu0 %v1512, 112
      %v1843 = vpop.permute.xlu0 %1842
      %1844 = vrot.lane.b32.xlu0 %v1513, 112
      %v1845 = vpop.permute.xlu0 %1844
      %1846 = vrot.lane.b32.xlu0 %v1514, 112
      %v1847 = vpop.permute.xlu0 %1846
      %1848 = vrot.lane.b32.xlu0 %v1515, 112
      %v1849 = vpop.permute.xlu0 %1848
      %1850 = vrot.lane.b32.xlu0 %v1516, 112
      %v1851 = vpop.permute.xlu0 %1850
      %1852 = vrot.lane.b32.xlu0 %v1517, 112
      %v1853 = vpop.permute.xlu0 %1852
      %1854 = vrot.lane.b32.xlu0 %v1518, 112
      %v1855 = vpop.permute.xlu0 %1854
      %1856 = vrot.lane.b32.xlu0 %v1519, 112
      %v1857 = vpop.permute.xlu0 %1856
      %1858 = vrot.lane.b32.xlu0 %v1520, 112
      %v1859 = vpop.permute.xlu0 %1858
      %1860 = vrot.lane.b32.xlu0 %v1521, 112
      %v1861 = vpop.permute.xlu0 %1860
      %1862 = vrot.lane.b32.xlu0 %v1522, 112
      %v1863 = vpop.permute.xlu0 %1862
      %1864 = vrot.lane.b32.xlu0 %v1523, 112
      %v1865 = vpop.permute.xlu0 %1864
      %1866 = vrot.lane.b32.xlu0 %v1524, 112
      %v1867 = vpop.permute.xlu0 %1866
      %1868 = vrot.lane.b32.xlu0 %v1525, 112
      %v1869 = vpop.permute.xlu0 %1868
      %1870 = vrot.lane.b32.xlu0 %v1526, 112
      %v1871 = vpop.permute.xlu0 %1870
      %1872 = vrot.lane.b32.xlu0 %v1527, 112
      %v1873 = vpop.permute.xlu0 %1872
      %1874 = vrot.lane.b32.xlu0 %v1528, 112
      %v1875 = vpop.permute.xlu0 %1874
      %1876 = vrot.lane.b32.xlu0 %v1529, 112
      %v1877 = vpop.permute.xlu0 %1876
      %1878 = vrot.lane.b32.xlu0 %v1530, 112
      %v1879 = vpop.permute.xlu0 %1878
      %1880 = vrot.lane.b32.xlu0 %v1531, 112
      %v1881 = vpop.permute.xlu0 %1880
      %1882 = vrot.lane.b32.xlu0 %v1532, 112
      %v1883 = vpop.permute.xlu0 %1882
      %1884 = vrot.lane.b32.xlu0 %v1533, 112
      %v1885 = vpop.permute.xlu0 %1884
      %1886 = vrot.lane.b32.xlu0 %v1534, 112
      %v1887 = vpop.permute.xlu0 %1886
      %1888 = vrot.lane.b32.xlu0 %v1535, 112
      %v1889 = vpop.permute.xlu0 %1888
      %1890 = vrot.lane.b32.xlu0 %v1536, 112
      %v1891 = vpop.permute.xlu0 %1890
      %1892 = vrot.lane.b32.xlu0 %v1537, 112
      %v1893 = vpop.permute.xlu0 %1892
      %1894 = vrot.lane.b32.xlu0 %v1538, 112
      %v1895 = vpop.permute.xlu0 %1894
      %1896 = vrot.lane.b32.xlu0 %v1539, 112
      %v1897 = vpop.permute.xlu0 %1896
      %1898 = vrot.lane.b32.xlu0 %v1540, 112
      %v1899 = vpop.permute.xlu0 %1898
      %1900 = vrot.lane.b32.xlu0 %v1541, 112
      %v1901 = vpop.permute.xlu0 %1900
      %1902 = vrot.lane.b32.xlu0 %v1542, 112
      %v1903 = vpop.permute.xlu0 %1902
      %1904 = vrot.lane.b32.xlu0 %v1543, 112
      %v1905 = vpop.permute.xlu0 %1904
      %1906 = vrot.lane.b32.xlu0 %v1544, 112
      %v1907 = vpop.permute.xlu0 %1906
      %1908 = vrot.lane.b32.xlu0 %v1545, 112
      %v1909 = vpop.permute.xlu0 %1908
      %1910 = vrot.lane.b32.xlu0 %v1546, 112
      %v1911 = vpop.permute.xlu0 %1910
      %1912 = vrot.lane.b32.xlu0 %v1547, 112
      %v1913 = vpop.permute.xlu0 %1912
      %1914 = vrot.lane.b32.xlu0 %v1548, 112
      %v1915 = vpop.permute.xlu0 %1914
      %1916 = vrot.lane.b32.xlu0 %v1549, 112
      %v1917 = vpop.permute.xlu0 %1916
      %1918 = vrot.lane.b32.xlu0 %v1550, 112
      %v1919 = vpop.permute.xlu0 %1918
      %1920 = vrot.lane.b32.xlu0 %v1551, 112
      %v1921 = vpop.permute.xlu0 %1920
      %1922 = vrot.lane.b32.xlu0 %v1552, 112
      %v1923 = vpop.permute.xlu0 %1922
      %1924 = vrot.lane.b32.xlu0 %v1553, 112
      %v1925 = vpop.permute.xlu0 %1924
      %1926 = vrot.lane.b32.xlu0 %v1554, 112
      %v1927 = vpop.permute.xlu0 %1926
      %1928 = vrot.lane.b32.xlu0 %v1555, 112
      %v1929 = vpop.permute.xlu0 %1928
      %1930 = vrot.lane.b32.xlu0 %v1556, 112
      %v1931 = vpop.permute.xlu0 %1930
      %1932 = vrot.lane.b32.xlu0 %v1557, 112
      %v1933 = vpop.permute.xlu0 %1932
      %1934 = vrot.lane.b32.xlu0 %v1558, 112
      %v1935 = vpop.permute.xlu0 %1934
      %1936 = vrot.lane.b32.xlu0 %v1559, 112
      %v1937 = vpop.permute.xlu0 %1936
      %1938 = vrot.lane.b32.xlu0 %v1560, 112
      %v1939 = vpop.permute.xlu0 %1938
      %1940 = vrot.lane.b32.xlu0 %v1561, 112
      %v1941 = vpop.permute.xlu0 %1940
      %1942 = vrot.lane.b32.xlu0 %v1562, 112
      %v1943 = vpop.permute.xlu0 %1942
      %1944 = vrot.lane.b32.xlu0 %v1563, 112
      %v1945 = vpop.permute.xlu0 %1944
      %1946 = vrot.lane.b32.xlu0 %v1564, 112
      %v1947 = vpop.permute.xlu0 %1946
      %1948 = vrot.lane.b32.xlu0 %v1565, 112
      %v1949 = vpop.permute.xlu0 %1948
      %1950 = vrot.lane.b32.xlu0 %v1566, 112
      %v1951 = vpop.permute.xlu0 %1950
      %1952 = vrot.lane.b32.xlu0 %v1567, 112
      %v1953 = vpop.permute.xlu0 %1952
      %vm2018 = vmand %vm1632, %vm471
      %v2019 = vld [vmem:[#allocation3] sm:$0x1]
      %v2020 = vsel %vm2018, %v1827, %v2019
      %2021 = vst [vmem:[#allocation3] sm:$0x1] %v2020
      %v2022 = vld [vmem:[#allocation3 + $0x1] sm:$0x1]
      %v2023 = vsel %vm2018, %v1829, %v2022
      %2024 = vst [vmem:[#allocation3 + $0x1] sm:$0x1] %v2023
      %v2025 = vld [vmem:[#allocation3 + $0x2] sm:$0x1]
      %v2026 = vsel %vm2018, %v1831, %v2025
      %2027 = vst [vmem:[#allocation3 + $0x2] sm:$0x1] %v2026
      %v2028 = vld [vmem:[#allocation3 + $0x3] sm:$0x1]
      %v2029 = vsel %vm2018, %v1833, %v2028
      %2030 = vst [vmem:[#allocation3 + $0x3] sm:$0x1] %v2029
      %v2031 = vld [vmem:[#allocation3 + $0x4] sm:$0x1]
      %v2032 = vsel %vm2018, %v1835, %v2031
      %2033 = vst [vmem:[#allocation3 + $0x4] sm:$0x1] %v2032
      %v2034 = vld [vmem:[#allocation3 + $0x5] sm:$0x1]
      %v2035 = vsel %vm2018, %v1837, %v2034
      %2036 = vst [vmem:[#allocation3 + $0x5] sm:$0x1] %v2035
      %v2037 = vld [vmem:[#allocation3 + $0x6] sm:$0x1]
      %v2038 = vsel %vm2018, %v1839, %v2037
      %2039 = vst [vmem:[#allocation3 + $0x6] sm:$0x1] %v2038
      %v2040 = vld [vmem:[#allocation3 + $0x7] sm:$0x1]
      %v2041 = vsel %vm2018, %v1841, %v2040
      %2042 = vst [vmem:[#allocation3 + $0x7] sm:$0x1] %v2041
      %v2043 = vld [vmem:[#allocation3 + $0x10] sm:$0x1]
      %v2044 = vsel %vm2018, %v1843, %v2043
      %2045 = vst [vmem:[#allocation3 + $0x10] sm:$0x1] %v2044
      %v2046 = vld [vmem:[#allocation3 + $0x11] sm:$0x1]
      %v2047 = vsel %vm2018, %v1845, %v2046
      %2048 = vst [vmem:[#allocation3 + $0x11] sm:$0x1] %v2047
      %v2049 = vld [vmem:[#allocation3 + $0x12] sm:$0x1]
      %v2050 = vsel %vm2018, %v1847, %v2049
      %2051 = vst [vmem:[#allocation3 + $0x12] sm:$0x1] %v2050
      %v2052 = vld [vmem:[#allocation3 + $0x13] sm:$0x1]
      %v2053 = vsel %vm2018, %v1849, %v2052
      %2054 = vst [vmem:[#allocation3 + $0x13] sm:$0x1] %v2053
      %v2055 = vld [vmem:[#allocation3 + $0x14] sm:$0x1]
      %v2056 = vsel %vm2018, %v1851, %v2055
      %2057 = vst [vmem:[#allocation3 + $0x14] sm:$0x1] %v2056
      %v2058 = vld [vmem:[#allocation3 + $0x15] sm:$0x1]
      %v2059 = vsel %vm2018, %v1853, %v2058
      %2060 = vst [vmem:[#allocation3 + $0x15] sm:$0x1] %v2059
      %v2061 = vld [vmem:[#allocation3 + $0x16] sm:$0x1]
      %v2062 = vsel %vm2018, %v1855, %v2061
      %2063 = vst [vmem:[#allocation3 + $0x16] sm:$0x1] %v2062
      %v2064 = vld [vmem:[#allocation3 + $0x17] sm:$0x1]
      %v2065 = vsel %vm2018, %v1857, %v2064
      %2066 = vst [vmem:[#allocation3 + $0x17] sm:$0x1] %v2065
      %v2067 = vld [vmem:[#allocation3 + $0x20] sm:$0x1]
      %v2068 = vsel %vm2018, %v1859, %v2067
      %2069 = vst [vmem:[#allocation3 + $0x20] sm:$0x1] %v2068
      %v2070 = vld [vmem:[#allocation3 + $0x21] sm:$0x1]
      %v2071 = vsel %vm2018, %v1861, %v2070
      %2072 = vst [vmem:[#allocation3 + $0x21] sm:$0x1] %v2071
      %v2073 = vld [vmem:[#allocation3 + $0x22] sm:$0x1]
      %v2074 = vsel %vm2018, %v1863, %v2073
      %2075 = vst [vmem:[#allocation3 + $0x22] sm:$0x1] %v2074
      %v2076 = vld [vmem:[#allocation3 + $0x23] sm:$0x1]
      %v2077 = vsel %vm2018, %v1865, %v2076
      %2078 = vst [vmem:[#allocation3 + $0x23] sm:$0x1] %v2077
      %v2079 = vld [vmem:[#allocation3 + $0x24] sm:$0x1]
      %v2080 = vsel %vm2018, %v1867, %v2079
      %2081 = vst [vmem:[#allocation3 + $0x24] sm:$0x1] %v2080
      %v2082 = vld [vmem:[#allocation3 + $0x25] sm:$0x1]
      %v2083 = vsel %vm2018, %v1869, %v2082
      %2084 = vst [vmem:[#allocation3 + $0x25] sm:$0x1] %v2083
      %v2085 = vld [vmem:[#allocation3 + $0x26] sm:$0x1]
      %v2086 = vsel %vm2018, %v1871, %v2085
      %2087 = vst [vmem:[#allocation3 + $0x26] sm:$0x1] %v2086
      %v2088 = vld [vmem:[#allocation3 + $0x27] sm:$0x1]
      %v2089 = vsel %vm2018, %v1873, %v2088
      %2090 = vst [vmem:[#allocation3 + $0x27] sm:$0x1] %v2089
      %v2091 = vld [vmem:[#allocation3 + $0x30] sm:$0x1]
      %v2092 = vsel %vm2018, %v1875, %v2091
      %2093 = vst [vmem:[#allocation3 + $0x30] sm:$0x1] %v2092
      %v2094 = vld [vmem:[#allocation3 + $0x31] sm:$0x1]
      %v2095 = vsel %vm2018, %v1877, %v2094
      %2096 = vst [vmem:[#allocation3 + $0x31] sm:$0x1] %v2095
      %v2097 = vld [vmem:[#allocation3 + $0x32] sm:$0x1]
      %v2098 = vsel %vm2018, %v1879, %v2097
      %2099 = vst [vmem:[#allocation3 + $0x32] sm:$0x1] %v2098
      %v2100 = vld [vmem:[#allocation3 + $0x33] sm:$0x1]
      %v2101 = vsel %vm2018, %v1881, %v2100
      %2102 = vst [vmem:[#allocation3 + $0x33] sm:$0x1] %v2101
      %v2103 = vld [vmem:[#allocation3 + $0x34] sm:$0x1]
      %v2104 = vsel %vm2018, %v1883, %v2103
      %2105 = vst [vmem:[#allocation3 + $0x34] sm:$0x1] %v2104
      %v2106 = vld [vmem:[#allocation3 + $0x35] sm:$0x1]
      %v2107 = vsel %vm2018, %v1885, %v2106
      %2108 = vst [vmem:[#allocation3 + $0x35] sm:$0x1] %v2107
      %v2109 = vld [vmem:[#allocation3 + $0x36] sm:$0x1]
      %v2110 = vsel %vm2018, %v1887, %v2109
      %2111 = vst [vmem:[#allocation3 + $0x36] sm:$0x1] %v2110
      %v2112 = vld [vmem:[#allocation3 + $0x37] sm:$0x1]
      %v2113 = vsel %vm2018, %v1889, %v2112
      %2114 = vst [vmem:[#allocation3 + $0x37] sm:$0x1] %v2113
      %v2115 = vld [vmem:[#allocation3 + $0x40] sm:$0x1]
      %v2116 = vsel %vm2018, %v1891, %v2115
      %2117 = vst [vmem:[#allocation3 + $0x40] sm:$0x1] %v2116
      %v2118 = vld [vmem:[#allocation3 + $0x41] sm:$0x1]
      %v2119 = vsel %vm2018, %v1893, %v2118
      %2120 = vst [vmem:[#allocation3 + $0x41] sm:$0x1] %v2119
      %v2121 = vld [vmem:[#allocation3 + $0x42] sm:$0x1]
      %v2122 = vsel %vm2018, %v1895, %v2121
      %2123 = vst [vmem:[#allocation3 + $0x42] sm:$0x1] %v2122
      %v2124 = vld [vmem:[#allocation3 + $0x43] sm:$0x1]
      %v2125 = vsel %vm2018, %v1897, %v2124
      %2126 = vst [vmem:[#allocation3 + $0x43] sm:$0x1] %v2125
      %v2127 = vld [vmem:[#allocation3 + $0x44] sm:$0x1]
      %v2128 = vsel %vm2018, %v1899, %v2127
      %2129 = vst [vmem:[#allocation3 + $0x44] sm:$0x1] %v2128
      %v2130 = vld [vmem:[#allocation3 + $0x45] sm:$0x1]
      %v2131 = vsel %vm2018, %v1901, %v2130
      %2132 = vst [vmem:[#allocation3 + $0x45] sm:$0x1] %v2131
      %v2133 = vld [vmem:[#allocation3 + $0x46] sm:$0x1]
      %v2134 = vsel %vm2018, %v1903, %v2133
      %2135 = vst [vmem:[#allocation3 + $0x46] sm:$0x1] %v2134
      %v2136 = vld [vmem:[#allocation3 + $0x47] sm:$0x1]
      %v2137 = vsel %vm2018, %v1905, %v2136
      %2138 = vst [vmem:[#allocation3 + $0x47] sm:$0x1] %v2137
      %v2139 = vld [vmem:[#allocation3 + $0x50] sm:$0x1]
      %v2140 = vsel %vm2018, %v1907, %v2139
      %2141 = vst [vmem:[#allocation3 + $0x50] sm:$0x1] %v2140
      %v2142 = vld [vmem:[#allocation3 + $0x51] sm:$0x1]
      %v2143 = vsel %vm2018, %v1909, %v2142
      %2144 = vst [vmem:[#allocation3 + $0x51] sm:$0x1] %v2143
      %v2145 = vld [vmem:[#allocation3 + $0x52] sm:$0x1]
      %v2146 = vsel %vm2018, %v1911, %v2145
      %2147 = vst [vmem:[#allocation3 + $0x52] sm:$0x1] %v2146
      %v2148 = vld [vmem:[#allocation3 + $0x53] sm:$0x1]
      %v2149 = vsel %vm2018, %v1913, %v2148
      %2150 = vst [vmem:[#allocation3 + $0x53] sm:$0x1] %v2149
      %v2151 = vld [vmem:[#allocation3 + $0x54] sm:$0x1]
      %v2152 = vsel %vm2018, %v1915, %v2151
      %2153 = vst [vmem:[#allocation3 + $0x54] sm:$0x1] %v2152
      %v2154 = vld [vmem:[#allocation3 + $0x55] sm:$0x1]
      %v2155 = vsel %vm2018, %v1917, %v2154
      %2156 = vst [vmem:[#allocation3 + $0x55] sm:$0x1] %v2155
      %v2157 = vld [vmem:[#allocation3 + $0x56] sm:$0x1]
      %v2158 = vsel %vm2018, %v1919, %v2157
      %2159 = vst [vmem:[#allocation3 + $0x56] sm:$0x1] %v2158
      %v2160 = vld [vmem:[#allocation3 + $0x57] sm:$0x1]
      %v2161 = vsel %vm2018, %v1921, %v2160
      %2162 = vst [vmem:[#allocation3 + $0x57] sm:$0x1] %v2161
      %v2163 = vld [vmem:[#allocation3 + $0x60] sm:$0x1]
      %v2164 = vsel %vm2018, %v1923, %v2163
      %2165 = vst [vmem:[#allocation3 + $0x60] sm:$0x1] %v2164
      %v2166 = vld [vmem:[#allocation3 + $0x61] sm:$0x1]
      %v2167 = vsel %vm2018, %v1925, %v2166
      %2168 = vst [vmem:[#allocation3 + $0x61] sm:$0x1] %v2167
      %v2169 = vld [vmem:[#allocation3 + $0x62] sm:$0x1]
      %v2170 = vsel %vm2018, %v1927, %v2169
      %2171 = vst [vmem:[#allocation3 + $0x62] sm:$0x1] %v2170
      %v2172 = vld [vmem:[#allocation3 + $0x63] sm:$0x1]
      %v2173 = vsel %vm2018, %v1929, %v2172
      %2174 = vst [vmem:[#allocation3 + $0x63] sm:$0x1] %v2173
      %v2175 = vld [vmem:[#allocation3 + $0x64] sm:$0x1]
      %v2176 = vsel %vm2018, %v1931, %v2175
      %2177 = vst [vmem:[#allocation3 + $0x64] sm:$0x1] %v2176
      %v2178 = vld [vmem:[#allocation3 + $0x65] sm:$0x1]
      %v2179 = vsel %vm2018, %v1933, %v2178
      %2180 = vst [vmem:[#allocation3 + $0x65] sm:$0x1] %v2179
      %v2181 = vld [vmem:[#allocation3 + $0x66] sm:$0x1]
      %v2182 = vsel %vm2018, %v1935, %v2181
      %2183 = vst [vmem:[#allocation3 + $0x66] sm:$0x1] %v2182
      %v2184 = vld [vmem:[#allocation3 + $0x67] sm:$0x1]
      %v2185 = vsel %vm2018, %v1937, %v2184
      %2186 = vst [vmem:[#allocation3 + $0x67] sm:$0x1] %v2185
      %v2187 = vld [vmem:[#allocation3 + $0x70] sm:$0x1]
      %v2188 = vsel %vm2018, %v1939, %v2187
      %2189 = vst [vmem:[#allocation3 + $0x70] sm:$0x1] %v2188
      %v2190 = vld [vmem:[#allocation3 + $0x71] sm:$0x1]
      %v2191 = vsel %vm2018, %v1941, %v2190
      %2192 = vst [vmem:[#allocation3 + $0x71] sm:$0x1] %v2191
      %v2193 = vld [vmem:[#allocation3 + $0x72] sm:$0x1]
      %v2194 = vsel %vm2018, %v1943, %v2193
      %2195 = vst [vmem:[#allocation3 + $0x72] sm:$0x1] %v2194
      %v2196 = vld [vmem:[#allocation3 + $0x73] sm:$0x1]
      %v2197 = vsel %vm2018, %v1945, %v2196
      %2198 = vst [vmem:[#allocation3 + $0x73] sm:$0x1] %v2197
      %v2199 = vld [vmem:[#allocation3 + $0x74] sm:$0x1]
      %v2200 = vsel %vm2018, %v1947, %v2199
      %2201 = vst [vmem:[#allocation3 + $0x74] sm:$0x1] %v2200
      %v2202 = vld [vmem:[#allocation3 + $0x75] sm:$0x1]
      %v2203 = vsel %vm2018, %v1949, %v2202
      %2204 = vst [vmem:[#allocation3 + $0x75] sm:$0x1] %v2203
      %v2205 = vld [vmem:[#allocation3 + $0x76] sm:$0x1]
      %v2206 = vsel %vm2018, %v1951, %v2205
      %2207 = vst [vmem:[#allocation3 + $0x76] sm:$0x1] %v2206
      %v2208 = vld [vmem:[#allocation3 + $0x77] sm:$0x1]
      %v2209 = vsel %vm2018, %v1953, %v2208
      %2210 = vst [vmem:[#allocation3 + $0x77] sm:$0x1] %v2209
      %2211 = vrot.lane.b32.xlu0 %v1504, 96
      %v2212 = vpop.permute.xlu0 %2211
      %2213 = vrot.lane.b32.xlu0 %v1505, 96
      %v2214 = vpop.permute.xlu0 %2213
      %2215 = vrot.lane.b32.xlu0 %v1506, 96
      %v2216 = vpop.permute.xlu0 %2215
      %2217 = vrot.lane.b32.xlu0 %v1507, 96
      %v2218 = vpop.permute.xlu0 %2217
      %2219 = vrot.lane.b32.xlu0 %v1508, 96
      %v2220 = vpop.permute.xlu0 %2219
      %2221 = vrot.lane.b32.xlu0 %v1509, 96
      %v2222 = vpop.permute.xlu0 %2221
      %2223 = vrot.lane.b32.xlu0 %v1510, 96
      %v2224 = vpop.permute.xlu0 %2223
      %2225 = vrot.lane.b32.xlu0 %v1511, 96
      %v2226 = vpop.permute.xlu0 %2225
      %2227 = vrot.lane.b32.xlu0 %v1512, 96
      %v2228 = vpop.permute.xlu0 %2227
      %2229 = vrot.lane.b32.xlu0 %v1513, 96
      %v2230 = vpop.permute.xlu0 %2229
      %2231 = vrot.lane.b32.xlu0 %v1514, 96
      %v2232 = vpop.permute.xlu0 %2231
      %2233 = vrot.lane.b32.xlu0 %v1515, 96
      %v2234 = vpop.permute.xlu0 %2233
      %2235 = vrot.lane.b32.xlu0 %v1516, 96
      %v2236 = vpop.permute.xlu0 %2235
      %2237 = vrot.lane.b32.xlu0 %v1517, 96
      %v2238 = vpop.permute.xlu0 %2237
      %2239 = vrot.lane.b32.xlu0 %v1518, 96
      %v2240 = vpop.permute.xlu0 %2239
      %2241 = vrot.lane.b32.xlu0 %v1519, 96
      %v2242 = vpop.permute.xlu0 %2241
      %2243 = vrot.lane.b32.xlu0 %v1520, 96
      %v2244 = vpop.permute.xlu0 %2243
      %2245 = vrot.lane.b32.xlu0 %v1521, 96
      %v2246 = vpop.permute.xlu0 %2245
      %2247 = vrot.lane.b32.xlu0 %v1522, 96
      %v2248 = vpop.permute.xlu0 %2247
      %2249 = vrot.lane.b32.xlu0 %v1523, 96
      %v2250 = vpop.permute.xlu0 %2249
      %2251 = vrot.lane.b32.xlu0 %v1524, 96
      %v2252 = vpop.permute.xlu0 %2251
      %2253 = vrot.lane.b32.xlu0 %v1525, 96
      %v2254 = vpop.permute.xlu0 %2253
      %2255 = vrot.lane.b32.xlu0 %v1526, 96
      %v2256 = vpop.permute.xlu0 %2255
      %2257 = vrot.lane.b32.xlu0 %v1527, 96
      %v2258 = vpop.permute.xlu0 %2257
      %2259 = vrot.lane.b32.xlu0 %v1528, 96
      %v2260 = vpop.permute.xlu0 %2259
      %2261 = vrot.lane.b32.xlu0 %v1529, 96
      %v2262 = vpop.permute.xlu0 %2261
      %2263 = vrot.lane.b32.xlu0 %v1530, 96
      %v2264 = vpop.permute.xlu0 %2263
      %2265 = vrot.lane.b32.xlu0 %v1531, 96
      %v2266 = vpop.permute.xlu0 %2265
      %2267 = vrot.lane.b32.xlu0 %v1532, 96
      %v2268 = vpop.permute.xlu0 %2267
      %2269 = vrot.lane.b32.xlu0 %v1533, 96
      %v2270 = vpop.permute.xlu0 %2269
      %2271 = vrot.lane.b32.xlu0 %v1534, 96
      %v2272 = vpop.permute.xlu0 %2271
      %2273 = vrot.lane.b32.xlu0 %v1535, 96
      %v2274 = vpop.permute.xlu0 %2273
      %2275 = vrot.lane.b32.xlu0 %v1536, 96
      %v2276 = vpop.permute.xlu0 %2275
      %2277 = vrot.lane.b32.xlu0 %v1537, 96
      %v2278 = vpop.permute.xlu0 %2277
      %2279 = vrot.lane.b32.xlu0 %v1538, 96
      %v2280 = vpop.permute.xlu0 %2279
      %2281 = vrot.lane.b32.xlu0 %v1539, 96
      %v2282 = vpop.permute.xlu0 %2281
      %2283 = vrot.lane.b32.xlu0 %v1540, 96
      %v2284 = vpop.permute.xlu0 %2283
      %2285 = vrot.lane.b32.xlu0 %v1541, 96
      %v2286 = vpop.permute.xlu0 %2285
      %2287 = vrot.lane.b32.xlu0 %v1542, 96
      %v2288 = vpop.permute.xlu0 %2287
      %2289 = vrot.lane.b32.xlu0 %v1543, 96
      %v2290 = vpop.permute.xlu0 %2289
      %2291 = vrot.lane.b32.xlu0 %v1544, 96
      %v2292 = vpop.permute.xlu0 %2291
      %2293 = vrot.lane.b32.xlu0 %v1545, 96
      %v2294 = vpop.permute.xlu0 %2293
      %2295 = vrot.lane.b32.xlu0 %v1546, 96
      %v2296 = vpop.permute.xlu0 %2295
      %2297 = vrot.lane.b32.xlu0 %v1547, 96
      %v2298 = vpop.permute.xlu0 %2297
      %2299 = vrot.lane.b32.xlu0 %v1548, 96
      %v2300 = vpop.permute.xlu0 %2299
      %2301 = vrot.lane.b32.xlu0 %v1549, 96
      %v2302 = vpop.permute.xlu0 %2301
      %2303 = vrot.lane.b32.xlu0 %v1550, 96
      %v2304 = vpop.permute.xlu0 %2303
      %2305 = vrot.lane.b32.xlu0 %v1551, 96
      %v2306 = vpop.permute.xlu0 %2305
      %2307 = vrot.lane.b32.xlu0 %v1552, 96
      %v2308 = vpop.permute.xlu0 %2307
      %2309 = vrot.lane.b32.xlu0 %v1553, 96
      %v2310 = vpop.permute.xlu0 %2309
      %2311 = vrot.lane.b32.xlu0 %v1554, 96
      %v2312 = vpop.permute.xlu0 %2311
      %2313 = vrot.lane.b32.xlu0 %v1555, 96
      %v2314 = vpop.permute.xlu0 %2313
      %2315 = vrot.lane.b32.xlu0 %v1556, 96
      %v2316 = vpop.permute.xlu0 %2315
      %2317 = vrot.lane.b32.xlu0 %v1557, 96
      %v2318 = vpop.permute.xlu0 %2317
      %2319 = vrot.lane.b32.xlu0 %v1558, 96
      %v2320 = vpop.permute.xlu0 %2319
      %2321 = vrot.lane.b32.xlu0 %v1559, 96
      %v2322 = vpop.permute.xlu0 %2321
      %2323 = vrot.lane.b32.xlu0 %v1560, 96
      %v2324 = vpop.permute.xlu0 %2323
      %2325 = vrot.lane.b32.xlu0 %v1561, 96
      %v2326 = vpop.permute.xlu0 %2325
      %2327 = vrot.lane.b32.xlu0 %v1562, 96
      %v2328 = vpop.permute.xlu0 %2327
      %2329 = vrot.lane.b32.xlu0 %v1563, 96
      %v2330 = vpop.permute.xlu0 %2329
      %2331 = vrot.lane.b32.xlu0 %v1564, 96
      %v2332 = vpop.permute.xlu0 %2331
      %2333 = vrot.lane.b32.xlu0 %v1565, 96
      %v2334 = vpop.permute.xlu0 %2333
      %2335 = vrot.lane.b32.xlu0 %v1566, 96
      %v2336 = vpop.permute.xlu0 %2335
      %2337 = vrot.lane.b32.xlu0 %v1567, 96
      %v2338 = vpop.permute.xlu0 %2337
      %s2403 = scalar_lea.vmem [#allocation3], 8
      %v2404 = vld [vmem:[%s2403] sm:$0x1]
      %v2405 = vsel %vm1633, %v2212, %v2404
      %2406 = vst [vmem:[%s2403] sm:$0x1] %v2405
      %v2407 = vld [vmem:[%s2403 + $0x1] sm:$0x1]
      %v2408 = vsel %vm1633, %v2214, %v2407
      %2409 = vst [vmem:[%s2403 + $0x1] sm:$0x1] %v2408
      %v2410 = vld [vmem:[%s2403 + $0x2] sm:$0x1]
      %v2411 = vsel %vm1633, %v2216, %v2410
      %2412 = vst [vmem:[%s2403 + $0x2] sm:$0x1] %v2411
      %v2413 = vld [vmem:[%s2403 + $0x3] sm:$0x1]
      %v2414 = vsel %vm1633, %v2218, %v2413
      %2415 = vst [vmem:[%s2403 + $0x3] sm:$0x1] %v2414
      %v2416 = vld [vmem:[%s2403 + $0x4] sm:$0x1]
      %v2417 = vsel %vm1633, %v2220, %v2416
      %2418 = vst [vmem:[%s2403 + $0x4] sm:$0x1] %v2417
      %v2419 = vld [vmem:[%s2403 + $0x5] sm:$0x1]
      %v2420 = vsel %vm1633, %v2222, %v2419
      %2421 = vst [vmem:[%s2403 + $0x5] sm:$0x1] %v2420
      %v2422 = vld [vmem:[%s2403 + $0x6] sm:$0x1]
      %v2423 = vsel %vm1633, %v2224, %v2422
      %2424 = vst [vmem:[%s2403 + $0x6] sm:$0x1] %v2423
      %v2425 = vld [vmem:[%s2403 + $0x7] sm:$0x1]
      %v2426 = vsel %vm1633, %v2226, %v2425
      %2427 = vst [vmem:[%s2403 + $0x7] sm:$0x1] %v2426
      %v2428 = vld [vmem:[%s2403 + $0x10] sm:$0x1]
      %v2429 = vsel %vm1633, %v2228, %v2428
      %2430 = vst [vmem:[%s2403 + $0x10] sm:$0x1] %v2429
      %v2431 = vld [vmem:[%s2403 + $0x11] sm:$0x1]
      %v2432 = vsel %vm1633, %v2230, %v2431
      %2433 = vst [vmem:[%s2403 + $0x11] sm:$0x1] %v2432
      %v2434 = vld [vmem:[%s2403 + $0x12] sm:$0x1]
      %v2435 = vsel %vm1633, %v2232, %v2434
      %2436 = vst [vmem:[%s2403 + $0x12] sm:$0x1] %v2435
      %v2437 = vld [vmem:[%s2403 + $0x13] sm:$0x1]
      %v2438 = vsel %vm1633, %v2234, %v2437
      %2439 = vst [vmem:[%s2403 + $0x13] sm:$0x1] %v2438
      %v2440 = vld [vmem:[%s2403 + $0x14] sm:$0x1]
      %v2441 = vsel %vm1633, %v2236, %v2440
      %2442 = vst [vmem:[%s2403 + $0x14] sm:$0x1] %v2441
      %v2443 = vld [vmem:[%s2403 + $0x15] sm:$0x1]
      %v2444 = vsel %vm1633, %v2238, %v2443
      %2445 = vst [vmem:[%s2403 + $0x15] sm:$0x1] %v2444
      %v2446 = vld [vmem:[%s2403 + $0x16] sm:$0x1]
      %v2447 = vsel %vm1633, %v2240, %v2446
      %2448 = vst [vmem:[%s2403 + $0x16] sm:$0x1] %v2447
      %v2449 = vld [vmem:[%s2403 + $0x17] sm:$0x1]
      %v2450 = vsel %vm1633, %v2242, %v2449
      %2451 = vst [vmem:[%s2403 + $0x17] sm:$0x1] %v2450
      %v2452 = vld [vmem:[%s2403 + $0x20] sm:$0x1]
      %v2453 = vsel %vm1633, %v2244, %v2452
      %2454 = vst [vmem:[%s2403 + $0x20] sm:$0x1] %v2453
      %v2455 = vld [vmem:[%s2403 + $0x21] sm:$0x1]
      %v2456 = vsel %vm1633, %v2246, %v2455
      %2457 = vst [vmem:[%s2403 + $0x21] sm:$0x1] %v2456
      %v2458 = vld [vmem:[%s2403 + $0x22] sm:$0x1]
      %v2459 = vsel %vm1633, %v2248, %v2458
      %2460 = vst [vmem:[%s2403 + $0x22] sm:$0x1] %v2459
      %v2461 = vld [vmem:[%s2403 + $0x23] sm:$0x1]
      %v2462 = vsel %vm1633, %v2250, %v2461
      %2463 = vst [vmem:[%s2403 + $0x23] sm:$0x1] %v2462
      %v2464 = vld [vmem:[%s2403 + $0x24] sm:$0x1]
      %v2465 = vsel %vm1633, %v2252, %v2464
      %2466 = vst [vmem:[%s2403 + $0x24] sm:$0x1] %v2465
      %v2467 = vld [vmem:[%s2403 + $0x25] sm:$0x1]
      %v2468 = vsel %vm1633, %v2254, %v2467
      %2469 = vst [vmem:[%s2403 + $0x25] sm:$0x1] %v2468
      %v2470 = vld [vmem:[%s2403 + $0x26] sm:$0x1]
      %v2471 = vsel %vm1633, %v2256, %v2470
      %2472 = vst [vmem:[%s2403 + $0x26] sm:$0x1] %v2471
      %v2473 = vld [vmem:[%s2403 + $0x27] sm:$0x1]
      %v2474 = vsel %vm1633, %v2258, %v2473
      %2475 = vst [vmem:[%s2403 + $0x27] sm:$0x1] %v2474
      %v2476 = vld [vmem:[%s2403 + $0x30] sm:$0x1]
      %v2477 = vsel %vm1633, %v2260, %v2476
      %2478 = vst [vmem:[%s2403 + $0x30] sm:$0x1] %v2477
      %v2479 = vld [vmem:[%s2403 + $0x31] sm:$0x1]
      %v2480 = vsel %vm1633, %v2262, %v2479
      %2481 = vst [vmem:[%s2403 + $0x31] sm:$0x1] %v2480
      %v2482 = vld [vmem:[%s2403 + $0x32] sm:$0x1]
      %v2483 = vsel %vm1633, %v2264, %v2482
      %2484 = vst [vmem:[%s2403 + $0x32] sm:$0x1] %v2483
      %v2485 = vld [vmem:[%s2403 + $0x33] sm:$0x1]
      %v2486 = vsel %vm1633, %v2266, %v2485
      %2487 = vst [vmem:[%s2403 + $0x33] sm:$0x1] %v2486
      %v2488 = vld [vmem:[%s2403 + $0x34] sm:$0x1]
      %v2489 = vsel %vm1633, %v2268, %v2488
      %2490 = vst [vmem:[%s2403 + $0x34] sm:$0x1] %v2489
      %v2491 = vld [vmem:[%s2403 + $0x35] sm:$0x1]
      %v2492 = vsel %vm1633, %v2270, %v2491
      %2493 = vst [vmem:[%s2403 + $0x35] sm:$0x1] %v2492
      %v2494 = vld [vmem:[%s2403 + $0x36] sm:$0x1]
      %v2495 = vsel %vm1633, %v2272, %v2494
      %2496 = vst [vmem:[%s2403 + $0x36] sm:$0x1] %v2495
      %v2497 = vld [vmem:[%s2403 + $0x37] sm:$0x1]
      %v2498 = vsel %vm1633, %v2274, %v2497
      %2499 = vst [vmem:[%s2403 + $0x37] sm:$0x1] %v2498
      %v2500 = vld [vmem:[%s2403 + $0x40] sm:$0x1]
      %v2501 = vsel %vm1633, %v2276, %v2500
      %2502 = vst [vmem:[%s2403 + $0x40] sm:$0x1] %v2501
      %v2503 = vld [vmem:[%s2403 + $0x41] sm:$0x1]
      %v2504 = vsel %vm1633, %v2278, %v2503
      %2505 = vst [vmem:[%s2403 + $0x41] sm:$0x1] %v2504
      %v2506 = vld [vmem:[%s2403 + $0x42] sm:$0x1]
      %v2507 = vsel %vm1633, %v2280, %v2506
      %2508 = vst [vmem:[%s2403 + $0x42] sm:$0x1] %v2507
      %v2509 = vld [vmem:[%s2403 + $0x43] sm:$0x1]
      %v2510 = vsel %vm1633, %v2282, %v2509
      %2511 = vst [vmem:[%s2403 + $0x43] sm:$0x1] %v2510
      %v2512 = vld [vmem:[%s2403 + $0x44] sm:$0x1]
      %v2513 = vsel %vm1633, %v2284, %v2512
      %2514 = vst [vmem:[%s2403 + $0x44] sm:$0x1] %v2513
      %v2515 = vld [vmem:[%s2403 + $0x45] sm:$0x1]
      %v2516 = vsel %vm1633, %v2286, %v2515
      %2517 = vst [vmem:[%s2403 + $0x45] sm:$0x1] %v2516
      %v2518 = vld [vmem:[%s2403 + $0x46] sm:$0x1]
      %v2519 = vsel %vm1633, %v2288, %v2518
      %2520 = vst [vmem:[%s2403 + $0x46] sm:$0x1] %v2519
      %v2521 = vld [vmem:[%s2403 + $0x47] sm:$0x1]
      %v2522 = vsel %vm1633, %v2290, %v2521
      %2523 = vst [vmem:[%s2403 + $0x47] sm:$0x1] %v2522
      %v2524 = vld [vmem:[%s2403 + $0x50] sm:$0x1]
      %v2525 = vsel %vm1633, %v2292, %v2524
      %2526 = vst [vmem:[%s2403 + $0x50] sm:$0x1] %v2525
      %v2527 = vld [vmem:[%s2403 + $0x51] sm:$0x1]
      %v2528 = vsel %vm1633, %v2294, %v2527
      %2529 = vst [vmem:[%s2403 + $0x51] sm:$0x1] %v2528
      %v2530 = vld [vmem:[%s2403 + $0x52] sm:$0x1]
      %v2531 = vsel %vm1633, %v2296, %v2530
      %2532 = vst [vmem:[%s2403 + $0x52] sm:$0x1] %v2531
      %v2533 = vld [vmem:[%s2403 + $0x53] sm:$0x1]
      %v2534 = vsel %vm1633, %v2298, %v2533
      %2535 = vst [vmem:[%s2403 + $0x53] sm:$0x1] %v2534
      %v2536 = vld [vmem:[%s2403 + $0x54] sm:$0x1]
      %v2537 = vsel %vm1633, %v2300, %v2536
      %2538 = vst [vmem:[%s2403 + $0x54] sm:$0x1] %v2537
      %v2539 = vld [vmem:[%s2403 + $0x55] sm:$0x1]
      %v2540 = vsel %vm1633, %v2302, %v2539
      %2541 = vst [vmem:[%s2403 + $0x55] sm:$0x1] %v2540
      %v2542 = vld [vmem:[%s2403 + $0x56] sm:$0x1]
      %v2543 = vsel %vm1633, %v2304, %v2542
      %2544 = vst [vmem:[%s2403 + $0x56] sm:$0x1] %v2543
      %v2545 = vld [vmem:[%s2403 + $0x57] sm:$0x1]
      %v2546 = vsel %vm1633, %v2306, %v2545
      %2547 = vst [vmem:[%s2403 + $0x57] sm:$0x1] %v2546
      %v2548 = vld [vmem:[%s2403 + $0x60] sm:$0x1]
      %v2549 = vsel %vm1633, %v2308, %v2548
      %2550 = vst [vmem:[%s2403 + $0x60] sm:$0x1] %v2549
      %v2551 = vld [vmem:[%s2403 + $0x61] sm:$0x1]
      %v2552 = vsel %vm1633, %v2310, %v2551
      %2553 = vst [vmem:[%s2403 + $0x61] sm:$0x1] %v2552
      %v2554 = vld [vmem:[%s2403 + $0x62] sm:$0x1]
      %v2555 = vsel %vm1633, %v2312, %v2554
      %2556 = vst [vmem:[%s2403 + $0x62] sm:$0x1] %v2555
      %v2557 = vld [vmem:[%s2403 + $0x63] sm:$0x1]
      %v2558 = vsel %vm1633, %v2314, %v2557
      %2559 = vst [vmem:[%s2403 + $0x63] sm:$0x1] %v2558
      %v2560 = vld [vmem:[%s2403 + $0x64] sm:$0x1]
      %v2561 = vsel %vm1633, %v2316, %v2560
      %2562 = vst [vmem:[%s2403 + $0x64] sm:$0x1] %v2561
      %v2563 = vld [vmem:[%s2403 + $0x65] sm:$0x1]
      %v2564 = vsel %vm1633, %v2318, %v2563
      %2565 = vst [vmem:[%s2403 + $0x65] sm:$0x1] %v2564
      %v2566 = vld [vmem:[%s2403 + $0x66] sm:$0x1]
      %v2567 = vsel %vm1633, %v2320, %v2566
      %2568 = vst [vmem:[%s2403 + $0x66] sm:$0x1] %v2567
      %v2569 = vld [vmem:[%s2403 + $0x67] sm:$0x1]
      %v2570 = vsel %vm1633, %v2322, %v2569
      %2571 = vst [vmem:[%s2403 + $0x67] sm:$0x1] %v2570
      %v2572 = vld [vmem:[%s2403 + $0x70] sm:$0x1]
      %v2573 = vsel %vm1633, %v2324, %v2572
      %2574 = vst [vmem:[%s2403 + $0x70] sm:$0x1] %v2573
      %v2575 = vld [vmem:[%s2403 + $0x71] sm:$0x1]
      %v2576 = vsel %vm1633, %v2326, %v2575
      %2577 = vst [vmem:[%s2403 + $0x71] sm:$0x1] %v2576
      %v2578 = vld [vmem:[%s2403 + $0x72] sm:$0x1]
      %v2579 = vsel %vm1633, %v2328, %v2578
      %2580 = vst [vmem:[%s2403 + $0x72] sm:$0x1] %v2579
      %v2581 = vld [vmem:[%s2403 + $0x73] sm:$0x1]
      %v2582 = vsel %vm1633, %v2330, %v2581
      %2583 = vst [vmem:[%s2403 + $0x73] sm:$0x1] %v2582
      %v2584 = vld [vmem:[%s2403 + $0x74] sm:$0x1]
      %v2585 = vsel %vm1633, %v2332, %v2584
      %2586 = vst [vmem:[%s2403 + $0x74] sm:$0x1] %v2585
      %v2587 = vld [vmem:[%s2403 + $0x75] sm:$0x1]
      %v2588 = vsel %vm1633, %v2334, %v2587
      %2589 = vst [vmem:[%s2403 + $0x75] sm:$0x1] %v2588
      %v2590 = vld [vmem:[%s2403 + $0x76] sm:$0x1]
      %v2591 = vsel %vm1633, %v2336, %v2590
      %2592 = vst [vmem:[%s2403 + $0x76] sm:$0x1] %v2591
      %v2593 = vld [vmem:[%s2403 + $0x77] sm:$0x1]
      %v2594 = vsel %vm1633, %v2338, %v2593
      %2595 = vst [vmem:[%s2403 + $0x77] sm:$0x1] %v2594
      %2596 = vrot.lane.b32.xlu0 %v1504, 80
      %v2597 = vpop.permute.xlu0 %2596
      %2598 = vrot.lane.b32.xlu0 %v1505, 80
      %v2599 = vpop.permute.xlu0 %2598
      %2600 = vrot.lane.b32.xlu0 %v1506, 80
      %v2601 = vpop.permute.xlu0 %2600
      %2602 = vrot.lane.b32.xlu0 %v1507, 80
      %v2603 = vpop.permute.xlu0 %2602
      %2604 = vrot.lane.b32.xlu0 %v1508, 80
      %v2605 = vpop.permute.xlu0 %2604
      %2606 = vrot.lane.b32.xlu0 %v1509, 80
      %v2607 = vpop.permute.xlu0 %2606
      %2608 = vrot.lane.b32.xlu0 %v1510, 80
      %v2609 = vpop.permute.xlu0 %2608
      %2610 = vrot.lane.b32.xlu0 %v1511, 80
      %v2611 = vpop.permute.xlu0 %2610
      %2612 = vrot.lane.b32.xlu0 %v1512, 80
      %v2613 = vpop.permute.xlu0 %2612
      %2614 = vrot.lane.b32.xlu0 %v1513, 80
      %v2615 = vpop.permute.xlu0 %2614
      %2616 = vrot.lane.b32.xlu0 %v1514, 80
      %v2617 = vpop.permute.xlu0 %2616
      %2618 = vrot.lane.b32.xlu0 %v1515, 80
      %v2619 = vpop.permute.xlu0 %2618
      %2620 = vrot.lane.b32.xlu0 %v1516, 80
      %v2621 = vpop.permute.xlu0 %2620
      %2622 = vrot.lane.b32.xlu0 %v1517, 80
      %v2623 = vpop.permute.xlu0 %2622
      %2624 = vrot.lane.b32.xlu0 %v1518, 80
      %v2625 = vpop.permute.xlu0 %2624
      %2626 = vrot.lane.b32.xlu0 %v1519, 80
      %v2627 = vpop.permute.xlu0 %2626
      %2628 = vrot.lane.b32.xlu0 %v1520, 80
      %v2629 = vpop.permute.xlu0 %2628
      %2630 = vrot.lane.b32.xlu0 %v1521, 80
      %v2631 = vpop.permute.xlu0 %2630
      %2632 = vrot.lane.b32.xlu0 %v1522, 80
      %v2633 = vpop.permute.xlu0 %2632
      %2634 = vrot.lane.b32.xlu0 %v1523, 80
      %v2635 = vpop.permute.xlu0 %2634
      %2636 = vrot.lane.b32.xlu0 %v1524, 80
      %v2637 = vpop.permute.xlu0 %2636
      %2638 = vrot.lane.b32.xlu0 %v1525, 80
      %v2639 = vpop.permute.xlu0 %2638
      %2640 = vrot.lane.b32.xlu0 %v1526, 80
      %v2641 = vpop.permute.xlu0 %2640
      %2642 = vrot.lane.b32.xlu0 %v1527, 80
      %v2643 = vpop.permute.xlu0 %2642
      %2644 = vrot.lane.b32.xlu0 %v1528, 80
      %v2645 = vpop.permute.xlu0 %2644
      %2646 = vrot.lane.b32.xlu0 %v1529, 80
      %v2647 = vpop.permute.xlu0 %2646
      %2648 = vrot.lane.b32.xlu0 %v1530, 80
      %v2649 = vpop.permute.xlu0 %2648
      %2650 = vrot.lane.b32.xlu0 %v1531, 80
      %v2651 = vpop.permute.xlu0 %2650
      %2652 = vrot.lane.b32.xlu0 %v1532, 80
      %v2653 = vpop.permute.xlu0 %2652
      %2654 = vrot.lane.b32.xlu0 %v1533, 80
      %v2655 = vpop.permute.xlu0 %2654
      %2656 = vrot.lane.b32.xlu0 %v1534, 80
      %v2657 = vpop.permute.xlu0 %2656
      %2658 = vrot.lane.b32.xlu0 %v1535, 80
      %v2659 = vpop.permute.xlu0 %2658
      %2660 = vrot.lane.b32.xlu0 %v1536, 80
      %v2661 = vpop.permute.xlu0 %2660
      %2662 = vrot.lane.b32.xlu0 %v1537, 80
      %v2663 = vpop.permute.xlu0 %2662
      %2664 = vrot.lane.b32.xlu0 %v1538, 80
      %v2665 = vpop.permute.xlu0 %2664
      %2666 = vrot.lane.b32.xlu0 %v1539, 80
      %v2667 = vpop.permute.xlu0 %2666
      %2668 = vrot.lane.b32.xlu0 %v1540, 80
      %v2669 = vpop.permute.xlu0 %2668
      %2670 = vrot.lane.b32.xlu0 %v1541, 80
      %v2671 = vpop.permute.xlu0 %2670
      %2672 = vrot.lane.b32.xlu0 %v1542, 80
      %v2673 = vpop.permute.xlu0 %2672
      %2674 = vrot.lane.b32.xlu0 %v1543, 80
      %v2675 = vpop.permute.xlu0 %2674
      %2676 = vrot.lane.b32.xlu0 %v1544, 80
      %v2677 = vpop.permute.xlu0 %2676
      %2678 = vrot.lane.b32.xlu0 %v1545, 80
      %v2679 = vpop.permute.xlu0 %2678
      %2680 = vrot.lane.b32.xlu0 %v1546, 80
      %v2681 = vpop.permute.xlu0 %2680
      %2682 = vrot.lane.b32.xlu0 %v1547, 80
      %v2683 = vpop.permute.xlu0 %2682
      %2684 = vrot.lane.b32.xlu0 %v1548, 80
      %v2685 = vpop.permute.xlu0 %2684
      %2686 = vrot.lane.b32.xlu0 %v1549, 80
      %v2687 = vpop.permute.xlu0 %2686
      %2688 = vrot.lane.b32.xlu0 %v1550, 80
      %v2689 = vpop.permute.xlu0 %2688
      %2690 = vrot.lane.b32.xlu0 %v1551, 80
      %v2691 = vpop.permute.xlu0 %2690
      %2692 = vrot.lane.b32.xlu0 %v1552, 80
      %v2693 = vpop.permute.xlu0 %2692
      %2694 = vrot.lane.b32.xlu0 %v1553, 80
      %v2695 = vpop.permute.xlu0 %2694
      %2696 = vrot.lane.b32.xlu0 %v1554, 80
      %v2697 = vpop.permute.xlu0 %2696
      %2698 = vrot.lane.b32.xlu0 %v1555, 80
      %v2699 = vpop.permute.xlu0 %2698
      %2700 = vrot.lane.b32.xlu0 %v1556, 80
      %v2701 = vpop.permute.xlu0 %2700
      %2702 = vrot.lane.b32.xlu0 %v1557, 80
      %v2703 = vpop.permute.xlu0 %2702
      %2704 = vrot.lane.b32.xlu0 %v1558, 80
      %v2705 = vpop.permute.xlu0 %2704
      %2706 = vrot.lane.b32.xlu0 %v1559, 80
      %v2707 = vpop.permute.xlu0 %2706
      %2708 = vrot.lane.b32.xlu0 %v1560, 80
      %v2709 = vpop.permute.xlu0 %2708
      %2710 = vrot.lane.b32.xlu0 %v1561, 80
      %v2711 = vpop.permute.xlu0 %2710
      %2712 = vrot.lane.b32.xlu0 %v1562, 80
      %v2713 = vpop.permute.xlu0 %2712
      %2714 = vrot.lane.b32.xlu0 %v1563, 80
      %v2715 = vpop.permute.xlu0 %2714
      %2716 = vrot.lane.b32.xlu0 %v1564, 80
      %v2717 = vpop.permute.xlu0 %2716
      %2718 = vrot.lane.b32.xlu0 %v1565, 80
      %v2719 = vpop.permute.xlu0 %2718
      %2720 = vrot.lane.b32.xlu0 %v1566, 80
      %v2721 = vpop.permute.xlu0 %2720
      %2722 = vrot.lane.b32.xlu0 %v1567, 80
      %v2723 = vpop.permute.xlu0 %2722
      %v2788 = vld [vmem:[%s2403] sm:$0x1]
      %v2789 = vsel %vm2018, %v2597, %v2788
      %2790 = vst [vmem:[%s2403] sm:$0x1] %v2789
      %v2791 = vld [vmem:[%s2403 + $0x1] sm:$0x1]
      %v2792 = vsel %vm2018, %v2599, %v2791
      %2793 = vst [vmem:[%s2403 + $0x1] sm:$0x1] %v2792
      %v2794 = vld [vmem:[%s2403 + $0x2] sm:$0x1]
      %v2795 = vsel %vm2018, %v2601, %v2794
      %2796 = vst [vmem:[%s2403 + $0x2] sm:$0x1] %v2795
      %v2797 = vld [vmem:[%s2403 + $0x3] sm:$0x1]
      %v2798 = vsel %vm2018, %v2603, %v2797
      %2799 = vst [vmem:[%s2403 + $0x3] sm:$0x1] %v2798
      %v2800 = vld [vmem:[%s2403 + $0x4] sm:$0x1]
      %v2801 = vsel %vm2018, %v2605, %v2800
      %2802 = vst [vmem:[%s2403 + $0x4] sm:$0x1] %v2801
      %v2803 = vld [vmem:[%s2403 + $0x5] sm:$0x1]
      %v2804 = vsel %vm2018, %v2607, %v2803
      %2805 = vst [vmem:[%s2403 + $0x5] sm:$0x1] %v2804
      %v2806 = vld [vmem:[%s2403 + $0x6] sm:$0x1]
      %v2807 = vsel %vm2018, %v2609, %v2806
      %2808 = vst [vmem:[%s2403 + $0x6] sm:$0x1] %v2807
      %v2809 = vld [vmem:[%s2403 + $0x7] sm:$0x1]
      %v2810 = vsel %vm2018, %v2611, %v2809
      %2811 = vst [vmem:[%s2403 + $0x7] sm:$0x1] %v2810
      %v2812 = vld [vmem:[%s2403 + $0x10] sm:$0x1]
      %v2813 = vsel %vm2018, %v2613, %v2812
      %2814 = vst [vmem:[%s2403 + $0x10] sm:$0x1] %v2813
      %v2815 = vld [vmem:[%s2403 + $0x11] sm:$0x1]
      %v2816 = vsel %vm2018, %v2615, %v2815
      %2817 = vst [vmem:[%s2403 + $0x11] sm:$0x1] %v2816
      %v2818 = vld [vmem:[%s2403 + $0x12] sm:$0x1]
      %v2819 = vsel %vm2018, %v2617, %v2818
      %2820 = vst [vmem:[%s2403 + $0x12] sm:$0x1] %v2819
      %v2821 = vld [vmem:[%s2403 + $0x13] sm:$0x1]
      %v2822 = vsel %vm2018, %v2619, %v2821
      %2823 = vst [vmem:[%s2403 + $0x13] sm:$0x1] %v2822
      %v2824 = vld [vmem:[%s2403 + $0x14] sm:$0x1]
      %v2825 = vsel %vm2018, %v2621, %v2824
      %2826 = vst [vmem:[%s2403 + $0x14] sm:$0x1] %v2825
      %v2827 = vld [vmem:[%s2403 + $0x15] sm:$0x1]
      %v2828 = vsel %vm2018, %v2623, %v2827
      %2829 = vst [vmem:[%s2403 + $0x15] sm:$0x1] %v2828
      %v2830 = vld [vmem:[%s2403 + $0x16] sm:$0x1]
      %v2831 = vsel %vm2018, %v2625, %v2830
      %2832 = vst [vmem:[%s2403 + $0x16] sm:$0x1] %v2831
      %v2833 = vld [vmem:[%s2403 + $0x17] sm:$0x1]
      %v2834 = vsel %vm2018, %v2627, %v2833
      %2835 = vst [vmem:[%s2403 + $0x17] sm:$0x1] %v2834
      %v2836 = vld [vmem:[%s2403 + $0x20] sm:$0x1]
      %v2837 = vsel %vm2018, %v2629, %v2836
      %2838 = vst [vmem:[%s2403 + $0x20] sm:$0x1] %v2837
      %v2839 = vld [vmem:[%s2403 + $0x21] sm:$0x1]
      %v2840 = vsel %vm2018, %v2631, %v2839
      %2841 = vst [vmem:[%s2403 + $0x21] sm:$0x1] %v2840
      %v2842 = vld [vmem:[%s2403 + $0x22] sm:$0x1]
      %v2843 = vsel %vm2018, %v2633, %v2842
      %2844 = vst [vmem:[%s2403 + $0x22] sm:$0x1] %v2843
      %v2845 = vld [vmem:[%s2403 + $0x23] sm:$0x1]
      %v2846 = vsel %vm2018, %v2635, %v2845
      %2847 = vst [vmem:[%s2403 + $0x23] sm:$0x1] %v2846
      %v2848 = vld [vmem:[%s2403 + $0x24] sm:$0x1]
      %v2849 = vsel %vm2018, %v2637, %v2848
      %2850 = vst [vmem:[%s2403 + $0x24] sm:$0x1] %v2849
      %v2851 = vld [vmem:[%s2403 + $0x25] sm:$0x1]
      %v2852 = vsel %vm2018, %v2639, %v2851
      %2853 = vst [vmem:[%s2403 + $0x25] sm:$0x1] %v2852
      %v2854 = vld [vmem:[%s2403 + $0x26] sm:$0x1]
      %v2855 = vsel %vm2018, %v2641, %v2854
      %2856 = vst [vmem:[%s2403 + $0x26] sm:$0x1] %v2855
      %v2857 = vld [vmem:[%s2403 + $0x27] sm:$0x1]
      %v2858 = vsel %vm2018, %v2643, %v2857
      %2859 = vst [vmem:[%s2403 + $0x27] sm:$0x1] %v2858
      %v2860 = vld [vmem:[%s2403 + $0x30] sm:$0x1]
      %v2861 = vsel %vm2018, %v2645, %v2860
      %2862 = vst [vmem:[%s2403 + $0x30] sm:$0x1] %v2861
      %v2863 = vld [vmem:[%s2403 + $0x31] sm:$0x1]
      %v2864 = vsel %vm2018, %v2647, %v2863
      %2865 = vst [vmem:[%s2403 + $0x31] sm:$0x1] %v2864
      %v2866 = vld [vmem:[%s2403 + $0x32] sm:$0x1]
      %v2867 = vsel %vm2018, %v2649, %v2866
      %2868 = vst [vmem:[%s2403 + $0x32] sm:$0x1] %v2867
      %v2869 = vld [vmem:[%s2403 + $0x33] sm:$0x1]
      %v2870 = vsel %vm2018, %v2651, %v2869
      %2871 = vst [vmem:[%s2403 + $0x33] sm:$0x1] %v2870
      %v2872 = vld [vmem:[%s2403 + $0x34] sm:$0x1]
      %v2873 = vsel %vm2018, %v2653, %v2872
      %2874 = vst [vmem:[%s2403 + $0x34] sm:$0x1] %v2873
      %v2875 = vld [vmem:[%s2403 + $0x35] sm:$0x1]
      %v2876 = vsel %vm2018, %v2655, %v2875
      %2877 = vst [vmem:[%s2403 + $0x35] sm:$0x1] %v2876
      %v2878 = vld [vmem:[%s2403 + $0x36] sm:$0x1]
      %v2879 = vsel %vm2018, %v2657, %v2878
      %2880 = vst [vmem:[%s2403 + $0x36] sm:$0x1] %v2879
      %v2881 = vld [vmem:[%s2403 + $0x37] sm:$0x1]
      %v2882 = vsel %vm2018, %v2659, %v2881
      %2883 = vst [vmem:[%s2403 + $0x37] sm:$0x1] %v2882
      %v2884 = vld [vmem:[%s2403 + $0x40] sm:$0x1]
      %v2885 = vsel %vm2018, %v2661, %v2884
      %2886 = vst [vmem:[%s2403 + $0x40] sm:$0x1] %v2885
      %v2887 = vld [vmem:[%s2403 + $0x41] sm:$0x1]
      %v2888 = vsel %vm2018, %v2663, %v2887
      %2889 = vst [vmem:[%s2403 + $0x41] sm:$0x1] %v2888
      %v2890 = vld [vmem:[%s2403 + $0x42] sm:$0x1]
      %v2891 = vsel %vm2018, %v2665, %v2890
      %2892 = vst [vmem:[%s2403 + $0x42] sm:$0x1] %v2891
      %v2893 = vld [vmem:[%s2403 + $0x43] sm:$0x1]
      %v2894 = vsel %vm2018, %v2667, %v2893
      %2895 = vst [vmem:[%s2403 + $0x43] sm:$0x1] %v2894
      %v2896 = vld [vmem:[%s2403 + $0x44] sm:$0x1]
      %v2897 = vsel %vm2018, %v2669, %v2896
      %2898 = vst [vmem:[%s2403 + $0x44] sm:$0x1] %v2897
      %v2899 = vld [vmem:[%s2403 + $0x45] sm:$0x1]
      %v2900 = vsel %vm2018, %v2671, %v2899
      %2901 = vst [vmem:[%s2403 + $0x45] sm:$0x1] %v2900
      %v2902 = vld [vmem:[%s2403 + $0x46] sm:$0x1]
      %v2903 = vsel %vm2018, %v2673, %v2902
      %2904 = vst [vmem:[%s2403 + $0x46] sm:$0x1] %v2903
      %v2905 = vld [vmem:[%s2403 + $0x47] sm:$0x1]
      %v2906 = vsel %vm2018, %v2675, %v2905
      %2907 = vst [vmem:[%s2403 + $0x47] sm:$0x1] %v2906
      %v2908 = vld [vmem:[%s2403 + $0x50] sm:$0x1]
      %v2909 = vsel %vm2018, %v2677, %v2908
      %2910 = vst [vmem:[%s2403 + $0x50] sm:$0x1] %v2909
      %v2911 = vld [vmem:[%s2403 + $0x51] sm:$0x1]
      %v2912 = vsel %vm2018, %v2679, %v2911
      %2913 = vst [vmem:[%s2403 + $0x51] sm:$0x1] %v2912
      %v2914 = vld [vmem:[%s2403 + $0x52] sm:$0x1]
      %v2915 = vsel %vm2018, %v2681, %v2914
      %2916 = vst [vmem:[%s2403 + $0x52] sm:$0x1] %v2915
      %v2917 = vld [vmem:[%s2403 + $0x53] sm:$0x1]
      %v2918 = vsel %vm2018, %v2683, %v2917
      %2919 = vst [vmem:[%s2403 + $0x53] sm:$0x1] %v2918
      %v2920 = vld [vmem:[%s2403 + $0x54] sm:$0x1]
      %v2921 = vsel %vm2018, %v2685, %v2920
      %2922 = vst [vmem:[%s2403 + $0x54] sm:$0x1] %v2921
      %v2923 = vld [vmem:[%s2403 + $0x55] sm:$0x1]
      %v2924 = vsel %vm2018, %v2687, %v2923
      %2925 = vst [vmem:[%s2403 + $0x55] sm:$0x1] %v2924
      %v2926 = vld [vmem:[%s2403 + $0x56] sm:$0x1]
      %v2927 = vsel %vm2018, %v2689, %v2926
      %2928 = vst [vmem:[%s2403 + $0x56] sm:$0x1] %v2927
      %v2929 = vld [vmem:[%s2403 + $0x57] sm:$0x1]
      %v2930 = vsel %vm2018, %v2691, %v2929
      %2931 = vst [vmem:[%s2403 + $0x57] sm:$0x1] %v2930
      %v2932 = vld [vmem:[%s2403 + $0x60] sm:$0x1]
      %v2933 = vsel %vm2018, %v2693, %v2932
      %2934 = vst [vmem:[%s2403 + $0x60] sm:$0x1] %v2933
      %v2935 = vld [vmem:[%s2403 + $0x61] sm:$0x1]
      %v2936 = vsel %vm2018, %v2695, %v2935
      %2937 = vst [vmem:[%s2403 + $0x61] sm:$0x1] %v2936
      %v2938 = vld [vmem:[%s2403 + $0x62] sm:$0x1]
      %v2939 = vsel %vm2018, %v2697, %v2938
      %2940 = vst [vmem:[%s2403 + $0x62] sm:$0x1] %v2939
      %v2941 = vld [vmem:[%s2403 + $0x63] sm:$0x1]
      %v2942 = vsel %vm2018, %v2699, %v2941
      %2943 = vst [vmem:[%s2403 + $0x63] sm:$0x1] %v2942
      %v2944 = vld [vmem:[%s2403 + $0x64] sm:$0x1]
      %v2945 = vsel %vm2018, %v2701, %v2944
      %2946 = vst [vmem:[%s2403 + $0x64] sm:$0x1] %v2945
      %v2947 = vld [vmem:[%s2403 + $0x65] sm:$0x1]
      %v2948 = vsel %vm2018, %v2703, %v2947
      %2949 = vst [vmem:[%s2403 + $0x65] sm:$0x1] %v2948
      %v2950 = vld [vmem:[%s2403 + $0x66] sm:$0x1]
      %v2951 = vsel %vm2018, %v2705, %v2950
      %2952 = vst [vmem:[%s2403 + $0x66] sm:$0x1] %v2951
      %v2953 = vld [vmem:[%s2403 + $0x67] sm:$0x1]
      %v2954 = vsel %vm2018, %v2707, %v2953
      %2955 = vst [vmem:[%s2403 + $0x67] sm:$0x1] %v2954
      %v2956 = vld [vmem:[%s2403 + $0x70] sm:$0x1]
      %v2957 = vsel %vm2018, %v2709, %v2956
      %2958 = vst [vmem:[%s2403 + $0x70] sm:$0x1] %v2957
      %v2959 = vld [vmem:[%s2403 + $0x71] sm:$0x1]
      %v2960 = vsel %vm2018, %v2711, %v2959
      %2961 = vst [vmem:[%s2403 + $0x71] sm:$0x1] %v2960
      %v2962 = vld [vmem:[%s2403 + $0x72] sm:$0x1]
      %v2963 = vsel %vm2018, %v2713, %v2962
      %2964 = vst [vmem:[%s2403 + $0x72] sm:$0x1] %v2963
      %v2965 = vld [vmem:[%s2403 + $0x73] sm:$0x1]
      %v2966 = vsel %vm2018, %v2715, %v2965
      %2967 = vst [vmem:[%s2403 + $0x73] sm:$0x1] %v2966
      %v2968 = vld [vmem:[%s2403 + $0x74] sm:$0x1]
      %v2969 = vsel %vm2018, %v2717, %v2968
      %2970 = vst [vmem:[%s2403 + $0x74] sm:$0x1] %v2969
      %v2971 = vld [vmem:[%s2403 + $0x75] sm:$0x1]
      %v2972 = vsel %vm2018, %v2719, %v2971
      %2973 = vst [vmem:[%s2403 + $0x75] sm:$0x1] %v2972
      %v2974 = vld [vmem:[%s2403 + $0x76] sm:$0x1]
      %v2975 = vsel %vm2018, %v2721, %v2974
      %2976 = vst [vmem:[%s2403 + $0x76] sm:$0x1] %v2975
      %v2977 = vld [vmem:[%s2403 + $0x77] sm:$0x1]
      %v2978 = vsel %vm2018, %v2723, %v2977
      %2979 = vst [vmem:[%s2403 + $0x77] sm:$0x1] %v2978
      %v2980 = vld [vmem:[#allocation3] sm:$0x1]
      %v2981 = vld [vmem:[#allocation3 + $0x1] sm:$0x1]
      %v2982 = vld [vmem:[#allocation3 + $0x2] sm:$0x1]
      %v2983 = vld [vmem:[#allocation3 + $0x3] sm:$0x1]
      %v2984 = vld [vmem:[#allocation3 + $0x4] sm:$0x1]
      %v2985 = vld [vmem:[#allocation3 + $0x5] sm:$0x1]
      %v2986 = vld [vmem:[#allocation3 + $0x6] sm:$0x1]
      %v2987 = vld [vmem:[#allocation3 + $0x7] sm:$0x1]
      %v2988 = vld [vmem:[#allocation3 + $0x8] sm:$0x1]
      %v2989 = vld [vmem:[#allocation3 + $0x9] sm:$0x1]
      %v2990 = vld [vmem:[#allocation3 + $0xa] sm:$0x1]
      %v2991 = vld [vmem:[#allocation3 + $0xb] sm:$0x1]
      %v2992 = vld [vmem:[#allocation3 + $0xc] sm:$0x1]
      %v2993 = vld [vmem:[#allocation3 + $0xd] sm:$0x1]
      %v2994 = vld [vmem:[#allocation3 + $0xe] sm:$0x1]
      %v2995 = vld [vmem:[#allocation3 + $0xf] sm:$0x1]
      %v2996 = vld [vmem:[#allocation3 + $0x10] sm:$0x1]
      %v2997 = vld [vmem:[#allocation3 + $0x11] sm:$0x1]
      %v2998 = vld [vmem:[#allocation3 + $0x12] sm:$0x1]
      %v2999 = vld [vmem:[#allocation3 + $0x13] sm:$0x1]
      %v3000 = vld [vmem:[#allocation3 + $0x14] sm:$0x1]
      %v3001 = vld [vmem:[#allocation3 + $0x15] sm:$0x1]
      %v3002 = vld [vmem:[#allocation3 + $0x16] sm:$0x1]
      %v3003 = vld [vmem:[#allocation3 + $0x17] sm:$0x1]
      %v3004 = vld [vmem:[#allocation3 + $0x18] sm:$0x1]
      %v3005 = vld [vmem:[#allocation3 + $0x19] sm:$0x1]
      %v3006 = vld [vmem:[#allocation3 + $0x1a] sm:$0x1]
      %v3007 = vld [vmem:[#allocation3 + $0x1b] sm:$0x1]
      %v3008 = vld [vmem:[#allocation3 + $0x1c] sm:$0x1]
      %v3009 = vld [vmem:[#allocation3 + $0x1d] sm:$0x1]
      %v3010 = vld [vmem:[#allocation3 + $0x1e] sm:$0x1]
      %v3011 = vld [vmem:[#allocation3 + $0x1f] sm:$0x1]
      %v3012 = vld [vmem:[#allocation3 + $0x20] sm:$0x1]
      %v3013 = vld [vmem:[#allocation3 + $0x21] sm:$0x1]
      %v3014 = vld [vmem:[#allocation3 + $0x22] sm:$0x1]
      %v3015 = vld [vmem:[#allocation3 + $0x23] sm:$0x1]
      %v3016 = vld [vmem:[#allocation3 + $0x24] sm:$0x1]
      %v3017 = vld [vmem:[#allocation3 + $0x25] sm:$0x1]
      %v3018 = vld [vmem:[#allocation3 + $0x26] sm:$0x1]
      %v3019 = vld [vmem:[#allocation3 + $0x27] sm:$0x1]
      %v3020 = vld [vmem:[#allocation3 + $0x28] sm:$0x1]
      %v3021 = vld [vmem:[#allocation3 + $0x29] sm:$0x1]
      %v3022 = vld [vmem:[#allocation3 + $0x2a] sm:$0x1]
      %v3023 = vld [vmem:[#allocation3 + $0x2b] sm:$0x1]
      %v3024 = vld [vmem:[#allocation3 + $0x2c] sm:$0x1]
      %v3025 = vld [vmem:[#allocation3 + $0x2d] sm:$0x1]
      %v3026 = vld [vmem:[#allocation3 + $0x2e] sm:$0x1]
      %v3027 = vld [vmem:[#allocation3 + $0x2f] sm:$0x1]
      %v3028 = vld [vmem:[#allocation3 + $0x30] sm:$0x1]
      %v3029 = vld [vmem:[#allocation3 + $0x31] sm:$0x1]
      %v3030 = vld [vmem:[#allocation3 + $0x32] sm:$0x1]
      %v3031 = vld [vmem:[#allocation3 + $0x33] sm:$0x1]
      %v3032 = vld [vmem:[#allocation3 + $0x34] sm:$0x1]
      %v3033 = vld [vmem:[#allocation3 + $0x35] sm:$0x1]
      %v3034 = vld [vmem:[#allocation3 + $0x36] sm:$0x1]
      %v3035 = vld [vmem:[#allocation3 + $0x37] sm:$0x1]
      %v3036 = vld [vmem:[#allocation3 + $0x38] sm:$0x1]
      %v3037 = vld [vmem:[#allocation3 + $0x39] sm:$0x1]
      %v3038 = vld [vmem:[#allocation3 + $0x3a] sm:$0x1]
      %v3039 = vld [vmem:[#allocation3 + $0x3b] sm:$0x1]
      %v3040 = vld [vmem:[#allocation3 + $0x3c] sm:$0x1]
      %v3041 = vld [vmem:[#allocation3 + $0x3d] sm:$0x1]
      %v3042 = vld [vmem:[#allocation3 + $0x3e] sm:$0x1]
      %v3043 = vld [vmem:[#allocation3 + $0x3f] sm:$0x1]
      %v3044 = vld [vmem:[#allocation3 + $0x40] sm:$0x1]
      %v3045 = vld [vmem:[#allocation3 + $0x41] sm:$0x1]
      %v3046 = vld [vmem:[#allocation3 + $0x42] sm:$0x1]
      %v3047 = vld [vmem:[#allocation3 + $0x43] sm:$0x1]
      %v3048 = vld [vmem:[#allocation3 + $0x44] sm:$0x1]
      %v3049 = vld [vmem:[#allocation3 + $0x45] sm:$0x1]
      %v3050 = vld [vmem:[#allocation3 + $0x46] sm:$0x1]
      %v3051 = vld [vmem:[#allocation3 + $0x47] sm:$0x1]
      %v3052 = vld [vmem:[#allocation3 + $0x48] sm:$0x1]
      %v3053 = vld [vmem:[#allocation3 + $0x49] sm:$0x1]
      %v3054 = vld [vmem:[#allocation3 + $0x4a] sm:$0x1]
      %v3055 = vld [vmem:[#allocation3 + $0x4b] sm:$0x1]
      %v3056 = vld [vmem:[#allocation3 + $0x4c] sm:$0x1]
      %v3057 = vld [vmem:[#allocation3 + $0x4d] sm:$0x1]
      %v3058 = vld [vmem:[#allocation3 + $0x4e] sm:$0x1]
      %v3059 = vld [vmem:[#allocation3 + $0x4f] sm:$0x1]
      %v3060 = vld [vmem:[#allocation3 + $0x50] sm:$0x1]
      %v3061 = vld [vmem:[#allocation3 + $0x51] sm:$0x1]
      %v3062 = vld [vmem:[#allocation3 + $0x52] sm:$0x1]
      %v3063 = vld [vmem:[#allocation3 + $0x53] sm:$0x1]
      %v3064 = vld [vmem:[#allocation3 + $0x54] sm:$0x1]
      %v3065 = vld [vmem:[#allocation3 + $0x55] sm:$0x1]
      %v3066 = vld [vmem:[#allocation3 + $0x56] sm:$0x1]
      %v3067 = vld [vmem:[#allocation3 + $0x57] sm:$0x1]
      %v3068 = vld [vmem:[#allocation3 + $0x58] sm:$0x1]
      %v3069 = vld [vmem:[#allocation3 + $0x59] sm:$0x1]
      %v3070 = vld [vmem:[#allocation3 + $0x5a] sm:$0x1]
      %v3071 = vld [vmem:[#allocation3 + $0x5b] sm:$0x1]
      %v3072 = vld [vmem:[#allocation3 + $0x5c] sm:$0x1]
      %v3073 = vld [vmem:[#allocation3 + $0x5d] sm:$0x1]
      %v3074 = vld [vmem:[#allocation3 + $0x5e] sm:$0x1]
      %v3075 = vld [vmem:[#allocation3 + $0x5f] sm:$0x1]
      %v3076 = vld [vmem:[#allocation3 + $0x60] sm:$0x1]
      %v3077 = vld [vmem:[#allocation3 + $0x61] sm:$0x1]
      %v3078 = vld [vmem:[#allocation3 + $0x62] sm:$0x1]
      %v3079 = vld [vmem:[#allocation3 + $0x63] sm:$0x1]
      %v3080 = vld [vmem:[#allocation3 + $0x64] sm:$0x1]
      %v3081 = vld [vmem:[#allocation3 + $0x65] sm:$0x1]
      %v3082 = vld [vmem:[#allocation3 + $0x66] sm:$0x1]
      %v3083 = vld [vmem:[#allocation3 + $0x67] sm:$0x1]
      %v3084 = vld [vmem:[#allocation3 + $0x68] sm:$0x1]
      %v3085 = vld [vmem:[#allocation3 + $0x69] sm:$0x1]
      %v3086 = vld [vmem:[#allocation3 + $0x6a] sm:$0x1]
      %v3087 = vld [vmem:[#allocation3 + $0x6b] sm:$0x1]
      %v3088 = vld [vmem:[#allocation3 + $0x6c] sm:$0x1]
      %v3089 = vld [vmem:[#allocation3 + $0x6d] sm:$0x1]
      %v3090 = vld [vmem:[#allocation3 + $0x6e] sm:$0x1]
      %v3091 = vld [vmem:[#allocation3 + $0x6f] sm:$0x1]
      %v3092 = vld [vmem:[#allocation3 + $0x70] sm:$0x1]
      %v3093 = vld [vmem:[#allocation3 + $0x71] sm:$0x1]
      %v3094 = vld [vmem:[#allocation3 + $0x72] sm:$0x1]
      %v3095 = vld [vmem:[#allocation3 + $0x73] sm:$0x1]
      %v3096 = vld [vmem:[#allocation3 + $0x74] sm:$0x1]
      %v3097 = vld [vmem:[#allocation3 + $0x75] sm:$0x1]
      %v3098 = vld [vmem:[#allocation3 + $0x76] sm:$0x1]
      %v3099 = vld [vmem:[#allocation3 + $0x77] sm:$0x1]
      %v3100 = vld [vmem:[#allocation3 + $0x78] sm:$0x1]
      %v3101 = vld [vmem:[#allocation3 + $0x79] sm:$0x1]
      %v3102 = vld [vmem:[#allocation3 + $0x7a] sm:$0x1]
      %v3103 = vld [vmem:[#allocation3 + $0x7b] sm:$0x1]
      %v3104 = vld [vmem:[#allocation3 + $0x7c] sm:$0x1]
      %v3105 = vld [vmem:[#allocation3 + $0x7d] sm:$0x1]
      %v3106 = vld [vmem:[#allocation3 + $0x7e] sm:$0x1]
      %v3107 = vld [vmem:[#allocation3 + $0x7f] sm:$0x1]
      %3108 = vst.msk [vmem:[#allocation4] sm:$0xf] %vm327, 0
      %3109 = vst.msk [vmem:[#allocation4 + $0x4] sm:$0xf] %vm327, 0
      %3110 = vst.msk [vmem:[#allocation4 + $0x8] sm:$0x1] %vm329, 0
      %3111 = vst.msk [vmem:[#allocation4 + $0xc] sm:$0xf] %vm327, 0
      %3112 = vst.msk [vmem:[#allocation4 + $0x10] sm:$0xf] %vm327, 0
      %3113 = vst.msk [vmem:[#allocation4 + $0x14] sm:$0x1] %vm329, 0
      %3114 = vst.msk [vmem:[#allocation4 + $0x18] sm:$0xf] %vm327, 0
      %3115 = vst.msk [vmem:[#allocation4 + $0x1c] sm:$0xf] %vm327, 0
      %3116 = vst.msk [vmem:[#allocation4 + $0x20] sm:$0x1] %vm329, 0
      %3117 = vst.msk [vmem:[#allocation4 + $0x24] sm:$0xf] %vm327, 0
      %3118 = vst.msk [vmem:[#allocation4 + $0x28] sm:$0xf] %vm327, 0
      %3119 = vst.msk [vmem:[#allocation4 + $0x2c] sm:$0x1] %vm329, 0
      %3120 = vst.msk [vmem:[#allocation4 + $0x30] sm:$0xf] %vm327, 0
      %3121 = vst.msk [vmem:[#allocation4 + $0x34] sm:$0xf] %vm327, 0
      %3122 = vst.msk [vmem:[#allocation4 + $0x38] sm:$0x1] %vm329, 0
      %3123 = vst.msk [vmem:[#allocation4 + $0x3c] sm:$0xf] %vm327, 0
      %3124 = vst.msk [vmem:[#allocation4 + $0x40] sm:$0xf] %vm327, 0
      %3125 = vst.msk [vmem:[#allocation4 + $0x44] sm:$0x1] %vm329, 0
      %3126 = vst.msk [vmem:[#allocation4 + $0x48] sm:$0xf] %vm327, 0
      %3127 = vst.msk [vmem:[#allocation4 + $0x4c] sm:$0xf] %vm327, 0
      %3128 = vst.msk [vmem:[#allocation4 + $0x50] sm:$0x1] %vm329, 0
      %3129 = vst.msk [vmem:[#allocation4 + $0x54] sm:$0xf] %vm327, 0
      %3130 = vst.msk [vmem:[#allocation4 + $0x58] sm:$0xf] %vm327, 0
      %3131 = vst.msk [vmem:[#allocation4 + $0x5c] sm:$0x1] %vm329, 0
      %3132 = vst.msk [vmem:[#allocation4 + $0x60] sm:$0xf] %vm327, 0
      %3133 = vst.msk [vmem:[#allocation4 + $0x64] sm:$0xf] %vm327, 0
      %3134 = vst.msk [vmem:[#allocation4 + $0x68] sm:$0x1] %vm329, 0
      %3135 = vst.msk [vmem:[#allocation4 + $0x6c] sm:$0xf] %vm327, 0
      %3136 = vst.msk [vmem:[#allocation4 + $0x70] sm:$0xf] %vm327, 0
      %3137 = vst.msk [vmem:[#allocation4 + $0x74] sm:$0x1] %vm329, 0
      %3138 = vst.msk [vmem:[#allocation4 + $0x78] sm:$0xf] %vm327, 0
      %3139 = vst.msk [vmem:[#allocation4 + $0x7c] sm:$0xf] %vm327, 0
      %3140 = vst.msk [vmem:[#allocation4 + $0x80] sm:$0x1] %vm329, 0
      %3141 = vst.msk [vmem:[#allocation4 + $0x84] sm:$0xf] %vm327, 0
      %3142 = vst.msk [vmem:[#allocation4 + $0x88] sm:$0xf] %vm327, 0
      %3143 = vst.msk [vmem:[#allocation4 + $0x8c] sm:$0x1] %vm329, 0
      %3144 = vst.msk [vmem:[#allocation4 + $0x90] sm:$0xf] %vm327, 0
      %3145 = vst.msk [vmem:[#allocation4 + $0x94] sm:$0xf] %vm327, 0
      %3146 = vst.msk [vmem:[#allocation4 + $0x98] sm:$0x1] %vm329, 0
      %3147 = vst.msk [vmem:[#allocation4 + $0x9c] sm:$0xf] %vm327, 0
      %3148 = vst.msk [vmem:[#allocation4 + $0xa0] sm:$0xf] %vm327, 0
      %3149 = vst.msk [vmem:[#allocation4 + $0xa4] sm:$0x1] %vm329, 0
      %3150 = vst.msk [vmem:[#allocation4 + $0xa8] sm:$0xf] %vm327, 0
      %3151 = vst.msk [vmem:[#allocation4 + $0xac] sm:$0xf] %vm327, 0
      %3152 = vst.msk [vmem:[#allocation4 + $0xb0] sm:$0x1] %vm329, 0
      %3153 = vst.msk [vmem:[#allocation4 + $0xb4] sm:$0xf] %vm327, 0
      %3154 = vst.msk [vmem:[#allocation4 + $0xb8] sm:$0xf] %vm327, 0
      %3155 = vst.msk [vmem:[#allocation4 + $0xbc] sm:$0x1] %vm329, 0
      %3156 = vst.msk [vmem:[#allocation4 + $0xc0] sm:$0xf] %vm327, 0
      %3157 = vst.msk [vmem:[#allocation4 + $0xc4] sm:$0xf] %vm327, 0
      %3158 = vst.msk [vmem:[#allocation4 + $0xc8] sm:$0x1] %vm329, 0
      %3159 = vst.msk [vmem:[#allocation4 + $0xcc] sm:$0xf] %vm327, 0
      %3160 = vst.msk [vmem:[#allocation4 + $0xd0] sm:$0xf] %vm327, 0
      %3161 = vst.msk [vmem:[#allocation4 + $0xd4] sm:$0x1] %vm329, 0
      %v3162 = vld [vmem:[%s320] sm:$0xff]
      %v3163 = vld [vmem:[%s320 + $0x8] sm:$0xff]
      %v3164 = vld [vmem:[%s320 + $0x10] sm:$0xff]
      %v3165 = vld [vmem:[%s320 + $0x18] sm:$0xff]
      %v3166 = vld [vmem:[%s320 + $0x20] sm:$0xff]
      %v3167 = vld [vmem:[%s320 + $0x28] sm:$0xff]
      %v3168 = vld [vmem:[%s320 + $0x30] sm:$0xff]
      %v3169 = vld [vmem:[%s320 + $0x38] sm:$0xff]
      %v3170 = vld [vmem:[%s320 + $0x40] sm:$0xff]
      %v3171 = vld [vmem:[%s320 + $0x48] sm:$0xff]
      %v3172 = vld [vmem:[%s320 + $0x50] sm:$0xff]
      %v3173 = vld [vmem:[%s320 + $0x58] sm:$0xff]
      %v3174 = vld [vmem:[%s320 + $0x60] sm:$0xff]
      %v3175 = vld [vmem:[%s320 + $0x68] sm:$0xff]
      %v3176 = vld [vmem:[%s320 + $0x70] sm:$0xff]
      %v3177 = vld [vmem:[%s320 + $0x78] sm:$0xff]
      %v3178 = vld [vmem:[%s320 + $0x80] sm:$0xff]
      %v3179 = vld [vmem:[%s320 + $0x88] sm:$0xff]
      %v3180 = vld [vmem:[%s320 + $0x90] sm:$0xff]
      %v3181 = vld [vmem:[%s320 + $0x98] sm:$0xff]
      %v3182 = vld [vmem:[%s320 + $0xa0] sm:$0xff]
      %v3183 = vld [vmem:[%s320 + $0xa8] sm:$0xff]
      %v3184 = vld [vmem:[%s320 + $0xb0] sm:$0xff]
      %v3185 = vld [vmem:[%s320 + $0xb8] sm:$0xff]
      %v3186 = vld [vmem:[%s320 + $0xc0] sm:$0xff]
      %v3187 = vld [vmem:[%s320 + $0xc8] sm:$0xff]
      %v3188 = vld [vmem:[%s320 + $0xd0] sm:$0xff]
      %v3189 = vld [vmem:[%s320 + $0xd8] sm:$0xff]
      %v3190 = vld [vmem:[%s320 + $0xe0] sm:$0xff]
      %v3191 = vld [vmem:[%s320 + $0xe8] sm:$0xff]
      %v3192 = vld [vmem:[%s320 + $0xf0] sm:$0xff]
      %v3193 = vld [vmem:[%s320 + $0xf8] sm:$0xff]
      %v3194 = vpack.c.bf16 %v3163, %v3162
      %v3195 = vpack.c.bf16 %v3165, %v3164
      %v3196 = vpack.c.bf16 %v3167, %v3166
      %v3197 = vpack.c.bf16 %v3169, %v3168
      %v3198 = vpack.c.bf16 %v3171, %v3170
      %v3199 = vpack.c.bf16 %v3173, %v3172
      %v3200 = vpack.c.bf16 %v3175, %v3174
      %v3201 = vpack.c.bf16 %v3177, %v3176
      %v3202 = vpack.c.bf16 %v3179, %v3178
      %v3203 = vpack.c.bf16 %v3181, %v3180
      %v3204 = vpack.c.bf16 %v3183, %v3182
      %v3205 = vpack.c.bf16 %v3185, %v3184
      %v3206 = vpack.c.bf16 %v3187, %v3186
      %v3207 = vpack.c.bf16 %v3189, %v3188
      %v3208 = vpack.c.bf16 %v3191, %v3190
      %v3209 = vpack.c.bf16 %v3193, %v3192
      %v3226 = vunpack.c.l.b16 %v3194
      %v3227 = vunpack.c.h.b16 %v3194
      %v3228 = vunpack.c.l.b16 %v3195
      %v3229 = vunpack.c.h.b16 %v3195
      %v3230 = vunpack.c.l.b16 %v3196
      %v3231 = vunpack.c.h.b16 %v3196
      %v3232 = vunpack.c.l.b16 %v3197
      %v3233 = vunpack.c.h.b16 %v3197
      %v3234 = vunpack.c.l.b16 %v3198
      %v3235 = vunpack.c.h.b16 %v3198
      %v3236 = vunpack.c.l.b16 %v3199
      %v3237 = vunpack.c.h.b16 %v3199
      %v3238 = vunpack.c.l.b16 %v3200
      %v3239 = vunpack.c.h.b16 %v3200
      %v3240 = vunpack.c.l.b16 %v3201
      %v3241 = vunpack.c.h.b16 %v3201
      %v3242 = vunpack.c.l.b16 %v3202
      %v3243 = vunpack.c.h.b16 %v3202
      %v3244 = vunpack.c.l.b16 %v3203
      %v3245 = vunpack.c.h.b16 %v3203
      %v3246 = vunpack.c.l.b16 %v3204
      %v3247 = vunpack.c.h.b16 %v3204
      %v3248 = vunpack.c.l.b16 %v3205
      %v3249 = vunpack.c.h.b16 %v3205
      %v3250 = vunpack.c.l.b16 %v3206
      %v3251 = vunpack.c.h.b16 %v3206
      %v3252 = vunpack.c.l.b16 %v3207
      %v3253 = vunpack.c.h.b16 %v3207
      %v3254 = vunpack.c.l.b16 %v3208
      %v3255 = vunpack.c.h.b16 %v3208
      %v3256 = vunpack.c.l.b16 %v3209
      %v3257 = vunpack.c.h.b16 %v3209
      %v3258 = vpack.c.b16 %v3226, %v3226
      %v3259 = vpack.c.b16 %v3227, %v3227
      %v3260 = vpack.c.b16 %v3228, %v3228
      %v3261 = vpack.c.b16 %v3229, %v3229
      %v3262 = vpack.c.b16 %v3230, %v3230
      %v3263 = vpack.c.b16 %v3231, %v3231
      %v3264 = vpack.c.b16 %v3232, %v3232
      %v3265 = vpack.c.b16 %v3233, %v3233
      %v3266 = vpack.c.b16 %v3234, %v3234
      %v3267 = vpack.c.b16 %v3235, %v3235
      %v3268 = vpack.c.b16 %v3236, %v3236
      %v3269 = vpack.c.b16 %v3237, %v3237
      %v3270 = vpack.c.b16 %v3238, %v3238
      %v3271 = vpack.c.b16 %v3239, %v3239
      %v3272 = vpack.c.b16 %v3240, %v3240
      %v3273 = vpack.c.b16 %v3241, %v3241
      %v3274 = vpack.c.b16 %v3242, %v3242
      %v3275 = vpack.c.b16 %v3243, %v3243
      %v3276 = vpack.c.b16 %v3244, %v3244
      %v3277 = vpack.c.b16 %v3245, %v3245
      %v3278 = vpack.c.b16 %v3246, %v3246
      %v3279 = vpack.c.b16 %v3247, %v3247
      %v3280 = vpack.c.b16 %v3248, %v3248
      %v3281 = vpack.c.b16 %v3249, %v3249
      %v3282 = vpack.c.b16 %v3250, %v3250
      %v3283 = vpack.c.b16 %v3251, %v3251
      %v3284 = vpack.c.b16 %v3252, %v3252
      %v3285 = vpack.c.b16 %v3253, %v3253
      %v3286 = vpack.c.b16 %v3254, %v3254
      %v3287 = vpack.c.b16 %v3255, %v3255
      %v3288 = vpack.c.b16 %v3256, %v3256
      %v3289 = vpack.c.b16 %v3257, %v3257
      %vm3290 = vsmask.f32 4368
      %vm3291 = vmor %vm477, %vm3290
      %v3293 = vshrl.u32 %v3258, 16
      %v3295 = vrot.slane %v3293, 7
      %v3296 = vshll.u32 %v3258, 16
      %v3298 = vor.u32 %v3295, %v3296
      %v3299 = vrot.slane %v3295, 4
      %v3301 = vshrl.u32 %v3259, 16
      %v3303 = vrot.slane %v3301, 7
      %v3304 = vshll.u32 %v3259, 16
      %v3306 = vor.u32 %v3303, %v3304
      %v3307 = vsel %vm3291, %v3299, %v3306
      %v3308 = vrot.slane %v3303, 4
      %v3310 = vshrl.u32 %v3260, 16
      %v3312 = vrot.slane %v3310, 7
      %v3313 = vshll.u32 %v3260, 16
      %v3315 = vor.u32 %v3312, %v3313
      %v3316 = vrot.slane %v3312, 4
      %v3318 = vshrl.u32 %v3261, 16
      %v3320 = vrot.slane %v3318, 7
      %v3321 = vshll.u32 %v3261, 16
      %v3323 = vor.u32 %v3320, %v3321
      %v3324 = vsel %vm3291, %v3316, %v3323
      %v3325 = vrot.slane %v3320, 4
      %v3327 = vshrl.u32 %v3262, 16
      %v3329 = vrot.slane %v3327, 7
      %v3330 = vshll.u32 %v3262, 16
      %v3332 = vor.u32 %v3329, %v3330
      %v3333 = vrot.slane %v3329, 4
      %v3335 = vshrl.u32 %v3263, 16
      %v3337 = vrot.slane %v3335, 7
      %v3338 = vshll.u32 %v3263, 16
      %v3340 = vor.u32 %v3337, %v3338
      %v3341 = vsel %vm3291, %v3333, %v3340
      %v3342 = vrot.slane %v3337, 4
      %v3344 = vshrl.u32 %v3264, 16
      %v3346 = vrot.slane %v3344, 7
      %v3347 = vshll.u32 %v3264, 16
      %v3349 = vor.u32 %v3346, %v3347
      %v3350 = vrot.slane %v3346, 4
      %v3352 = vshrl.u32 %v3265, 16
      %v3354 = vrot.slane %v3352, 7
      %v3355 = vshll.u32 %v3265, 16
      %v3357 = vor.u32 %v3354, %v3355
      %v3358 = vsel %vm3291, %v3350, %v3357
      %v3359 = vrot.slane %v3354, 4
      %v3361 = vshrl.u32 %v3266, 16
      %v3363 = vrot.slane %v3361, 7
      %v3364 = vshll.u32 %v3266, 16
      %v3366 = vor.u32 %v3363, %v3364
      %v3367 = vrot.slane %v3363, 4
      %v3369 = vshrl.u32 %v3267, 16
      %v3371 = vrot.slane %v3369, 7
      %v3372 = vshll.u32 %v3267, 16
      %v3374 = vor.u32 %v3371, %v3372
      %v3375 = vsel %vm3291, %v3367, %v3374
      %v3376 = vrot.slane %v3371, 4
      %v3378 = vshrl.u32 %v3268, 16
      %v3380 = vrot.slane %v3378, 7
      %v3381 = vshll.u32 %v3268, 16
      %v3383 = vor.u32 %v3380, %v3381
      %v3384 = vrot.slane %v3380, 4
      %v3386 = vshrl.u32 %v3269, 16
      %v3388 = vrot.slane %v3386, 7
      %v3389 = vshll.u32 %v3269, 16
      %v3391 = vor.u32 %v3388, %v3389
      %v3392 = vsel %vm3291, %v3384, %v3391
      %v3393 = vrot.slane %v3388, 4
      %v3395 = vshrl.u32 %v3270, 16
      %v3397 = vrot.slane %v3395, 7
      %v3398 = vshll.u32 %v3270, 16
      %v3400 = vor.u32 %v3397, %v3398
      %v3401 = vrot.slane %v3397, 4
      %v3403 = vshrl.u32 %v3271, 16
      %v3405 = vrot.slane %v3403, 7
      %v3406 = vshll.u32 %v3271, 16
      %v3408 = vor.u32 %v3405, %v3406
      %v3409 = vsel %vm3291, %v3401, %v3408
      %v3410 = vrot.slane %v3405, 4
      %v3412 = vshrl.u32 %v3272, 16
      %v3414 = vrot.slane %v3412, 7
      %v3415 = vshll.u32 %v3272, 16
      %v3417 = vor.u32 %v3414, %v3415
      %v3418 = vrot.slane %v3414, 4
      %v3420 = vshrl.u32 %v3273, 16
      %v3422 = vrot.slane %v3420, 7
      %v3423 = vshll.u32 %v3273, 16
      %v3425 = vor.u32 %v3422, %v3423
      %v3426 = vsel %vm3291, %v3418, %v3425
      %v3427 = vrot.slane %v3422, 4
      %v3429 = vshrl.u32 %v3274, 16
      %v3431 = vrot.slane %v3429, 7
      %v3432 = vshll.u32 %v3274, 16
      %v3434 = vor.u32 %v3431, %v3432
      %v3435 = vrot.slane %v3431, 4
      %v3437 = vshrl.u32 %v3275, 16
      %v3439 = vrot.slane %v3437, 7
      %v3440 = vshll.u32 %v3275, 16
      %v3442 = vor.u32 %v3439, %v3440
      %v3443 = vsel %vm3291, %v3435, %v3442
      %v3444 = vrot.slane %v3439, 4
      %v3446 = vshrl.u32 %v3276, 16
      %v3448 = vrot.slane %v3446, 7
      %v3449 = vshll.u32 %v3276, 16
      %v3451 = vor.u32 %v3448, %v3449
      %v3452 = vrot.slane %v3448, 4
      %v3454 = vshrl.u32 %v3277, 16
      %v3456 = vrot.slane %v3454, 7
      %v3457 = vshll.u32 %v3277, 16
      %v3459 = vor.u32 %v3456, %v3457
      %v3460 = vsel %vm3291, %v3452, %v3459
      %v3461 = vrot.slane %v3456, 4
      %v3463 = vshrl.u32 %v3278, 16
      %v3465 = vrot.slane %v3463, 7
      %v3466 = vshll.u32 %v3278, 16
      %v3468 = vor.u32 %v3465, %v3466
      %v3469 = vrot.slane %v3465, 4
      %v3471 = vshrl.u32 %v3279, 16
      %v3473 = vrot.slane %v3471, 7
      %v3474 = vshll.u32 %v3279, 16
      %v3476 = vor.u32 %v3473, %v3474
      %v3477 = vsel %vm3291, %v3469, %v3476
      %v3478 = vrot.slane %v3473, 4
      %v3480 = vshrl.u32 %v3280, 16
      %v3482 = vrot.slane %v3480, 7
      %v3483 = vshll.u32 %v3280, 16
      %v3485 = vor.u32 %v3482, %v3483
      %v3486 = vrot.slane %v3482, 4
      %v3488 = vshrl.u32 %v3281, 16
      %v3490 = vrot.slane %v3488, 7
      %v3491 = vshll.u32 %v3281, 16
      %v3493 = vor.u32 %v3490, %v3491
      %v3494 = vsel %vm3291, %v3486, %v3493
      %v3495 = vrot.slane %v3490, 4
      %v3497 = vshrl.u32 %v3282, 16
      %v3499 = vrot.slane %v3497, 7
      %v3500 = vshll.u32 %v3282, 16
      %v3502 = vor.u32 %v3499, %v3500
      %v3503 = vrot.slane %v3499, 4
      %v3505 = vshrl.u32 %v3283, 16
      %v3507 = vrot.slane %v3505, 7
      %v3508 = vshll.u32 %v3283, 16
      %v3510 = vor.u32 %v3507, %v3508
      %v3511 = vsel %vm3291, %v3503, %v3510
      %v3512 = vrot.slane %v3507, 4
      %v3514 = vshrl.u32 %v3284, 16
      %v3516 = vrot.slane %v3514, 7
      %v3517 = vshll.u32 %v3284, 16
      %v3519 = vor.u32 %v3516, %v3517
      %v3520 = vrot.slane %v3516, 4
      %v3522 = vshrl.u32 %v3285, 16
      %v3524 = vrot.slane %v3522, 7
      %v3525 = vshll.u32 %v3285, 16
      %v3527 = vor.u32 %v3524, %v3525
      %v3528 = vsel %vm3291, %v3520, %v3527
      %v3529 = vrot.slane %v3524, 4
      %v3531 = vshrl.u32 %v3286, 16
      %v3533 = vrot.slane %v3531, 7
      %v3534 = vshll.u32 %v3286, 16
      %v3536 = vor.u32 %v3533, %v3534
      %v3537 = vrot.slane %v3533, 4
      %v3539 = vshrl.u32 %v3287, 16
      %v3541 = vrot.slane %v3539, 7
      %v3542 = vshll.u32 %v3287, 16
      %v3544 = vor.u32 %v3541, %v3542
      %v3545 = vsel %vm3291, %v3537, %v3544
      %v3546 = vrot.slane %v3541, 4
      %v3548 = vshrl.u32 %v3288, 16
      %v3550 = vrot.slane %v3548, 7
      %v3551 = vshll.u32 %v3288, 16
      %v3553 = vor.u32 %v3550, %v3551
      %v3554 = vrot.slane %v3550, 4
      %v3556 = vshrl.u32 %v3289, 16
      %v3558 = vrot.slane %v3556, 7
      %v3559 = vshll.u32 %v3289, 16
      %v3561 = vor.u32 %v3558, %v3559
      %v3562 = vsel %vm3291, %v3554, %v3561
      %v3563 = vrot.slane %v3558, 4
      %s3612 = scalar_lea.vmem [#allocation4], 12
      %vm3613 = vcmask 125952
      %vm3614 = vmand %vm3613, %vm471
      %v3615 = vld [vmem:[%s3612] sm:$0xf]
      %v3616 = vsel %vm3614, %v3298, %v3615
      %3617 = vst [vmem:[%s3612] sm:$0xf] %v3616
      %vm3618 = vcmask 125952
      %3619 = vst.msk [vmem:[%s3612 + $0x4] sm:$0xf] %vm3618, %v3307
      %v3620 = vld [vmem:[%s3612 + $0x8] sm:$0x1]
      %v3621 = vsel %vm1633, %v3308, %v3620
      %3622 = vst [vmem:[%s3612 + $0x8] sm:$0x1] %v3621
      %v3623 = vld [vmem:[%s3612 + $0xc] sm:$0xf]
      %v3624 = vsel %vm3614, %v3315, %v3623
      %3625 = vst [vmem:[%s3612 + $0xc] sm:$0xf] %v3624
      %3626 = vst.msk [vmem:[%s3612 + $0x10] sm:$0xf] %vm3618, %v3324
      %v3627 = vld [vmem:[%s3612 + $0x14] sm:$0x1]
      %v3628 = vsel %vm1633, %v3325, %v3627
      %3629 = vst [vmem:[%s3612 + $0x14] sm:$0x1] %v3628
      %v3630 = vld [vmem:[%s3612 + $0x18] sm:$0xf]
      %v3631 = vsel %vm3614, %v3332, %v3630
      %3632 = vst [vmem:[%s3612 + $0x18] sm:$0xf] %v3631
      %3633 = vst.msk [vmem:[%s3612 + $0x1c] sm:$0xf] %vm3618, %v3341
      %v3634 = vld [vmem:[%s3612 + $0x20] sm:$0x1]
      %v3635 = vsel %vm1633, %v3342, %v3634
      %3636 = vst [vmem:[%s3612 + $0x20] sm:$0x1] %v3635
      %v3637 = vld [vmem:[%s3612 + $0x24] sm:$0xf]
      %v3638 = vsel %vm3614, %v3349, %v3637
      %3639 = vst [vmem:[%s3612 + $0x24] sm:$0xf] %v3638
      %3640 = vst.msk [vmem:[%s3612 + $0x28] sm:$0xf] %vm3618, %v3358
      %v3641 = vld [vmem:[%s3612 + $0x2c] sm:$0x1]
      %v3642 = vsel %vm1633, %v3359, %v3641
      %3643 = vst [vmem:[%s3612 + $0x2c] sm:$0x1] %v3642
      %v3644 = vld [vmem:[%s3612 + $0x30] sm:$0xf]
      %v3645 = vsel %vm3614, %v3366, %v3644
      %3646 = vst [vmem:[%s3612 + $0x30] sm:$0xf] %v3645
      %3647 = vst.msk [vmem:[%s3612 + $0x34] sm:$0xf] %vm3618, %v3375
      %v3648 = vld [vmem:[%s3612 + $0x38] sm:$0x1]
      %v3649 = vsel %vm1633, %v3376, %v3648
      %3650 = vst [vmem:[%s3612 + $0x38] sm:$0x1] %v3649
      %v3651 = vld [vmem:[%s3612 + $0x3c] sm:$0xf]
      %v3652 = vsel %vm3614, %v3383, %v3651
      %3653 = vst [vmem:[%s3612 + $0x3c] sm:$0xf] %v3652
      %3654 = vst.msk [vmem:[%s3612 + $0x40] sm:$0xf] %vm3618, %v3392
      %v3655 = vld [vmem:[%s3612 + $0x44] sm:$0x1]
      %v3656 = vsel %vm1633, %v3393, %v3655
      %3657 = vst [vmem:[%s3612 + $0x44] sm:$0x1] %v3656
      %v3658 = vld [vmem:[%s3612 + $0x48] sm:$0xf]
      %v3659 = vsel %vm3614, %v3400, %v3658
      %3660 = vst [vmem:[%s3612 + $0x48] sm:$0xf] %v3659
      %3661 = vst.msk [vmem:[%s3612 + $0x4c] sm:$0xf] %vm3618, %v3409
      %v3662 = vld [vmem:[%s3612 + $0x50] sm:$0x1]
      %v3663 = vsel %vm1633, %v3410, %v3662
      %3664 = vst [vmem:[%s3612 + $0x50] sm:$0x1] %v3663
      %v3665 = vld [vmem:[%s3612 + $0x54] sm:$0xf]
      %v3666 = vsel %vm3614, %v3417, %v3665
      %3667 = vst [vmem:[%s3612 + $0x54] sm:$0xf] %v3666
      %3668 = vst.msk [vmem:[%s3612 + $0x58] sm:$0xf] %vm3618, %v3426
      %v3669 = vld [vmem:[%s3612 + $0x5c] sm:$0x1]
      %v3670 = vsel %vm1633, %v3427, %v3669
      %3671 = vst [vmem:[%s3612 + $0x5c] sm:$0x1] %v3670
      %v3672 = vld [vmem:[%s3612 + $0x60] sm:$0xf]
      %v3673 = vsel %vm3614, %v3434, %v3672
      %3674 = vst [vmem:[%s3612 + $0x60] sm:$0xf] %v3673
      %3675 = vst.msk [vmem:[%s3612 + $0x64] sm:$0xf] %vm3618, %v3443
      %v3676 = vld [vmem:[%s3612 + $0x68] sm:$0x1]
      %v3677 = vsel %vm1633, %v3444, %v3676
      %3678 = vst [vmem:[%s3612 + $0x68] sm:$0x1] %v3677
      %v3679 = vld [vmem:[%s3612 + $0x6c] sm:$0xf]
      %v3680 = vsel %vm3614, %v3451, %v3679
      %3681 = vst [vmem:[%s3612 + $0x6c] sm:$0xf] %v3680
      %3682 = vst.msk [vmem:[%s3612 + $0x70] sm:$0xf] %vm3618, %v3460
      %v3683 = vld [vmem:[%s3612 + $0x74] sm:$0x1]
      %v3684 = vsel %vm1633, %v3461, %v3683
      %3685 = vst [vmem:[%s3612 + $0x74] sm:$0x1] %v3684
      %v3686 = vld [vmem:[%s3612 + $0x78] sm:$0xf]
      %v3687 = vsel %vm3614, %v3468, %v3686
      %3688 = vst [vmem:[%s3612 + $0x78] sm:$0xf] %v3687
      %3689 = vst.msk [vmem:[%s3612 + $0x7c] sm:$0xf] %vm3618, %v3477
      %v3690 = vld [vmem:[%s3612 + $0x80] sm:$0x1]
      %v3691 = vsel %vm1633, %v3478, %v3690
      %3692 = vst [vmem:[%s3612 + $0x80] sm:$0x1] %v3691
      %v3693 = vld [vmem:[%s3612 + $0x84] sm:$0xf]
      %v3694 = vsel %vm3614, %v3485, %v3693
      %3695 = vst [vmem:[%s3612 + $0x84] sm:$0xf] %v3694
      %3696 = vst.msk [vmem:[%s3612 + $0x88] sm:$0xf] %vm3618, %v3494
      %v3697 = vld [vmem:[%s3612 + $0x8c] sm:$0x1]
      %v3698 = vsel %vm1633, %v3495, %v3697
      %3699 = vst [vmem:[%s3612 + $0x8c] sm:$0x1] %v3698
      %v3700 = vld [vmem:[%s3612 + $0x90] sm:$0xf]
      %v3701 = vsel %vm3614, %v3502, %v3700
      %3702 = vst [vmem:[%s3612 + $0x90] sm:$0xf] %v3701
      %3703 = vst.msk [vmem:[%s3612 + $0x94] sm:$0xf] %vm3618, %v3511
      %v3704 = vld [vmem:[%s3612 + $0x98] sm:$0x1]
      %v3705 = vsel %vm1633, %v3512, %v3704
      %3706 = vst [vmem:[%s3612 + $0x98] sm:$0x1] %v3705
      %v3707 = vld [vmem:[%s3612 + $0x9c] sm:$0xf]
      %v3708 = vsel %vm3614, %v3519, %v3707
      %3709 = vst [vmem:[%s3612 + $0x9c] sm:$0xf] %v3708
      %3710 = vst.msk [vmem:[%s3612 + $0xa0] sm:$0xf] %vm3618, %v3528
      %v3711 = vld [vmem:[%s3612 + $0xa4] sm:$0x1]
      %v3712 = vsel %vm1633, %v3529, %v3711
      %3713 = vst [vmem:[%s3612 + $0xa4] sm:$0x1] %v3712
      %v3714 = vld [vmem:[%s3612 + $0xa8] sm:$0xf]
      %v3715 = vsel %vm3614, %v3536, %v3714
      %3716 = vst [vmem:[%s3612 + $0xa8] sm:$0xf] %v3715
      %3717 = vst.msk [vmem:[%s3612 + $0xac] sm:$0xf] %vm3618, %v3545
      %v3718 = vld [vmem:[%s3612 + $0xb0] sm:$0x1]
      %v3719 = vsel %vm1633, %v3546, %v3718
      %3720 = vst [vmem:[%s3612 + $0xb0] sm:$0x1] %v3719
      %v3721 = vld [vmem:[%s3612 + $0xb4] sm:$0xf]
      %v3722 = vsel %vm3614, %v3553, %v3721
      %3723 = vst [vmem:[%s3612 + $0xb4] sm:$0xf] %v3722
      %3724 = vst.msk [vmem:[%s3612 + $0xb8] sm:$0xf] %vm3618, %v3562
      %v3725 = vld [vmem:[%s3612 + $0xbc] sm:$0x1]
      %v3726 = vsel %vm1633, %v3563, %v3725
      %3727 = vst [vmem:[%s3612 + $0xbc] sm:$0x1] %v3726
      %v3856 = vcombine.low %v2980, %v2982
      %v3857 = vcombine.low %v2981, %v2983
      %v3859 = vunpack.c.l.s4 1935823168
      %v3860 = vunpack.c.0.s8 %v3859
      %v3861 = vlaneseq
      %v3862 = vshrl.u32 %v3861, 7
      %v3863 = vsub.s32 %v3860, %v3862
      %v3864 = vrot.slane %v3856, %v3863
      %v3866 = vunpack.c.l.s4 1935823168
      %v3867 = vunpack.c.0.s8 %v3866
      %v3868 = vlaneseq
      %v3869 = vshrl.u32 %v3868, 7
      %v3870 = vsub.s32 %v3867, %v3869
      %v3871 = vrot.slane %v3857, %v3870
      %v3872 = vcombine.low %v3864, %v3871
      %v3874 = vunpack.c.l.s4 1935823168
      %v3875 = vunpack.c.0.s8 %v3874
      %v3876 = vlaneseq
      %v3877 = vshrl.u32 %v3876, 7
      %v3878 = vsub.s32 %v3875, %v3877
      %v3879 = vrot.slane %v3872, %v3878
      %v3880 = vcombine.low %v2984, %v2986
      %v3881 = vcombine.low %v2985, %v2987
      %v3883 = vunpack.c.l.s4 1935823168
      %v3884 = vunpack.c.0.s8 %v3883
      %v3885 = vlaneseq
      %v3886 = vshrl.u32 %v3885, 7
      %v3887 = vsub.s32 %v3884, %v3886
      %v3888 = vrot.slane %v3880, %v3887
      %v3890 = vunpack.c.l.s4 1935823168
      %v3891 = vunpack.c.0.s8 %v3890
      %v3892 = vlaneseq
      %v3893 = vshrl.u32 %v3892, 7
      %v3894 = vsub.s32 %v3891, %v3893
      %v3895 = vrot.slane %v3881, %v3894
      %v3896 = vcombine.low %v3888, %v3895
      %v3898 = vunpack.c.l.s4 1935823168
      %v3899 = vunpack.c.0.s8 %v3898
      %v3900 = vlaneseq
      %v3901 = vshrl.u32 %v3900, 7
      %v3902 = vsub.s32 %v3899, %v3901
      %v3903 = vrot.slane %v3896, %v3902
      %v3904 = vcombine.low %v2988, %v2990
      %v3905 = vcombine.low %v2989, %v2991
      %v3907 = vunpack.c.l.s4 1935823168
      %v3908 = vunpack.c.0.s8 %v3907
      %v3909 = vlaneseq
      %v3910 = vshrl.u32 %v3909, 7
      %v3911 = vsub.s32 %v3908, %v3910
      %v3912 = vrot.slane %v3904, %v3911
      %v3914 = vunpack.c.l.s4 1935823168
      %v3915 = vunpack.c.0.s8 %v3914
      %v3916 = vlaneseq
      %v3917 = vshrl.u32 %v3916, 7
      %v3918 = vsub.s32 %v3915, %v3917
      %v3919 = vrot.slane %v3905, %v3918
      %v3920 = vcombine.low %v3912, %v3919
      %v3922 = vunpack.c.l.s4 1935823168
      %v3923 = vunpack.c.0.s8 %v3922
      %v3924 = vlaneseq
      %v3925 = vshrl.u32 %v3924, 7
      %v3926 = vsub.s32 %v3923, %v3925
      %v3927 = vrot.slane %v3920, %v3926
      %v3928 = vcombine.low %v2992, %v2994
      %v3929 = vcombine.low %v2993, %v2995
      %v3931 = vunpack.c.l.s4 1935823168
      %v3932 = vunpack.c.0.s8 %v3931
      %v3933 = vlaneseq
      %v3934 = vshrl.u32 %v3933, 7
      %v3935 = vsub.s32 %v3932, %v3934
      %v3936 = vrot.slane %v3928, %v3935
      %v3938 = vunpack.c.l.s4 1935823168
      %v3939 = vunpack.c.0.s8 %v3938
      %v3940 = vlaneseq
      %v3941 = vshrl.u32 %v3940, 7
      %v3942 = vsub.s32 %v3939, %v3941
      %v3943 = vrot.slane %v3929, %v3942
      %v3944 = vcombine.low %v3936, %v3943
      %v3946 = vunpack.c.l.s4 1935823168
      %v3947 = vunpack.c.0.s8 %v3946
      %v3948 = vlaneseq
      %v3949 = vshrl.u32 %v3948, 7
      %v3950 = vsub.s32 %v3947, %v3949
      %v3951 = vrot.slane %v3944, %v3950
      %v3952 = vcombine.low %v2996, %v2998
      %v3953 = vcombine.low %v2997, %v2999
      %v3955 = vunpack.c.l.s4 1935823168
      %v3956 = vunpack.c.0.s8 %v3955
      %v3957 = vlaneseq
      %v3958 = vshrl.u32 %v3957, 7
      %v3959 = vsub.s32 %v3956, %v3958
      %v3960 = vrot.slane %v3952, %v3959
      %v3962 = vunpack.c.l.s4 1935823168
      %v3963 = vunpack.c.0.s8 %v3962
      %v3964 = vlaneseq
      %v3965 = vshrl.u32 %v3964, 7
      %v3966 = vsub.s32 %v3963, %v3965
      %v3967 = vrot.slane %v3953, %v3966
      %v3968 = vcombine.low %v3960, %v3967
      %v3970 = vunpack.c.l.s4 1935823168
      %v3971 = vunpack.c.0.s8 %v3970
      %v3972 = vlaneseq
      %v3973 = vshrl.u32 %v3972, 7
      %v3974 = vsub.s32 %v3971, %v3973
      %v3975 = vrot.slane %v3968, %v3974
      %v3976 = vcombine.low %v3000, %v3002
      %v3977 = vcombine.low %v3001, %v3003
      %v3979 = vunpack.c.l.s4 1935823168
      %v3980 = vunpack.c.0.s8 %v3979
      %v3981 = vlaneseq
      %v3982 = vshrl.u32 %v3981, 7
      %v3983 = vsub.s32 %v3980, %v3982
      %v3984 = vrot.slane %v3976, %v3983
      %v3986 = vunpack.c.l.s4 1935823168
      %v3987 = vunpack.c.0.s8 %v3986
      %v3988 = vlaneseq
      %v3989 = vshrl.u32 %v3988, 7
      %v3990 = vsub.s32 %v3987, %v3989
      %v3991 = vrot.slane %v3977, %v3990
      %v3992 = vcombine.low %v3984, %v3991
      %v3994 = vunpack.c.l.s4 1935823168
      %v3995 = vunpack.c.0.s8 %v3994
      %v3996 = vlaneseq
      %v3997 = vshrl.u32 %v3996, 7
      %v3998 = vsub.s32 %v3995, %v3997
      %v3999 = vrot.slane %v3992, %v3998
      %v4000 = vcombine.low %v3004, %v3006
      %v4001 = vcombine.low %v3005, %v3007
      %v4003 = vunpack.c.l.s4 1935823168
      %v4004 = vunpack.c.0.s8 %v4003
      %v4005 = vlaneseq
      %v4006 = vshrl.u32 %v4005, 7
      %v4007 = vsub.s32 %v4004, %v4006
      %v4008 = vrot.slane %v4000, %v4007
      %v4010 = vunpack.c.l.s4 1935823168
      %v4011 = vunpack.c.0.s8 %v4010
      %v4012 = vlaneseq
      %v4013 = vshrl.u32 %v4012, 7
      %v4014 = vsub.s32 %v4011, %v4013
      %v4015 = vrot.slane %v4001, %v4014
      %v4016 = vcombine.low %v4008, %v4015
      %v4018 = vunpack.c.l.s4 1935823168
      %v4019 = vunpack.c.0.s8 %v4018
      %v4020 = vlaneseq
      %v4021 = vshrl.u32 %v4020, 7
      %v4022 = vsub.s32 %v4019, %v4021
      %v4023 = vrot.slane %v4016, %v4022
      %v4024 = vcombine.low %v3008, %v3010
      %v4025 = vcombine.low %v3009, %v3011
      %v4027 = vunpack.c.l.s4 1935823168
      %v4028 = vunpack.c.0.s8 %v4027
      %v4029 = vlaneseq
      %v4030 = vshrl.u32 %v4029, 7
      %v4031 = vsub.s32 %v4028, %v4030
      %v4032 = vrot.slane %v4024, %v4031
      %v4034 = vunpack.c.l.s4 1935823168
      %v4035 = vunpack.c.0.s8 %v4034
      %v4036 = vlaneseq
      %v4037 = vshrl.u32 %v4036, 7
      %v4038 = vsub.s32 %v4035, %v4037
      %v4039 = vrot.slane %v4025, %v4038
      %v4040 = vcombine.low %v4032, %v4039
      %v4042 = vunpack.c.l.s4 1935823168
      %v4043 = vunpack.c.0.s8 %v4042
      %v4044 = vlaneseq
      %v4045 = vshrl.u32 %v4044, 7
      %v4046 = vsub.s32 %v4043, %v4045
      %v4047 = vrot.slane %v4040, %v4046
      %v4048 = vcombine.low %v3012, %v3014
      %v4049 = vcombine.low %v3013, %v3015
      %v4051 = vunpack.c.l.s4 1935823168
      %v4052 = vunpack.c.0.s8 %v4051
      %v4053 = vlaneseq
      %v4054 = vshrl.u32 %v4053, 7
      %v4055 = vsub.s32 %v4052, %v4054
      %v4056 = vrot.slane %v4048, %v4055
      %v4058 = vunpack.c.l.s4 1935823168
      %v4059 = vunpack.c.0.s8 %v4058
      %v4060 = vlaneseq
      %v4061 = vshrl.u32 %v4060, 7
      %v4062 = vsub.s32 %v4059, %v4061
      %v4063 = vrot.slane %v4049, %v4062
      %v4064 = vcombine.low %v4056, %v4063
      %v4066 = vunpack.c.l.s4 1935823168
      %v4067 = vunpack.c.0.s8 %v4066
      %v4068 = vlaneseq
      %v4069 = vshrl.u32 %v4068, 7
      %v4070 = vsub.s32 %v4067, %v4069
      %v4071 = vrot.slane %v4064, %v4070
      %v4072 = vcombine.low %v3016, %v3018
      %v4073 = vcombine.low %v3017, %v3019
      %v4075 = vunpack.c.l.s4 1935823168
      %v4076 = vunpack.c.0.s8 %v4075
      %v4077 = vlaneseq
      %v4078 = vshrl.u32 %v4077, 7
      %v4079 = vsub.s32 %v4076, %v4078
      %v4080 = vrot.slane %v4072, %v4079
      %v4082 = vunpack.c.l.s4 1935823168
      %v4083 = vunpack.c.0.s8 %v4082
      %v4084 = vlaneseq
      %v4085 = vshrl.u32 %v4084, 7
      %v4086 = vsub.s32 %v4083, %v4085
      %v4087 = vrot.slane %v4073, %v4086
      %v4088 = vcombine.low %v4080, %v4087
      %v4090 = vunpack.c.l.s4 1935823168
      %v4091 = vunpack.c.0.s8 %v4090
      %v4092 = vlaneseq
      %v4093 = vshrl.u32 %v4092, 7
      %v4094 = vsub.s32 %v4091, %v4093
      %v4095 = vrot.slane %v4088, %v4094
      %v4096 = vcombine.low %v3020, %v3022
      %v4097 = vcombine.low %v3021, %v3023
      %v4099 = vunpack.c.l.s4 1935823168
      %v4100 = vunpack.c.0.s8 %v4099
      %v4101 = vlaneseq
      %v4102 = vshrl.u32 %v4101, 7
      %v4103 = vsub.s32 %v4100, %v4102
      %v4104 = vrot.slane %v4096, %v4103
      %v4106 = vunpack.c.l.s4 1935823168
      %v4107 = vunpack.c.0.s8 %v4106
      %v4108 = vlaneseq
      %v4109 = vshrl.u32 %v4108, 7
      %v4110 = vsub.s32 %v4107, %v4109
      %v4111 = vrot.slane %v4097, %v4110
      %v4112 = vcombine.low %v4104, %v4111
      %v4114 = vunpack.c.l.s4 1935823168
      %v4115 = vunpack.c.0.s8 %v4114
      %v4116 = vlaneseq
      %v4117 = vshrl.u32 %v4116, 7
      %v4118 = vsub.s32 %v4115, %v4117
      %v4119 = vrot.slane %v4112, %v4118
      %v4120 = vcombine.low %v3024, %v3026
      %v4121 = vcombine.low %v3025, %v3027
      %v4123 = vunpack.c.l.s4 1935823168
      %v4124 = vunpack.c.0.s8 %v4123
      %v4125 = vlaneseq
      %v4126 = vshrl.u32 %v4125, 7
      %v4127 = vsub.s32 %v4124, %v4126
      %v4128 = vrot.slane %v4120, %v4127
      %v4130 = vunpack.c.l.s4 1935823168
      %v4131 = vunpack.c.0.s8 %v4130
      %v4132 = vlaneseq
      %v4133 = vshrl.u32 %v4132, 7
      %v4134 = vsub.s32 %v4131, %v4133
      %v4135 = vrot.slane %v4121, %v4134
      %v4136 = vcombine.low %v4128, %v4135
      %v4138 = vunpack.c.l.s4 1935823168
      %v4139 = vunpack.c.0.s8 %v4138
      %v4140 = vlaneseq
      %v4141 = vshrl.u32 %v4140, 7
      %v4142 = vsub.s32 %v4139, %v4141
      %v4143 = vrot.slane %v4136, %v4142
      %v4144 = vcombine.low %v3028, %v3030
      %v4145 = vcombine.low %v3029, %v3031
      %v4147 = vunpack.c.l.s4 1935823168
      %v4148 = vunpack.c.0.s8 %v4147
      %v4149 = vlaneseq
      %v4150 = vshrl.u32 %v4149, 7
      %v4151 = vsub.s32 %v4148, %v4150
      %v4152 = vrot.slane %v4144, %v4151
      %v4154 = vunpack.c.l.s4 1935823168
      %v4155 = vunpack.c.0.s8 %v4154
      %v4156 = vlaneseq
      %v4157 = vshrl.u32 %v4156, 7
      %v4158 = vsub.s32 %v4155, %v4157
      %v4159 = vrot.slane %v4145, %v4158
      %v4160 = vcombine.low %v4152, %v4159
      %v4162 = vunpack.c.l.s4 1935823168
      %v4163 = vunpack.c.0.s8 %v4162
      %v4164 = vlaneseq
      %v4165 = vshrl.u32 %v4164, 7
      %v4166 = vsub.s32 %v4163, %v4165
      %v4167 = vrot.slane %v4160, %v4166
      %v4168 = vcombine.low %v3032, %v3034
      %v4169 = vcombine.low %v3033, %v3035
      %v4171 = vunpack.c.l.s4 1935823168
      %v4172 = vunpack.c.0.s8 %v4171
      %v4173 = vlaneseq
      %v4174 = vshrl.u32 %v4173, 7
      %v4175 = vsub.s32 %v4172, %v4174
      %v4176 = vrot.slane %v4168, %v4175
      %v4178 = vunpack.c.l.s4 1935823168
      %v4179 = vunpack.c.0.s8 %v4178
      %v4180 = vlaneseq
      %v4181 = vshrl.u32 %v4180, 7
      %v4182 = vsub.s32 %v4179, %v4181
      %v4183 = vrot.slane %v4169, %v4182
      %v4184 = vcombine.low %v4176, %v4183
      %v4186 = vunpack.c.l.s4 1935823168
      %v4187 = vunpack.c.0.s8 %v4186
      %v4188 = vlaneseq
      %v4189 = vshrl.u32 %v4188, 7
      %v4190 = vsub.s32 %v4187, %v4189
      %v4191 = vrot.slane %v4184, %v4190
      %v4192 = vcombine.low %v3036, %v3038
      %v4193 = vcombine.low %v3037, %v3039
      %v4195 = vunpack.c.l.s4 1935823168
      %v4196 = vunpack.c.0.s8 %v4195
      %v4197 = vlaneseq
      %v4198 = vshrl.u32 %v4197, 7
      %v4199 = vsub.s32 %v4196, %v4198
      %v4200 = vrot.slane %v4192, %v4199
      %v4202 = vunpack.c.l.s4 1935823168
      %v4203 = vunpack.c.0.s8 %v4202
      %v4204 = vlaneseq
      %v4205 = vshrl.u32 %v4204, 7
      %v4206 = vsub.s32 %v4203, %v4205
      %v4207 = vrot.slane %v4193, %v4206
      %v4208 = vcombine.low %v4200, %v4207
      %v4210 = vunpack.c.l.s4 1935823168
      %v4211 = vunpack.c.0.s8 %v4210
      %v4212 = vlaneseq
      %v4213 = vshrl.u32 %v4212, 7
      %v4214 = vsub.s32 %v4211, %v4213
      %v4215 = vrot.slane %v4208, %v4214
      %v4216 = vcombine.low %v3040, %v3042
      %v4217 = vcombine.low %v3041, %v3043
      %v4219 = vunpack.c.l.s4 1935823168
      %v4220 = vunpack.c.0.s8 %v4219
      %v4221 = vlaneseq
      %v4222 = vshrl.u32 %v4221, 7
      %v4223 = vsub.s32 %v4220, %v4222
      %v4224 = vrot.slane %v4216, %v4223
      %v4226 = vunpack.c.l.s4 1935823168
      %v4227 = vunpack.c.0.s8 %v4226
      %v4228 = vlaneseq
      %v4229 = vshrl.u32 %v4228, 7
      %v4230 = vsub.s32 %v4227, %v4229
      %v4231 = vrot.slane %v4217, %v4230
      %v4232 = vcombine.low %v4224, %v4231
      %v4234 = vunpack.c.l.s4 1935823168
      %v4235 = vunpack.c.0.s8 %v4234
      %v4236 = vlaneseq
      %v4237 = vshrl.u32 %v4236, 7
      %v4238 = vsub.s32 %v4235, %v4237
      %v4239 = vrot.slane %v4232, %v4238
      %v4240 = vcombine.low %v3044, %v3046
      %v4241 = vcombine.low %v3045, %v3047
      %v4243 = vunpack.c.l.s4 1935823168
      %v4244 = vunpack.c.0.s8 %v4243
      %v4245 = vlaneseq
      %v4246 = vshrl.u32 %v4245, 7
      %v4247 = vsub.s32 %v4244, %v4246
      %v4248 = vrot.slane %v4240, %v4247
      %v4250 = vunpack.c.l.s4 1935823168
      %v4251 = vunpack.c.0.s8 %v4250
      %v4252 = vlaneseq
      %v4253 = vshrl.u32 %v4252, 7
      %v4254 = vsub.s32 %v4251, %v4253
      %v4255 = vrot.slane %v4241, %v4254
      %v4256 = vcombine.low %v4248, %v4255
      %v4258 = vunpack.c.l.s4 1935823168
      %v4259 = vunpack.c.0.s8 %v4258
      %v4260 = vlaneseq
      %v4261 = vshrl.u32 %v4260, 7
      %v4262 = vsub.s32 %v4259, %v4261
      %v4263 = vrot.slane %v4256, %v4262
      %v4264 = vcombine.low %v3048, %v3050
      %v4265 = vcombine.low %v3049, %v3051
      %v4267 = vunpack.c.l.s4 1935823168
      %v4268 = vunpack.c.0.s8 %v4267
      %v4269 = vlaneseq
      %v4270 = vshrl.u32 %v4269, 7
      %v4271 = vsub.s32 %v4268, %v4270
      %v4272 = vrot.slane %v4264, %v4271
      %v4274 = vunpack.c.l.s4 1935823168
      %v4275 = vunpack.c.0.s8 %v4274
      %v4276 = vlaneseq
      %v4277 = vshrl.u32 %v4276, 7
      %v4278 = vsub.s32 %v4275, %v4277
      %v4279 = vrot.slane %v4265, %v4278
      %v4280 = vcombine.low %v4272, %v4279
      %v4282 = vunpack.c.l.s4 1935823168
      %v4283 = vunpack.c.0.s8 %v4282
      %v4284 = vlaneseq
      %v4285 = vshrl.u32 %v4284, 7
      %v4286 = vsub.s32 %v4283, %v4285
      %v4287 = vrot.slane %v4280, %v4286
      %v4288 = vcombine.low %v3052, %v3054
      %v4289 = vcombine.low %v3053, %v3055
      %v4291 = vunpack.c.l.s4 1935823168
      %v4292 = vunpack.c.0.s8 %v4291
      %v4293 = vlaneseq
      %v4294 = vshrl.u32 %v4293, 7
      %v4295 = vsub.s32 %v4292, %v4294
      %v4296 = vrot.slane %v4288, %v4295
      %v4298 = vunpack.c.l.s4 1935823168
      %v4299 = vunpack.c.0.s8 %v4298
      %v4300 = vlaneseq
      %v4301 = vshrl.u32 %v4300, 7
      %v4302 = vsub.s32 %v4299, %v4301
      %v4303 = vrot.slane %v4289, %v4302
      %v4304 = vcombine.low %v4296, %v4303
      %v4306 = vunpack.c.l.s4 1935823168
      %v4307 = vunpack.c.0.s8 %v4306
      %v4308 = vlaneseq
      %v4309 = vshrl.u32 %v4308, 7
      %v4310 = vsub.s32 %v4307, %v4309
      %v4311 = vrot.slane %v4304, %v4310
      %v4312 = vcombine.low %v3056, %v3058
      %v4313 = vcombine.low %v3057, %v3059
      %v4315 = vunpack.c.l.s4 1935823168
      %v4316 = vunpack.c.0.s8 %v4315
      %v4317 = vlaneseq
      %v4318 = vshrl.u32 %v4317, 7
      %v4319 = vsub.s32 %v4316, %v4318
      %v4320 = vrot.slane %v4312, %v4319
      %v4322 = vunpack.c.l.s4 1935823168
      %v4323 = vunpack.c.0.s8 %v4322
      %v4324 = vlaneseq
      %v4325 = vshrl.u32 %v4324, 7
      %v4326 = vsub.s32 %v4323, %v4325
      %v4327 = vrot.slane %v4313, %v4326
      %v4328 = vcombine.low %v4320, %v4327
      %v4330 = vunpack.c.l.s4 1935823168
      %v4331 = vunpack.c.0.s8 %v4330
      %v4332 = vlaneseq
      %v4333 = vshrl.u32 %v4332, 7
      %v4334 = vsub.s32 %v4331, %v4333
      %v4335 = vrot.slane %v4328, %v4334
      %v4336 = vcombine.low %v3060, %v3062
      %v4337 = vcombine.low %v3061, %v3063
      %v4339 = vunpack.c.l.s4 1935823168
      %v4340 = vunpack.c.0.s8 %v4339
      %v4341 = vlaneseq
      %v4342 = vshrl.u32 %v4341, 7
      %v4343 = vsub.s32 %v4340, %v4342
      %v4344 = vrot.slane %v4336, %v4343
      %v4346 = vunpack.c.l.s4 1935823168
      %v4347 = vunpack.c.0.s8 %v4346
      %v4348 = vlaneseq
      %v4349 = vshrl.u32 %v4348, 7
      %v4350 = vsub.s32 %v4347, %v4349
      %v4351 = vrot.slane %v4337, %v4350
      %v4352 = vcombine.low %v4344, %v4351
      %v4354 = vunpack.c.l.s4 1935823168
      %v4355 = vunpack.c.0.s8 %v4354
      %v4356 = vlaneseq
      %v4357 = vshrl.u32 %v4356, 7
      %v4358 = vsub.s32 %v4355, %v4357
      %v4359 = vrot.slane %v4352, %v4358
      %v4360 = vcombine.low %v3064, %v3066
      %v4361 = vcombine.low %v3065, %v3067
      %v4363 = vunpack.c.l.s4 1935823168
      %v4364 = vunpack.c.0.s8 %v4363
      %v4365 = vlaneseq
      %v4366 = vshrl.u32 %v4365, 7
      %v4367 = vsub.s32 %v4364, %v4366
      %v4368 = vrot.slane %v4360, %v4367
      %v4370 = vunpack.c.l.s4 1935823168
      %v4371 = vunpack.c.0.s8 %v4370
      %v4372 = vlaneseq
      %v4373 = vshrl.u32 %v4372, 7
      %v4374 = vsub.s32 %v4371, %v4373
      %v4375 = vrot.slane %v4361, %v4374
      %v4376 = vcombine.low %v4368, %v4375
      %v4378 = vunpack.c.l.s4 1935823168
      %v4379 = vunpack.c.0.s8 %v4378
      %v4380 = vlaneseq
      %v4381 = vshrl.u32 %v4380, 7
      %v4382 = vsub.s32 %v4379, %v4381
      %v4383 = vrot.slane %v4376, %v4382
      %v4384 = vcombine.low %v3068, %v3070
      %v4385 = vcombine.low %v3069, %v3071
      %v4387 = vunpack.c.l.s4 1935823168
      %v4388 = vunpack.c.0.s8 %v4387
      %v4389 = vlaneseq
      %v4390 = vshrl.u32 %v4389, 7
      %v4391 = vsub.s32 %v4388, %v4390
      %v4392 = vrot.slane %v4384, %v4391
      %v4394 = vunpack.c.l.s4 1935823168
      %v4395 = vunpack.c.0.s8 %v4394
      %v4396 = vlaneseq
      %v4397 = vshrl.u32 %v4396, 7
      %v4398 = vsub.s32 %v4395, %v4397
      %v4399 = vrot.slane %v4385, %v4398
      %v4400 = vcombine.low %v4392, %v4399
      %v4402 = vunpack.c.l.s4 1935823168
      %v4403 = vunpack.c.0.s8 %v4402
      %v4404 = vlaneseq
      %v4405 = vshrl.u32 %v4404, 7
      %v4406 = vsub.s32 %v4403, %v4405
      %v4407 = vrot.slane %v4400, %v4406
      %v4408 = vcombine.low %v3072, %v3074
      %v4409 = vcombine.low %v3073, %v3075
      %v4411 = vunpack.c.l.s4 1935823168
      %v4412 = vunpack.c.0.s8 %v4411
      %v4413 = vlaneseq
      %v4414 = vshrl.u32 %v4413, 7
      %v4415 = vsub.s32 %v4412, %v4414
      %v4416 = vrot.slane %v4408, %v4415
      %v4418 = vunpack.c.l.s4 1935823168
      %v4419 = vunpack.c.0.s8 %v4418
      %v4420 = vlaneseq
      %v4421 = vshrl.u32 %v4420, 7
      %v4422 = vsub.s32 %v4419, %v4421
      %v4423 = vrot.slane %v4409, %v4422
      %v4424 = vcombine.low %v4416, %v4423
      %v4426 = vunpack.c.l.s4 1935823168
      %v4427 = vunpack.c.0.s8 %v4426
      %v4428 = vlaneseq
      %v4429 = vshrl.u32 %v4428, 7
      %v4430 = vsub.s32 %v4427, %v4429
      %v4431 = vrot.slane %v4424, %v4430
      %v4432 = vcombine.low %v3076, %v3078
      %v4433 = vcombine.low %v3077, %v3079
      %v4435 = vunpack.c.l.s4 1935823168
      %v4436 = vunpack.c.0.s8 %v4435
      %v4437 = vlaneseq
      %v4438 = vshrl.u32 %v4437, 7
      %v4439 = vsub.s32 %v4436, %v4438
      %v4440 = vrot.slane %v4432, %v4439
      %v4442 = vunpack.c.l.s4 1935823168
      %v4443 = vunpack.c.0.s8 %v4442
      %v4444 = vlaneseq
      %v4445 = vshrl.u32 %v4444, 7
      %v4446 = vsub.s32 %v4443, %v4445
      %v4447 = vrot.slane %v4433, %v4446
      %v4448 = vcombine.low %v4440, %v4447
      %v4450 = vunpack.c.l.s4 1935823168
      %v4451 = vunpack.c.0.s8 %v4450
      %v4452 = vlaneseq
      %v4453 = vshrl.u32 %v4452, 7
      %v4454 = vsub.s32 %v4451, %v4453
      %v4455 = vrot.slane %v4448, %v4454
      %v4456 = vcombine.low %v3080, %v3082
      %v4457 = vcombine.low %v3081, %v3083
      %v4459 = vunpack.c.l.s4 1935823168
      %v4460 = vunpack.c.0.s8 %v4459
      %v4461 = vlaneseq
      %v4462 = vshrl.u32 %v4461, 7
      %v4463 = vsub.s32 %v4460, %v4462
      %v4464 = vrot.slane %v4456, %v4463
      %v4466 = vunpack.c.l.s4 1935823168
      %v4467 = vunpack.c.0.s8 %v4466
      %v4468 = vlaneseq
      %v4469 = vshrl.u32 %v4468, 7
      %v4470 = vsub.s32 %v4467, %v4469
      %v4471 = vrot.slane %v4457, %v4470
      %v4472 = vcombine.low %v4464, %v4471
      %v4474 = vunpack.c.l.s4 1935823168
      %v4475 = vunpack.c.0.s8 %v4474
      %v4476 = vlaneseq
      %v4477 = vshrl.u32 %v4476, 7
      %v4478 = vsub.s32 %v4475, %v4477
      %v4479 = vrot.slane %v4472, %v4478
      %v4480 = vcombine.low %v3084, %v3086
      %v4481 = vcombine.low %v3085, %v3087
      %v4483 = vunpack.c.l.s4 1935823168
      %v4484 = vunpack.c.0.s8 %v4483
      %v4485 = vlaneseq
      %v4486 = vshrl.u32 %v4485, 7
      %v4487 = vsub.s32 %v4484, %v4486
      %v4488 = vrot.slane %v4480, %v4487
      %v4490 = vunpack.c.l.s4 1935823168
      %v4491 = vunpack.c.0.s8 %v4490
      %v4492 = vlaneseq
      %v4493 = vshrl.u32 %v4492, 7
      %v4494 = vsub.s32 %v4491, %v4493
      %v4495 = vrot.slane %v4481, %v4494
      %v4496 = vcombine.low %v4488, %v4495
      %v4498 = vunpack.c.l.s4 1935823168
      %v4499 = vunpack.c.0.s8 %v4498
      %v4500 = vlaneseq
      %v4501 = vshrl.u32 %v4500, 7
      %v4502 = vsub.s32 %v4499, %v4501
      %v4503 = vrot.slane %v4496, %v4502
      %v4504 = vcombine.low %v3088, %v3090
      %v4505 = vcombine.low %v3089, %v3091
      %v4507 = vunpack.c.l.s4 1935823168
      %v4508 = vunpack.c.0.s8 %v4507
      %v4509 = vlaneseq
      %v4510 = vshrl.u32 %v4509, 7
      %v4511 = vsub.s32 %v4508, %v4510
      %v4512 = vrot.slane %v4504, %v4511
      %v4514 = vunpack.c.l.s4 1935823168
      %v4515 = vunpack.c.0.s8 %v4514
      %v4516 = vlaneseq
      %v4517 = vshrl.u32 %v4516, 7
      %v4518 = vsub.s32 %v4515, %v4517
      %v4519 = vrot.slane %v4505, %v4518
      %v4520 = vcombine.low %v4512, %v4519
      %v4522 = vunpack.c.l.s4 1935823168
      %v4523 = vunpack.c.0.s8 %v4522
      %v4524 = vlaneseq
      %v4525 = vshrl.u32 %v4524, 7
      %v4526 = vsub.s32 %v4523, %v4525
      %v4527 = vrot.slane %v4520, %v4526
      %v4528 = vcombine.low %v3092, %v3094
      %v4529 = vcombine.low %v3093, %v3095
      %v4531 = vunpack.c.l.s4 1935823168
      %v4532 = vunpack.c.0.s8 %v4531
      %v4533 = vlaneseq
      %v4534 = vshrl.u32 %v4533, 7
      %v4535 = vsub.s32 %v4532, %v4534
      %v4536 = vrot.slane %v4528, %v4535
      %v4538 = vunpack.c.l.s4 1935823168
      %v4539 = vunpack.c.0.s8 %v4538
      %v4540 = vlaneseq
      %v4541 = vshrl.u32 %v4540, 7
      %v4542 = vsub.s32 %v4539, %v4541
      %v4543 = vrot.slane %v4529, %v4542
      %v4544 = vcombine.low %v4536, %v4543
      %v4546 = vunpack.c.l.s4 1935823168
      %v4547 = vunpack.c.0.s8 %v4546
      %v4548 = vlaneseq
      %v4549 = vshrl.u32 %v4548, 7
      %v4550 = vsub.s32 %v4547, %v4549
      %v4551 = vrot.slane %v4544, %v4550
      %v4552 = vcombine.low %v3096, %v3098
      %v4553 = vcombine.low %v3097, %v3099
      %v4555 = vunpack.c.l.s4 1935823168
      %v4556 = vunpack.c.0.s8 %v4555
      %v4557 = vlaneseq
      %v4558 = vshrl.u32 %v4557, 7
      %v4559 = vsub.s32 %v4556, %v4558
      %v4560 = vrot.slane %v4552, %v4559
      %v4562 = vunpack.c.l.s4 1935823168
      %v4563 = vunpack.c.0.s8 %v4562
      %v4564 = vlaneseq
      %v4565 = vshrl.u32 %v4564, 7
      %v4566 = vsub.s32 %v4563, %v4565
      %v4567 = vrot.slane %v4553, %v4566
      %v4568 = vcombine.low %v4560, %v4567
      %v4570 = vunpack.c.l.s4 1935823168
      %v4571 = vunpack.c.0.s8 %v4570
      %v4572 = vlaneseq
      %v4573 = vshrl.u32 %v4572, 7
      %v4574 = vsub.s32 %v4571, %v4573
      %v4575 = vrot.slane %v4568, %v4574
      %v4576 = vcombine.low %v3100, %v3102
      %v4577 = vcombine.low %v3101, %v3103
      %v4579 = vunpack.c.l.s4 1935823168
      %v4580 = vunpack.c.0.s8 %v4579
      %v4581 = vlaneseq
      %v4582 = vshrl.u32 %v4581, 7
      %v4583 = vsub.s32 %v4580, %v4582
      %v4584 = vrot.slane %v4576, %v4583
      %v4586 = vunpack.c.l.s4 1935823168
      %v4587 = vunpack.c.0.s8 %v4586
      %v4588 = vlaneseq
      %v4589 = vshrl.u32 %v4588, 7
      %v4590 = vsub.s32 %v4587, %v4589
      %v4591 = vrot.slane %v4577, %v4590
      %v4592 = vcombine.low %v4584, %v4591
      %v4594 = vunpack.c.l.s4 1935823168
      %v4595 = vunpack.c.0.s8 %v4594
      %v4596 = vlaneseq
      %v4597 = vshrl.u32 %v4596, 7
      %v4598 = vsub.s32 %v4595, %v4597
      %v4599 = vrot.slane %v4592, %v4598
      %v4600 = vcombine.low %v3104, %v3106
      %v4601 = vcombine.low %v3105, %v3107
      %v4603 = vunpack.c.l.s4 1935823168
      %v4604 = vunpack.c.0.s8 %v4603
      %v4605 = vlaneseq
      %v4606 = vshrl.u32 %v4605, 7
      %v4607 = vsub.s32 %v4604, %v4606
      %v4608 = vrot.slane %v4600, %v4607
      %v4610 = vunpack.c.l.s4 1935823168
      %v4611 = vunpack.c.0.s8 %v4610
      %v4612 = vlaneseq
      %v4613 = vshrl.u32 %v4612, 7
      %v4614 = vsub.s32 %v4611, %v4613
      %v4615 = vrot.slane %v4601, %v4614
      %v4616 = vcombine.low %v4608, %v4615
      %v4618 = vunpack.c.l.s4 1935823168
      %v4619 = vunpack.c.0.s8 %v4618
      %v4620 = vlaneseq
      %v4621 = vshrl.u32 %v4620, 7
      %v4622 = vsub.s32 %v4619, %v4621
      %v4623 = vrot.slane %v4616, %v4622
      %v4625 = vshrl.u32 %v3879, 16
      %v4627 = vrot.slane %v4625, 7
      %v4628 = vshll.u32 %v3879, 16
      %v4630 = vor.u32 %v4627, %v4628
      %v4631 = vrot.slane %v4627, 4
      %v4633 = vshrl.u32 %v3903, 16
      %v4635 = vrot.slane %v4633, 7
      %v4636 = vshll.u32 %v3903, 16
      %v4638 = vor.u32 %v4635, %v4636
      %v4639 = vsel %vm3291, %v4631, %v4638
      %v4640 = vrot.slane %v4635, 4
      %v4642 = vshrl.u32 %v3927, 16
      %v4644 = vrot.slane %v4642, 7
      %v4645 = vshll.u32 %v3927, 16
      %v4647 = vor.u32 %v4644, %v4645
      %v4648 = vrot.slane %v4644, 4
      %v4650 = vshrl.u32 %v3951, 16
      %v4652 = vrot.slane %v4650, 7
      %v4653 = vshll.u32 %v3951, 16
      %v4655 = vor.u32 %v4652, %v4653
      %v4656 = vsel %vm3291, %v4648, %v4655
      %v4657 = vrot.slane %v4652, 4
      %v4659 = vshrl.u32 %v3975, 16
      %v4661 = vrot.slane %v4659, 7
      %v4662 = vshll.u32 %v3975, 16
      %v4664 = vor.u32 %v4661, %v4662
      %v4665 = vrot.slane %v4661, 4
      %v4667 = vshrl.u32 %v3999, 16
      %v4669 = vrot.slane %v4667, 7
      %v4670 = vshll.u32 %v3999, 16
      %v4672 = vor.u32 %v4669, %v4670
      %v4673 = vsel %vm3291, %v4665, %v4672
      %v4674 = vrot.slane %v4669, 4
      %v4676 = vshrl.u32 %v4023, 16
      %v4678 = vrot.slane %v4676, 7
      %v4679 = vshll.u32 %v4023, 16
      %v4681 = vor.u32 %v4678, %v4679
      %v4682 = vrot.slane %v4678, 4
      %v4684 = vshrl.u32 %v4047, 16
      %v4686 = vrot.slane %v4684, 7
      %v4687 = vshll.u32 %v4047, 16
      %v4689 = vor.u32 %v4686, %v4687
      %v4690 = vsel %vm3291, %v4682, %v4689
      %v4691 = vrot.slane %v4686, 4
      %v4693 = vshrl.u32 %v4071, 16
      %v4695 = vrot.slane %v4693, 7
      %v4696 = vshll.u32 %v4071, 16
      %v4698 = vor.u32 %v4695, %v4696
      %v4699 = vrot.slane %v4695, 4
      %v4701 = vshrl.u32 %v4095, 16
      %v4703 = vrot.slane %v4701, 7
      %v4704 = vshll.u32 %v4095, 16
      %v4706 = vor.u32 %v4703, %v4704
      %v4707 = vsel %vm3291, %v4699, %v4706
      %v4708 = vrot.slane %v4703, 4
      %v4710 = vshrl.u32 %v4119, 16
      %v4712 = vrot.slane %v4710, 7
      %v4713 = vshll.u32 %v4119, 16
      %v4715 = vor.u32 %v4712, %v4713
      %v4716 = vrot.slane %v4712, 4
      %v4718 = vshrl.u32 %v4143, 16
      %v4720 = vrot.slane %v4718, 7
      %v4721 = vshll.u32 %v4143, 16
      %v4723 = vor.u32 %v4720, %v4721
      %v4724 = vsel %vm3291, %v4716, %v4723
      %v4725 = vrot.slane %v4720, 4
      %v4727 = vshrl.u32 %v4167, 16
      %v4729 = vrot.slane %v4727, 7
      %v4730 = vshll.u32 %v4167, 16
      %v4732 = vor.u32 %v4729, %v4730
      %v4733 = vrot.slane %v4729, 4
      %v4735 = vshrl.u32 %v4191, 16
      %v4737 = vrot.slane %v4735, 7
      %v4738 = vshll.u32 %v4191, 16
      %v4740 = vor.u32 %v4737, %v4738
      %v4741 = vsel %vm3291, %v4733, %v4740
      %v4742 = vrot.slane %v4737, 4
      %v4744 = vshrl.u32 %v4215, 16
      %v4746 = vrot.slane %v4744, 7
      %v4747 = vshll.u32 %v4215, 16
      %v4749 = vor.u32 %v4746, %v4747
      %v4750 = vrot.slane %v4746, 4
      %v4752 = vshrl.u32 %v4239, 16
      %v4754 = vrot.slane %v4752, 7
      %v4755 = vshll.u32 %v4239, 16
      %v4757 = vor.u32 %v4754, %v4755
      %v4758 = vsel %vm3291, %v4750, %v4757
      %v4759 = vrot.slane %v4754, 4
      %v4761 = vshrl.u32 %v4263, 16
      %v4763 = vrot.slane %v4761, 7
      %v4764 = vshll.u32 %v4263, 16
      %v4766 = vor.u32 %v4763, %v4764
      %v4767 = vrot.slane %v4763, 4
      %v4769 = vshrl.u32 %v4287, 16
      %v4771 = vrot.slane %v4769, 7
      %v4772 = vshll.u32 %v4287, 16
      %v4774 = vor.u32 %v4771, %v4772
      %v4775 = vsel %vm3291, %v4767, %v4774
      %v4776 = vrot.slane %v4771, 4
      %v4778 = vshrl.u32 %v4311, 16
      %v4780 = vrot.slane %v4778, 7
      %v4781 = vshll.u32 %v4311, 16
      %v4783 = vor.u32 %v4780, %v4781
      %v4784 = vrot.slane %v4780, 4
      %v4786 = vshrl.u32 %v4335, 16
      %v4788 = vrot.slane %v4786, 7
      %v4789 = vshll.u32 %v4335, 16
      %v4791 = vor.u32 %v4788, %v4789
      %v4792 = vsel %vm3291, %v4784, %v4791
      %v4793 = vrot.slane %v4788, 4
      %v4795 = vshrl.u32 %v4359, 16
      %v4797 = vrot.slane %v4795, 7
      %v4798 = vshll.u32 %v4359, 16
      %v4800 = vor.u32 %v4797, %v4798
      %v4801 = vrot.slane %v4797, 4
      %v4803 = vshrl.u32 %v4383, 16
      %v4805 = vrot.slane %v4803, 7
      %v4806 = vshll.u32 %v4383, 16
      %v4808 = vor.u32 %v4805, %v4806
      %v4809 = vsel %vm3291, %v4801, %v4808
      %v4810 = vrot.slane %v4805, 4
      %v4812 = vshrl.u32 %v4407, 16
      %v4814 = vrot.slane %v4812, 7
      %v4815 = vshll.u32 %v4407, 16
      %v4817 = vor.u32 %v4814, %v4815
      %v4818 = vrot.slane %v4814, 4
      %v4820 = vshrl.u32 %v4431, 16
      %v4822 = vrot.slane %v4820, 7
      %v4823 = vshll.u32 %v4431, 16
      %v4825 = vor.u32 %v4822, %v4823
      %v4826 = vsel %vm3291, %v4818, %v4825
      %v4827 = vrot.slane %v4822, 4
      %v4829 = vshrl.u32 %v4455, 16
      %v4831 = vrot.slane %v4829, 7
      %v4832 = vshll.u32 %v4455, 16
      %v4834 = vor.u32 %v4831, %v4832
      %v4835 = vrot.slane %v4831, 4
      %v4837 = vshrl.u32 %v4479, 16
      %v4839 = vrot.slane %v4837, 7
      %v4840 = vshll.u32 %v4479, 16
      %v4842 = vor.u32 %v4839, %v4840
      %v4843 = vsel %vm3291, %v4835, %v4842
      %v4844 = vrot.slane %v4839, 4
      %v4846 = vshrl.u32 %v4503, 16
      %v4848 = vrot.slane %v4846, 7
      %v4849 = vshll.u32 %v4503, 16
      %v4851 = vor.u32 %v4848, %v4849
      %v4852 = vrot.slane %v4848, 4
      %v4854 = vshrl.u32 %v4527, 16
      %v4856 = vrot.slane %v4854, 7
      %v4857 = vshll.u32 %v4527, 16
      %v4859 = vor.u32 %v4856, %v4857
      %v4860 = vsel %vm3291, %v4852, %v4859
      %v4861 = vrot.slane %v4856, 4
      %v4863 = vshrl.u32 %v4551, 16
      %v4865 = vrot.slane %v4863, 7
      %v4866 = vshll.u32 %v4551, 16
      %v4868 = vor.u32 %v4865, %v4866
      %v4869 = vrot.slane %v4865, 4
      %v4871 = vshrl.u32 %v4575, 16
      %v4873 = vrot.slane %v4871, 7
      %v4874 = vshll.u32 %v4575, 16
      %v4876 = vor.u32 %v4873, %v4874
      %v4877 = vsel %vm3291, %v4869, %v4876
      %v4878 = vrot.slane %v4873, 4
      %v4880 = vshrl.u32 %v4599, 16
      %v4882 = vrot.slane %v4880, 7
      %v4883 = vshll.u32 %v4599, 16
      %v4885 = vor.u32 %v4882, %v4883
      %v4886 = vrot.slane %v4882, 4
      %v4888 = vshrl.u32 %v4623, 16
      %v4890 = vrot.slane %v4888, 7
      %v4891 = vshll.u32 %v4623, 16
      %v4893 = vor.u32 %v4890, %v4891
      %v4894 = vsel %vm3291, %v4886, %v4893
      %v4895 = vrot.slane %v4890, 4
      %4896 = vrot.lane.b32.xlu0 %v4630, 16
      %v4897 = vpop.permute.xlu0 %4896
      %4898 = vrot.lane.b32.xlu0 %v4639, 16
      %v4899 = vpop.permute.xlu0 %4898
      %4900 = vrot.lane.b32.xlu0 %v4640, 16
      %v4901 = vpop.permute.xlu0 %4900
      %4902 = vrot.lane.b32.xlu0 %v4647, 16
      %v4903 = vpop.permute.xlu0 %4902
      %4904 = vrot.lane.b32.xlu0 %v4656, 16
      %v4905 = vpop.permute.xlu0 %4904
      %4906 = vrot.lane.b32.xlu0 %v4657, 16
      %v4907 = vpop.permute.xlu0 %4906
      %4908 = vrot.lane.b32.xlu0 %v4664, 16
      %v4909 = vpop.permute.xlu0 %4908
      %4910 = vrot.lane.b32.xlu0 %v4673, 16
      %v4911 = vpop.permute.xlu0 %4910
      %4912 = vrot.lane.b32.xlu0 %v4674, 16
      %v4913 = vpop.permute.xlu0 %4912
      %4914 = vrot.lane.b32.xlu0 %v4681, 16
      %v4915 = vpop.permute.xlu0 %4914
      %4916 = vrot.lane.b32.xlu0 %v4690, 16
      %v4917 = vpop.permute.xlu0 %4916
      %4918 = vrot.lane.b32.xlu0 %v4691, 16
      %v4919 = vpop.permute.xlu0 %4918
      %4920 = vrot.lane.b32.xlu0 %v4698, 16
      %v4921 = vpop.permute.xlu0 %4920
      %4922 = vrot.lane.b32.xlu0 %v4707, 16
      %v4923 = vpop.permute.xlu0 %4922
      %4924 = vrot.lane.b32.xlu0 %v4708, 16
      %v4925 = vpop.permute.xlu0 %4924
      %4926 = vrot.lane.b32.xlu0 %v4715, 16
      %v4927 = vpop.permute.xlu0 %4926
      %4928 = vrot.lane.b32.xlu0 %v4724, 16
      %v4929 = vpop.permute.xlu0 %4928
      %4930 = vrot.lane.b32.xlu0 %v4725, 16
      %v4931 = vpop.permute.xlu0 %4930
      %4932 = vrot.lane.b32.xlu0 %v4732, 16
      %v4933 = vpop.permute.xlu0 %4932
      %4934 = vrot.lane.b32.xlu0 %v4741, 16
      %v4935 = vpop.permute.xlu0 %4934
      %4936 = vrot.lane.b32.xlu0 %v4742, 16
      %v4937 = vpop.permute.xlu0 %4936
      %4938 = vrot.lane.b32.xlu0 %v4749, 16
      %v4939 = vpop.permute.xlu0 %4938
      %4940 = vrot.lane.b32.xlu0 %v4758, 16
      %v4941 = vpop.permute.xlu0 %4940
      %4942 = vrot.lane.b32.xlu0 %v4759, 16
      %v4943 = vpop.permute.xlu0 %4942
      %4944 = vrot.lane.b32.xlu0 %v4766, 16
      %v4945 = vpop.permute.xlu0 %4944
      %4946 = vrot.lane.b32.xlu0 %v4775, 16
      %v4947 = vpop.permute.xlu0 %4946
      %4948 = vrot.lane.b32.xlu0 %v4776, 16
      %v4949 = vpop.permute.xlu0 %4948
      %4950 = vrot.lane.b32.xlu0 %v4783, 16
      %v4951 = vpop.permute.xlu0 %4950
      %4952 = vrot.lane.b32.xlu0 %v4792, 16
      %v4953 = vpop.permute.xlu0 %4952
      %4954 = vrot.lane.b32.xlu0 %v4793, 16
      %v4955 = vpop.permute.xlu0 %4954
      %4956 = vrot.lane.b32.xlu0 %v4800, 16
      %v4957 = vpop.permute.xlu0 %4956
      %4958 = vrot.lane.b32.xlu0 %v4809, 16
      %v4959 = vpop.permute.xlu0 %4958
      %4960 = vrot.lane.b32.xlu0 %v4810, 16
      %v4961 = vpop.permute.xlu0 %4960
      %4962 = vrot.lane.b32.xlu0 %v4817, 16
      %v4963 = vpop.permute.xlu0 %4962
      %4964 = vrot.lane.b32.xlu0 %v4826, 16
      %v4965 = vpop.permute.xlu0 %4964
      %4966 = vrot.lane.b32.xlu0 %v4827, 16
      %v4967 = vpop.permute.xlu0 %4966
      %4968 = vrot.lane.b32.xlu0 %v4834, 16
      %v4969 = vpop.permute.xlu0 %4968
      %4970 = vrot.lane.b32.xlu0 %v4843, 16
      %v4971 = vpop.permute.xlu0 %4970
      %4972 = vrot.lane.b32.xlu0 %v4844, 16
      %v4973 = vpop.permute.xlu0 %4972
      %4974 = vrot.lane.b32.xlu0 %v4851, 16
      %v4975 = vpop.permute.xlu0 %4974
      %4976 = vrot.lane.b32.xlu0 %v4860, 16
      %v4977 = vpop.permute.xlu0 %4976
      %4978 = vrot.lane.b32.xlu0 %v4861, 16
      %v4979 = vpop.permute.xlu0 %4978
      %4980 = vrot.lane.b32.xlu0 %v4868, 16
      %v4981 = vpop.permute.xlu0 %4980
      %4982 = vrot.lane.b32.xlu0 %v4877, 16
      %v4983 = vpop.permute.xlu0 %4982
      %4984 = vrot.lane.b32.xlu0 %v4878, 16
      %v4985 = vpop.permute.xlu0 %4984
      %4986 = vrot.lane.b32.xlu0 %v4885, 16
      %v4987 = vpop.permute.xlu0 %4986
      %4988 = vrot.lane.b32.xlu0 %v4894, 16
      %v4989 = vpop.permute.xlu0 %4988
      %4990 = vrot.lane.b32.xlu0 %v4895, 16
      %v4991 = vpop.permute.xlu0 %4990
      %vm5040 = vcmask 257152
      %vm5041 = vmand %vm5040, %vm471
      %v5042 = vld [vmem:[%s3612] sm:$0xf]
      %v5043 = vsel %vm5041, %v4897, %v5042
      %5044 = vst [vmem:[%s3612] sm:$0xf] %v5043
      %vm5045 = vcmask 257152
      %5046 = vst.msk [vmem:[%s3612 + $0x4] sm:$0xf] %vm5045, %v4899
      %vm5047 = vcmask 254080
      %vm5048 = vmand %vm5047, %vm477
      %v5049 = vld [vmem:[%s3612 + $0x8] sm:$0x1]
      %v5050 = vsel %vm5048, %v4901, %v5049
      %5051 = vst [vmem:[%s3612 + $0x8] sm:$0x1] %v5050
      %v5052 = vld [vmem:[%s3612 + $0xc] sm:$0xf]
      %v5053 = vsel %vm5041, %v4903, %v5052
      %5054 = vst [vmem:[%s3612 + $0xc] sm:$0xf] %v5053
      %5055 = vst.msk [vmem:[%s3612 + $0x10] sm:$0xf] %vm5045, %v4905
      %v5056 = vld [vmem:[%s3612 + $0x14] sm:$0x1]
      %v5057 = vsel %vm5048, %v4907, %v5056
      %5058 = vst [vmem:[%s3612 + $0x14] sm:$0x1] %v5057
      %v5059 = vld [vmem:[%s3612 + $0x18] sm:$0xf]
      %v5060 = vsel %vm5041, %v4909, %v5059
      %5061 = vst [vmem:[%s3612 + $0x18] sm:$0xf] %v5060
      %5062 = vst.msk [vmem:[%s3612 + $0x1c] sm:$0xf] %vm5045, %v4911
      %v5063 = vld [vmem:[%s3612 + $0x20] sm:$0x1]
      %v5064 = vsel %vm5048, %v4913, %v5063
      %5065 = vst [vmem:[%s3612 + $0x20] sm:$0x1] %v5064
      %v5066 = vld [vmem:[%s3612 + $0x24] sm:$0xf]
      %v5067 = vsel %vm5041, %v4915, %v5066
      %5068 = vst [vmem:[%s3612 + $0x24] sm:$0xf] %v5067
      %5069 = vst.msk [vmem:[%s3612 + $0x28] sm:$0xf] %vm5045, %v4917
      %v5070 = vld [vmem:[%s3612 + $0x2c] sm:$0x1]
      %v5071 = vsel %vm5048, %v4919, %v5070
      %5072 = vst [vmem:[%s3612 + $0x2c] sm:$0x1] %v5071
      %v5073 = vld [vmem:[%s3612 + $0x30] sm:$0xf]
      %v5074 = vsel %vm5041, %v4921, %v5073
      %5075 = vst [vmem:[%s3612 + $0x30] sm:$0xf] %v5074
      %5076 = vst.msk [vmem:[%s3612 + $0x34] sm:$0xf] %vm5045, %v4923
      %v5077 = vld [vmem:[%s3612 + $0x38] sm:$0x1]
      %v5078 = vsel %vm5048, %v4925, %v5077
      %5079 = vst [vmem:[%s3612 + $0x38] sm:$0x1] %v5078
      %v5080 = vld [vmem:[%s3612 + $0x3c] sm:$0xf]
      %v5081 = vsel %vm5041, %v4927, %v5080
      %5082 = vst [vmem:[%s3612 + $0x3c] sm:$0xf] %v5081
      %5083 = vst.msk [vmem:[%s3612 + $0x40] sm:$0xf] %vm5045, %v4929
      %v5084 = vld [vmem:[%s3612 + $0x44] sm:$0x1]
      %v5085 = vsel %vm5048, %v4931, %v5084
      %5086 = vst [vmem:[%s3612 + $0x44] sm:$0x1] %v5085
      %v5087 = vld [vmem:[%s3612 + $0x48] sm:$0xf]
      %v5088 = vsel %vm5041, %v4933, %v5087
      %5089 = vst [vmem:[%s3612 + $0x48] sm:$0xf] %v5088
      %5090 = vst.msk [vmem:[%s3612 + $0x4c] sm:$0xf] %vm5045, %v4935
      %v5091 = vld [vmem:[%s3612 + $0x50] sm:$0x1]
      %v5092 = vsel %vm5048, %v4937, %v5091
      %5093 = vst [vmem:[%s3612 + $0x50] sm:$0x1] %v5092
      %v5094 = vld [vmem:[%s3612 + $0x54] sm:$0xf]
      %v5095 = vsel %vm5041, %v4939, %v5094
      %5096 = vst [vmem:[%s3612 + $0x54] sm:$0xf] %v5095
      %5097 = vst.msk [vmem:[%s3612 + $0x58] sm:$0xf] %vm5045, %v4941
      %v5098 = vld [vmem:[%s3612 + $0x5c] sm:$0x1]
      %v5099 = vsel %vm5048, %v4943, %v5098
      %5100 = vst [vmem:[%s3612 + $0x5c] sm:$0x1] %v5099
      %v5101 = vld [vmem:[%s3612 + $0x60] sm:$0xf]
      %v5102 = vsel %vm5041, %v4945, %v5101
      %5103 = vst [vmem:[%s3612 + $0x60] sm:$0xf] %v5102
      %5104 = vst.msk [vmem:[%s3612 + $0x64] sm:$0xf] %vm5045, %v4947
      %v5105 = vld [vmem:[%s3612 + $0x68] sm:$0x1]
      %v5106 = vsel %vm5048, %v4949, %v5105
      %5107 = vst [vmem:[%s3612 + $0x68] sm:$0x1] %v5106
      %v5108 = vld [vmem:[%s3612 + $0x6c] sm:$0xf]
      %v5109 = vsel %vm5041, %v4951, %v5108
      %5110 = vst [vmem:[%s3612 + $0x6c] sm:$0xf] %v5109
      %5111 = vst.msk [vmem:[%s3612 + $0x70] sm:$0xf] %vm5045, %v4953
      %v5112 = vld [vmem:[%s3612 + $0x74] sm:$0x1]
      %v5113 = vsel %vm5048, %v4955, %v5112
      %5114 = vst [vmem:[%s3612 + $0x74] sm:$0x1] %v5113
      %v5115 = vld [vmem:[%s3612 + $0x78] sm:$0xf]
      %v5116 = vsel %vm5041, %v4957, %v5115
      %5117 = vst [vmem:[%s3612 + $0x78] sm:$0xf] %v5116
      %5118 = vst.msk [vmem:[%s3612 + $0x7c] sm:$0xf] %vm5045, %v4959
      %v5119 = vld [vmem:[%s3612 + $0x80] sm:$0x1]
      %v5120 = vsel %vm5048, %v4961, %v5119
      %5121 = vst [vmem:[%s3612 + $0x80] sm:$0x1] %v5120
      %v5122 = vld [vmem:[%s3612 + $0x84] sm:$0xf]
      %v5123 = vsel %vm5041, %v4963, %v5122
      %5124 = vst [vmem:[%s3612 + $0x84] sm:$0xf] %v5123
      %5125 = vst.msk [vmem:[%s3612 + $0x88] sm:$0xf] %vm5045, %v4965
      %v5126 = vld [vmem:[%s3612 + $0x8c] sm:$0x1]
      %v5127 = vsel %vm5048, %v4967, %v5126
      %5128 = vst [vmem:[%s3612 + $0x8c] sm:$0x1] %v5127
      %v5129 = vld [vmem:[%s3612 + $0x90] sm:$0xf]
      %v5130 = vsel %vm5041, %v4969, %v5129
      %5131 = vst [vmem:[%s3612 + $0x90] sm:$0xf] %v5130
      %5132 = vst.msk [vmem:[%s3612 + $0x94] sm:$0xf] %vm5045, %v4971
      %v5133 = vld [vmem:[%s3612 + $0x98] sm:$0x1]
      %v5134 = vsel %vm5048, %v4973, %v5133
      %5135 = vst [vmem:[%s3612 + $0x98] sm:$0x1] %v5134
      %v5136 = vld [vmem:[%s3612 + $0x9c] sm:$0xf]
      %v5137 = vsel %vm5041, %v4975, %v5136
      %5138 = vst [vmem:[%s3612 + $0x9c] sm:$0xf] %v5137
      %5139 = vst.msk [vmem:[%s3612 + $0xa0] sm:$0xf] %vm5045, %v4977
      %v5140 = vld [vmem:[%s3612 + $0xa4] sm:$0x1]
      %v5141 = vsel %vm5048, %v4979, %v5140
      %5142 = vst [vmem:[%s3612 + $0xa4] sm:$0x1] %v5141
      %v5143 = vld [vmem:[%s3612 + $0xa8] sm:$0xf]
      %v5144 = vsel %vm5041, %v4981, %v5143
      %5145 = vst [vmem:[%s3612 + $0xa8] sm:$0xf] %v5144
      %5146 = vst.msk [vmem:[%s3612 + $0xac] sm:$0xf] %vm5045, %v4983
      %v5147 = vld [vmem:[%s3612 + $0xb0] sm:$0x1]
      %v5148 = vsel %vm5048, %v4985, %v5147
      %5149 = vst [vmem:[%s3612 + $0xb0] sm:$0x1] %v5148
      %v5150 = vld [vmem:[%s3612 + $0xb4] sm:$0xf]
      %v5151 = vsel %vm5041, %v4987, %v5150
      %5152 = vst [vmem:[%s3612 + $0xb4] sm:$0xf] %v5151
      %5153 = vst.msk [vmem:[%s3612 + $0xb8] sm:$0xf] %vm5045, %v4989
      %v5154 = vld [vmem:[%s3612 + $0xbc] sm:$0x1]
      %v5155 = vsel %vm5048, %v4991, %v5154
      %5156 = vst [vmem:[%s3612 + $0xbc] sm:$0x1] %v5155
      %v5157 = vld [vmem:[#allocation4] sm:$0xf]
      %v5158 = vld [vmem:[#allocation4 + $0x4] sm:$0xf]
      %v5159 = vld [vmem:[#allocation4 + $0x8] sm:$0x1]
      %v5160 = vld [vmem:[#allocation4 + $0xc] sm:$0xf]
      %v5161 = vld [vmem:[#allocation4 + $0x10] sm:$0xf]
      %v5162 = vld [vmem:[#allocation4 + $0x14] sm:$0x1]
      %v5163 = vld [vmem:[#allocation4 + $0x18] sm:$0xf]
      %v5164 = vld [vmem:[#allocation4 + $0x1c] sm:$0xf]
      %v5165 = vld [vmem:[#allocation4 + $0x20] sm:$0x1]
      %v5166 = vld [vmem:[#allocation4 + $0x24] sm:$0xf]
      %v5167 = vld [vmem:[#allocation4 + $0x28] sm:$0xf]
      %v5168 = vld [vmem:[#allocation4 + $0x2c] sm:$0x1]
      %v5169 = vld [vmem:[#allocation4 + $0x30] sm:$0xf]
      %v5170 = vld [vmem:[#allocation4 + $0x34] sm:$0xf]
      %v5171 = vld [vmem:[#allocation4 + $0x38] sm:$0x1]
      %v5172 = vld [vmem:[#allocation4 + $0x3c] sm:$0xf]
      %v5173 = vld [vmem:[#allocation4 + $0x40] sm:$0xf]
      %v5174 = vld [vmem:[#allocation4 + $0x44] sm:$0x1]
      %v5175 = vld [vmem:[#allocation4 + $0x48] sm:$0xf]
      %v5176 = vld [vmem:[#allocation4 + $0x4c] sm:$0xf]
      %v5177 = vld [vmem:[#allocation4 + $0x50] sm:$0x1]
      %v5178 = vld [vmem:[#allocation4 + $0x54] sm:$0xf]
      %v5179 = vld [vmem:[#allocation4 + $0x58] sm:$0xf]
      %v5180 = vld [vmem:[#allocation4 + $0x5c] sm:$0x1]
      %v5181 = vld [vmem:[#allocation4 + $0x60] sm:$0xf]
      %v5182 = vld [vmem:[#allocation4 + $0x64] sm:$0xf]
      %v5183 = vld [vmem:[#allocation4 + $0x68] sm:$0x1]
      %v5184 = vld [vmem:[#allocation4 + $0x6c] sm:$0xf]
      %v5185 = vld [vmem:[#allocation4 + $0x70] sm:$0xf]
      %v5186 = vld [vmem:[#allocation4 + $0x74] sm:$0x1]
      %v5187 = vld [vmem:[#allocation4 + $0x78] sm:$0xf]
      %v5188 = vld [vmem:[#allocation4 + $0x7c] sm:$0xf]
      %v5189 = vld [vmem:[#allocation4 + $0x80] sm:$0x1]
      %v5190 = vld [vmem:[#allocation4 + $0x84] sm:$0xf]
      %v5191 = vld [vmem:[#allocation4 + $0x88] sm:$0xf]
      %v5192 = vld [vmem:[#allocation4 + $0x8c] sm:$0x1]
      %v5193 = vld [vmem:[#allocation4 + $0x90] sm:$0xf]
      %v5194 = vld [vmem:[#allocation4 + $0x94] sm:$0xf]
      %v5195 = vld [vmem:[#allocation4 + $0x98] sm:$0x1]
      %v5196 = vld [vmem:[#allocation4 + $0x9c] sm:$0xf]
      %v5197 = vld [vmem:[#allocation4 + $0xa0] sm:$0xf]
      %v5198 = vld [vmem:[#allocation4 + $0xa4] sm:$0x1]
      %v5199 = vld [vmem:[#allocation4 + $0xa8] sm:$0xf]
      %v5200 = vld [vmem:[#allocation4 + $0xac] sm:$0xf]
      %v5201 = vld [vmem:[#allocation4 + $0xb0] sm:$0x1]
      %v5202 = vld [vmem:[#allocation4 + $0xb4] sm:$0xf]
      %v5203 = vld [vmem:[#allocation4 + $0xb8] sm:$0xf]
      %v5204 = vld [vmem:[#allocation4 + $0xbc] sm:$0x1]
      %v5205 = vld [vmem:[#allocation4 + $0xc0] sm:$0xf]
      %v5206 = vld [vmem:[#allocation4 + $0xc4] sm:$0xf]
      %v5207 = vld [vmem:[#allocation4 + $0xc8] sm:$0x1]
      %v5208 = vld [vmem:[#allocation4 + $0xcc] sm:$0xf]
      %v5209 = vld [vmem:[#allocation4 + $0xd0] sm:$0xf]
      %v5210 = vld [vmem:[#allocation4 + $0xd4] sm:$0x1]
      %v5243 = vunpack.c.l.b16 %v5157
      %v5244 = vunpack.c.l.b16 %v5158
      %v5245 = vunpack.c.l.b16 %v5160
      %v5246 = vunpack.c.l.b16 %v5161
      %v5247 = vunpack.c.l.b16 %v5163
      %v5248 = vunpack.c.l.b16 %v5164
      %v5249 = vunpack.c.l.b16 %v5166
      %v5250 = vunpack.c.l.b16 %v5167
      %v5251 = vunpack.c.l.b16 %v5169
      %v5252 = vunpack.c.l.b16 %v5170
      %v5253 = vunpack.c.l.b16 %v5172
      %v5254 = vunpack.c.l.b16 %v5173
      %v5255 = vunpack.c.l.b16 %v5175
      %v5256 = vunpack.c.l.b16 %v5176
      %v5257 = vunpack.c.l.b16 %v5178
      %v5258 = vunpack.c.l.b16 %v5179
      %v5259 = vunpack.c.l.b16 %v5181
      %v5260 = vunpack.c.l.b16 %v5182
      %v5261 = vunpack.c.l.b16 %v5184
      %v5262 = vunpack.c.l.b16 %v5185
      %v5263 = vunpack.c.l.b16 %v5187
      %v5264 = vunpack.c.l.b16 %v5188
      %v5265 = vunpack.c.l.b16 %v5190
      %v5266 = vunpack.c.l.b16 %v5191
      %v5267 = vunpack.c.l.b16 %v5193
      %v5268 = vunpack.c.l.b16 %v5194
      %v5269 = vunpack.c.l.b16 %v5196
      %v5270 = vunpack.c.l.b16 %v5197
      %v5271 = vunpack.c.l.b16 %v5199
      %v5272 = vunpack.c.l.b16 %v5200
      %v5273 = vunpack.c.l.b16 %v5202
      %v5274 = vunpack.c.l.b16 %v5203
      %v5275 = vpack.c.b16 %v5244, %v5243
      %v5276 = vpack.c.b16 %v5246, %v5245
      %v5277 = vpack.c.b16 %v5248, %v5247
      %v5278 = vpack.c.b16 %v5250, %v5249
      %v5279 = vpack.c.b16 %v5252, %v5251
      %v5280 = vpack.c.b16 %v5254, %v5253
      %v5281 = vpack.c.b16 %v5256, %v5255
      %v5282 = vpack.c.b16 %v5258, %v5257
      %v5283 = vpack.c.b16 %v5260, %v5259
      %v5284 = vpack.c.b16 %v5262, %v5261
      %v5285 = vpack.c.b16 %v5264, %v5263
      %v5286 = vpack.c.b16 %v5266, %v5265
      %v5287 = vpack.c.b16 %v5268, %v5267
      %v5288 = vpack.c.b16 %v5270, %v5269
      %v5289 = vpack.c.b16 %v5272, %v5271
      %v5290 = vpack.c.b16 %v5274, %v5273
      %5307 = vst.msk [vmem:[#allocation6] sm:$0xff] %vm568, %v5275
      %5308 = vst.msk [vmem:[#allocation6 + $0x18] sm:$0xff] %vm568, %v5276
      %5309 = vst.msk [vmem:[#allocation6 + $0x30] sm:$0xff] %vm568, %v5277
      %5310 = vst.msk [vmem:[#allocation6 + $0x48] sm:$0xff] %vm568, %v5278
      %5311 = vst.msk [vmem:[#allocation6 + $0x60] sm:$0xff] %vm568, %v5279
      %5312 = vst.msk [vmem:[#allocation6 + $0x78] sm:$0xff] %vm568, %v5280
      %5313 = vst.msk [vmem:[#allocation6 + $0x90] sm:$0xff] %vm568, %v5281
      %5314 = vst.msk [vmem:[#allocation6 + $0xa8] sm:$0xff] %vm568, %v5282
      %5315 = vst.msk [vmem:[#allocation6 + $0xc0] sm:$0xff] %vm568, %v5283
      %5316 = vst.msk [vmem:[#allocation6 + $0xd8] sm:$0xff] %vm568, %v5284
      %5317 = vst.msk [vmem:[#allocation6 + $0xf0] sm:$0xff] %vm568, %v5285
      %5318 = vst.msk [vmem:[#allocation6 + $0x108] sm:$0xff] %vm568, %v5286
      %5319 = vst.msk [vmem:[#allocation6 + $0x120] sm:$0xff] %vm568, %v5287
      %5320 = vst.msk [vmem:[#allocation6 + $0x138] sm:$0xff] %vm568, %v5288
      %5321 = vst.msk [vmem:[#allocation6 + $0x150] sm:$0xff] %vm568, %v5289
      %5322 = vst.msk [vmem:[#allocation6 + $0x168] sm:$0xff] %vm568, %v5290
      %v5324 = vshrl.u32 %v5157, 16
      %v5326 = vrot.slane %v5324, 4
      %v5327 = vshll.u32 %v5157, 16
      %v5329 = vrot.slane %v5327, 5
      %v5330 = vor.u32 %v5326, %v5329
      %v5331 = vrot.slane %v5330, 4
      %v5333 = vshll.u32 %v5158, 16
      %v5335 = vrot.slane %v5333, 5
      %v5336 = vsel %vm575, %v5331, %v5335
      %v5337 = vshrl.u32 %v5158, 16
      %v5339 = vrot.slane %v5337, 4
      %v5340 = vor.u32 %v5339, %v5335
      %v5341 = vrot.slane %v5340, 4
      %v5343 = vshll.u32 %v5159, 16
      %v5345 = vrot.slane %v5343, 5
      %v5346 = vsel %vm575, %v5341, %v5345
      %v5348 = vshrl.u32 %v5160, 16
      %v5350 = vrot.slane %v5348, 4
      %v5351 = vshll.u32 %v5160, 16
      %v5353 = vrot.slane %v5351, 5
      %v5354 = vor.u32 %v5350, %v5353
      %v5355 = vrot.slane %v5354, 4
      %v5357 = vshll.u32 %v5161, 16
      %v5359 = vrot.slane %v5357, 5
      %v5360 = vsel %vm575, %v5355, %v5359
      %v5361 = vshrl.u32 %v5161, 16
      %v5363 = vrot.slane %v5361, 4
      %v5364 = vor.u32 %v5363, %v5359
      %v5365 = vrot.slane %v5364, 4
      %v5367 = vshll.u32 %v5162, 16
      %v5369 = vrot.slane %v5367, 5
      %v5370 = vsel %vm575, %v5365, %v5369
      %v5372 = vshrl.u32 %v5163, 16
      %v5374 = vrot.slane %v5372, 4
      %v5375 = vshll.u32 %v5163, 16
      %v5377 = vrot.slane %v5375, 5
      %v5378 = vor.u32 %v5374, %v5377
      %v5379 = vrot.slane %v5378, 4
      %v5381 = vshll.u32 %v5164, 16
      %v5383 = vrot.slane %v5381, 5
      %v5384 = vsel %vm575, %v5379, %v5383
      %v5385 = vshrl.u32 %v5164, 16
      %v5387 = vrot.slane %v5385, 4
      %v5388 = vor.u32 %v5387, %v5383
      %v5389 = vrot.slane %v5388, 4
      %v5391 = vshll.u32 %v5165, 16
      %v5393 = vrot.slane %v5391, 5
      %v5394 = vsel %vm575, %v5389, %v5393
      %v5396 = vshrl.u32 %v5166, 16
      %v5398 = vrot.slane %v5396, 4
      %v5399 = vshll.u32 %v5166, 16
      %v5401 = vrot.slane %v5399, 5
      %v5402 = vor.u32 %v5398, %v5401
      %v5403 = vrot.slane %v5402, 4
      %v5405 = vshll.u32 %v5167, 16
      %v5407 = vrot.slane %v5405, 5
      %v5408 = vsel %vm575, %v5403, %v5407
      %v5409 = vshrl.u32 %v5167, 16
      %v5411 = vrot.slane %v5409, 4
      %v5412 = vor.u32 %v5411, %v5407
      %v5413 = vrot.slane %v5412, 4
      %v5415 = vshll.u32 %v5168, 16
      %v5417 = vrot.slane %v5415, 5
      %v5418 = vsel %vm575, %v5413, %v5417
      %v5420 = vshrl.u32 %v5169, 16
      %v5422 = vrot.slane %v5420, 4
      %v5423 = vshll.u32 %v5169, 16
      %v5425 = vrot.slane %v5423, 5
      %v5426 = vor.u32 %v5422, %v5425
      %v5427 = vrot.slane %v5426, 4
      %v5429 = vshll.u32 %v5170, 16
      %v5431 = vrot.slane %v5429, 5
      %v5432 = vsel %vm575, %v5427, %v5431
      %v5433 = vshrl.u32 %v5170, 16
      %v5435 = vrot.slane %v5433, 4
      %v5436 = vor.u32 %v5435, %v5431
      %v5437 = vrot.slane %v5436, 4
      %v5439 = vshll.u32 %v5171, 16
      %v5441 = vrot.slane %v5439, 5
      %v5442 = vsel %vm575, %v5437, %v5441
      %v5444 = vshrl.u32 %v5172, 16
      %v5446 = vrot.slane %v5444, 4
      %v5447 = vshll.u32 %v5172, 16
      %v5449 = vrot.slane %v5447, 5
      %v5450 = vor.u32 %v5446, %v5449
      %v5451 = vrot.slane %v5450, 4
      %v5453 = vshll.u32 %v5173, 16
      %v5455 = vrot.slane %v5453, 5
      %v5456 = vsel %vm575, %v5451, %v5455
      %v5457 = vshrl.u32 %v5173, 16
      %v5459 = vrot.slane %v5457, 4
      %v5460 = vor.u32 %v5459, %v5455
      %v5461 = vrot.slane %v5460, 4
      %v5463 = vshll.u32 %v5174, 16
      %v5465 = vrot.slane %v5463, 5
      %v5466 = vsel %vm575, %v5461, %v5465
      %v5468 = vshrl.u32 %v5175, 16
      %v5470 = vrot.slane %v5468, 4
      %v5471 = vshll.u32 %v5175, 16
      %v5473 = vrot.slane %v5471, 5
      %v5474 = vor.u32 %v5470, %v5473
      %v5475 = vrot.slane %v5474, 4
      %v5477 = vshll.u32 %v5176, 16
      %v5479 = vrot.slane %v5477, 5
      %v5480 = vsel %vm575, %v5475, %v5479
      %v5481 = vshrl.u32 %v5176, 16
      %v5483 = vrot.slane %v5481, 4
      %v5484 = vor.u32 %v5483, %v5479
      %v5485 = vrot.slane %v5484, 4
      %v5487 = vshll.u32 %v5177, 16
      %v5489 = vrot.slane %v5487, 5
      %v5490 = vsel %vm575, %v5485, %v5489
      %v5492 = vshrl.u32 %v5178, 16
      %v5494 = vrot.slane %v5492, 4
      %v5495 = vshll.u32 %v5178, 16
      %v5497 = vrot.slane %v5495, 5
      %v5498 = vor.u32 %v5494, %v5497
      %v5499 = vrot.slane %v5498, 4
      %v5501 = vshll.u32 %v5179, 16
      %v5503 = vrot.slane %v5501, 5
      %v5504 = vsel %vm575, %v5499, %v5503
      %v5505 = vshrl.u32 %v5179, 16
      %v5507 = vrot.slane %v5505, 4
      %v5508 = vor.u32 %v5507, %v5503
      %v5509 = vrot.slane %v5508, 4
      %v5511 = vshll.u32 %v5180, 16
      %v5513 = vrot.slane %v5511, 5
      %v5514 = vsel %vm575, %v5509, %v5513
      %v5516 = vshrl.u32 %v5181, 16
      %v5518 = vrot.slane %v5516, 4
      %v5519 = vshll.u32 %v5181, 16
      %v5521 = vrot.slane %v5519, 5
      %v5522 = vor.u32 %v5518, %v5521
      %v5523 = vrot.slane %v5522, 4
      %v5525 = vshll.u32 %v5182, 16
      %v5527 = vrot.slane %v5525, 5
      %v5528 = vsel %vm575, %v5523, %v5527
      %v5529 = vshrl.u32 %v5182, 16
      %v5531 = vrot.slane %v5529, 4
      %v5532 = vor.u32 %v5531, %v5527
      %v5533 = vrot.slane %v5532, 4
      %v5535 = vshll.u32 %v5183, 16
      %v5537 = vrot.slane %v5535, 5
      %v5538 = vsel %vm575, %v5533, %v5537
      %v5540 = vshrl.u32 %v5184, 16
      %v5542 = vrot.slane %v5540, 4
      %v5543 = vshll.u32 %v5184, 16
      %v5545 = vrot.slane %v5543, 5
      %v5546 = vor.u32 %v5542, %v5545
      %v5547 = vrot.slane %v5546, 4
      %v5549 = vshll.u32 %v5185, 16
      %v5551 = vrot.slane %v5549, 5
      %v5552 = vsel %vm575, %v5547, %v5551
      %v5553 = vshrl.u32 %v5185, 16
      %v5555 = vrot.slane %v5553, 4
      %v5556 = vor.u32 %v5555, %v5551
      %v5557 = vrot.slane %v5556, 4
      %v5559 = vshll.u32 %v5186, 16
      %v5561 = vrot.slane %v5559, 5
      %v5562 = vsel %vm575, %v5557, %v5561
      %v5564 = vshrl.u32 %v5187, 16
      %v5566 = vrot.slane %v5564, 4
      %v5567 = vshll.u32 %v5187, 16
      %v5569 = vrot.slane %v5567, 5
      %v5570 = vor.u32 %v5566, %v5569
      %v5571 = vrot.slane %v5570, 4
      %v5573 = vshll.u32 %v5188, 16
      %v5575 = vrot.slane %v5573, 5
      %v5576 = vsel %vm575, %v5571, %v5575
      %v5577 = vshrl.u32 %v5188, 16
      %v5579 = vrot.slane %v5577, 4
      %v5580 = vor.u32 %v5579, %v5575
      %v5581 = vrot.slane %v5580, 4
      %v5583 = vshll.u32 %v5189, 16
      %v5585 = vrot.slane %v5583, 5
      %v5586 = vsel %vm575, %v5581, %v5585
      %v5588 = vshrl.u32 %v5190, 16
      %v5590 = vrot.slane %v5588, 4
      %v5591 = vshll.u32 %v5190, 16
      %v5593 = vrot.slane %v5591, 5
      %v5594 = vor.u32 %v5590, %v5593
      %v5595 = vrot.slane %v5594, 4
      %v5597 = vshll.u32 %v5191, 16
      %v5599 = vrot.slane %v5597, 5
      %v5600 = vsel %vm575, %v5595, %v5599
      %v5601 = vshrl.u32 %v5191, 16
      %v5603 = vrot.slane %v5601, 4
      %v5604 = vor.u32 %v5603, %v5599
      %v5605 = vrot.slane %v5604, 4
      %v5607 = vshll.u32 %v5192, 16
      %v5609 = vrot.slane %v5607, 5
      %v5610 = vsel %vm575, %v5605, %v5609
      %v5612 = vshrl.u32 %v5193, 16
      %v5614 = vrot.slane %v5612, 4
      %v5615 = vshll.u32 %v5193, 16
      %v5617 = vrot.slane %v5615, 5
      %v5618 = vor.u32 %v5614, %v5617
      %v5619 = vrot.slane %v5618, 4
      %v5621 = vshll.u32 %v5194, 16
      %v5623 = vrot.slane %v5621, 5
      %v5624 = vsel %vm575, %v5619, %v5623
      %v5625 = vshrl.u32 %v5194, 16
      %v5627 = vrot.slane %v5625, 4
      %v5628 = vor.u32 %v5627, %v5623
      %v5629 = vrot.slane %v5628, 4
      %v5631 = vshll.u32 %v5195, 16
      %v5633 = vrot.slane %v5631, 5
      %v5634 = vsel %vm575, %v5629, %v5633
      %v5636 = vshrl.u32 %v5196, 16
      %v5638 = vrot.slane %v5636, 4
      %v5639 = vshll.u32 %v5196, 16
      %v5641 = vrot.slane %v5639, 5
      %v5642 = vor.u32 %v5638, %v5641
      %v5643 = vrot.slane %v5642, 4
      %v5645 = vshll.u32 %v5197, 16
      %v5647 = vrot.slane %v5645, 5
      %v5648 = vsel %vm575, %v5643, %v5647
      %v5649 = vshrl.u32 %v5197, 16
      %v5651 = vrot.slane %v5649, 4
      %v5652 = vor.u32 %v5651, %v5647
      %v5653 = vrot.slane %v5652, 4
      %v5655 = vshll.u32 %v5198, 16
      %v5657 = vrot.slane %v5655, 5
      %v5658 = vsel %vm575, %v5653, %v5657
      %v5660 = vshrl.u32 %v5199, 16
      %v5662 = vrot.slane %v5660, 4
      %v5663 = vshll.u32 %v5199, 16
      %v5665 = vrot.slane %v5663, 5
      %v5666 = vor.u32 %v5662, %v5665
      %v5667 = vrot.slane %v5666, 4
      %v5669 = vshll.u32 %v5200, 16
      %v5671 = vrot.slane %v5669, 5
      %v5672 = vsel %vm575, %v5667, %v5671
      %v5673 = vshrl.u32 %v5200, 16
      %v5675 = vrot.slane %v5673, 4
      %v5676 = vor.u32 %v5675, %v5671
      %v5677 = vrot.slane %v5676, 4
      %v5679 = vshll.u32 %v5201, 16
      %v5681 = vrot.slane %v5679, 5
      %v5682 = vsel %vm575, %v5677, %v5681
      %v5684 = vshrl.u32 %v5202, 16
      %v5686 = vrot.slane %v5684, 4
      %v5687 = vshll.u32 %v5202, 16
      %v5689 = vrot.slane %v5687, 5
      %v5690 = vor.u32 %v5686, %v5689
      %v5691 = vrot.slane %v5690, 4
      %v5693 = vshll.u32 %v5203, 16
      %v5695 = vrot.slane %v5693, 5
      %v5696 = vsel %vm575, %v5691, %v5695
      %v5697 = vshrl.u32 %v5203, 16
      %v5699 = vrot.slane %v5697, 4
      %v5700 = vor.u32 %v5699, %v5695
      %v5701 = vrot.slane %v5700, 4
      %v5703 = vshll.u32 %v5204, 16
      %v5705 = vrot.slane %v5703, 5
      %v5706 = vsel %vm575, %v5701, %v5705
      %v5707 = vunpack.c.l.b16 %v5336
      %v5708 = vunpack.c.l.b16 %v5346
      %v5709 = vunpack.c.l.b16 %v5360
      %v5710 = vunpack.c.l.b16 %v5370
      %v5711 = vunpack.c.l.b16 %v5384
      %v5712 = vunpack.c.l.b16 %v5394
      %v5713 = vunpack.c.l.b16 %v5408
      %v5714 = vunpack.c.l.b16 %v5418
      %v5715 = vunpack.c.l.b16 %v5432
      %v5716 = vunpack.c.l.b16 %v5442
      %v5717 = vunpack.c.l.b16 %v5456
      %v5718 = vunpack.c.l.b16 %v5466
      %v5719 = vunpack.c.l.b16 %v5480
      %v5720 = vunpack.c.l.b16 %v5490
      %v5721 = vunpack.c.l.b16 %v5504
      %v5722 = vunpack.c.l.b16 %v5514
      %v5723 = vunpack.c.l.b16 %v5528
      %v5724 = vunpack.c.l.b16 %v5538
      %v5725 = vunpack.c.l.b16 %v5552
      %v5726 = vunpack.c.l.b16 %v5562
      %v5727 = vunpack.c.l.b16 %v5576
      %v5728 = vunpack.c.l.b16 %v5586
      %v5729 = vunpack.c.l.b16 %v5600
      %v5730 = vunpack.c.l.b16 %v5610
      %v5731 = vunpack.c.l.b16 %v5624
      %v5732 = vunpack.c.l.b16 %v5634
      %v5733 = vunpack.c.l.b16 %v5648
      %v5734 = vunpack.c.l.b16 %v5658
      %v5735 = vunpack.c.l.b16 %v5672
      %v5736 = vunpack.c.l.b16 %v5682
      %v5737 = vunpack.c.l.b16 %v5696
      %v5738 = vunpack.c.l.b16 %v5706
      %v5739 = vpack.c.b16 %v5708, %v5707
      %v5740 = vpack.c.b16 %v5710, %v5709
      %v5741 = vpack.c.b16 %v5712, %v5711
      %v5742 = vpack.c.b16 %v5714, %v5713
      %v5743 = vpack.c.b16 %v5716, %v5715
      %v5744 = vpack.c.b16 %v5718, %v5717
      %v5745 = vpack.c.b16 %v5720, %v5719
      %v5746 = vpack.c.b16 %v5722, %v5721
      %v5747 = vpack.c.b16 %v5724, %v5723
      %v5748 = vpack.c.b16 %v5726, %v5725
      %v5749 = vpack.c.b16 %v5728, %v5727
      %v5750 = vpack.c.b16 %v5730, %v5729
      %v5751 = vpack.c.b16 %v5732, %v5731
      %v5752 = vpack.c.b16 %v5734, %v5733
      %v5753 = vpack.c.b16 %v5736, %v5735
      %v5754 = vpack.c.b16 %v5738, %v5737
      %5755 = vrot.lane.b32.xlu0 %v5739, 32
      %v5756 = vpop.permute.xlu0 %5755
      %5757 = vrot.lane.b32.xlu0 %v5740, 32
      %v5758 = vpop.permute.xlu0 %5757
      %5759 = vrot.lane.b32.xlu0 %v5741, 32
      %v5760 = vpop.permute.xlu0 %5759
      %5761 = vrot.lane.b32.xlu0 %v5742, 32
      %v5762 = vpop.permute.xlu0 %5761
      %5763 = vrot.lane.b32.xlu0 %v5743, 32
      %v5764 = vpop.permute.xlu0 %5763
      %5765 = vrot.lane.b32.xlu0 %v5744, 32
      %v5766 = vpop.permute.xlu0 %5765
      %5767 = vrot.lane.b32.xlu0 %v5745, 32
      %v5768 = vpop.permute.xlu0 %5767
      %5769 = vrot.lane.b32.xlu0 %v5746, 32
      %v5770 = vpop.permute.xlu0 %5769
      %5771 = vrot.lane.b32.xlu0 %v5747, 32
      %v5772 = vpop.permute.xlu0 %5771
      %5773 = vrot.lane.b32.xlu0 %v5748, 32
      %v5774 = vpop.permute.xlu0 %5773
      %5775 = vrot.lane.b32.xlu0 %v5749, 32
      %v5776 = vpop.permute.xlu0 %5775
      %5777 = vrot.lane.b32.xlu0 %v5750, 32
      %v5778 = vpop.permute.xlu0 %5777
      %5779 = vrot.lane.b32.xlu0 %v5751, 32
      %v5780 = vpop.permute.xlu0 %5779
      %5781 = vrot.lane.b32.xlu0 %v5752, 32
      %v5782 = vpop.permute.xlu0 %5781
      %5783 = vrot.lane.b32.xlu0 %v5753, 32
      %v5784 = vpop.permute.xlu0 %5783
      %5785 = vrot.lane.b32.xlu0 %v5754, 32
      %v5786 = vpop.permute.xlu0 %5785
      %5803 = vst.msk [vmem:[#allocation6] sm:$0xff] %vm712, %v5756
      %5804 = vst.msk [vmem:[#allocation6 + $0x18] sm:$0xff] %vm712, %v5758
      %5805 = vst.msk [vmem:[#allocation6 + $0x30] sm:$0xff] %vm712, %v5760
      %5806 = vst.msk [vmem:[#allocation6 + $0x48] sm:$0xff] %vm712, %v5762
      %5807 = vst.msk [vmem:[#allocation6 + $0x60] sm:$0xff] %vm712, %v5764
      %5808 = vst.msk [vmem:[#allocation6 + $0x78] sm:$0xff] %vm712, %v5766
      %5809 = vst.msk [vmem:[#allocation6 + $0x90] sm:$0xff] %vm712, %v5768
      %5810 = vst.msk [vmem:[#allocation6 + $0xa8] sm:$0xff] %vm712, %v5770
      %5811 = vst.msk [vmem:[#allocation6 + $0xc0] sm:$0xff] %vm712, %v5772
      %5812 = vst.msk [vmem:[#allocation6 + $0xd8] sm:$0xff] %vm712, %v5774
      %5813 = vst.msk [vmem:[#allocation6 + $0xf0] sm:$0xff] %vm712, %v5776
      %5814 = vst.msk [vmem:[#allocation6 + $0x108] sm:$0xff] %vm712, %v5778
      %5815 = vst.msk [vmem:[#allocation6 + $0x120] sm:$0xff] %vm712, %v5780
      %5816 = vst.msk [vmem:[#allocation6 + $0x138] sm:$0xff] %vm712, %v5782
      %5817 = vst.msk [vmem:[#allocation6 + $0x150] sm:$0xff] %vm712, %v5784
      %5818 = vst.msk [vmem:[#allocation6 + $0x168] sm:$0xff] %vm712, %v5786
      %v5835 = vrot.slane %v5157, 5
      %v5836 = vrot.slane %v5835, 4
      %v5837 = vrot.slane %v5158, 5
      %v5838 = vsel %vm727, %v5836, %v5837
      %v5839 = vrot.slane %v5837, 4
      %v5840 = vrot.slane %v5159, 5
      %v5841 = vsel %vm727, %v5839, %v5840
      %v5842 = vrot.slane %v5160, 5
      %v5843 = vrot.slane %v5842, 4
      %v5844 = vrot.slane %v5161, 5
      %v5845 = vsel %vm727, %v5843, %v5844
      %v5846 = vrot.slane %v5844, 4
      %v5847 = vrot.slane %v5162, 5
      %v5848 = vsel %vm727, %v5846, %v5847
      %v5849 = vrot.slane %v5163, 5
      %v5850 = vrot.slane %v5849, 4
      %v5851 = vrot.slane %v5164, 5
      %v5852 = vsel %vm727, %v5850, %v5851
      %v5853 = vrot.slane %v5851, 4
      %v5854 = vrot.slane %v5165, 5
      %v5855 = vsel %vm727, %v5853, %v5854
      %v5856 = vrot.slane %v5166, 5
      %v5857 = vrot.slane %v5856, 4
      %v5858 = vrot.slane %v5167, 5
      %v5859 = vsel %vm727, %v5857, %v5858
      %v5860 = vrot.slane %v5858, 4
      %v5861 = vrot.slane %v5168, 5
      %v5862 = vsel %vm727, %v5860, %v5861
      %v5863 = vrot.slane %v5169, 5
      %v5864 = vrot.slane %v5863, 4
      %v5865 = vrot.slane %v5170, 5
      %v5866 = vsel %vm727, %v5864, %v5865
      %v5867 = vrot.slane %v5865, 4
      %v5868 = vrot.slane %v5171, 5
      %v5869 = vsel %vm727, %v5867, %v5868
      %v5870 = vrot.slane %v5172, 5
      %v5871 = vrot.slane %v5870, 4
      %v5872 = vrot.slane %v5173, 5
      %v5873 = vsel %vm727, %v5871, %v5872
      %v5874 = vrot.slane %v5872, 4
      %v5875 = vrot.slane %v5174, 5
      %v5876 = vsel %vm727, %v5874, %v5875
      %v5877 = vrot.slane %v5175, 5
      %v5878 = vrot.slane %v5877, 4
      %v5879 = vrot.slane %v5176, 5
      %v5880 = vsel %vm727, %v5878, %v5879
      %v5881 = vrot.slane %v5879, 4
      %v5882 = vrot.slane %v5177, 5
      %v5883 = vsel %vm727, %v5881, %v5882
      %v5884 = vrot.slane %v5178, 5
      %v5885 = vrot.slane %v5884, 4
      %v5886 = vrot.slane %v5179, 5
      %v5887 = vsel %vm727, %v5885, %v5886
      %v5888 = vrot.slane %v5886, 4
      %v5889 = vrot.slane %v5180, 5
      %v5890 = vsel %vm727, %v5888, %v5889
      %v5891 = vrot.slane %v5181, 5
      %v5892 = vrot.slane %v5891, 4
      %v5893 = vrot.slane %v5182, 5
      %v5894 = vsel %vm727, %v5892, %v5893
      %v5895 = vrot.slane %v5893, 4
      %v5896 = vrot.slane %v5183, 5
      %v5897 = vsel %vm727, %v5895, %v5896
      %v5898 = vrot.slane %v5184, 5
      %v5899 = vrot.slane %v5898, 4
      %v5900 = vrot.slane %v5185, 5
      %v5901 = vsel %vm727, %v5899, %v5900
      %v5902 = vrot.slane %v5900, 4
      %v5903 = vrot.slane %v5186, 5
      %v5904 = vsel %vm727, %v5902, %v5903
      %v5905 = vrot.slane %v5187, 5
      %v5906 = vrot.slane %v5905, 4
      %v5907 = vrot.slane %v5188, 5
      %v5908 = vsel %vm727, %v5906, %v5907
      %v5909 = vrot.slane %v5907, 4
      %v5910 = vrot.slane %v5189, 5
      %v5911 = vsel %vm727, %v5909, %v5910
      %v5912 = vrot.slane %v5190, 5
      %v5913 = vrot.slane %v5912, 4
      %v5914 = vrot.slane %v5191, 5
      %v5915 = vsel %vm727, %v5913, %v5914
      %v5916 = vrot.slane %v5914, 4
      %v5917 = vrot.slane %v5192, 5
      %v5918 = vsel %vm727, %v5916, %v5917
      %v5919 = vrot.slane %v5193, 5
      %v5920 = vrot.slane %v5919, 4
      %v5921 = vrot.slane %v5194, 5
      %v5922 = vsel %vm727, %v5920, %v5921
      %v5923 = vrot.slane %v5921, 4
      %v5924 = vrot.slane %v5195, 5
      %v5925 = vsel %vm727, %v5923, %v5924
      %v5926 = vrot.slane %v5196, 5
      %v5927 = vrot.slane %v5926, 4
      %v5928 = vrot.slane %v5197, 5
      %v5929 = vsel %vm727, %v5927, %v5928
      %v5930 = vrot.slane %v5928, 4
      %v5931 = vrot.slane %v5198, 5
      %v5932 = vsel %vm727, %v5930, %v5931
      %v5933 = vrot.slane %v5199, 5
      %v5934 = vrot.slane %v5933, 4
      %v5935 = vrot.slane %v5200, 5
      %v5936 = vsel %vm727, %v5934, %v5935
      %v5937 = vrot.slane %v5935, 4
      %v5938 = vrot.slane %v5201, 5
      %v5939 = vsel %vm727, %v5937, %v5938
      %v5940 = vrot.slane %v5202, 5
      %v5941 = vrot.slane %v5940, 4
      %v5942 = vrot.slane %v5203, 5
      %v5943 = vsel %vm727, %v5941, %v5942
      %v5944 = vrot.slane %v5942, 4
      %v5945 = vrot.slane %v5204, 5
      %v5946 = vsel %vm727, %v5944, %v5945
      %v5947 = vunpack.c.l.b16 %v5838
      %v5948 = vunpack.c.l.b16 %v5841
      %v5949 = vunpack.c.l.b16 %v5845
      %v5950 = vunpack.c.l.b16 %v5848
      %v5951 = vunpack.c.l.b16 %v5852
      %v5952 = vunpack.c.l.b16 %v5855
      %v5953 = vunpack.c.l.b16 %v5859
      %v5954 = vunpack.c.l.b16 %v5862
      %v5955 = vunpack.c.l.b16 %v5866
      %v5956 = vunpack.c.l.b16 %v5869
      %v5957 = vunpack.c.l.b16 %v5873
      %v5958 = vunpack.c.l.b16 %v5876
      %v5959 = vunpack.c.l.b16 %v5880
      %v5960 = vunpack.c.l.b16 %v5883
      %v5961 = vunpack.c.l.b16 %v5887
      %v5962 = vunpack.c.l.b16 %v5890
      %v5963 = vunpack.c.l.b16 %v5894
      %v5964 = vunpack.c.l.b16 %v5897
      %v5965 = vunpack.c.l.b16 %v5901
      %v5966 = vunpack.c.l.b16 %v5904
      %v5967 = vunpack.c.l.b16 %v5908
      %v5968 = vunpack.c.l.b16 %v5911
      %v5969 = vunpack.c.l.b16 %v5915
      %v5970 = vunpack.c.l.b16 %v5918
      %v5971 = vunpack.c.l.b16 %v5922
      %v5972 = vunpack.c.l.b16 %v5925
      %v5973 = vunpack.c.l.b16 %v5929
      %v5974 = vunpack.c.l.b16 %v5932
      %v5975 = vunpack.c.l.b16 %v5936
      %v5976 = vunpack.c.l.b16 %v5939
      %v5977 = vunpack.c.l.b16 %v5943
      %v5978 = vunpack.c.l.b16 %v5946
      %v5979 = vpack.c.b16 %v5948, %v5947
      %v5980 = vpack.c.b16 %v5950, %v5949
      %v5981 = vpack.c.b16 %v5952, %v5951
      %v5982 = vpack.c.b16 %v5954, %v5953
      %v5983 = vpack.c.b16 %v5956, %v5955
      %v5984 = vpack.c.b16 %v5958, %v5957
      %v5985 = vpack.c.b16 %v5960, %v5959
      %v5986 = vpack.c.b16 %v5962, %v5961
      %v5987 = vpack.c.b16 %v5964, %v5963
      %v5988 = vpack.c.b16 %v5966, %v5965
      %v5989 = vpack.c.b16 %v5968, %v5967
      %v5990 = vpack.c.b16 %v5970, %v5969
      %v5991 = vpack.c.b16 %v5972, %v5971
      %v5992 = vpack.c.b16 %v5974, %v5973
      %v5993 = vpack.c.b16 %v5976, %v5975
      %v5994 = vpack.c.b16 %v5978, %v5977
      %5995 = vrot.lane.b32.xlu0 %v5979, 64
      %v5996 = vpop.permute.xlu0 %5995
      %5997 = vrot.lane.b32.xlu0 %v5980, 64
      %v5998 = vpop.permute.xlu0 %5997
      %5999 = vrot.lane.b32.xlu0 %v5981, 64
      %v6000 = vpop.permute.xlu0 %5999
      %6001 = vrot.lane.b32.xlu0 %v5982, 64
      %v6002 = vpop.permute.xlu0 %6001
      %6003 = vrot.lane.b32.xlu0 %v5983, 64
      %v6004 = vpop.permute.xlu0 %6003
      %6005 = vrot.lane.b32.xlu0 %v5984, 64
      %v6006 = vpop.permute.xlu0 %6005
      %6007 = vrot.lane.b32.xlu0 %v5985, 64
      %v6008 = vpop.permute.xlu0 %6007
      %6009 = vrot.lane.b32.xlu0 %v5986, 64
      %v6010 = vpop.permute.xlu0 %6009
      %6011 = vrot.lane.b32.xlu0 %v5987, 64
      %v6012 = vpop.permute.xlu0 %6011
      %6013 = vrot.lane.b32.xlu0 %v5988, 64
      %v6014 = vpop.permute.xlu0 %6013
      %6015 = vrot.lane.b32.xlu0 %v5989, 64
      %v6016 = vpop.permute.xlu0 %6015
      %6017 = vrot.lane.b32.xlu0 %v5990, 64
      %v6018 = vpop.permute.xlu0 %6017
      %6019 = vrot.lane.b32.xlu0 %v5991, 64
      %v6020 = vpop.permute.xlu0 %6019
      %6021 = vrot.lane.b32.xlu0 %v5992, 64
      %v6022 = vpop.permute.xlu0 %6021
      %6023 = vrot.lane.b32.xlu0 %v5993, 64
      %v6024 = vpop.permute.xlu0 %6023
      %6025 = vrot.lane.b32.xlu0 %v5994, 64
      %v6026 = vpop.permute.xlu0 %6025
      %6043 = vst.msk [vmem:[#allocation6] sm:$0xff] %vm784, %v5996
      %6044 = vst.msk [vmem:[#allocation6 + $0x18] sm:$0xff] %vm784, %v5998
      %6045 = vst.msk [vmem:[#allocation6 + $0x30] sm:$0xff] %vm784, %v6000
      %6046 = vst.msk [vmem:[#allocation6 + $0x48] sm:$0xff] %vm784, %v6002
      %6047 = vst.msk [vmem:[#allocation6 + $0x60] sm:$0xff] %vm784, %v6004
      %6048 = vst.msk [vmem:[#allocation6 + $0x78] sm:$0xff] %vm784, %v6006
      %6049 = vst.msk [vmem:[#allocation6 + $0x90] sm:$0xff] %vm784, %v6008
      %6050 = vst.msk [vmem:[#allocation6 + $0xa8] sm:$0xff] %vm784, %v6010
      %6051 = vst.msk [vmem:[#allocation6 + $0xc0] sm:$0xff] %vm784, %v6012
      %6052 = vst.msk [vmem:[#allocation6 + $0xd8] sm:$0xff] %vm784, %v6014
      %6053 = vst.msk [vmem:[#allocation6 + $0xf0] sm:$0xff] %vm784, %v6016
      %6054 = vst.msk [vmem:[#allocation6 + $0x108] sm:$0xff] %vm784, %v6018
      %6055 = vst.msk [vmem:[#allocation6 + $0x120] sm:$0xff] %vm784, %v6020
      %6056 = vst.msk [vmem:[#allocation6 + $0x138] sm:$0xff] %vm784, %v6022
      %6057 = vst.msk [vmem:[#allocation6 + $0x150] sm:$0xff] %vm784, %v6024
      %6058 = vst.msk [vmem:[#allocation6 + $0x168] sm:$0xff] %vm784, %v6026
      %v6061 = vunpack.c.l.b16 %v5205
      %v6062 = vunpack.c.l.b16 %v5206
      %v6063 = vpack.c.b16 %v6062, %v6061
      %6064 = vrot.lane.b32.xlu0 %v5276, 96
      %v6065 = vpop.permute.xlu0 %6064
      %6066 = vrot.lane.b32.xlu0 %v5277, 96
      %v6067 = vpop.permute.xlu0 %6066
      %6068 = vrot.lane.b32.xlu0 %v5278, 96
      %v6069 = vpop.permute.xlu0 %6068
      %6070 = vrot.lane.b32.xlu0 %v5279, 96
      %v6071 = vpop.permute.xlu0 %6070
      %6072 = vrot.lane.b32.xlu0 %v5280, 96
      %v6073 = vpop.permute.xlu0 %6072
      %6074 = vrot.lane.b32.xlu0 %v5281, 96
      %v6075 = vpop.permute.xlu0 %6074
      %6076 = vrot.lane.b32.xlu0 %v5282, 96
      %v6077 = vpop.permute.xlu0 %6076
      %6078 = vrot.lane.b32.xlu0 %v5283, 96
      %v6079 = vpop.permute.xlu0 %6078
      %6080 = vrot.lane.b32.xlu0 %v5284, 96
      %v6081 = vpop.permute.xlu0 %6080
      %6082 = vrot.lane.b32.xlu0 %v5285, 96
      %v6083 = vpop.permute.xlu0 %6082
      %6084 = vrot.lane.b32.xlu0 %v5286, 96
      %v6085 = vpop.permute.xlu0 %6084
      %6086 = vrot.lane.b32.xlu0 %v5287, 96
      %v6087 = vpop.permute.xlu0 %6086
      %6088 = vrot.lane.b32.xlu0 %v5288, 96
      %v6089 = vpop.permute.xlu0 %6088
      %6090 = vrot.lane.b32.xlu0 %v5289, 96
      %v6091 = vpop.permute.xlu0 %6090
      %6092 = vrot.lane.b32.xlu0 %v5290, 96
      %v6093 = vpop.permute.xlu0 %6092
      %6094 = vrot.lane.b32.xlu0 %v6063, 96
      %v6095 = vpop.permute.xlu0 %6094
      %6112 = vst.msk [vmem:[#allocation6] sm:$0xff] %vm807, %v6065
      %6113 = vst.msk [vmem:[#allocation6 + $0x18] sm:$0xff] %vm807, %v6067
      %6114 = vst.msk [vmem:[#allocation6 + $0x30] sm:$0xff] %vm807, %v6069
      %6115 = vst.msk [vmem:[#allocation6 + $0x48] sm:$0xff] %vm807, %v6071
      %6116 = vst.msk [vmem:[#allocation6 + $0x60] sm:$0xff] %vm807, %v6073
      %6117 = vst.msk [vmem:[#allocation6 + $0x78] sm:$0xff] %vm807, %v6075
      %6118 = vst.msk [vmem:[#allocation6 + $0x90] sm:$0xff] %vm807, %v6077
      %6119 = vst.msk [vmem:[#allocation6 + $0xa8] sm:$0xff] %vm807, %v6079
      %6120 = vst.msk [vmem:[#allocation6 + $0xc0] sm:$0xff] %vm807, %v6081
      %6121 = vst.msk [vmem:[#allocation6 + $0xd8] sm:$0xff] %vm807, %v6083
      %6122 = vst.msk [vmem:[#allocation6 + $0xf0] sm:$0xff] %vm807, %v6085
      %6123 = vst.msk [vmem:[#allocation6 + $0x108] sm:$0xff] %vm807, %v6087
      %6124 = vst.msk [vmem:[#allocation6 + $0x120] sm:$0xff] %vm807, %v6089
      %6125 = vst.msk [vmem:[#allocation6 + $0x138] sm:$0xff] %vm807, %v6091
      %6126 = vst.msk [vmem:[#allocation6 + $0x150] sm:$0xff] %vm807, %v6093
      %6127 = vst.msk [vmem:[#allocation6 + $0x168] sm:$0xff] %vm807, %v6095
      %v6129 = vshrl.u32 %v5205, 16
      %v6131 = vrot.slane %v6129, 4
      %v6132 = vshll.u32 %v5205, 16
      %v6134 = vrot.slane %v6132, 5
      %v6135 = vor.u32 %v6131, %v6134
      %v6136 = vrot.slane %v6135, 4
      %v6138 = vshll.u32 %v5206, 16
      %v6140 = vrot.slane %v6138, 5
      %v6141 = vsel %vm575, %v6136, %v6140
      %v6142 = vshrl.u32 %v5206, 16
      %v6144 = vrot.slane %v6142, 4
      %v6145 = vor.u32 %v6144, %v6140
      %v6146 = vrot.slane %v6145, 4
      %v6148 = vshll.u32 %v5207, 16
      %v6150 = vrot.slane %v6148, 5
      %v6151 = vsel %vm575, %v6146, %v6150
      %v6152 = vunpack.c.l.b16 %v6141
      %v6153 = vunpack.c.l.b16 %v6151
      %v6154 = vpack.c.b16 %v6153, %v6152
      %6171 = vst.msk [vmem:[#allocation6 + $0x8] sm:$0xff] %vm568, %v5740
      %6172 = vst.msk [vmem:[#allocation6 + $0x20] sm:$0xff] %vm568, %v5741
      %6173 = vst.msk [vmem:[#allocation6 + $0x38] sm:$0xff] %vm568, %v5742
      %6174 = vst.msk [vmem:[#allocation6 + $0x50] sm:$0xff] %vm568, %v5743
      %6175 = vst.msk [vmem:[#allocation6 + $0x68] sm:$0xff] %vm568, %v5744
      %6176 = vst.msk [vmem:[#allocation6 + $0x80] sm:$0xff] %vm568, %v5745
      %6177 = vst.msk [vmem:[#allocation6 + $0x98] sm:$0xff] %vm568, %v5746
      %6178 = vst.msk [vmem:[#allocation6 + $0xb0] sm:$0xff] %vm568, %v5747
      %6179 = vst.msk [vmem:[#allocation6 + $0xc8] sm:$0xff] %vm568, %v5748
      %6180 = vst.msk [vmem:[#allocation6 + $0xe0] sm:$0xff] %vm568, %v5749
      %6181 = vst.msk [vmem:[#allocation6 + $0xf8] sm:$0xff] %vm568, %v5750
      %6182 = vst.msk [vmem:[#allocation6 + $0x110] sm:$0xff] %vm568, %v5751
      %6183 = vst.msk [vmem:[#allocation6 + $0x128] sm:$0xff] %vm568, %v5752
      %6184 = vst.msk [vmem:[#allocation6 + $0x140] sm:$0xff] %vm568, %v5753
      %6185 = vst.msk [vmem:[#allocation6 + $0x158] sm:$0xff] %vm568, %v5754
      %6186 = vst.msk [vmem:[#allocation6 + $0x170] sm:$0xff] %vm568, %v6154
      %v6188 = vrot.slane %v5205, 5
      %v6189 = vrot.slane %v6188, 4
      %v6190 = vrot.slane %v5206, 5
      %v6191 = vsel %vm727, %v6189, %v6190
      %v6192 = vrot.slane %v6190, 4
      %v6193 = vrot.slane %v5207, 5
      %v6194 = vsel %vm727, %v6192, %v6193
      %v6195 = vunpack.c.l.b16 %v6191
      %v6196 = vunpack.c.l.b16 %v6194
      %v6197 = vpack.c.b16 %v6196, %v6195
      %6198 = vrot.lane.b32.xlu0 %v5980, 32
      %v6199 = vpop.permute.xlu0 %6198
      %6200 = vrot.lane.b32.xlu0 %v5981, 32
      %v6201 = vpop.permute.xlu0 %6200
      %6202 = vrot.lane.b32.xlu0 %v5982, 32
      %v6203 = vpop.permute.xlu0 %6202
      %6204 = vrot.lane.b32.xlu0 %v5983, 32
      %v6205 = vpop.permute.xlu0 %6204
      %6206 = vrot.lane.b32.xlu0 %v5984, 32
      %v6207 = vpop.permute.xlu0 %6206
      %6208 = vrot.lane.b32.xlu0 %v5985, 32
      %v6209 = vpop.permute.xlu0 %6208
      %6210 = vrot.lane.b32.xlu0 %v5986, 32
      %v6211 = vpop.permute.xlu0 %6210
      %6212 = vrot.lane.b32.xlu0 %v5987, 32
      %v6213 = vpop.permute.xlu0 %6212
      %6214 = vrot.lane.b32.xlu0 %v5988, 32
      %v6215 = vpop.permute.xlu0 %6214
      %6216 = vrot.lane.b32.xlu0 %v5989, 32
      %v6217 = vpop.permute.xlu0 %6216
      %6218 = vrot.lane.b32.xlu0 %v5990, 32
      %v6219 = vpop.permute.xlu0 %6218
      %6220 = vrot.lane.b32.xlu0 %v5991, 32
      %v6221 = vpop.permute.xlu0 %6220
      %6222 = vrot.lane.b32.xlu0 %v5992, 32
      %v6223 = vpop.permute.xlu0 %6222
      %6224 = vrot.lane.b32.xlu0 %v5993, 32
      %v6225 = vpop.permute.xlu0 %6224
      %6226 = vrot.lane.b32.xlu0 %v5994, 32
      %v6227 = vpop.permute.xlu0 %6226
      %6228 = vrot.lane.b32.xlu0 %v6197, 32
      %v6229 = vpop.permute.xlu0 %6228
      %6246 = vst.msk [vmem:[#allocation6 + $0x8] sm:$0xff] %vm712, %v6199
      %6247 = vst.msk [vmem:[#allocation6 + $0x20] sm:$0xff] %vm712, %v6201
      %6248 = vst.msk [vmem:[#allocation6 + $0x38] sm:$0xff] %vm712, %v6203
      %6249 = vst.msk [vmem:[#allocation6 + $0x50] sm:$0xff] %vm712, %v6205
      %6250 = vst.msk [vmem:[#allocation6 + $0x68] sm:$0xff] %vm712, %v6207
      %6251 = vst.msk [vmem:[#allocation6 + $0x80] sm:$0xff] %vm712, %v6209
      %6252 = vst.msk [vmem:[#allocation6 + $0x98] sm:$0xff] %vm712, %v6211
      %6253 = vst.msk [vmem:[#allocation6 + $0xb0] sm:$0xff] %vm712, %v6213
      %6254 = vst.msk [vmem:[#allocation6 + $0xc8] sm:$0xff] %vm712, %v6215
      %6255 = vst.msk [vmem:[#allocation6 + $0xe0] sm:$0xff] %vm712, %v6217
      %6256 = vst.msk [vmem:[#allocation6 + $0xf8] sm:$0xff] %vm712, %v6219
      %6257 = vst.msk [vmem:[#allocation6 + $0x110] sm:$0xff] %vm712, %v6221
      %6258 = vst.msk [vmem:[#allocation6 + $0x128] sm:$0xff] %vm712, %v6223
      %6259 = vst.msk [vmem:[#allocation6 + $0x140] sm:$0xff] %vm712, %v6225
      %6260 = vst.msk [vmem:[#allocation6 + $0x158] sm:$0xff] %vm712, %v6227
      %6261 = vst.msk [vmem:[#allocation6 + $0x170] sm:$0xff] %vm712, %v6229
      %v6264 = vunpack.c.l.b16 %v5208
      %v6265 = vunpack.c.l.b16 %v5209
      %v6266 = vpack.c.b16 %v6265, %v6264
      %6267 = vrot.lane.b32.xlu0 %v5277, 64
      %v6268 = vpop.permute.xlu0 %6267
      %6269 = vrot.lane.b32.xlu0 %v5278, 64
      %v6270 = vpop.permute.xlu0 %6269
      %6271 = vrot.lane.b32.xlu0 %v5279, 64
      %v6272 = vpop.permute.xlu0 %6271
      %6273 = vrot.lane.b32.xlu0 %v5280, 64
      %v6274 = vpop.permute.xlu0 %6273
      %6275 = vrot.lane.b32.xlu0 %v5281, 64
      %v6276 = vpop.permute.xlu0 %6275
      %6277 = vrot.lane.b32.xlu0 %v5282, 64
      %v6278 = vpop.permute.xlu0 %6277
      %6279 = vrot.lane.b32.xlu0 %v5283, 64
      %v6280 = vpop.permute.xlu0 %6279
      %6281 = vrot.lane.b32.xlu0 %v5284, 64
      %v6282 = vpop.permute.xlu0 %6281
      %6283 = vrot.lane.b32.xlu0 %v5285, 64
      %v6284 = vpop.permute.xlu0 %6283
      %6285 = vrot.lane.b32.xlu0 %v5286, 64
      %v6286 = vpop.permute.xlu0 %6285
      %6287 = vrot.lane.b32.xlu0 %v5287, 64
      %v6288 = vpop.permute.xlu0 %6287
      %6289 = vrot.lane.b32.xlu0 %v5288, 64
      %v6290 = vpop.permute.xlu0 %6289
      %6291 = vrot.lane.b32.xlu0 %v5289, 64
      %v6292 = vpop.permute.xlu0 %6291
      %6293 = vrot.lane.b32.xlu0 %v5290, 64
      %v6294 = vpop.permute.xlu0 %6293
      %6295 = vrot.lane.b32.xlu0 %v6063, 64
      %v6296 = vpop.permute.xlu0 %6295
      %6297 = vrot.lane.b32.xlu0 %v6266, 64
      %v6298 = vpop.permute.xlu0 %6297
      %6315 = vst.msk [vmem:[#allocation6 + $0x8] sm:$0xff] %vm784, %v6268
      %6316 = vst.msk [vmem:[#allocation6 + $0x20] sm:$0xff] %vm784, %v6270
      %6317 = vst.msk [vmem:[#allocation6 + $0x38] sm:$0xff] %vm784, %v6272
      %6318 = vst.msk [vmem:[#allocation6 + $0x50] sm:$0xff] %vm784, %v6274
      %6319 = vst.msk [vmem:[#allocation6 + $0x68] sm:$0xff] %vm784, %v6276
      %6320 = vst.msk [vmem:[#allocation6 + $0x80] sm:$0xff] %vm784, %v6278
      %6321 = vst.msk [vmem:[#allocation6 + $0x98] sm:$0xff] %vm784, %v6280
      %6322 = vst.msk [vmem:[#allocation6 + $0xb0] sm:$0xff] %vm784, %v6282
      %6323 = vst.msk [vmem:[#allocation6 + $0xc8] sm:$0xff] %vm784, %v6284
      %6324 = vst.msk [vmem:[#allocation6 + $0xe0] sm:$0xff] %vm784, %v6286
      %6325 = vst.msk [vmem:[#allocation6 + $0xf8] sm:$0xff] %vm784, %v6288
      %6326 = vst.msk [vmem:[#allocation6 + $0x110] sm:$0xff] %vm784, %v6290
      %6327 = vst.msk [vmem:[#allocation6 + $0x128] sm:$0xff] %vm784, %v6292
      %6328 = vst.msk [vmem:[#allocation6 + $0x140] sm:$0xff] %vm784, %v6294
      %6329 = vst.msk [vmem:[#allocation6 + $0x158] sm:$0xff] %vm784, %v6296
      %6330 = vst.msk [vmem:[#allocation6 + $0x170] sm:$0xff] %vm784, %v6298
      %v6332 = vshrl.u32 %v5208, 16
      %v6334 = vrot.slane %v6332, 4
      %v6335 = vshll.u32 %v5208, 16
      %v6337 = vrot.slane %v6335, 5
      %v6338 = vor.u32 %v6334, %v6337
      %v6339 = vrot.slane %v6338, 4
      %v6341 = vshll.u32 %v5209, 16
      %v6343 = vrot.slane %v6341, 5
      %v6344 = vsel %vm575, %v6339, %v6343
      %v6345 = vshrl.u32 %v5209, 16
      %v6347 = vrot.slane %v6345, 4
      %v6348 = vor.u32 %v6347, %v6343
      %v6349 = vrot.slane %v6348, 4
      %v6351 = vshll.u32 %v5210, 16
      %v6353 = vrot.slane %v6351, 5
      %v6354 = vsel %vm575, %v6349, %v6353
      %v6355 = vunpack.c.l.b16 %v6344
      %v6356 = vunpack.c.l.b16 %v6354
      %v6357 = vpack.c.b16 %v6356, %v6355
      %6358 = vrot.lane.b32.xlu0 %v5741, 96
      %v6359 = vpop.permute.xlu0 %6358
      %6360 = vrot.lane.b32.xlu0 %v5742, 96
      %v6361 = vpop.permute.xlu0 %6360
      %6362 = vrot.lane.b32.xlu0 %v5743, 96
      %v6363 = vpop.permute.xlu0 %6362
      %6364 = vrot.lane.b32.xlu0 %v5744, 96
      %v6365 = vpop.permute.xlu0 %6364
      %6366 = vrot.lane.b32.xlu0 %v5745, 96
      %v6367 = vpop.permute.xlu0 %6366
      %6368 = vrot.lane.b32.xlu0 %v5746, 96
      %v6369 = vpop.permute.xlu0 %6368
      %6370 = vrot.lane.b32.xlu0 %v5747, 96
      %v6371 = vpop.permute.xlu0 %6370
      %6372 = vrot.lane.b32.xlu0 %v5748, 96
      %v6373 = vpop.permute.xlu0 %6372
      %6374 = vrot.lane.b32.xlu0 %v5749, 96
      %v6375 = vpop.permute.xlu0 %6374
      %6376 = vrot.lane.b32.xlu0 %v5750, 96
      %v6377 = vpop.permute.xlu0 %6376
      %6378 = vrot.lane.b32.xlu0 %v5751, 96
      %v6379 = vpop.permute.xlu0 %6378
      %6380 = vrot.lane.b32.xlu0 %v5752, 96
      %v6381 = vpop.permute.xlu0 %6380
      %6382 = vrot.lane.b32.xlu0 %v5753, 96
      %v6383 = vpop.permute.xlu0 %6382
      %6384 = vrot.lane.b32.xlu0 %v5754, 96
      %v6385 = vpop.permute.xlu0 %6384
      %6386 = vrot.lane.b32.xlu0 %v6154, 96
      %v6387 = vpop.permute.xlu0 %6386
      %6388 = vrot.lane.b32.xlu0 %v6357, 96
      %v6389 = vpop.permute.xlu0 %6388
      %6406 = vst.msk [vmem:[#allocation6 + $0x8] sm:$0xff] %vm807, %v6359
      %6407 = vst.msk [vmem:[#allocation6 + $0x20] sm:$0xff] %vm807, %v6361
      %6408 = vst.msk [vmem:[#allocation6 + $0x38] sm:$0xff] %vm807, %v6363
      %6409 = vst.msk [vmem:[#allocation6 + $0x50] sm:$0xff] %vm807, %v6365
      %6410 = vst.msk [vmem:[#allocation6 + $0x68] sm:$0xff] %vm807, %v6367
      %6411 = vst.msk [vmem:[#allocation6 + $0x80] sm:$0xff] %vm807, %v6369
      %6412 = vst.msk [vmem:[#allocation6 + $0x98] sm:$0xff] %vm807, %v6371
      %6413 = vst.msk [vmem:[#allocation6 + $0xb0] sm:$0xff] %vm807, %v6373
      %6414 = vst.msk [vmem:[#allocation6 + $0xc8] sm:$0xff] %vm807, %v6375
      %6415 = vst.msk [vmem:[#allocation6 + $0xe0] sm:$0xff] %vm807, %v6377
      %6416 = vst.msk [vmem:[#allocation6 + $0xf8] sm:$0xff] %vm807, %v6379
      %6417 = vst.msk [vmem:[#allocation6 + $0x110] sm:$0xff] %vm807, %v6381
      %6418 = vst.msk [vmem:[#allocation6 + $0x128] sm:$0xff] %vm807, %v6383
      %6419 = vst.msk [vmem:[#allocation6 + $0x140] sm:$0xff] %vm807, %v6385
      %6420 = vst.msk [vmem:[#allocation6 + $0x158] sm:$0xff] %vm807, %v6387
      %6421 = vst.msk [vmem:[#allocation6 + $0x170] sm:$0xff] %vm807, %v6389
      %v6423 = vrot.slane %v5208, 5
      %v6424 = vrot.slane %v6423, 4
      %v6425 = vrot.slane %v5209, 5
      %v6426 = vsel %vm727, %v6424, %v6425
      %v6427 = vrot.slane %v6425, 4
      %v6428 = vrot.slane %v5210, 5
      %v6429 = vsel %vm727, %v6427, %v6428
      %v6430 = vunpack.c.l.b16 %v6426
      %v6431 = vunpack.c.l.b16 %v6429
      %v6432 = vpack.c.b16 %v6431, %v6430
      %6449 = vst.msk [vmem:[#allocation6 + $0x10] sm:$0xff] %vm568, %v5981
      %6450 = vst.msk [vmem:[#allocation6 + $0x28] sm:$0xff] %vm568, %v5982
      %6451 = vst.msk [vmem:[#allocation6 + $0x40] sm:$0xff] %vm568, %v5983
      %6452 = vst.msk [vmem:[#allocation6 + $0x58] sm:$0xff] %vm568, %v5984
      %6453 = vst.msk [vmem:[#allocation6 + $0x70] sm:$0xff] %vm568, %v5985
      %6454 = vst.msk [vmem:[#allocation6 + $0x88] sm:$0xff] %vm568, %v5986
      %6455 = vst.msk [vmem:[#allocation6 + $0xa0] sm:$0xff] %vm568, %v5987
      %6456 = vst.msk [vmem:[#allocation6 + $0xb8] sm:$0xff] %vm568, %v5988
      %6457 = vst.msk [vmem:[#allocation6 + $0xd0] sm:$0xff] %vm568, %v5989
      %6458 = vst.msk [vmem:[#allocation6 + $0xe8] sm:$0xff] %vm568, %v5990
      %6459 = vst.msk [vmem:[#allocation6 + $0x100] sm:$0xff] %vm568, %v5991
      %6460 = vst.msk [vmem:[#allocation6 + $0x118] sm:$0xff] %vm568, %v5992
      %6461 = vst.msk [vmem:[#allocation6 + $0x130] sm:$0xff] %vm568, %v5993
      %6462 = vst.msk [vmem:[#allocation6 + $0x148] sm:$0xff] %vm568, %v5994
      %6463 = vst.msk [vmem:[#allocation6 + $0x160] sm:$0xff] %vm568, %v6197
      %6464 = vst.msk [vmem:[#allocation6 + $0x178] sm:$0xff] %vm568, %v6432
      %v6465 = vld [vmem:[#allocation6] sm:$0xff]
      %v6466 = vld [vmem:[#allocation6 + $0x8] sm:$0xff]
      %v6467 = vld [vmem:[#allocation6 + $0x10] sm:$0xff]
      %v6468 = vld [vmem:[#allocation6 + $0x18] sm:$0xff]
      %v6469 = vld [vmem:[#allocation6 + $0x20] sm:$0xff]
      %v6470 = vld [vmem:[#allocation6 + $0x28] sm:$0xff]
      %v6471 = vld [vmem:[#allocation6 + $0x30] sm:$0xff]
      %v6472 = vld [vmem:[#allocation6 + $0x38] sm:$0xff]
      %v6473 = vld [vmem:[#allocation6 + $0x40] sm:$0xff]
      %v6474 = vld [vmem:[#allocation6 + $0x48] sm:$0xff]
      %v6475 = vld [vmem:[#allocation6 + $0x50] sm:$0xff]
      %v6476 = vld [vmem:[#allocation6 + $0x58] sm:$0xff]
      %v6477 = vld [vmem:[#allocation6 + $0x60] sm:$0xff]
      %v6478 = vld [vmem:[#allocation6 + $0x68] sm:$0xff]
      %v6479 = vld [vmem:[#allocation6 + $0x70] sm:$0xff]
      %v6480 = vld [vmem:[#allocation6 + $0x78] sm:$0xff]
      %v6481 = vld [vmem:[#allocation6 + $0x80] sm:$0xff]
      %v6482 = vld [vmem:[#allocation6 + $0x88] sm:$0xff]
      %v6483 = vld [vmem:[#allocation6 + $0x90] sm:$0xff]
      %v6484 = vld [vmem:[#allocation6 + $0x98] sm:$0xff]
      %v6485 = vld [vmem:[#allocation6 + $0xa0] sm:$0xff]
      %v6486 = vld [vmem:[#allocation6 + $0xa8] sm:$0xff]
      %v6487 = vld [vmem:[#allocation6 + $0xb0] sm:$0xff]
      %v6488 = vld [vmem:[#allocation6 + $0xb8] sm:$0xff]
      %v6489 = vld [vmem:[#allocation6 + $0xc0] sm:$0xff]
      %v6490 = vld [vmem:[#allocation6 + $0xc8] sm:$0xff]
      %v6491 = vld [vmem:[#allocation6 + $0xd0] sm:$0xff]
      %v6492 = vld [vmem:[#allocation6 + $0xd8] sm:$0xff]
      %v6493 = vld [vmem:[#allocation6 + $0xe0] sm:$0xff]
      %v6494 = vld [vmem:[#allocation6 + $0xe8] sm:$0xff]
      %v6495 = vld [vmem:[#allocation6 + $0xf0] sm:$0xff]
      %v6496 = vld [vmem:[#allocation6 + $0xf8] sm:$0xff]
      %v6497 = vld [vmem:[#allocation6 + $0x100] sm:$0xff]
      %v6498 = vld [vmem:[#allocation6 + $0x108] sm:$0xff]
      %v6499 = vld [vmem:[#allocation6 + $0x110] sm:$0xff]
      %v6500 = vld [vmem:[#allocation6 + $0x118] sm:$0xff]
      %v6501 = vld [vmem:[#allocation6 + $0x120] sm:$0xff]
      %v6502 = vld [vmem:[#allocation6 + $0x128] sm:$0xff]
      %v6503 = vld [vmem:[#allocation6 + $0x130] sm:$0xff]
      %v6504 = vld [vmem:[#allocation6 + $0x138] sm:$0xff]
      %v6505 = vld [vmem:[#allocation6 + $0x140] sm:$0xff]
      %v6506 = vld [vmem:[#allocation6 + $0x148] sm:$0xff]
      %v6507 = vld [vmem:[#allocation6 + $0x150] sm:$0xff]
      %v6508 = vld [vmem:[#allocation6 + $0x158] sm:$0xff]
      %v6509 = vld [vmem:[#allocation6 + $0x160] sm:$0xff]
      %v6510 = vld [vmem:[#allocation6 + $0x168] sm:$0xff]
      %v6511 = vld [vmem:[#allocation6 + $0x170] sm:$0xff]
      %v6512 = vld [vmem:[#allocation6 + $0x178] sm:$0xff]
      %v6513 = vld [vmem:[%s4] sm:$0xf]
      %v6514 = vld [vmem:[%s4 + $0x4] sm:$0xf]
      %v6515 = vld [vmem:[%s4 + $0x8] sm:$0xf]
      %v6516 = vld [vmem:[%s4 + $0xc] sm:$0xf]
      %v6517 = vld [vmem:[%s4 + $0x10] sm:$0xf]
      %v6518 = vld [vmem:[%s4 + $0x14] sm:$0xf]
      %v6519 = vld [vmem:[%s4 + $0x18] sm:$0xf]
      %v6520 = vld [vmem:[%s4 + $0x1c] sm:$0xf]
      %v6521 = vld [vmem:[%s4 + $0x20] sm:$0xf]
      %v6522 = vld [vmem:[%s4 + $0x24] sm:$0xf]
      %v6523 = vld [vmem:[%s4 + $0x28] sm:$0xf]
      %v6524 = vld [vmem:[%s4 + $0x2c] sm:$0xf]
      %v6525 = vld [vmem:[%s4 + $0x30] sm:$0xf]
      %v6526 = vld [vmem:[%s4 + $0x34] sm:$0xf]
      %v6527 = vld [vmem:[%s4 + $0x38] sm:$0xf]
      %v6528 = vld [vmem:[%s4 + $0x3c] sm:$0xf]
      %v6529 = vld [vmem:[%s4 + $0x40] sm:$0xf]
      %v6530 = vld [vmem:[%s4 + $0x44] sm:$0xf]
      %v6531 = vld [vmem:[%s4 + $0x48] sm:$0xf]
      %v6532 = vld [vmem:[%s4 + $0x4c] sm:$0xf]
      %v6533 = vld [vmem:[%s4 + $0x50] sm:$0xf]
      %v6534 = vld [vmem:[%s4 + $0x54] sm:$0xf]
      %v6535 = vld [vmem:[%s4 + $0x58] sm:$0xf]
      %v6536 = vld [vmem:[%s4 + $0x5c] sm:$0xf]
      %v6537 = vld [vmem:[%s4 + $0x60] sm:$0xf]
      %v6538 = vld [vmem:[%s4 + $0x64] sm:$0xf]
      %v6539 = vld [vmem:[%s4 + $0x68] sm:$0xf]
      %v6540 = vld [vmem:[%s4 + $0x6c] sm:$0xf]
      %v6541 = vld [vmem:[%s4 + $0x70] sm:$0xf]
      %v6542 = vld [vmem:[%s4 + $0x74] sm:$0xf]
      %v6543 = vld [vmem:[%s4 + $0x78] sm:$0xf]
      %v6544 = vld [vmem:[%s4 + $0x7c] sm:$0xf]
      %v6545 = vld [vmem:[%s4 + $0x80] sm:$0xf]
      %v6546 = vld [vmem:[%s4 + $0x84] sm:$0xf]
      %v6547 = vld [vmem:[%s4 + $0x88] sm:$0xf]
      %v6548 = vld [vmem:[%s4 + $0x8c] sm:$0xf]
      %v6549 = vld [vmem:[%s5] sm:$0x1]
      %v6551 = vlaneseq
      %v6552 = vshrl.u32 %v6551, 7
      %v6553 = vsub.s32 0, %v6552
      %v6554 = vrot.slane %v6549, %v6553
      %v6592 = vunpack.c.l.b16 %v6513
      %v6593 = vunpack.c.l.b16 %v6514
      %v6594 = vunpack.c.l.b16 %v6515
      %v6595 = vunpack.c.l.b16 %v6516
      %v6596 = vunpack.c.l.b16 %v6517
      %v6597 = vunpack.c.l.b16 %v6518
      %v6598 = vunpack.c.l.b16 %v6519
      %v6599 = vunpack.c.l.b16 %v6520
      %v6600 = vunpack.c.l.b16 %v6521
      %v6601 = vunpack.c.l.b16 %v6522
      %v6602 = vunpack.c.l.b16 %v6523
      %v6603 = vunpack.c.l.b16 %v6524
      %v6604 = vunpack.c.l.b16 %v6525
      %v6605 = vunpack.c.l.b16 %v6526
      %v6606 = vunpack.c.l.b16 %v6527
      %v6607 = vunpack.c.l.b16 %v6528
      %v6608 = vunpack.c.l.b16 %v6529
      %v6609 = vunpack.c.l.b16 %v6530
      %v6610 = vunpack.c.l.b16 %v6531
      %v6611 = vunpack.c.l.b16 %v6532
      %v6612 = vunpack.c.l.b16 %v6533
      %v6613 = vunpack.c.l.b16 %v6534
      %v6614 = vunpack.c.l.b16 %v6535
      %v6615 = vunpack.c.l.b16 %v6536
      %v6616 = vunpack.c.l.b16 %v6537
      %v6617 = vunpack.c.l.b16 %v6538
      %v6618 = vunpack.c.l.b16 %v6539
      %v6619 = vunpack.c.l.b16 %v6540
      %v6620 = vunpack.c.l.b16 %v6541
      %v6621 = vunpack.c.l.b16 %v6542
      %v6622 = vunpack.c.l.b16 %v6543
      %v6623 = vunpack.c.l.b16 %v6544
      %v6624 = vunpack.c.l.b16 %v6545
      %v6625 = vunpack.c.l.b16 %v6546
      %v6626 = vunpack.c.l.b16 %v6547
      %v6627 = vunpack.c.l.b16 %v6548
      %v6628 = vpack.c.b16 %v6593, %v6592
      %v6629 = vpack.c.b16 %v6595, %v6594
      %v6630 = vpack.c.b16 %v6597, %v6596
      %v6631 = vpack.c.b16 %v6599, %v6598
      %v6632 = vpack.c.b16 %v6601, %v6600
      %v6633 = vpack.c.b16 %v6603, %v6602
      %v6634 = vpack.c.b16 %v6605, %v6604
      %v6635 = vpack.c.b16 %v6607, %v6606
      %v6636 = vpack.c.b16 %v6609, %v6608
      %v6637 = vpack.c.b16 %v6611, %v6610
      %v6638 = vpack.c.b16 %v6613, %v6612
      %v6639 = vpack.c.b16 %v6615, %v6614
      %v6640 = vpack.c.b16 %v6617, %v6616
      %v6641 = vpack.c.b16 %v6619, %v6618
      %v6642 = vpack.c.b16 %v6621, %v6620
      %v6643 = vpack.c.b16 %v6623, %v6622
      %v6644 = vpack.c.b16 %v6625, %v6624
      %v6645 = vpack.c.b16 %v6627, %v6626
      %v6665 = vsel %vm568, %v6467, 0
      %v6668 = vsel %vm568, %v6470, 0
      %v6671 = vsel %vm568, %v6473, 0
      %v6674 = vsel %vm568, %v6476, 0
      %v6677 = vsel %vm568, %v6479, 0
      %v6680 = vsel %vm568, %v6482, 0
      %v6683 = vsel %vm568, %v6485, 0
      %v6686 = vsel %vm568, %v6488, 0
      %v6689 = vsel %vm568, %v6491, 0
      %v6692 = vsel %vm568, %v6494, 0
      %v6695 = vsel %vm568, %v6497, 0
      %v6698 = vsel %vm568, %v6500, 0
      %v6701 = vsel %vm568, %v6503, 0
      %v6704 = vsel %vm568, %v6506, 0
      %v6707 = vsel %vm568, %v6509, 0
      %v6710 = vsel %vm568, %v6512, 0
      %6712 = vmatprep.subr.bf16.mxu0 0
      %6713 = vmatpush1.bf16.msra.mxu0 %v6628
      %6714 = vmatprep.subr.bf16.mxu0 0
      %6715 = vmatpush1.bf16.msra.mxu0 %v6629
      %6716 = vmatprep.subr.bf16.mxu0 0
      %6717 = vmatpush1.bf16.msra.mxu0 %v6630
      %6718 = vmatprep.subr.bf16.mxu0 0
      %6719 = vmatpush1.bf16.msra.mxu0 %v6631
      %6720 = vmatprep.subr.bf16.mxu0 0
      %6721 = vmatpush1.bf16.msra.mxu0 %v6632
      %6722 = vmatprep.subr.bf16.mxu0 0
      %6723 = vmatpush1.bf16.msra.mxu0 %v6633
      %6724 = vmatprep.subr.bf16.mxu0 0
      %6725 = vmatpush1.bf16.msra.mxu0 %v6634
      %6726 = vmatprep.subr.bf16.mxu0 0
      %6727 = vmatpush1.bf16.msra.mxu0 %v6635
      %6728 = vmatprep.subr.bf16.mxu0 0
      %6729 = vmatpush1.bf16.msra.mxu0 %v6636
      %6730 = vmatprep.subr.bf16.mxu0 0
      %6731 = vmatpush1.bf16.msra.mxu0 %v6637
      %6732 = vmatprep.subr.bf16.mxu0 0
      %6733 = vmatpush1.bf16.msra.mxu0 %v6638
      %6734 = vmatprep.subr.bf16.mxu0 0
      %6735 = vmatpush1.bf16.msra.mxu0 %v6639
      %6736 = vmatprep.subr.bf16.mxu0 0
      %6737 = vmatpush1.bf16.msra.mxu0 %v6640
      %6738 = vmatprep.subr.bf16.mxu0 0
      %6739 = vmatpush1.bf16.msra.mxu0 %v6641
      %6740 = vmatprep.subr.bf16.mxu0 0
      %6741 = vmatpush1.bf16.msra.mxu0 %v6642
      %6742 = vmatprep.subr.bf16.mxu0 0
      %6743 = vmatpush1.bf16.msra.mxu0 %v6643
      %6744 = vmatprep.mubr.bf16.mxu0 %v6466
      %6745 = vmatmul.mubr.bf16.gmra.mrb[0].mxu0 %v6465
      %v6746 = vpop.f32.mrb[0].mxu0
      %v6747 = vadd.f32 %v6554, %v6746
      %v6748 = vpop.f32.mrb[0].mxu0
      %v6749 = vpop.f32.mrb[0].mxu0
      %v6750 = vadd.f32 %v6554, %v6749
      %v6751 = vpop.f32.mrb[0].mxu0
      %6752 = vmatprep.mubr.bf16.mxu0 %v6469
      %6753 = vmatmul.mubr.bf16.gmra.mrb[0].mxu0 %v6468
      %v6754 = vpop.f32.mrb[0].mxu0
      %v6755 = vadd.f32 %v6554, %v6754
      %v6756 = vpop.f32.mrb[0].mxu0
      %v6757 = vpop.f32.mrb[0].mxu0
      %v6758 = vadd.f32 %v6554, %v6757
      %v6759 = vpop.f32.mrb[0].mxu0
      %6760 = vmatprep.mubr.bf16.mxu0 %v6472
      %6761 = vmatmul.mubr.bf16.gmra.mrb[0].mxu0 %v6471
      %v6762 = vpop.f32.mrb[0].mxu0
      %v6763 = vadd.f32 %v6554, %v6762
      %v6764 = vpop.f32.mrb[0].mxu0
      %v6765 = vpop.f32.mrb[0].mxu0
      %v6766 = vadd.f32 %v6554, %v6765
      %v6767 = vpop.f32.mrb[0].mxu0
      %6768 = vmatprep.mubr.bf16.mxu0 %v6475
      %6769 = vmatmul.mubr.bf16.gmra.mrb[0].mxu0 %v6474
      %v6770 = vpop.f32.mrb[0].mxu0
      %v6771 = vadd.f32 %v6554, %v6770
      %v6772 = vpop.f32.mrb[0].mxu0
      %v6773 = vpop.f32.mrb[0].mxu0
      %v6774 = vadd.f32 %v6554, %v6773
      %v6775 = vpop.f32.mrb[0].mxu0
      %6776 = vmatprep.mubr.bf16.mxu0 %v6478
      %6777 = vmatmul.mubr.bf16.gmra.mrb[0].mxu0 %v6477
      %v6778 = vpop.f32.mrb[0].mxu0
      %v6779 = vadd.f32 %v6554, %v6778
      %v6780 = vpop.f32.mrb[0].mxu0
      %v6781 = vpop.f32.mrb[0].mxu0
      %v6782 = vadd.f32 %v6554, %v6781
      %v6783 = vpop.f32.mrb[0].mxu0
      %6784 = vmatprep.mubr.bf16.mxu0 %v6481
      %6785 = vmatmul.mubr.bf16.gmra.mrb[0].mxu0 %v6480
      %v6786 = vpop.f32.mrb[0].mxu0
      %v6787 = vadd.f32 %v6554, %v6786
      %v6788 = vpop.f32.mrb[0].mxu0
      %v6789 = vpop.f32.mrb[0].mxu0
      %v6790 = vadd.f32 %v6554, %v6789
      %v6791 = vpop.f32.mrb[0].mxu0
      %6792 = vmatprep.mubr.bf16.mxu0 %v6484
      %6793 = vmatmul.mubr.bf16.gmra.mrb[0].mxu0 %v6483
      %v6794 = vpop.f32.mrb[0].mxu0
      %v6795 = vadd.f32 %v6554, %v6794
      %v6796 = vpop.f32.mrb[0].mxu0
      %v6797 = vpop.f32.mrb[0].mxu0
      %v6798 = vadd.f32 %v6554, %v6797
      %v6799 = vpop.f32.mrb[0].mxu0
      %6800 = vmatprep.mubr.bf16.mxu0 %v6487
      %6801 = vmatmul.mubr.bf16.gmra.mrb[0].mxu0 %v6486
      %v6802 = vpop.f32.mrb[0].mxu0
      %v6803 = vadd.f32 %v6554, %v6802
      %v6804 = vpop.f32.mrb[0].mxu0
      %v6805 = vpop.f32.mrb[0].mxu0
      %v6806 = vadd.f32 %v6554, %v6805
      %v6807 = vpop.f32.mrb[0].mxu0
      %6808 = vmatprep.mubr.bf16.mxu0 %v6490
      %6809 = vmatmul.mubr.bf16.gmra.mrb[0].mxu0 %v6489
      %v6810 = vpop.f32.mrb[0].mxu0
      %v6811 = vadd.f32 %v6554, %v6810
      %v6812 = vpop.f32.mrb[0].mxu0
      %v6813 = vpop.f32.mrb[0].mxu0
      %v6814 = vadd.f32 %v6554, %v6813
      %v6815 = vpop.f32.mrb[0].mxu0
      %6816 = vmatprep.mubr.bf16.mxu0 %v6493
      %6817 = vmatmul.mubr.bf16.gmra.mrb[0].mxu0 %v6492
      %v6818 = vpop.f32.mrb[0].mxu0
      %v6819 = vadd.f32 %v6554, %v6818
      %v6820 = vpop.f32.mrb[0].mxu0
      %v6821 = vpop.f32.mrb[0].mxu0
      %v6822 = vadd.f32 %v6554, %v6821
      %v6823 = vpop.f32.mrb[0].mxu0
      %6824 = vmatprep.mubr.bf16.mxu0 %v6496
      %6825 = vmatmul.mubr.bf16.gmra.mrb[0].mxu0 %v6495
      %v6826 = vpop.f32.mrb[0].mxu0
      %v6827 = vadd.f32 %v6554, %v6826
      %v6828 = vpop.f32.mrb[0].mxu0
      %v6829 = vpop.f32.mrb[0].mxu0
      %v6830 = vadd.f32 %v6554, %v6829
      %v6831 = vpop.f32.mrb[0].mxu0
      %6832 = vmatprep.mubr.bf16.mxu0 %v6499
      %6833 = vmatmul.mubr.bf16.gmra.mrb[0].mxu0 %v6498
      %v6834 = vpop.f32.mrb[0].mxu0
      %v6835 = vadd.f32 %v6554, %v6834
      %v6836 = vpop.f32.mrb[0].mxu0
      %v6837 = vpop.f32.mrb[0].mxu0
      %v6838 = vadd.f32 %v6554, %v6837
      %v6839 = vpop.f32.mrb[0].mxu0
      %6840 = vmatprep.mubr.bf16.mxu0 %v6502
      %6841 = vmatmul.mubr.bf16.gmra.mrb[0].mxu0 %v6501
      %v6842 = vpop.f32.mrb[0].mxu0
      %v6843 = vadd.f32 %v6554, %v6842
      %v6844 = vpop.f32.mrb[0].mxu0
      %v6845 = vpop.f32.mrb[0].mxu0
      %v6846 = vadd.f32 %v6554, %v6845
      %v6847 = vpop.f32.mrb[0].mxu0
      %6848 = vmatprep.mubr.bf16.mxu0 %v6505
      %6849 = vmatmul.mubr.bf16.gmra.mrb[0].mxu0 %v6504
      %v6850 = vpop.f32.mrb[0].mxu0
      %v6851 = vadd.f32 %v6554, %v6850
      %v6852 = vpop.f32.mrb[0].mxu0
      %v6853 = vpop.f32.mrb[0].mxu0
      %v6854 = vadd.f32 %v6554, %v6853
      %v6855 = vpop.f32.mrb[0].mxu0
      %6856 = vmatprep.mubr.bf16.mxu0 %v6508
      %6857 = vmatmul.mubr.bf16.gmra.mrb[0].mxu0 %v6507
      %v6858 = vpop.f32.mrb[0].mxu0
      %v6859 = vadd.f32 %v6554, %v6858
      %v6860 = vpop.f32.mrb[0].mxu0
      %v6861 = vpop.f32.mrb[0].mxu0
      %v6862 = vadd.f32 %v6554, %v6861
      %v6863 = vpop.f32.mrb[0].mxu0
      %6864 = vmatprep.mubr.bf16.mxu0 %v6511
      %6865 = vmatmul.mubr.bf16.gmra.mrb[0].mxu0 %v6510
      %v6866 = vpop.f32.mrb[0].mxu0
      %v6867 = vadd.f32 %v6554, %v6866
      %v6868 = vpop.f32.mrb[0].mxu0
      %v6869 = vpop.f32.mrb[0].mxu0
      %v6870 = vadd.f32 %v6554, %v6869
      %v6871 = vpop.f32.mrb[0].mxu0
      %6872 = vdwg.mxu0
      %6873 = vmatprep.subr.bf16.mxu0 0
      %6874 = vmatpush1.bf16.msra.mxu0 %v6644
      %6875 = vmatprep.subr.bf16.mxu0 0
      %6876 = vmatpush1.bf16.msra.mxu0 %v6645
      %6877 = vmatprep.subr.bf16.mxu0 0
      %6878 = vmatpush1.bf16.msra.mxu0 0
      %6879 = vmatprep.subr.bf16.mxu0 0
      %6880 = vmatpush1.bf16.msra.mxu0 0
      %6881 = vmatprep.subr.bf16.mxu0 0
      %6882 = vmatpush1.bf16.msra.mxu0 0
      %6883 = vmatprep.subr.bf16.mxu0 0
      %6884 = vmatpush1.bf16.msra.mxu0 0
      %6885 = vmatprep.subr.bf16.mxu0 0
      %6886 = vmatpush1.bf16.msra.mxu0 0
      %6887 = vmatprep.subr.bf16.mxu0 0
      %6888 = vmatpush1.bf16.msra.mxu0 0
      %6889 = vmatprep.subr.bf16.mxu0 0
      %6890 = vmatpush1.bf16.msra.mxu0 0
      %6891 = vmatprep.subr.bf16.mxu0 0
      %6892 = vmatpush1.bf16.msra.mxu0 0
      %6893 = vmatprep.subr.bf16.mxu0 0
      %6894 = vmatpush1.bf16.msra.mxu0 0
      %6895 = vmatprep.subr.bf16.mxu0 0
      %6896 = vmatpush1.bf16.msra.mxu0 0
      %6897 = vmatprep.subr.bf16.mxu0 0
      %6898 = vmatpush1.bf16.msra.mxu0 0
      %6899 = vmatprep.subr.bf16.mxu0 0
      %6900 = vmatpush1.bf16.msra.mxu0 0
      %6901 = vmatprep.subr.bf16.mxu0 0
      %6902 = vmatpush1.bf16.msra.mxu0 0
      %6903 = vmatprep.subr.bf16.mxu0 0
      %6904 = vmatpush1.bf16.msra.mxu0 0
      %6905 = vmatprep.mubr.bf16.mxu0 0
      %6906 = vmatmul.mubr.bf16.gmra.mrb[0].mxu0 %v6665
      %v6907 = vpop.f32.mrb[0].mxu0
      %v6908 = vadd.f32 %v6747, %v6907
      %v6909 = vpop.f32.mrb[0].mxu0
      %v6910 = vpop.f32.mrb[0].mxu0
      %v6911 = vadd.f32 %v6750, %v6910
      %v6912 = vpop.f32.mrb[0].mxu0
      %6913 = vmatprep.mubr.bf16.mxu0 0
      %6914 = vmatmul.mubr.bf16.gmra.mrb[0].mxu0 %v6668
      %v6915 = vpop.f32.mrb[0].mxu0
      %v6916 = vadd.f32 %v6755, %v6915
      %v6917 = vpop.f32.mrb[0].mxu0
      %v6918 = vpop.f32.mrb[0].mxu0
      %v6919 = vadd.f32 %v6758, %v6918
      %v6920 = vpop.f32.mrb[0].mxu0
      %6921 = vmatprep.mubr.bf16.mxu0 0
      %6922 = vmatmul.mubr.bf16.gmra.mrb[0].mxu0 %v6671
      %v6923 = vpop.f32.mrb[0].mxu0
      %v6924 = vadd.f32 %v6763, %v6923
      %v6925 = vpop.f32.mrb[0].mxu0
      %v6926 = vpop.f32.mrb[0].mxu0
      %v6927 = vadd.f32 %v6766, %v6926
      %v6928 = vpop.f32.mrb[0].mxu0
      %6929 = vmatprep.mubr.bf16.mxu0 0
      %6930 = vmatmul.mubr.bf16.gmra.mrb[0].mxu0 %v6674
      %v6931 = vpop.f32.mrb[0].mxu0
      %v6932 = vadd.f32 %v6771, %v6931
      %v6933 = vpop.f32.mrb[0].mxu0
      %v6934 = vpop.f32.mrb[0].mxu0
      %v6935 = vadd.f32 %v6774, %v6934
      %v6936 = vpop.f32.mrb[0].mxu0
      %6937 = vmatprep.mubr.bf16.mxu0 0
      %6938 = vmatmul.mubr.bf16.gmra.mrb[0].mxu0 %v6677
      %v6939 = vpop.f32.mrb[0].mxu0
      %v6940 = vadd.f32 %v6779, %v6939
      %v6941 = vpop.f32.mrb[0].mxu0
      %v6942 = vpop.f32.mrb[0].mxu0
      %v6943 = vadd.f32 %v6782, %v6942
      %v6944 = vpop.f32.mrb[0].mxu0
      %6945 = vmatprep.mubr.bf16.mxu0 0
      %6946 = vmatmul.mubr.bf16.gmra.mrb[0].mxu0 %v6680
      %v6947 = vpop.f32.mrb[0].mxu0
      %v6948 = vadd.f32 %v6787, %v6947
      %v6949 = vpop.f32.mrb[0].mxu0
      %v6950 = vpop.f32.mrb[0].mxu0
      %v6951 = vadd.f32 %v6790, %v6950
      %v6952 = vpop.f32.mrb[0].mxu0
      %6953 = vmatprep.mubr.bf16.mxu0 0
      %6954 = vmatmul.mubr.bf16.gmra.mrb[0].mxu0 %v6683
      %v6955 = vpop.f32.mrb[0].mxu0
      %v6956 = vadd.f32 %v6795, %v6955
      %v6957 = vpop.f32.mrb[0].mxu0
      %v6958 = vpop.f32.mrb[0].mxu0
      %v6959 = vadd.f32 %v6798, %v6958
      %v6960 = vpop.f32.mrb[0].mxu0
      %6961 = vmatprep.mubr.bf16.mxu0 0
      %6962 = vmatmul.mubr.bf16.gmra.mrb[0].mxu0 %v6686
      %v6963 = vpop.f32.mrb[0].mxu0
      %v6964 = vadd.f32 %v6803, %v6963
      %v6965 = vpop.f32.mrb[0].mxu0
      %v6966 = vpop.f32.mrb[0].mxu0
      %v6967 = vadd.f32 %v6806, %v6966
      %v6968 = vpop.f32.mrb[0].mxu0
      %6969 = vmatprep.mubr.bf16.mxu0 0
      %6970 = vmatmul.mubr.bf16.gmra.mrb[0].mxu0 %v6689
      %v6971 = vpop.f32.mrb[0].mxu0
      %v6972 = vadd.f32 %v6811, %v6971
      %v6973 = vpop.f32.mrb[0].mxu0
      %v6974 = vpop.f32.mrb[0].mxu0
      %v6975 = vadd.f32 %v6814, %v6974
      %v6976 = vpop.f32.mrb[0].mxu0
      %6977 = vmatprep.mubr.bf16.mxu0 0
      %6978 = vmatmul.mubr.bf16.gmra.mrb[0].mxu0 %v6692
      %v6979 = vpop.f32.mrb[0].mxu0
      %v6980 = vadd.f32 %v6819, %v6979
      %v6981 = vpop.f32.mrb[0].mxu0
      %v6982 = vpop.f32.mrb[0].mxu0
      %v6983 = vadd.f32 %v6822, %v6982
      %v6984 = vpop.f32.mrb[0].mxu0
      %6985 = vmatprep.mubr.bf16.mxu0 0
      %6986 = vmatmul.mubr.bf16.gmra.mrb[0].mxu0 %v6695
      %v6987 = vpop.f32.mrb[0].mxu0
      %v6988 = vadd.f32 %v6827, %v6987
      %v6989 = vpop.f32.mrb[0].mxu0
      %v6990 = vpop.f32.mrb[0].mxu0
      %v6991 = vadd.f32 %v6830, %v6990
      %v6992 = vpop.f32.mrb[0].mxu0
      %6993 = vmatprep.mubr.bf16.mxu0 0
      %6994 = vmatmul.mubr.bf16.gmra.mrb[0].mxu0 %v6698
      %v6995 = vpop.f32.mrb[0].mxu0
      %v6996 = vadd.f32 %v6835, %v6995
      %v6997 = vpop.f32.mrb[0].mxu0
      %v6998 = vpop.f32.mrb[0].mxu0
      %v6999 = vadd.f32 %v6838, %v6998
      %v7000 = vpop.f32.mrb[0].mxu0
      %7001 = vmatprep.mubr.bf16.mxu0 0
      %7002 = vmatmul.mubr.bf16.gmra.mrb[0].mxu0 %v6701
      %v7003 = vpop.f32.mrb[0].mxu0
      %v7004 = vadd.f32 %v6843, %v7003
      %v7005 = vpop.f32.mrb[0].mxu0
      %v7006 = vpop.f32.mrb[0].mxu0
      %v7007 = vadd.f32 %v6846, %v7006
      %v7008 = vpop.f32.mrb[0].mxu0
      %7009 = vmatprep.mubr.bf16.mxu0 0
      %7010 = vmatmul.mubr.bf16.gmra.mrb[0].mxu0 %v6704
      %v7011 = vpop.f32.mrb[0].mxu0
      %v7012 = vadd.f32 %v6851, %v7011
      %v7013 = vpop.f32.mrb[0].mxu0
      %v7014 = vpop.f32.mrb[0].mxu0
      %v7015 = vadd.f32 %v6854, %v7014
      %v7016 = vpop.f32.mrb[0].mxu0
      %7017 = vmatprep.mubr.bf16.mxu0 0
      %7018 = vmatmul.mubr.bf16.gmra.mrb[0].mxu0 %v6707
      %v7019 = vpop.f32.mrb[0].mxu0
      %v7020 = vadd.f32 %v6859, %v7019
      %v7021 = vpop.f32.mrb[0].mxu0
      %v7022 = vpop.f32.mrb[0].mxu0
      %v7023 = vadd.f32 %v6862, %v7022
      %v7024 = vpop.f32.mrb[0].mxu0
      %7025 = vmatprep.mubr.bf16.mxu0 0
      %7026 = vmatmul.mubr.bf16.gmra.mrb[0].mxu0 %v6710
      %v7027 = vpop.f32.mrb[0].mxu0
      %v7028 = vadd.f32 %v6867, %v7027
      %v7029 = vpop.f32.mrb[0].mxu0
      %v7030 = vpop.f32.mrb[0].mxu0
      %v7031 = vadd.f32 %v6870, %v7030
      %v7032 = vpop.f32.mrb[0].mxu0
      %7033 = vdwg.mxu0
      %vm7034 = vcmp.gt.f32.partialorder %v6908, 0.0
      %vm7035 = vcmp.gt.f32.partialorder %v6911, 0.0
      %vm7036 = vcmp.gt.f32.partialorder %v6916, 0.0
      %vm7037 = vcmp.gt.f32.partialorder %v6919, 0.0
      %vm7038 = vcmp.gt.f32.partialorder %v6924, 0.0
      %vm7039 = vcmp.gt.f32.partialorder %v6927, 0.0
      %vm7040 = vcmp.gt.f32.partialorder %v6932, 0.0
      %vm7041 = vcmp.gt.f32.partialorder %v6935, 0.0
      %vm7042 = vcmp.gt.f32.partialorder %v6940, 0.0
      %vm7043 = vcmp.gt.f32.partialorder %v6943, 0.0
      %vm7044 = vcmp.gt.f32.partialorder %v6948, 0.0
      %vm7045 = vcmp.gt.f32.partialorder %v6951, 0.0
      %vm7046 = vcmp.gt.f32.partialorder %v6956, 0.0
      %vm7047 = vcmp.gt.f32.partialorder %v6959, 0.0
      %vm7048 = vcmp.gt.f32.partialorder %v6964, 0.0
      %vm7049 = vcmp.gt.f32.partialorder %v6967, 0.0
      %vm7050 = vcmp.gt.f32.partialorder %v6972, 0.0
      %vm7051 = vcmp.gt.f32.partialorder %v6975, 0.0
      %vm7052 = vcmp.gt.f32.partialorder %v6980, 0.0
      %vm7053 = vcmp.gt.f32.partialorder %v6983, 0.0
      %vm7054 = vcmp.gt.f32.partialorder %v6988, 0.0
      %vm7055 = vcmp.gt.f32.partialorder %v6991, 0.0
      %vm7056 = vcmp.gt.f32.partialorder %v6996, 0.0
      %vm7057 = vcmp.gt.f32.partialorder %v6999, 0.0
      %vm7058 = vcmp.gt.f32.partialorder %v7004, 0.0
      %vm7059 = vcmp.gt.f32.partialorder %v7007, 0.0
      %vm7060 = vcmp.gt.f32.partialorder %v7012, 0.0
      %vm7061 = vcmp.gt.f32.partialorder %v7015, 0.0
      %vm7062 = vcmp.gt.f32.partialorder %v7020, 0.0
      %vm7063 = vcmp.gt.f32.partialorder %v7023, 0.0
      %vm7064 = vcmp.gt.f32.partialorder %v7028, 0.0
      %vm7065 = vcmp.gt.f32.partialorder %v7031, 0.0
      %v7066 = vmul.f32 %v6908, 0.1
      %v7067 = vmul.f32 %v6911, 0.1
      %v7068 = vmul.f32 %v6916, 0.1
      %v7069 = vmul.f32 %v6919, 0.1
      %v7070 = vmul.f32 %v6924, 0.1
      %v7071 = vmul.f32 %v6927, 0.1
      %v7072 = vmul.f32 %v6932, 0.1
      %v7073 = vmul.f32 %v6935, 0.1
      %v7074 = vmul.f32 %v6940, 0.1
      %v7075 = vmul.f32 %v6943, 0.1
      %v7076 = vmul.f32 %v6948, 0.1
      %v7077 = vmul.f32 %v6951, 0.1
      %v7078 = vmul.f32 %v6956, 0.1
      %v7079 = vmul.f32 %v6959, 0.1
      %v7080 = vmul.f32 %v6964, 0.1
      %v7081 = vmul.f32 %v6967, 0.1
      %v7082 = vmul.f32 %v6972, 0.1
      %v7083 = vmul.f32 %v6975, 0.1
      %v7084 = vmul.f32 %v6980, 0.1
      %v7085 = vmul.f32 %v6983, 0.1
      %v7086 = vmul.f32 %v6988, 0.1
      %v7087 = vmul.f32 %v6991, 0.1
      %v7088 = vmul.f32 %v6996, 0.1
      %v7089 = vmul.f32 %v6999, 0.1
      %v7090 = vmul.f32 %v7004, 0.1
      %v7091 = vmul.f32 %v7007, 0.1
      %v7092 = vmul.f32 %v7012, 0.1
      %v7093 = vmul.f32 %v7015, 0.1
      %v7094 = vmul.f32 %v7020, 0.1
      %v7095 = vmul.f32 %v7023, 0.1
      %v7096 = vmul.f32 %v7028, 0.1
      %v7097 = vmul.f32 %v7031, 0.1
      %v7098 = vsel %vm7034, %v6908, %v7066
      %v7099 = vsel %vm7035, %v6911, %v7067
      %v7100 = vsel %vm7036, %v6916, %v7068
      %v7101 = vsel %vm7037, %v6919, %v7069
      %v7102 = vsel %vm7038, %v6924, %v7070
      %v7103 = vsel %vm7039, %v6927, %v7071
      %v7104 = vsel %vm7040, %v6932, %v7072
      %v7105 = vsel %vm7041, %v6935, %v7073
      %v7106 = vsel %vm7042, %v6940, %v7074
      %v7107 = vsel %vm7043, %v6943, %v7075
      %v7108 = vsel %vm7044, %v6948, %v7076
      %v7109 = vsel %vm7045, %v6951, %v7077
      %v7110 = vsel %vm7046, %v6956, %v7078
      %v7111 = vsel %vm7047, %v6959, %v7079
      %v7112 = vsel %vm7048, %v6964, %v7080
      %v7113 = vsel %vm7049, %v6967, %v7081
      %v7114 = vsel %vm7050, %v6972, %v7082
      %v7115 = vsel %vm7051, %v6975, %v7083
      %v7116 = vsel %vm7052, %v6980, %v7084
      %v7117 = vsel %vm7053, %v6983, %v7085
      %v7118 = vsel %vm7054, %v6988, %v7086
      %v7119 = vsel %vm7055, %v6991, %v7087
      %v7120 = vsel %vm7056, %v6996, %v7088
      %v7121 = vsel %vm7057, %v6999, %v7089
      %v7122 = vsel %vm7058, %v7004, %v7090
      %v7123 = vsel %vm7059, %v7007, %v7091
      %v7124 = vsel %vm7060, %v7012, %v7092
      %v7125 = vsel %vm7061, %v7015, %v7093
      %v7126 = vsel %vm7062, %v7020, %v7094
      %v7127 = vsel %vm7063, %v7023, %v7095
      %v7128 = vsel %vm7064, %v7028, %v7096
      %v7129 = vsel %vm7065, %v7031, %v7097
      %7130 = vst.msk [vmem:[#allocation5] sm:$0xf] %vm3618, 0
      %7131 = vst.msk [vmem:[#allocation5 + $0x4] sm:$0xf] %vm3618, 0
      %vm7132 = vcmask 122880
      %7133 = vst.msk [vmem:[#allocation5 + $0x8] sm:$0x1] %vm7132, 0
      %7134 = vst.msk [vmem:[#allocation5 + $0xc] sm:$0xf] %vm3618, 0
      %7135 = vst.msk [vmem:[#allocation5 + $0x10] sm:$0xf] %vm3618, 0
      %7136 = vst.msk [vmem:[#allocation5 + $0x14] sm:$0x1] %vm7132, 0
      %7137 = vst.msk [vmem:[#allocation5 + $0x18] sm:$0xf] %vm3618, 0
      %7138 = vst.msk [vmem:[#allocation5 + $0x1c] sm:$0xf] %vm3618, 0
      %7139 = vst.msk [vmem:[#allocation5 + $0x20] sm:$0x1] %vm7132, 0
      %7140 = vst.msk [vmem:[#allocation5 + $0x24] sm:$0xf] %vm3618, 0
      %7141 = vst.msk [vmem:[#allocation5 + $0x28] sm:$0xf] %vm3618, 0
      %7142 = vst.msk [vmem:[#allocation5 + $0x2c] sm:$0x1] %vm7132, 0
      %7143 = vst.msk [vmem:[#allocation5 + $0x30] sm:$0xf] %vm3618, 0
      %7144 = vst.msk [vmem:[#allocation5 + $0x34] sm:$0xf] %vm3618, 0
      %7145 = vst.msk [vmem:[#allocation5 + $0x38] sm:$0x1] %vm7132, 0
      %7146 = vst.msk [vmem:[#allocation5 + $0x3c] sm:$0xf] %vm3618, 0
      %7147 = vst.msk [vmem:[#allocation5 + $0x40] sm:$0xf] %vm3618, 0
      %7148 = vst.msk [vmem:[#allocation5 + $0x44] sm:$0x1] %vm7132, 0
      %7149 = vst.msk [vmem:[#allocation5 + $0x48] sm:$0xf] %vm3618, 0
      %7150 = vst.msk [vmem:[#allocation5 + $0x4c] sm:$0xf] %vm3618, 0
      %7151 = vst.msk [vmem:[#allocation5 + $0x50] sm:$0x1] %vm7132, 0
      %7152 = vst.msk [vmem:[#allocation5 + $0x54] sm:$0xf] %vm3618, 0
      %7153 = vst.msk [vmem:[#allocation5 + $0x58] sm:$0xf] %vm3618, 0
      %7154 = vst.msk [vmem:[#allocation5 + $0x5c] sm:$0x1] %vm7132, 0
      %7155 = vst.msk [vmem:[#allocation5 + $0x60] sm:$0xf] %vm3618, 0
      %7156 = vst.msk [vmem:[#allocation5 + $0x64] sm:$0xf] %vm3618, 0
      %7157 = vst.msk [vmem:[#allocation5 + $0x68] sm:$0x1] %vm7132, 0
      %7158 = vst.msk [vmem:[#allocation5 + $0x6c] sm:$0xf] %vm3618, 0
      %7159 = vst.msk [vmem:[#allocation5 + $0x70] sm:$0xf] %vm3618, 0
      %7160 = vst.msk [vmem:[#allocation5 + $0x74] sm:$0x1] %vm7132, 0
      %7161 = vst.msk [vmem:[#allocation5 + $0x78] sm:$0xf] %vm3618, 0
      %7162 = vst.msk [vmem:[#allocation5 + $0x7c] sm:$0xf] %vm3618, 0
      %7163 = vst.msk [vmem:[#allocation5 + $0x80] sm:$0x1] %vm7132, 0
      %7164 = vst.msk [vmem:[#allocation5 + $0x84] sm:$0xf] %vm3618, 0
      %7165 = vst.msk [vmem:[#allocation5 + $0x88] sm:$0xf] %vm3618, 0
      %7166 = vst.msk [vmem:[#allocation5 + $0x8c] sm:$0x1] %vm7132, 0
      %7167 = vst.msk [vmem:[#allocation5 + $0x90] sm:$0xf] %vm3618, 0
      %7168 = vst.msk [vmem:[#allocation5 + $0x94] sm:$0xf] %vm3618, 0
      %7169 = vst.msk [vmem:[#allocation5 + $0x98] sm:$0x1] %vm7132, 0
      %7170 = vst.msk [vmem:[#allocation5 + $0x9c] sm:$0xf] %vm3618, 0
      %7171 = vst.msk [vmem:[#allocation5 + $0xa0] sm:$0xf] %vm3618, 0
      %7172 = vst.msk [vmem:[#allocation5 + $0xa4] sm:$0x1] %vm7132, 0
      %7173 = vst.msk [vmem:[#allocation5 + $0xa8] sm:$0xf] %vm3618, 0
      %7174 = vst.msk [vmem:[#allocation5 + $0xac] sm:$0xf] %vm3618, 0
      %7175 = vst.msk [vmem:[#allocation5 + $0xb0] sm:$0x1] %vm7132, 0
      %7176 = vst.msk [vmem:[#allocation5 + $0xb4] sm:$0xf] %vm3618, 0
      %7177 = vst.msk [vmem:[#allocation5 + $0xb8] sm:$0xf] %vm3618, 0
      %7178 = vst.msk [vmem:[#allocation5 + $0xbc] sm:$0x1] %vm7132, 0
      %7179 = vst.msk [vmem:[#allocation5 + $0xc0] sm:$0xf] %vm3618, 0
      %7180 = vst.msk [vmem:[#allocation5 + $0xc4] sm:$0xf] %vm3618, 0
      %7181 = vst.msk [vmem:[#allocation5 + $0xc8] sm:$0x1] %vm7132, 0
      %7182 = vst.msk [vmem:[#allocation5 + $0xcc] sm:$0xf] %vm3618, 0
      %7183 = vst.msk [vmem:[#allocation5 + $0xd0] sm:$0xf] %vm3618, 0
      %7184 = vst.msk [vmem:[#allocation5 + $0xd4] sm:$0x1] %vm7132, 0
      %v7185 = vpack.c.bf16 %v7099, %v7098
      %v7186 = vpack.c.bf16 %v7101, %v7100
      %v7187 = vpack.c.bf16 %v7103, %v7102
      %v7188 = vpack.c.bf16 %v7105, %v7104
      %v7189 = vpack.c.bf16 %v7107, %v7106
      %v7190 = vpack.c.bf16 %v7109, %v7108
      %v7191 = vpack.c.bf16 %v7111, %v7110
      %v7192 = vpack.c.bf16 %v7113, %v7112
      %v7193 = vpack.c.bf16 %v7115, %v7114
      %v7194 = vpack.c.bf16 %v7117, %v7116
      %v7195 = vpack.c.bf16 %v7119, %v7118
      %v7196 = vpack.c.bf16 %v7121, %v7120
      %v7197 = vpack.c.bf16 %v7123, %v7122
      %v7198 = vpack.c.bf16 %v7125, %v7124
      %v7199 = vpack.c.bf16 %v7127, %v7126
      %v7200 = vpack.c.bf16 %v7129, %v7128
      %v7217 = vunpack.c.l.b16 %v7185
      %v7218 = vunpack.c.h.b16 %v7185
      %v7219 = vunpack.c.l.b16 %v7186
      %v7220 = vunpack.c.h.b16 %v7186
      %v7221 = vunpack.c.l.b16 %v7187
      %v7222 = vunpack.c.h.b16 %v7187
      %v7223 = vunpack.c.l.b16 %v7188
      %v7224 = vunpack.c.h.b16 %v7188
      %v7225 = vunpack.c.l.b16 %v7189
      %v7226 = vunpack.c.h.b16 %v7189
      %v7227 = vunpack.c.l.b16 %v7190
      %v7228 = vunpack.c.h.b16 %v7190
      %v7229 = vunpack.c.l.b16 %v7191
      %v7230 = vunpack.c.h.b16 %v7191
      %v7231 = vunpack.c.l.b16 %v7192
      %v7232 = vunpack.c.h.b16 %v7192
      %v7233 = vunpack.c.l.b16 %v7193
      %v7234 = vunpack.c.h.b16 %v7193
      %v7235 = vunpack.c.l.b16 %v7194
      %v7236 = vunpack.c.h.b16 %v7194
      %v7237 = vunpack.c.l.b16 %v7195
      %v7238 = vunpack.c.h.b16 %v7195
      %v7239 = vunpack.c.l.b16 %v7196
      %v7240 = vunpack.c.h.b16 %v7196
      %v7241 = vunpack.c.l.b16 %v7197
      %v7242 = vunpack.c.h.b16 %v7197
      %v7243 = vunpack.c.l.b16 %v7198
      %v7244 = vunpack.c.h.b16 %v7198
      %v7245 = vunpack.c.l.b16 %v7199
      %v7246 = vunpack.c.h.b16 %v7199
      %v7247 = vunpack.c.l.b16 %v7200
      %v7248 = vunpack.c.h.b16 %v7200
      %v7249 = vpack.c.b16 %v7217, %v7217
      %v7250 = vpack.c.b16 %v7218, %v7218
      %v7251 = vpack.c.b16 %v7219, %v7219
      %v7252 = vpack.c.b16 %v7220, %v7220
      %v7253 = vpack.c.b16 %v7221, %v7221
      %v7254 = vpack.c.b16 %v7222, %v7222
      %v7255 = vpack.c.b16 %v7223, %v7223
      %v7256 = vpack.c.b16 %v7224, %v7224
      %v7257 = vpack.c.b16 %v7225, %v7225
      %v7258 = vpack.c.b16 %v7226, %v7226
      %v7259 = vpack.c.b16 %v7227, %v7227
      %v7260 = vpack.c.b16 %v7228, %v7228
      %v7261 = vpack.c.b16 %v7229, %v7229
      %v7262 = vpack.c.b16 %v7230, %v7230
      %v7263 = vpack.c.b16 %v7231, %v7231
      %v7264 = vpack.c.b16 %v7232, %v7232
      %v7265 = vpack.c.b16 %v7233, %v7233
      %v7266 = vpack.c.b16 %v7234, %v7234
      %v7267 = vpack.c.b16 %v7235, %v7235
      %v7268 = vpack.c.b16 %v7236, %v7236
      %v7269 = vpack.c.b16 %v7237, %v7237
      %v7270 = vpack.c.b16 %v7238, %v7238
      %v7271 = vpack.c.b16 %v7239, %v7239
      %v7272 = vpack.c.b16 %v7240, %v7240
      %v7273 = vpack.c.b16 %v7241, %v7241
      %v7274 = vpack.c.b16 %v7242, %v7242
      %v7275 = vpack.c.b16 %v7243, %v7243
      %v7276 = vpack.c.b16 %v7244, %v7244
      %v7277 = vpack.c.b16 %v7245, %v7245
      %v7278 = vpack.c.b16 %v7246, %v7246
      %v7279 = vpack.c.b16 %v7247, %v7247
      %v7280 = vpack.c.b16 %v7248, %v7248
      %v7282 = vshrl.u32 %v7249, 16
      %v7284 = vrot.slane %v7282, 7
      %v7285 = vshll.u32 %v7249, 16
      %v7287 = vor.u32 %v7284, %v7285
      %v7288 = vrot.slane %v7284, 4
      %v7290 = vshrl.u32 %v7250, 16
      %v7292 = vrot.slane %v7290, 7
      %v7293 = vshll.u32 %v7250, 16
      %v7295 = vor.u32 %v7292, %v7293
      %v7296 = vsel %vm3291, %v7288, %v7295
      %v7297 = vrot.slane %v7292, 4
      %v7299 = vshrl.u32 %v7251, 16
      %v7301 = vrot.slane %v7299, 7
      %v7302 = vshll.u32 %v7251, 16
      %v7304 = vor.u32 %v7301, %v7302
      %v7305 = vrot.slane %v7301, 4
      %v7307 = vshrl.u32 %v7252, 16
      %v7309 = vrot.slane %v7307, 7
      %v7310 = vshll.u32 %v7252, 16
      %v7312 = vor.u32 %v7309, %v7310
      %v7313 = vsel %vm3291, %v7305, %v7312
      %v7314 = vrot.slane %v7309, 4
      %v7316 = vshrl.u32 %v7253, 16
      %v7318 = vrot.slane %v7316, 7
      %v7319 = vshll.u32 %v7253, 16
      %v7321 = vor.u32 %v7318, %v7319
      %v7322 = vrot.slane %v7318, 4
      %v7324 = vshrl.u32 %v7254, 16
      %v7326 = vrot.slane %v7324, 7
      %v7327 = vshll.u32 %v7254, 16
      %v7329 = vor.u32 %v7326, %v7327
      %v7330 = vsel %vm3291, %v7322, %v7329
      %v7331 = vrot.slane %v7326, 4
      %v7333 = vshrl.u32 %v7255, 16
      %v7335 = vrot.slane %v7333, 7
      %v7336 = vshll.u32 %v7255, 16
      %v7338 = vor.u32 %v7335, %v7336
      %v7339 = vrot.slane %v7335, 4
      %v7341 = vshrl.u32 %v7256, 16
      %v7343 = vrot.slane %v7341, 7
      %v7344 = vshll.u32 %v7256, 16
      %v7346 = vor.u32 %v7343, %v7344
      %v7347 = vsel %vm3291, %v7339, %v7346
      %v7348 = vrot.slane %v7343, 4
      %v7350 = vshrl.u32 %v7257, 16
      %v7352 = vrot.slane %v7350, 7
      %v7353 = vshll.u32 %v7257, 16
      %v7355 = vor.u32 %v7352, %v7353
      %v7356 = vrot.slane %v7352, 4
      %v7358 = vshrl.u32 %v7258, 16
      %v7360 = vrot.slane %v7358, 7
      %v7361 = vshll.u32 %v7258, 16
      %v7363 = vor.u32 %v7360, %v7361
      %v7364 = vsel %vm3291, %v7356, %v7363
      %v7365 = vrot.slane %v7360, 4
      %v7367 = vshrl.u32 %v7259, 16
      %v7369 = vrot.slane %v7367, 7
      %v7370 = vshll.u32 %v7259, 16
      %v7372 = vor.u32 %v7369, %v7370
      %v7373 = vrot.slane %v7369, 4
      %v7375 = vshrl.u32 %v7260, 16
      %v7377 = vrot.slane %v7375, 7
      %v7378 = vshll.u32 %v7260, 16
      %v7380 = vor.u32 %v7377, %v7378
      %v7381 = vsel %vm3291, %v7373, %v7380
      %v7382 = vrot.slane %v7377, 4
      %v7384 = vshrl.u32 %v7261, 16
      %v7386 = vrot.slane %v7384, 7
      %v7387 = vshll.u32 %v7261, 16
      %v7389 = vor.u32 %v7386, %v7387
      %v7390 = vrot.slane %v7386, 4
      %v7392 = vshrl.u32 %v7262, 16
      %v7394 = vrot.slane %v7392, 7
      %v7395 = vshll.u32 %v7262, 16
      %v7397 = vor.u32 %v7394, %v7395
      %v7398 = vsel %vm3291, %v7390, %v7397
      %v7399 = vrot.slane %v7394, 4
      %v7401 = vshrl.u32 %v7263, 16
      %v7403 = vrot.slane %v7401, 7
      %v7404 = vshll.u32 %v7263, 16
      %v7406 = vor.u32 %v7403, %v7404
      %v7407 = vrot.slane %v7403, 4
      %v7409 = vshrl.u32 %v7264, 16
      %v7411 = vrot.slane %v7409, 7
      %v7412 = vshll.u32 %v7264, 16
      %v7414 = vor.u32 %v7411, %v7412
      %v7415 = vsel %vm3291, %v7407, %v7414
      %v7416 = vrot.slane %v7411, 4
      %v7418 = vshrl.u32 %v7265, 16
      %v7420 = vrot.slane %v7418, 7
      %v7421 = vshll.u32 %v7265, 16
      %v7423 = vor.u32 %v7420, %v7421
      %v7424 = vrot.slane %v7420, 4
      %v7426 = vshrl.u32 %v7266, 16
      %v7428 = vrot.slane %v7426, 7
      %v7429 = vshll.u32 %v7266, 16
      %v7431 = vor.u32 %v7428, %v7429
      %v7432 = vsel %vm3291, %v7424, %v7431
      %v7433 = vrot.slane %v7428, 4
      %v7435 = vshrl.u32 %v7267, 16
      %v7437 = vrot.slane %v7435, 7
      %v7438 = vshll.u32 %v7267, 16
      %v7440 = vor.u32 %v7437, %v7438
      %v7441 = vrot.slane %v7437, 4
      %v7443 = vshrl.u32 %v7268, 16
      %v7445 = vrot.slane %v7443, 7
      %v7446 = vshll.u32 %v7268, 16
      %v7448 = vor.u32 %v7445, %v7446
      %v7449 = vsel %vm3291, %v7441, %v7448
      %v7450 = vrot.slane %v7445, 4
      %v7452 = vshrl.u32 %v7269, 16
      %v7454 = vrot.slane %v7452, 7
      %v7455 = vshll.u32 %v7269, 16
      %v7457 = vor.u32 %v7454, %v7455
      %v7458 = vrot.slane %v7454, 4
      %v7460 = vshrl.u32 %v7270, 16
      %v7462 = vrot.slane %v7460, 7
      %v7463 = vshll.u32 %v7270, 16
      %v7465 = vor.u32 %v7462, %v7463
      %v7466 = vsel %vm3291, %v7458, %v7465
      %v7467 = vrot.slane %v7462, 4
      %v7469 = vshrl.u32 %v7271, 16
      %v7471 = vrot.slane %v7469, 7
      %v7472 = vshll.u32 %v7271, 16
      %v7474 = vor.u32 %v7471, %v7472
      %v7475 = vrot.slane %v7471, 4
      %v7477 = vshrl.u32 %v7272, 16
      %v7479 = vrot.slane %v7477, 7
      %v7480 = vshll.u32 %v7272, 16
      %v7482 = vor.u32 %v7479, %v7480
      %v7483 = vsel %vm3291, %v7475, %v7482
      %v7484 = vrot.slane %v7479, 4
      %v7486 = vshrl.u32 %v7273, 16
      %v7488 = vrot.slane %v7486, 7
      %v7489 = vshll.u32 %v7273, 16
      %v7491 = vor.u32 %v7488, %v7489
      %v7492 = vrot.slane %v7488, 4
      %v7494 = vshrl.u32 %v7274, 16
      %v7496 = vrot.slane %v7494, 7
      %v7497 = vshll.u32 %v7274, 16
      %v7499 = vor.u32 %v7496, %v7497
      %v7500 = vsel %vm3291, %v7492, %v7499
      %v7501 = vrot.slane %v7496, 4
      %v7503 = vshrl.u32 %v7275, 16
      %v7505 = vrot.slane %v7503, 7
      %v7506 = vshll.u32 %v7275, 16
      %v7508 = vor.u32 %v7505, %v7506
      %v7509 = vrot.slane %v7505, 4
      %v7511 = vshrl.u32 %v7276, 16
      %v7513 = vrot.slane %v7511, 7
      %v7514 = vshll.u32 %v7276, 16
      %v7516 = vor.u32 %v7513, %v7514
      %v7517 = vsel %vm3291, %v7509, %v7516
      %v7518 = vrot.slane %v7513, 4
      %v7520 = vshrl.u32 %v7277, 16
      %v7522 = vrot.slane %v7520, 7
      %v7523 = vshll.u32 %v7277, 16
      %v7525 = vor.u32 %v7522, %v7523
      %v7526 = vrot.slane %v7522, 4
      %v7528 = vshrl.u32 %v7278, 16
      %v7530 = vrot.slane %v7528, 7
      %v7531 = vshll.u32 %v7278, 16
      %v7533 = vor.u32 %v7530, %v7531
      %v7534 = vsel %vm3291, %v7526, %v7533
      %v7535 = vrot.slane %v7530, 4
      %v7537 = vshrl.u32 %v7279, 16
      %v7539 = vrot.slane %v7537, 7
      %v7540 = vshll.u32 %v7279, 16
      %v7542 = vor.u32 %v7539, %v7540
      %v7543 = vrot.slane %v7539, 4
      %v7545 = vshrl.u32 %v7280, 16
      %v7547 = vrot.slane %v7545, 7
      %v7548 = vshll.u32 %v7280, 16
      %v7550 = vor.u32 %v7547, %v7548
      %v7551 = vsel %vm3291, %v7543, %v7550
      %v7552 = vrot.slane %v7547, 4
      %s7601 = scalar_lea.vmem [#allocation5], 12
      %v7602 = vld [vmem:[%s7601] sm:$0xf]
      %v7603 = vsel %vm3614, %v7287, %v7602
      %7604 = vst [vmem:[%s7601] sm:$0xf] %v7603
      %7605 = vst.msk [vmem:[%s7601 + $0x4] sm:$0xf] %vm3618, %v7296
      %v7606 = vld [vmem:[%s7601 + $0x8] sm:$0x1]
      %v7607 = vsel %vm1633, %v7297, %v7606
      %7608 = vst [vmem:[%s7601 + $0x8] sm:$0x1] %v7607
      %v7609 = vld [vmem:[%s7601 + $0xc] sm:$0xf]
      %v7610 = vsel %vm3614, %v7304, %v7609
      %7611 = vst [vmem:[%s7601 + $0xc] sm:$0xf] %v7610
      %7612 = vst.msk [vmem:[%s7601 + $0x10] sm:$0xf] %vm3618, %v7313
      %v7613 = vld [vmem:[%s7601 + $0x14] sm:$0x1]
      %v7614 = vsel %vm1633, %v7314, %v7613
      %7615 = vst [vmem:[%s7601 + $0x14] sm:$0x1] %v7614
      %v7616 = vld [vmem:[%s7601 + $0x18] sm:$0xf]
      %v7617 = vsel %vm3614, %v7321, %v7616
      %7618 = vst [vmem:[%s7601 + $0x18] sm:$0xf] %v7617
      %7619 = vst.msk [vmem:[%s7601 + $0x1c] sm:$0xf] %vm3618, %v7330
      %v7620 = vld [vmem:[%s7601 + $0x20] sm:$0x1]
      %v7621 = vsel %vm1633, %v7331, %v7620
      %7622 = vst [vmem:[%s7601 + $0x20] sm:$0x1] %v7621
      %v7623 = vld [vmem:[%s7601 + $0x24] sm:$0xf]
      %v7624 = vsel %vm3614, %v7338, %v7623
      %7625 = vst [vmem:[%s7601 + $0x24] sm:$0xf] %v7624
      %7626 = vst.msk [vmem:[%s7601 + $0x28] sm:$0xf] %vm3618, %v7347
      %v7627 = vld [vmem:[%s7601 + $0x2c] sm:$0x1]
      %v7628 = vsel %vm1633, %v7348, %v7627
      %7629 = vst [vmem:[%s7601 + $0x2c] sm:$0x1] %v7628
      %v7630 = vld [vmem:[%s7601 + $0x30] sm:$0xf]
      %v7631 = vsel %vm3614, %v7355, %v7630
      %7632 = vst [vmem:[%s7601 + $0x30] sm:$0xf] %v7631
      %7633 = vst.msk [vmem:[%s7601 + $0x34] sm:$0xf] %vm3618, %v7364
      %v7634 = vld [vmem:[%s7601 + $0x38] sm:$0x1]
      %v7635 = vsel %vm1633, %v7365, %v7634
      %7636 = vst [vmem:[%s7601 + $0x38] sm:$0x1] %v7635
      %v7637 = vld [vmem:[%s7601 + $0x3c] sm:$0xf]
      %v7638 = vsel %vm3614, %v7372, %v7637
      %7639 = vst [vmem:[%s7601 + $0x3c] sm:$0xf] %v7638
      %7640 = vst.msk [vmem:[%s7601 + $0x40] sm:$0xf] %vm3618, %v7381
      %v7641 = vld [vmem:[%s7601 + $0x44] sm:$0x1]
      %v7642 = vsel %vm1633, %v7382, %v7641
      %7643 = vst [vmem:[%s7601 + $0x44] sm:$0x1] %v7642
      %v7644 = vld [vmem:[%s7601 + $0x48] sm:$0xf]
      %v7645 = vsel %vm3614, %v7389, %v7644
      %7646 = vst [vmem:[%s7601 + $0x48] sm:$0xf] %v7645
      %7647 = vst.msk [vmem:[%s7601 + $0x4c] sm:$0xf] %vm3618, %v7398
      %v7648 = vld [vmem:[%s7601 + $0x50] sm:$0x1]
      %v7649 = vsel %vm1633, %v7399, %v7648
      %7650 = vst [vmem:[%s7601 + $0x50] sm:$0x1] %v7649
      %v7651 = vld [vmem:[%s7601 + $0x54] sm:$0xf]
      %v7652 = vsel %vm3614, %v7406, %v7651
      %7653 = vst [vmem:[%s7601 + $0x54] sm:$0xf] %v7652
      %7654 = vst.msk [vmem:[%s7601 + $0x58] sm:$0xf] %vm3618, %v7415
      %v7655 = vld [vmem:[%s7601 + $0x5c] sm:$0x1]
      %v7656 = vsel %vm1633, %v7416, %v7655
      %7657 = vst [vmem:[%s7601 + $0x5c] sm:$0x1] %v7656
      %v7658 = vld [vmem:[%s7601 + $0x60] sm:$0xf]
      %v7659 = vsel %vm3614, %v7423, %v7658
      %7660 = vst [vmem:[%s7601 + $0x60] sm:$0xf] %v7659
      %7661 = vst.msk [vmem:[%s7601 + $0x64] sm:$0xf] %vm3618, %v7432
      %v7662 = vld [vmem:[%s7601 + $0x68] sm:$0x1]
      %v7663 = vsel %vm1633, %v7433, %v7662
      %7664 = vst [vmem:[%s7601 + $0x68] sm:$0x1] %v7663
      %v7665 = vld [vmem:[%s7601 + $0x6c] sm:$0xf]
      %v7666 = vsel %vm3614, %v7440, %v7665
      %7667 = vst [vmem:[%s7601 + $0x6c] sm:$0xf] %v7666
      %7668 = vst.msk [vmem:[%s7601 + $0x70] sm:$0xf] %vm3618, %v7449
      %v7669 = vld [vmem:[%s7601 + $0x74] sm:$0x1]
      %v7670 = vsel %vm1633, %v7450, %v7669
      %7671 = vst [vmem:[%s7601 + $0x74] sm:$0x1] %v7670
      %v7672 = vld [vmem:[%s7601 + $0x78] sm:$0xf]
      %v7673 = vsel %vm3614, %v7457, %v7672
      %7674 = vst [vmem:[%s7601 + $0x78] sm:$0xf] %v7673
      %7675 = vst.msk [vmem:[%s7601 + $0x7c] sm:$0xf] %vm3618, %v7466
      %v7676 = vld [vmem:[%s7601 + $0x80] sm:$0x1]
      %v7677 = vsel %vm1633, %v7467, %v7676
      %7678 = vst [vmem:[%s7601 + $0x80] sm:$0x1] %v7677
      %v7679 = vld [vmem:[%s7601 + $0x84] sm:$0xf]
      %v7680 = vsel %vm3614, %v7474, %v7679
      %7681 = vst [vmem:[%s7601 + $0x84] sm:$0xf] %v7680
      %7682 = vst.msk [vmem:[%s7601 + $0x88] sm:$0xf] %vm3618, %v7483
      %v7683 = vld [vmem:[%s7601 + $0x8c] sm:$0x1]
      %v7684 = vsel %vm1633, %v7484, %v7683
      %7685 = vst [vmem:[%s7601 + $0x8c] sm:$0x1] %v7684
      %v7686 = vld [vmem:[%s7601 + $0x90] sm:$0xf]
      %v7687 = vsel %vm3614, %v7491, %v7686
      %7688 = vst [vmem:[%s7601 + $0x90] sm:$0xf] %v7687
      %7689 = vst.msk [vmem:[%s7601 + $0x94] sm:$0xf] %vm3618, %v7500
      %v7690 = vld [vmem:[%s7601 + $0x98] sm:$0x1]
      %v7691 = vsel %vm1633, %v7501, %v7690
      %7692 = vst [vmem:[%s7601 + $0x98] sm:$0x1] %v7691
      %v7693 = vld [vmem:[%s7601 + $0x9c] sm:$0xf]
      %v7694 = vsel %vm3614, %v7508, %v7693
      %7695 = vst [vmem:[%s7601 + $0x9c] sm:$0xf] %v7694
      %7696 = vst.msk [vmem:[%s7601 + $0xa0] sm:$0xf] %vm3618, %v7517
      %v7697 = vld [vmem:[%s7601 + $0xa4] sm:$0x1]
      %v7698 = vsel %vm1633, %v7518, %v7697
      %7699 = vst [vmem:[%s7601 + $0xa4] sm:$0x1] %v7698
      %v7700 = vld [vmem:[%s7601 + $0xa8] sm:$0xf]
      %v7701 = vsel %vm3614, %v7525, %v7700
      %7702 = vst [vmem:[%s7601 + $0xa8] sm:$0xf] %v7701
      %7703 = vst.msk [vmem:[%s7601 + $0xac] sm:$0xf] %vm3618, %v7534
      %v7704 = vld [vmem:[%s7601 + $0xb0] sm:$0x1]
      %v7705 = vsel %vm1633, %v7535, %v7704
      %7706 = vst [vmem:[%s7601 + $0xb0] sm:$0x1] %v7705
      %v7707 = vld [vmem:[%s7601 + $0xb4] sm:$0xf]
      %v7708 = vsel %vm3614, %v7542, %v7707
      %7709 = vst [vmem:[%s7601 + $0xb4] sm:$0xf] %v7708
      %7710 = vst.msk [vmem:[%s7601 + $0xb8] sm:$0xf] %vm3618, %v7551
      %v7711 = vld [vmem:[%s7601 + $0xbc] sm:$0x1]
      %v7712 = vsel %vm1633, %v7552, %v7711
      %7713 = vst [vmem:[%s7601 + $0xbc] sm:$0x1] %v7712
      %v7714 = vld [vmem:[#allocation5] sm:$0xf]
      %v7715 = vld [vmem:[#allocation5 + $0x4] sm:$0xf]
      %v7716 = vld [vmem:[#allocation5 + $0x8] sm:$0x1]
      %v7717 = vld [vmem:[#allocation5 + $0xc] sm:$0xf]
      %v7718 = vld [vmem:[#allocation5 + $0x10] sm:$0xf]
      %v7719 = vld [vmem:[#allocation5 + $0x14] sm:$0x1]
      %v7720 = vld [vmem:[#allocation5 + $0x18] sm:$0xf]
      %v7721 = vld [vmem:[#allocation5 + $0x1c] sm:$0xf]
      %v7722 = vld [vmem:[#allocation5 + $0x20] sm:$0x1]
      %v7723 = vld [vmem:[#allocation5 + $0x24] sm:$0xf]
      %v7724 = vld [vmem:[#allocation5 + $0x28] sm:$0xf]
      %v7725 = vld [vmem:[#allocation5 + $0x2c] sm:$0x1]
      %v7726 = vld [vmem:[#allocation5 + $0x30] sm:$0xf]
      %v7727 = vld [vmem:[#allocation5 + $0x34] sm:$0xf]
      %v7728 = vld [vmem:[#allocation5 + $0x38] sm:$0x1]
      %v7729 = vld [vmem:[#allocation5 + $0x3c] sm:$0xf]
      %v7730 = vld [vmem:[#allocation5 + $0x40] sm:$0xf]
      %v7731 = vld [vmem:[#allocation5 + $0x44] sm:$0x1]
      %v7732 = vld [vmem:[#allocation5 + $0x48] sm:$0xf]
      %v7733 = vld [vmem:[#allocation5 + $0x4c] sm:$0xf]
      %v7734 = vld [vmem:[#allocation5 + $0x50] sm:$0x1]
      %v7735 = vld [vmem:[#allocation5 + $0x54] sm:$0xf]
      %v7736 = vld [vmem:[#allocation5 + $0x58] sm:$0xf]
      %v7737 = vld [vmem:[#allocation5 + $0x5c] sm:$0x1]
      %v7738 = vld [vmem:[#allocation5 + $0x60] sm:$0xf]
      %v7739 = vld [vmem:[#allocation5 + $0x64] sm:$0xf]
      %v7740 = vld [vmem:[#allocation5 + $0x68] sm:$0x1]
      %v7741 = vld [vmem:[#allocation5 + $0x6c] sm:$0xf]
      %v7742 = vld [vmem:[#allocation5 + $0x70] sm:$0xf]
      %v7743 = vld [vmem:[#allocation5 + $0x74] sm:$0x1]
      %v7744 = vld [vmem:[#allocation5 + $0x78] sm:$0xf]
      %v7745 = vld [vmem:[#allocation5 + $0x7c] sm:$0xf]
      %v7746 = vld [vmem:[#allocation5 + $0x80] sm:$0x1]
      %v7747 = vld [vmem:[#allocation5 + $0x84] sm:$0xf]
      %v7748 = vld [vmem:[#allocation5 + $0x88] sm:$0xf]
      %v7749 = vld [vmem:[#allocation5 + $0x8c] sm:$0x1]
      %v7750 = vld [vmem:[#allocation5 + $0x90] sm:$0xf]
      %v7751 = vld [vmem:[#allocation5 + $0x94] sm:$0xf]
      %v7752 = vld [vmem:[#allocation5 + $0x98] sm:$0x1]
      %v7753 = vld [vmem:[#allocation5 + $0x9c] sm:$0xf]
      %v7754 = vld [vmem:[#allocation5 + $0xa0] sm:$0xf]
      %v7755 = vld [vmem:[#allocation5 + $0xa4] sm:$0x1]
      %v7756 = vld [vmem:[#allocation5 + $0xa8] sm:$0xf]
      %v7757 = vld [vmem:[#allocation5 + $0xac] sm:$0xf]
      %v7758 = vld [vmem:[#allocation5 + $0xb0] sm:$0x1]
      %v7759 = vld [vmem:[#allocation5 + $0xb4] sm:$0xf]
      %v7760 = vld [vmem:[#allocation5 + $0xb8] sm:$0xf]
      %v7761 = vld [vmem:[#allocation5 + $0xbc] sm:$0x1]
      %v7762 = vld [vmem:[#allocation5 + $0xc0] sm:$0xf]
      %v7763 = vld [vmem:[#allocation5 + $0xc4] sm:$0xf]
      %v7764 = vld [vmem:[#allocation5 + $0xc8] sm:$0x1]
      %v7765 = vld [vmem:[#allocation5 + $0xcc] sm:$0xf]
      %v7766 = vld [vmem:[#allocation5 + $0xd0] sm:$0xf]
      %v7767 = vld [vmem:[#allocation5 + $0xd4] sm:$0x1]
      %v7800 = vunpack.c.l.b16 %v7714
      %v7801 = vunpack.c.l.b16 %v7715
      %v7802 = vunpack.c.l.b16 %v7717
      %v7803 = vunpack.c.l.b16 %v7718
      %v7804 = vunpack.c.l.b16 %v7720
      %v7805 = vunpack.c.l.b16 %v7721
      %v7806 = vunpack.c.l.b16 %v7723
      %v7807 = vunpack.c.l.b16 %v7724
      %v7808 = vunpack.c.l.b16 %v7726
      %v7809 = vunpack.c.l.b16 %v7727
      %v7810 = vunpack.c.l.b16 %v7729
      %v7811 = vunpack.c.l.b16 %v7730
      %v7812 = vunpack.c.l.b16 %v7732
      %v7813 = vunpack.c.l.b16 %v7733
      %v7814 = vunpack.c.l.b16 %v7735
      %v7815 = vunpack.c.l.b16 %v7736
      %v7816 = vunpack.c.l.b16 %v7738
      %v7817 = vunpack.c.l.b16 %v7739
      %v7818 = vunpack.c.l.b16 %v7741
      %v7819 = vunpack.c.l.b16 %v7742
      %v7820 = vunpack.c.l.b16 %v7744
      %v7821 = vunpack.c.l.b16 %v7745
      %v7822 = vunpack.c.l.b16 %v7747
      %v7823 = vunpack.c.l.b16 %v7748
      %v7824 = vunpack.c.l.b16 %v7750
      %v7825 = vunpack.c.l.b16 %v7751
      %v7826 = vunpack.c.l.b16 %v7753
      %v7827 = vunpack.c.l.b16 %v7754
      %v7828 = vunpack.c.l.b16 %v7756
      %v7829 = vunpack.c.l.b16 %v7757
      %v7830 = vunpack.c.l.b16 %v7759
      %v7831 = vunpack.c.l.b16 %v7760
      %v7832 = vpack.c.b16 %v7801, %v7800
      %v7833 = vpack.c.b16 %v7803, %v7802
      %v7834 = vpack.c.b16 %v7805, %v7804
      %v7835 = vpack.c.b16 %v7807, %v7806
      %v7836 = vpack.c.b16 %v7809, %v7808
      %v7837 = vpack.c.b16 %v7811, %v7810
      %v7838 = vpack.c.b16 %v7813, %v7812
      %v7839 = vpack.c.b16 %v7815, %v7814
      %v7840 = vpack.c.b16 %v7817, %v7816
      %v7841 = vpack.c.b16 %v7819, %v7818
      %v7842 = vpack.c.b16 %v7821, %v7820
      %v7843 = vpack.c.b16 %v7823, %v7822
      %v7844 = vpack.c.b16 %v7825, %v7824
      %v7845 = vpack.c.b16 %v7827, %v7826
      %v7846 = vpack.c.b16 %v7829, %v7828
      %v7847 = vpack.c.b16 %v7831, %v7830
      %vm7864 = vcmask 130048
      %7865 = vst.msk [vmem:[#allocation6] sm:$0xff] %vm7864, %v7832
      %7866 = vst.msk [vmem:[#allocation6 + $0x18] sm:$0xff] %vm7864, %v7833
      %7867 = vst.msk [vmem:[#allocation6 + $0x30] sm:$0xff] %vm7864, %v7834
      %7868 = vst.msk [vmem:[#allocation6 + $0x48] sm:$0xff] %vm7864, %v7835
      %7869 = vst.msk [vmem:[#allocation6 + $0x60] sm:$0xff] %vm7864, %v7836
      %7870 = vst.msk [vmem:[#allocation6 + $0x78] sm:$0xff] %vm7864, %v7837
      %7871 = vst.msk [vmem:[#allocation6 + $0x90] sm:$0xff] %vm7864, %v7838
      %7872 = vst.msk [vmem:[#allocation6 + $0xa8] sm:$0xff] %vm7864, %v7839
      %7873 = vst.msk [vmem:[#allocation6 + $0xc0] sm:$0xff] %vm7864, %v7840
      %7874 = vst.msk [vmem:[#allocation6 + $0xd8] sm:$0xff] %vm7864, %v7841
      %7875 = vst.msk [vmem:[#allocation6 + $0xf0] sm:$0xff] %vm7864, %v7842
      %7876 = vst.msk [vmem:[#allocation6 + $0x108] sm:$0xff] %vm7864, %v7843
      %7877 = vst.msk [vmem:[#allocation6 + $0x120] sm:$0xff] %vm7864, %v7844
      %7878 = vst.msk [vmem:[#allocation6 + $0x138] sm:$0xff] %vm7864, %v7845
      %7879 = vst.msk [vmem:[#allocation6 + $0x150] sm:$0xff] %vm7864, %v7846
      %7880 = vst.msk [vmem:[#allocation6 + $0x168] sm:$0xff] %vm7864, %v7847
      %v7882 = vshrl.u32 %v7714, 16
      %v7884 = vrot.slane %v7882, 4
      %v7885 = vshll.u32 %v7714, 16
      %v7887 = vrot.slane %v7885, 5
      %v7888 = vor.u32 %v7884, %v7887
      %v7889 = vrot.slane %v7888, 4
      %v7891 = vshll.u32 %v7715, 16
      %v7893 = vrot.slane %v7891, 5
      %v7894 = vsel %vm575, %v7889, %v7893
      %v7895 = vshrl.u32 %v7715, 16
      %v7897 = vrot.slane %v7895, 4
      %v7898 = vor.u32 %v7897, %v7893
      %v7899 = vrot.slane %v7898, 4
      %v7901 = vshll.u32 %v7716, 16
      %v7903 = vrot.slane %v7901, 5
      %v7904 = vsel %vm575, %v7899, %v7903
      %v7906 = vshrl.u32 %v7717, 16
      %v7908 = vrot.slane %v7906, 4
      %v7909 = vshll.u32 %v7717, 16
      %v7911 = vrot.slane %v7909, 5
      %v7912 = vor.u32 %v7908, %v7911
      %v7913 = vrot.slane %v7912, 4
      %v7915 = vshll.u32 %v7718, 16
      %v7917 = vrot.slane %v7915, 5
      %v7918 = vsel %vm575, %v7913, %v7917
      %v7919 = vshrl.u32 %v7718, 16
      %v7921 = vrot.slane %v7919, 4
      %v7922 = vor.u32 %v7921, %v7917
      %v7923 = vrot.slane %v7922, 4
      %v7925 = vshll.u32 %v7719, 16
      %v7927 = vrot.slane %v7925, 5
      %v7928 = vsel %vm575, %v7923, %v7927
      %v7930 = vshrl.u32 %v7720, 16
      %v7932 = vrot.slane %v7930, 4
      %v7933 = vshll.u32 %v7720, 16
      %v7935 = vrot.slane %v7933, 5
      %v7936 = vor.u32 %v7932, %v7935
      %v7937 = vrot.slane %v7936, 4
      %v7939 = vshll.u32 %v7721, 16
      %v7941 = vrot.slane %v7939, 5
      %v7942 = vsel %vm575, %v7937, %v7941
      %v7943 = vshrl.u32 %v7721, 16
      %v7945 = vrot.slane %v7943, 4
      %v7946 = vor.u32 %v7945, %v7941
      %v7947 = vrot.slane %v7946, 4
      %v7949 = vshll.u32 %v7722, 16
      %v7951 = vrot.slane %v7949, 5
      %v7952 = vsel %vm575, %v7947, %v7951
      %v7954 = vshrl.u32 %v7723, 16
      %v7956 = vrot.slane %v7954, 4
      %v7957 = vshll.u32 %v7723, 16
      %v7959 = vrot.slane %v7957, 5
      %v7960 = vor.u32 %v7956, %v7959
      %v7961 = vrot.slane %v7960, 4
      %v7963 = vshll.u32 %v7724, 16
      %v7965 = vrot.slane %v7963, 5
      %v7966 = vsel %vm575, %v7961, %v7965
      %v7967 = vshrl.u32 %v7724, 16
      %v7969 = vrot.slane %v7967, 4
      %v7970 = vor.u32 %v7969, %v7965
      %v7971 = vrot.slane %v7970, 4
      %v7973 = vshll.u32 %v7725, 16
      %v7975 = vrot.slane %v7973, 5
      %v7976 = vsel %vm575, %v7971, %v7975
      %v7978 = vshrl.u32 %v7726, 16
      %v7980 = vrot.slane %v7978, 4
      %v7981 = vshll.u32 %v7726, 16
      %v7983 = vrot.slane %v7981, 5
      %v7984 = vor.u32 %v7980, %v7983
      %v7985 = vrot.slane %v7984, 4
      %v7987 = vshll.u32 %v7727, 16
      %v7989 = vrot.slane %v7987, 5
      %v7990 = vsel %vm575, %v7985, %v7989
      %v7991 = vshrl.u32 %v7727, 16
      %v7993 = vrot.slane %v7991, 4
      %v7994 = vor.u32 %v7993, %v7989
      %v7995 = vrot.slane %v7994, 4
      %v7997 = vshll.u32 %v7728, 16
      %v7999 = vrot.slane %v7997, 5
      %v8000 = vsel %vm575, %v7995, %v7999
      %v8002 = vshrl.u32 %v7729, 16
      %v8004 = vrot.slane %v8002, 4
      %v8005 = vshll.u32 %v7729, 16
      %v8007 = vrot.slane %v8005, 5
      %v8008 = vor.u32 %v8004, %v8007
      %v8009 = vrot.slane %v8008, 4
      %v8011 = vshll.u32 %v7730, 16
      %v8013 = vrot.slane %v8011, 5
      %v8014 = vsel %vm575, %v8009, %v8013
      %v8015 = vshrl.u32 %v7730, 16
      %v8017 = vrot.slane %v8015, 4
      %v8018 = vor.u32 %v8017, %v8013
      %v8019 = vrot.slane %v8018, 4
      %v8021 = vshll.u32 %v7731, 16
      %v8023 = vrot.slane %v8021, 5
      %v8024 = vsel %vm575, %v8019, %v8023
      %v8026 = vshrl.u32 %v7732, 16
      %v8028 = vrot.slane %v8026, 4
      %v8029 = vshll.u32 %v7732, 16
      %v8031 = vrot.slane %v8029, 5
      %v8032 = vor.u32 %v8028, %v8031
      %v8033 = vrot.slane %v8032, 4
      %v8035 = vshll.u32 %v7733, 16
      %v8037 = vrot.slane %v8035, 5
      %v8038 = vsel %vm575, %v8033, %v8037
      %v8039 = vshrl.u32 %v7733, 16
      %v8041 = vrot.slane %v8039, 4
      %v8042 = vor.u32 %v8041, %v8037
      %v8043 = vrot.slane %v8042, 4
      %v8045 = vshll.u32 %v7734, 16
      %v8047 = vrot.slane %v8045, 5
      %v8048 = vsel %vm575, %v8043, %v8047
      %v8050 = vshrl.u32 %v7735, 16
      %v8052 = vrot.slane %v8050, 4
      %v8053 = vshll.u32 %v7735, 16
      %v8055 = vrot.slane %v8053, 5
      %v8056 = vor.u32 %v8052, %v8055
      %v8057 = vrot.slane %v8056, 4
      %v8059 = vshll.u32 %v7736, 16
      %v8061 = vrot.slane %v8059, 5
      %v8062 = vsel %vm575, %v8057, %v8061
      %v8063 = vshrl.u32 %v7736, 16
      %v8065 = vrot.slane %v8063, 4
      %v8066 = vor.u32 %v8065, %v8061
      %v8067 = vrot.slane %v8066, 4
      %v8069 = vshll.u32 %v7737, 16
      %v8071 = vrot.slane %v8069, 5
      %v8072 = vsel %vm575, %v8067, %v8071
      %v8074 = vshrl.u32 %v7738, 16
      %v8076 = vrot.slane %v8074, 4
      %v8077 = vshll.u32 %v7738, 16
      %v8079 = vrot.slane %v8077, 5
      %v8080 = vor.u32 %v8076, %v8079
      %v8081 = vrot.slane %v8080, 4
      %v8083 = vshll.u32 %v7739, 16
      %v8085 = vrot.slane %v8083, 5
      %v8086 = vsel %vm575, %v8081, %v8085
      %v8087 = vshrl.u32 %v7739, 16
      %v8089 = vrot.slane %v8087, 4
      %v8090 = vor.u32 %v8089, %v8085
      %v8091 = vrot.slane %v8090, 4
      %v8093 = vshll.u32 %v7740, 16
      %v8095 = vrot.slane %v8093, 5
      %v8096 = vsel %vm575, %v8091, %v8095
      %v8098 = vshrl.u32 %v7741, 16
      %v8100 = vrot.slane %v8098, 4
      %v8101 = vshll.u32 %v7741, 16
      %v8103 = vrot.slane %v8101, 5
      %v8104 = vor.u32 %v8100, %v8103
      %v8105 = vrot.slane %v8104, 4
      %v8107 = vshll.u32 %v7742, 16
      %v8109 = vrot.slane %v8107, 5
      %v8110 = vsel %vm575, %v8105, %v8109
      %v8111 = vshrl.u32 %v7742, 16
      %v8113 = vrot.slane %v8111, 4
      %v8114 = vor.u32 %v8113, %v8109
      %v8115 = vrot.slane %v8114, 4
      %v8117 = vshll.u32 %v7743, 16
      %v8119 = vrot.slane %v8117, 5
      %v8120 = vsel %vm575, %v8115, %v8119
      %v8122 = vshrl.u32 %v7744, 16
      %v8124 = vrot.slane %v8122, 4
      %v8125 = vshll.u32 %v7744, 16
      %v8127 = vrot.slane %v8125, 5
      %v8128 = vor.u32 %v8124, %v8127
      %v8129 = vrot.slane %v8128, 4
      %v8131 = vshll.u32 %v7745, 16
      %v8133 = vrot.slane %v8131, 5
      %v8134 = vsel %vm575, %v8129, %v8133
      %v8135 = vshrl.u32 %v7745, 16
      %v8137 = vrot.slane %v8135, 4
      %v8138 = vor.u32 %v8137, %v8133
      %v8139 = vrot.slane %v8138, 4
      %v8141 = vshll.u32 %v7746, 16
      %v8143 = vrot.slane %v8141, 5
      %v8144 = vsel %vm575, %v8139, %v8143
      %v8146 = vshrl.u32 %v7747, 16
      %v8148 = vrot.slane %v8146, 4
      %v8149 = vshll.u32 %v7747, 16
      %v8151 = vrot.slane %v8149, 5
      %v8152 = vor.u32 %v8148, %v8151
      %v8153 = vrot.slane %v8152, 4
      %v8155 = vshll.u32 %v7748, 16
      %v8157 = vrot.slane %v8155, 5
      %v8158 = vsel %vm575, %v8153, %v8157
      %v8159 = vshrl.u32 %v7748, 16
      %v8161 = vrot.slane %v8159, 4
      %v8162 = vor.u32 %v8161, %v8157
      %v8163 = vrot.slane %v8162, 4
      %v8165 = vshll.u32 %v7749, 16
      %v8167 = vrot.slane %v8165, 5
      %v8168 = vsel %vm575, %v8163, %v8167
      %v8170 = vshrl.u32 %v7750, 16
      %v8172 = vrot.slane %v8170, 4
      %v8173 = vshll.u32 %v7750, 16
      %v8175 = vrot.slane %v8173, 5
      %v8176 = vor.u32 %v8172, %v8175
      %v8177 = vrot.slane %v8176, 4
      %v8179 = vshll.u32 %v7751, 16
      %v8181 = vrot.slane %v8179, 5
      %v8182 = vsel %vm575, %v8177, %v8181
      %v8183 = vshrl.u32 %v7751, 16
      %v8185 = vrot.slane %v8183, 4
      %v8186 = vor.u32 %v8185, %v8181
      %v8187 = vrot.slane %v8186, 4
      %v8189 = vshll.u32 %v7752, 16
      %v8191 = vrot.slane %v8189, 5
      %v8192 = vsel %vm575, %v8187, %v8191
      %v8194 = vshrl.u32 %v7753, 16
      %v8196 = vrot.slane %v8194, 4
      %v8197 = vshll.u32 %v7753, 16
      %v8199 = vrot.slane %v8197, 5
      %v8200 = vor.u32 %v8196, %v8199
      %v8201 = vrot.slane %v8200, 4
      %v8203 = vshll.u32 %v7754, 16
      %v8205 = vrot.slane %v8203, 5
      %v8206 = vsel %vm575, %v8201, %v8205
      %v8207 = vshrl.u32 %v7754, 16
      %v8209 = vrot.slane %v8207, 4
      %v8210 = vor.u32 %v8209, %v8205
      %v8211 = vrot.slane %v8210, 4
      %v8213 = vshll.u32 %v7755, 16
      %v8215 = vrot.slane %v8213, 5
      %v8216 = vsel %vm575, %v8211, %v8215
      %v8218 = vshrl.u32 %v7756, 16
      %v8220 = vrot.slane %v8218, 4
      %v8221 = vshll.u32 %v7756, 16
      %v8223 = vrot.slane %v8221, 5
      %v8224 = vor.u32 %v8220, %v8223
      %v8225 = vrot.slane %v8224, 4
      %v8227 = vshll.u32 %v7757, 16
      %v8229 = vrot.slane %v8227, 5
      %v8230 = vsel %vm575, %v8225, %v8229
      %v8231 = vshrl.u32 %v7757, 16
      %v8233 = vrot.slane %v8231, 4
      %v8234 = vor.u32 %v8233, %v8229
      %v8235 = vrot.slane %v8234, 4
      %v8237 = vshll.u32 %v7758, 16
      %v8239 = vrot.slane %v8237, 5
      %v8240 = vsel %vm575, %v8235, %v8239
      %v8242 = vshrl.u32 %v7759, 16
      %v8244 = vrot.slane %v8242, 4
      %v8245 = vshll.u32 %v7759, 16
      %v8247 = vrot.slane %v8245, 5
      %v8248 = vor.u32 %v8244, %v8247
      %v8249 = vrot.slane %v8248, 4
      %v8251 = vshll.u32 %v7760, 16
      %v8253 = vrot.slane %v8251, 5
      %v8254 = vsel %vm575, %v8249, %v8253
      %v8255 = vshrl.u32 %v7760, 16
      %v8257 = vrot.slane %v8255, 4
      %v8258 = vor.u32 %v8257, %v8253
      %v8259 = vrot.slane %v8258, 4
      %v8261 = vshll.u32 %v7761, 16
      %v8263 = vrot.slane %v8261, 5
      %v8264 = vsel %vm575, %v8259, %v8263
      %v8265 = vunpack.c.l.b16 %v7894
      %v8266 = vunpack.c.l.b16 %v7904
      %v8267 = vunpack.c.l.b16 %v7918
      %v8268 = vunpack.c.l.b16 %v7928
      %v8269 = vunpack.c.l.b16 %v7942
      %v8270 = vunpack.c.l.b16 %v7952
      %v8271 = vunpack.c.l.b16 %v7966
      %v8272 = vunpack.c.l.b16 %v7976
      %v8273 = vunpack.c.l.b16 %v7990
      %v8274 = vunpack.c.l.b16 %v8000
      %v8275 = vunpack.c.l.b16 %v8014
      %v8276 = vunpack.c.l.b16 %v8024
      %v8277 = vunpack.c.l.b16 %v8038
      %v8278 = vunpack.c.l.b16 %v8048
      %v8279 = vunpack.c.l.b16 %v8062
      %v8280 = vunpack.c.l.b16 %v8072
      %v8281 = vunpack.c.l.b16 %v8086
      %v8282 = vunpack.c.l.b16 %v8096
      %v8283 = vunpack.c.l.b16 %v8110
      %v8284 = vunpack.c.l.b16 %v8120
      %v8285 = vunpack.c.l.b16 %v8134
      %v8286 = vunpack.c.l.b16 %v8144
      %v8287 = vunpack.c.l.b16 %v8158
      %v8288 = vunpack.c.l.b16 %v8168
      %v8289 = vunpack.c.l.b16 %v8182
      %v8290 = vunpack.c.l.b16 %v8192
      %v8291 = vunpack.c.l.b16 %v8206
      %v8292 = vunpack.c.l.b16 %v8216
      %v8293 = vunpack.c.l.b16 %v8230
      %v8294 = vunpack.c.l.b16 %v8240
      %v8295 = vunpack.c.l.b16 %v8254
      %v8296 = vunpack.c.l.b16 %v8264
      %v8297 = vpack.c.b16 %v8266, %v8265
      %v8298 = vpack.c.b16 %v8268, %v8267
      %v8299 = vpack.c.b16 %v8270, %v8269
      %v8300 = vpack.c.b16 %v8272, %v8271
      %v8301 = vpack.c.b16 %v8274, %v8273
      %v8302 = vpack.c.b16 %v8276, %v8275
      %v8303 = vpack.c.b16 %v8278, %v8277
      %v8304 = vpack.c.b16 %v8280, %v8279
      %v8305 = vpack.c.b16 %v8282, %v8281
      %v8306 = vpack.c.b16 %v8284, %v8283
      %v8307 = vpack.c.b16 %v8286, %v8285
      %v8308 = vpack.c.b16 %v8288, %v8287
      %v8309 = vpack.c.b16 %v8290, %v8289
      %v8310 = vpack.c.b16 %v8292, %v8291
      %v8311 = vpack.c.b16 %v8294, %v8293
      %v8312 = vpack.c.b16 %v8296, %v8295
      %8313 = vrot.lane.b32.xlu0 %v8297, 16
      %v8314 = vpop.permute.xlu0 %8313
      %8315 = vrot.lane.b32.xlu0 %v8298, 16
      %v8316 = vpop.permute.xlu0 %8315
      %8317 = vrot.lane.b32.xlu0 %v8299, 16
      %v8318 = vpop.permute.xlu0 %8317
      %8319 = vrot.lane.b32.xlu0 %v8300, 16
      %v8320 = vpop.permute.xlu0 %8319
      %8321 = vrot.lane.b32.xlu0 %v8301, 16
      %v8322 = vpop.permute.xlu0 %8321
      %8323 = vrot.lane.b32.xlu0 %v8302, 16
      %v8324 = vpop.permute.xlu0 %8323
      %8325 = vrot.lane.b32.xlu0 %v8303, 16
      %v8326 = vpop.permute.xlu0 %8325
      %8327 = vrot.lane.b32.xlu0 %v8304, 16
      %v8328 = vpop.permute.xlu0 %8327
      %8329 = vrot.lane.b32.xlu0 %v8305, 16
      %v8330 = vpop.permute.xlu0 %8329
      %8331 = vrot.lane.b32.xlu0 %v8306, 16
      %v8332 = vpop.permute.xlu0 %8331
      %8333 = vrot.lane.b32.xlu0 %v8307, 16
      %v8334 = vpop.permute.xlu0 %8333
      %8335 = vrot.lane.b32.xlu0 %v8308, 16
      %v8336 = vpop.permute.xlu0 %8335
      %8337 = vrot.lane.b32.xlu0 %v8309, 16
      %v8338 = vpop.permute.xlu0 %8337
      %8339 = vrot.lane.b32.xlu0 %v8310, 16
      %v8340 = vpop.permute.xlu0 %8339
      %8341 = vrot.lane.b32.xlu0 %v8311, 16
      %v8342 = vpop.permute.xlu0 %8341
      %8343 = vrot.lane.b32.xlu0 %v8312, 16
      %v8344 = vpop.permute.xlu0 %8343
      %vm8361 = vcmask 261248
      %8362 = vst.msk [vmem:[#allocation6] sm:$0xff] %vm8361, %v8314
      %8363 = vst.msk [vmem:[#allocation6 + $0x18] sm:$0xff] %vm8361, %v8316
      %8364 = vst.msk [vmem:[#allocation6 + $0x30] sm:$0xff] %vm8361, %v8318
      %8365 = vst.msk [vmem:[#allocation6 + $0x48] sm:$0xff] %vm8361, %v8320
      %8366 = vst.msk [vmem:[#allocation6 + $0x60] sm:$0xff] %vm8361, %v8322
      %8367 = vst.msk [vmem:[#allocation6 + $0x78] sm:$0xff] %vm8361, %v8324
      %8368 = vst.msk [vmem:[#allocation6 + $0x90] sm:$0xff] %vm8361, %v8326
      %8369 = vst.msk [vmem:[#allocation6 + $0xa8] sm:$0xff] %vm8361, %v8328
      %8370 = vst.msk [vmem:[#allocation6 + $0xc0] sm:$0xff] %vm8361, %v8330
      %8371 = vst.msk [vmem:[#allocation6 + $0xd8] sm:$0xff] %vm8361, %v8332
      %8372 = vst.msk [vmem:[#allocation6 + $0xf0] sm:$0xff] %vm8361, %v8334
      %8373 = vst.msk [vmem:[#allocation6 + $0x108] sm:$0xff] %vm8361, %v8336
      %8374 = vst.msk [vmem:[#allocation6 + $0x120] sm:$0xff] %vm8361, %v8338
      %8375 = vst.msk [vmem:[#allocation6 + $0x138] sm:$0xff] %vm8361, %v8340
      %8376 = vst.msk [vmem:[#allocation6 + $0x150] sm:$0xff] %vm8361, %v8342
      %8377 = vst.msk [vmem:[#allocation6 + $0x168] sm:$0xff] %vm8361, %v8344
      %v8394 = vrot.slane %v7714, 5
      %v8395 = vrot.slane %v8394, 4
      %v8396 = vrot.slane %v7715, 5
      %v8397 = vsel %vm727, %v8395, %v8396
      %v8398 = vrot.slane %v8396, 4
      %v8399 = vrot.slane %v7716, 5
      %v8400 = vsel %vm727, %v8398, %v8399
      %v8401 = vrot.slane %v7717, 5
      %v8402 = vrot.slane %v8401, 4
      %v8403 = vrot.slane %v7718, 5
      %v8404 = vsel %vm727, %v8402, %v8403
      %v8405 = vrot.slane %v8403, 4
      %v8406 = vrot.slane %v7719, 5
      %v8407 = vsel %vm727, %v8405, %v8406
      %v8408 = vrot.slane %v7720, 5
      %v8409 = vrot.slane %v8408, 4
      %v8410 = vrot.slane %v7721, 5
      %v8411 = vsel %vm727, %v8409, %v8410
      %v8412 = vrot.slane %v8410, 4
      %v8413 = vrot.slane %v7722, 5
      %v8414 = vsel %vm727, %v8412, %v8413
      %v8415 = vrot.slane %v7723, 5
      %v8416 = vrot.slane %v8415, 4
      %v8417 = vrot.slane %v7724, 5
      %v8418 = vsel %vm727, %v8416, %v8417
      %v8419 = vrot.slane %v8417, 4
      %v8420 = vrot.slane %v7725, 5
      %v8421 = vsel %vm727, %v8419, %v8420
      %v8422 = vrot.slane %v7726, 5
      %v8423 = vrot.slane %v8422, 4
      %v8424 = vrot.slane %v7727, 5
      %v8425 = vsel %vm727, %v8423, %v8424
      %v8426 = vrot.slane %v8424, 4
      %v8427 = vrot.slane %v7728, 5
      %v8428 = vsel %vm727, %v8426, %v8427
      %v8429 = vrot.slane %v7729, 5
      %v8430 = vrot.slane %v8429, 4
      %v8431 = vrot.slane %v7730, 5
      %v8432 = vsel %vm727, %v8430, %v8431
      %v8433 = vrot.slane %v8431, 4
      %v8434 = vrot.slane %v7731, 5
      %v8435 = vsel %vm727, %v8433, %v8434
      %v8436 = vrot.slane %v7732, 5
      %v8437 = vrot.slane %v8436, 4
      %v8438 = vrot.slane %v7733, 5
      %v8439 = vsel %vm727, %v8437, %v8438
      %v8440 = vrot.slane %v8438, 4
      %v8441 = vrot.slane %v7734, 5
      %v8442 = vsel %vm727, %v8440, %v8441
      %v8443 = vrot.slane %v7735, 5
      %v8444 = vrot.slane %v8443, 4
      %v8445 = vrot.slane %v7736, 5
      %v8446 = vsel %vm727, %v8444, %v8445
      %v8447 = vrot.slane %v8445, 4
      %v8448 = vrot.slane %v7737, 5
      %v8449 = vsel %vm727, %v8447, %v8448
      %v8450 = vrot.slane %v7738, 5
      %v8451 = vrot.slane %v8450, 4
      %v8452 = vrot.slane %v7739, 5
      %v8453 = vsel %vm727, %v8451, %v8452
      %v8454 = vrot.slane %v8452, 4
      %v8455 = vrot.slane %v7740, 5
      %v8456 = vsel %vm727, %v8454, %v8455
      %v8457 = vrot.slane %v7741, 5
      %v8458 = vrot.slane %v8457, 4
      %v8459 = vrot.slane %v7742, 5
      %v8460 = vsel %vm727, %v8458, %v8459
      %v8461 = vrot.slane %v8459, 4
      %v8462 = vrot.slane %v7743, 5
      %v8463 = vsel %vm727, %v8461, %v8462
      %v8464 = vrot.slane %v7744, 5
      %v8465 = vrot.slane %v8464, 4
      %v8466 = vrot.slane %v7745, 5
      %v8467 = vsel %vm727, %v8465, %v8466
      %v8468 = vrot.slane %v8466, 4
      %v8469 = vrot.slane %v7746, 5
      %v8470 = vsel %vm727, %v8468, %v8469
      %v8471 = vrot.slane %v7747, 5
      %v8472 = vrot.slane %v8471, 4
      %v8473 = vrot.slane %v7748, 5
      %v8474 = vsel %vm727, %v8472, %v8473
      %v8475 = vrot.slane %v8473, 4
      %v8476 = vrot.slane %v7749, 5
      %v8477 = vsel %vm727, %v8475, %v8476
      %v8478 = vrot.slane %v7750, 5
      %v8479 = vrot.slane %v8478, 4
      %v8480 = vrot.slane %v7751, 5
      %v8481 = vsel %vm727, %v8479, %v8480
      %v8482 = vrot.slane %v8480, 4
      %v8483 = vrot.slane %v7752, 5
      %v8484 = vsel %vm727, %v8482, %v8483
      %v8485 = vrot.slane %v7753, 5
      %v8486 = vrot.slane %v8485, 4
      %v8487 = vrot.slane %v7754, 5
      %v8488 = vsel %vm727, %v8486, %v8487
      %v8489 = vrot.slane %v8487, 4
      %v8490 = vrot.slane %v7755, 5
      %v8491 = vsel %vm727, %v8489, %v8490
      %v8492 = vrot.slane %v7756, 5
      %v8493 = vrot.slane %v8492, 4
      %v8494 = vrot.slane %v7757, 5
      %v8495 = vsel %vm727, %v8493, %v8494
      %v8496 = vrot.slane %v8494, 4
      %v8497 = vrot.slane %v7758, 5
      %v8498 = vsel %vm727, %v8496, %v8497
      %v8499 = vrot.slane %v7759, 5
      %v8500 = vrot.slane %v8499, 4
      %v8501 = vrot.slane %v7760, 5
      %v8502 = vsel %vm727, %v8500, %v8501
      %v8503 = vrot.slane %v8501, 4
      %v8504 = vrot.slane %v7761, 5
      %v8505 = vsel %vm727, %v8503, %v8504
      %v8506 = vunpack.c.l.b16 %v8397
      %v8507 = vunpack.c.l.b16 %v8400
      %v8508 = vunpack.c.l.b16 %v8404
      %v8509 = vunpack.c.l.b16 %v8407
      %v8510 = vunpack.c.l.b16 %v8411
      %v8511 = vunpack.c.l.b16 %v8414
      %v8512 = vunpack.c.l.b16 %v8418
      %v8513 = vunpack.c.l.b16 %v8421
      %v8514 = vunpack.c.l.b16 %v8425
      %v8515 = vunpack.c.l.b16 %v8428
      %v8516 = vunpack.c.l.b16 %v8432
      %v8517 = vunpack.c.l.b16 %v8435
      %v8518 = vunpack.c.l.b16 %v8439
      %v8519 = vunpack.c.l.b16 %v8442
      %v8520 = vunpack.c.l.b16 %v8446
      %v8521 = vunpack.c.l.b16 %v8449
      %v8522 = vunpack.c.l.b16 %v8453
      %v8523 = vunpack.c.l.b16 %v8456
      %v8524 = vunpack.c.l.b16 %v8460
      %v8525 = vunpack.c.l.b16 %v8463
      %v8526 = vunpack.c.l.b16 %v8467
      %v8527 = vunpack.c.l.b16 %v8470
      %v8528 = vunpack.c.l.b16 %v8474
      %v8529 = vunpack.c.l.b16 %v8477
      %v8530 = vunpack.c.l.b16 %v8481
      %v8531 = vunpack.c.l.b16 %v8484
      %v8532 = vunpack.c.l.b16 %v8488
      %v8533 = vunpack.c.l.b16 %v8491
      %v8534 = vunpack.c.l.b16 %v8495
      %v8535 = vunpack.c.l.b16 %v8498
      %v8536 = vunpack.c.l.b16 %v8502
      %v8537 = vunpack.c.l.b16 %v8505
      %v8538 = vpack.c.b16 %v8507, %v8506
      %v8539 = vpack.c.b16 %v8509, %v8508
      %v8540 = vpack.c.b16 %v8511, %v8510
      %v8541 = vpack.c.b16 %v8513, %v8512
      %v8542 = vpack.c.b16 %v8515, %v8514
      %v8543 = vpack.c.b16 %v8517, %v8516
      %v8544 = vpack.c.b16 %v8519, %v8518
      %v8545 = vpack.c.b16 %v8521, %v8520
      %v8546 = vpack.c.b16 %v8523, %v8522
      %v8547 = vpack.c.b16 %v8525, %v8524
      %v8548 = vpack.c.b16 %v8527, %v8526
      %v8549 = vpack.c.b16 %v8529, %v8528
      %v8550 = vpack.c.b16 %v8531, %v8530
      %v8551 = vpack.c.b16 %v8533, %v8532
      %v8552 = vpack.c.b16 %v8535, %v8534
      %v8553 = vpack.c.b16 %v8537, %v8536
      %8554 = vrot.lane.b32.xlu0 %v8538, 32
      %v8555 = vpop.permute.xlu0 %8554
      %8556 = vrot.lane.b32.xlu0 %v8539, 32
      %v8557 = vpop.permute.xlu0 %8556
      %8558 = vrot.lane.b32.xlu0 %v8540, 32
      %v8559 = vpop.permute.xlu0 %8558
      %8560 = vrot.lane.b32.xlu0 %v8541, 32
      %v8561 = vpop.permute.xlu0 %8560
      %8562 = vrot.lane.b32.xlu0 %v8542, 32
      %v8563 = vpop.permute.xlu0 %8562
      %8564 = vrot.lane.b32.xlu0 %v8543, 32
      %v8565 = vpop.permute.xlu0 %8564
      %8566 = vrot.lane.b32.xlu0 %v8544, 32
      %v8567 = vpop.permute.xlu0 %8566
      %8568 = vrot.lane.b32.xlu0 %v8545, 32
      %v8569 = vpop.permute.xlu0 %8568
      %8570 = vrot.lane.b32.xlu0 %v8546, 32
      %v8571 = vpop.permute.xlu0 %8570
      %8572 = vrot.lane.b32.xlu0 %v8547, 32
      %v8573 = vpop.permute.xlu0 %8572
      %8574 = vrot.lane.b32.xlu0 %v8548, 32
      %v8575 = vpop.permute.xlu0 %8574
      %8576 = vrot.lane.b32.xlu0 %v8549, 32
      %v8577 = vpop.permute.xlu0 %8576
      %8578 = vrot.lane.b32.xlu0 %v8550, 32
      %v8579 = vpop.permute.xlu0 %8578
      %8580 = vrot.lane.b32.xlu0 %v8551, 32
      %v8581 = vpop.permute.xlu0 %8580
      %8582 = vrot.lane.b32.xlu0 %v8552, 32
      %v8583 = vpop.permute.xlu0 %8582
      %8584 = vrot.lane.b32.xlu0 %v8553, 32
      %v8585 = vpop.permute.xlu0 %8584
      %vm8602 = vcmask 392448
      %8603 = vst.msk [vmem:[#allocation6] sm:$0xff] %vm8602, %v8555
      %8604 = vst.msk [vmem:[#allocation6 + $0x18] sm:$0xff] %vm8602, %v8557
      %8605 = vst.msk [vmem:[#allocation6 + $0x30] sm:$0xff] %vm8602, %v8559
      %8606 = vst.msk [vmem:[#allocation6 + $0x48] sm:$0xff] %vm8602, %v8561
      %8607 = vst.msk [vmem:[#allocation6 + $0x60] sm:$0xff] %vm8602, %v8563
      %8608 = vst.msk [vmem:[#allocation6 + $0x78] sm:$0xff] %vm8602, %v8565
      %8609 = vst.msk [vmem:[#allocation6 + $0x90] sm:$0xff] %vm8602, %v8567
      %8610 = vst.msk [vmem:[#allocation6 + $0xa8] sm:$0xff] %vm8602, %v8569
      %8611 = vst.msk [vmem:[#allocation6 + $0xc0] sm:$0xff] %vm8602, %v8571
      %8612 = vst.msk [vmem:[#allocation6 + $0xd8] sm:$0xff] %vm8602, %v8573
      %8613 = vst.msk [vmem:[#allocation6 + $0xf0] sm:$0xff] %vm8602, %v8575
      %8614 = vst.msk [vmem:[#allocation6 + $0x108] sm:$0xff] %vm8602, %v8577
      %8615 = vst.msk [vmem:[#allocation6 + $0x120] sm:$0xff] %vm8602, %v8579
      %8616 = vst.msk [vmem:[#allocation6 + $0x138] sm:$0xff] %vm8602, %v8581
      %8617 = vst.msk [vmem:[#allocation6 + $0x150] sm:$0xff] %vm8602, %v8583
      %8618 = vst.msk [vmem:[#allocation6 + $0x168] sm:$0xff] %vm8602, %v8585
      %v8621 = vunpack.c.l.b16 %v7762
      %v8622 = vunpack.c.l.b16 %v7763
      %v8623 = vpack.c.b16 %v8622, %v8621
      %8624 = vrot.lane.b32.xlu0 %v7833, 48
      %v8625 = vpop.permute.xlu0 %8624
      %8626 = vrot.lane.b32.xlu0 %v7834, 48
      %v8627 = vpop.permute.xlu0 %8626
      %8628 = vrot.lane.b32.xlu0 %v7835, 48
      %v8629 = vpop.permute.xlu0 %8628
      %8630 = vrot.lane.b32.xlu0 %v7836, 48
      %v8631 = vpop.permute.xlu0 %8630
      %8632 = vrot.lane.b32.xlu0 %v7837, 48
      %v8633 = vpop.permute.xlu0 %8632
      %8634 = vrot.lane.b32.xlu0 %v7838, 48
      %v8635 = vpop.permute.xlu0 %8634
      %8636 = vrot.lane.b32.xlu0 %v7839, 48
      %v8637 = vpop.permute.xlu0 %8636
      %8638 = vrot.lane.b32.xlu0 %v7840, 48
      %v8639 = vpop.permute.xlu0 %8638
      %8640 = vrot.lane.b32.xlu0 %v7841, 48
      %v8641 = vpop.permute.xlu0 %8640
      %8642 = vrot.lane.b32.xlu0 %v7842, 48
      %v8643 = vpop.permute.xlu0 %8642
      %8644 = vrot.lane.b32.xlu0 %v7843, 48
      %v8645 = vpop.permute.xlu0 %8644
      %8646 = vrot.lane.b32.xlu0 %v7844, 48
      %v8647 = vpop.permute.xlu0 %8646
      %8648 = vrot.lane.b32.xlu0 %v7845, 48
      %v8649 = vpop.permute.xlu0 %8648
      %8650 = vrot.lane.b32.xlu0 %v7846, 48
      %v8651 = vpop.permute.xlu0 %8650
      %8652 = vrot.lane.b32.xlu0 %v7847, 48
      %v8653 = vpop.permute.xlu0 %8652
      %8654 = vrot.lane.b32.xlu0 %v8623, 48
      %v8655 = vpop.permute.xlu0 %8654
      %vm8672 = vcmask 523648
      %8673 = vst.msk [vmem:[#allocation6] sm:$0xff] %vm8672, %v8625
      %8674 = vst.msk [vmem:[#allocation6 + $0x18] sm:$0xff] %vm8672, %v8627
      %8675 = vst.msk [vmem:[#allocation6 + $0x30] sm:$0xff] %vm8672, %v8629
      %8676 = vst.msk [vmem:[#allocation6 + $0x48] sm:$0xff] %vm8672, %v8631
      %8677 = vst.msk [vmem:[#allocation6 + $0x60] sm:$0xff] %vm8672, %v8633
      %8678 = vst.msk [vmem:[#allocation6 + $0x78] sm:$0xff] %vm8672, %v8635
      %8679 = vst.msk [vmem:[#allocation6 + $0x90] sm:$0xff] %vm8672, %v8637
      %8680 = vst.msk [vmem:[#allocation6 + $0xa8] sm:$0xff] %vm8672, %v8639
      %8681 = vst.msk [vmem:[#allocation6 + $0xc0] sm:$0xff] %vm8672, %v8641
      %8682 = vst.msk [vmem:[#allocation6 + $0xd8] sm:$0xff] %vm8672, %v8643
      %8683 = vst.msk [vmem:[#allocation6 + $0xf0] sm:$0xff] %vm8672, %v8645
      %8684 = vst.msk [vmem:[#allocation6 + $0x108] sm:$0xff] %vm8672, %v8647
      %8685 = vst.msk [vmem:[#allocation6 + $0x120] sm:$0xff] %vm8672, %v8649
      %8686 = vst.msk [vmem:[#allocation6 + $0x138] sm:$0xff] %vm8672, %v8651
      %8687 = vst.msk [vmem:[#allocation6 + $0x150] sm:$0xff] %vm8672, %v8653
      %8688 = vst.msk [vmem:[#allocation6 + $0x168] sm:$0xff] %vm8672, %v8655
      %v8690 = vshrl.u32 %v7762, 16
      %v8692 = vrot.slane %v8690, 4
      %v8693 = vshll.u32 %v7762, 16
      %v8695 = vrot.slane %v8693, 5
      %v8696 = vor.u32 %v8692, %v8695
      %v8697 = vrot.slane %v8696, 4
      %v8699 = vshll.u32 %v7763, 16
      %v8701 = vrot.slane %v8699, 5
      %v8702 = vsel %vm575, %v8697, %v8701
      %v8703 = vshrl.u32 %v7763, 16
      %v8705 = vrot.slane %v8703, 4
      %v8706 = vor.u32 %v8705, %v8701
      %v8707 = vrot.slane %v8706, 4
      %v8709 = vshll.u32 %v7764, 16
      %v8711 = vrot.slane %v8709, 5
      %v8712 = vsel %vm575, %v8707, %v8711
      %v8713 = vunpack.c.l.b16 %v8702
      %v8714 = vunpack.c.l.b16 %v8712
      %v8715 = vpack.c.b16 %v8714, %v8713
      %8716 = vrot.lane.b32.xlu0 %v8298, 64
      %v8717 = vpop.permute.xlu0 %8716
      %8718 = vrot.lane.b32.xlu0 %v8299, 64
      %v8719 = vpop.permute.xlu0 %8718
      %8720 = vrot.lane.b32.xlu0 %v8300, 64
      %v8721 = vpop.permute.xlu0 %8720
      %8722 = vrot.lane.b32.xlu0 %v8301, 64
      %v8723 = vpop.permute.xlu0 %8722
      %8724 = vrot.lane.b32.xlu0 %v8302, 64
      %v8725 = vpop.permute.xlu0 %8724
      %8726 = vrot.lane.b32.xlu0 %v8303, 64
      %v8727 = vpop.permute.xlu0 %8726
      %8728 = vrot.lane.b32.xlu0 %v8304, 64
      %v8729 = vpop.permute.xlu0 %8728
      %8730 = vrot.lane.b32.xlu0 %v8305, 64
      %v8731 = vpop.permute.xlu0 %8730
      %8732 = vrot.lane.b32.xlu0 %v8306, 64
      %v8733 = vpop.permute.xlu0 %8732
      %8734 = vrot.lane.b32.xlu0 %v8307, 64
      %v8735 = vpop.permute.xlu0 %8734
      %8736 = vrot.lane.b32.xlu0 %v8308, 64
      %v8737 = vpop.permute.xlu0 %8736
      %8738 = vrot.lane.b32.xlu0 %v8309, 64
      %v8739 = vpop.permute.xlu0 %8738
      %8740 = vrot.lane.b32.xlu0 %v8310, 64
      %v8741 = vpop.permute.xlu0 %8740
      %8742 = vrot.lane.b32.xlu0 %v8311, 64
      %v8743 = vpop.permute.xlu0 %8742
      %8744 = vrot.lane.b32.xlu0 %v8312, 64
      %v8745 = vpop.permute.xlu0 %8744
      %8746 = vrot.lane.b32.xlu0 %v8715, 64
      %v8747 = vpop.permute.xlu0 %8746
      %vm8764 = vcmask 654848
      %8765 = vst.msk [vmem:[#allocation6] sm:$0xff] %vm8764, %v8717
      %8766 = vst.msk [vmem:[#allocation6 + $0x18] sm:$0xff] %vm8764, %v8719
      %8767 = vst.msk [vmem:[#allocation6 + $0x30] sm:$0xff] %vm8764, %v8721
      %8768 = vst.msk [vmem:[#allocation6 + $0x48] sm:$0xff] %vm8764, %v8723
      %8769 = vst.msk [vmem:[#allocation6 + $0x60] sm:$0xff] %vm8764, %v8725
      %8770 = vst.msk [vmem:[#allocation6 + $0x78] sm:$0xff] %vm8764, %v8727
      %8771 = vst.msk [vmem:[#allocation6 + $0x90] sm:$0xff] %vm8764, %v8729
      %8772 = vst.msk [vmem:[#allocation6 + $0xa8] sm:$0xff] %vm8764, %v8731
      %8773 = vst.msk [vmem:[#allocation6 + $0xc0] sm:$0xff] %vm8764, %v8733
      %8774 = vst.msk [vmem:[#allocation6 + $0xd8] sm:$0xff] %vm8764, %v8735
      %8775 = vst.msk [vmem:[#allocation6 + $0xf0] sm:$0xff] %vm8764, %v8737
      %8776 = vst.msk [vmem:[#allocation6 + $0x108] sm:$0xff] %vm8764, %v8739
      %8777 = vst.msk [vmem:[#allocation6 + $0x120] sm:$0xff] %vm8764, %v8741
      %8778 = vst.msk [vmem:[#allocation6 + $0x138] sm:$0xff] %vm8764, %v8743
      %8779 = vst.msk [vmem:[#allocation6 + $0x150] sm:$0xff] %vm8764, %v8745
      %8780 = vst.msk [vmem:[#allocation6 + $0x168] sm:$0xff] %vm8764, %v8747
      %v8782 = vrot.slane %v7762, 5
      %v8783 = vrot.slane %v8782, 4
      %v8784 = vrot.slane %v7763, 5
      %v8785 = vsel %vm727, %v8783, %v8784
      %v8786 = vrot.slane %v8784, 4
      %v8787 = vrot.slane %v7764, 5
      %v8788 = vsel %vm727, %v8786, %v8787
      %v8789 = vunpack.c.l.b16 %v8785
      %v8790 = vunpack.c.l.b16 %v8788
      %v8791 = vpack.c.b16 %v8790, %v8789
      %8792 = vrot.lane.b32.xlu0 %v8539, 80
      %v8793 = vpop.permute.xlu0 %8792
      %8794 = vrot.lane.b32.xlu0 %v8540, 80
      %v8795 = vpop.permute.xlu0 %8794
      %8796 = vrot.lane.b32.xlu0 %v8541, 80
      %v8797 = vpop.permute.xlu0 %8796
      %8798 = vrot.lane.b32.xlu0 %v8542, 80
      %v8799 = vpop.permute.xlu0 %8798
      %8800 = vrot.lane.b32.xlu0 %v8543, 80
      %v8801 = vpop.permute.xlu0 %8800
      %8802 = vrot.lane.b32.xlu0 %v8544, 80
      %v8803 = vpop.permute.xlu0 %8802
      %8804 = vrot.lane.b32.xlu0 %v8545, 80
      %v8805 = vpop.permute.xlu0 %8804
      %8806 = vrot.lane.b32.xlu0 %v8546, 80
      %v8807 = vpop.permute.xlu0 %8806
      %8808 = vrot.lane.b32.xlu0 %v8547, 80
      %v8809 = vpop.permute.xlu0 %8808
      %8810 = vrot.lane.b32.xlu0 %v8548, 80
      %v8811 = vpop.permute.xlu0 %8810
      %8812 = vrot.lane.b32.xlu0 %v8549, 80
      %v8813 = vpop.permute.xlu0 %8812
      %8814 = vrot.lane.b32.xlu0 %v8550, 80
      %v8815 = vpop.permute.xlu0 %8814
      %8816 = vrot.lane.b32.xlu0 %v8551, 80
      %v8817 = vpop.permute.xlu0 %8816
      %8818 = vrot.lane.b32.xlu0 %v8552, 80
      %v8819 = vpop.permute.xlu0 %8818
      %8820 = vrot.lane.b32.xlu0 %v8553, 80
      %v8821 = vpop.permute.xlu0 %8820
      %8822 = vrot.lane.b32.xlu0 %v8791, 80
      %v8823 = vpop.permute.xlu0 %8822
      %vm8840 = vcmask 786048
      %8841 = vst.msk [vmem:[#allocation6] sm:$0xff] %vm8840, %v8793
      %8842 = vst.msk [vmem:[#allocation6 + $0x18] sm:$0xff] %vm8840, %v8795
      %8843 = vst.msk [vmem:[#allocation6 + $0x30] sm:$0xff] %vm8840, %v8797
      %8844 = vst.msk [vmem:[#allocation6 + $0x48] sm:$0xff] %vm8840, %v8799
      %8845 = vst.msk [vmem:[#allocation6 + $0x60] sm:$0xff] %vm8840, %v8801
      %8846 = vst.msk [vmem:[#allocation6 + $0x78] sm:$0xff] %vm8840, %v8803
      %8847 = vst.msk [vmem:[#allocation6 + $0x90] sm:$0xff] %vm8840, %v8805
      %8848 = vst.msk [vmem:[#allocation6 + $0xa8] sm:$0xff] %vm8840, %v8807
      %8849 = vst.msk [vmem:[#allocation6 + $0xc0] sm:$0xff] %vm8840, %v8809
      %8850 = vst.msk [vmem:[#allocation6 + $0xd8] sm:$0xff] %vm8840, %v8811
      %8851 = vst.msk [vmem:[#allocation6 + $0xf0] sm:$0xff] %vm8840, %v8813
      %8852 = vst.msk [vmem:[#allocation6 + $0x108] sm:$0xff] %vm8840, %v8815
      %8853 = vst.msk [vmem:[#allocation6 + $0x120] sm:$0xff] %vm8840, %v8817
      %8854 = vst.msk [vmem:[#allocation6 + $0x138] sm:$0xff] %vm8840, %v8819
      %8855 = vst.msk [vmem:[#allocation6 + $0x150] sm:$0xff] %vm8840, %v8821
      %8856 = vst.msk [vmem:[#allocation6 + $0x168] sm:$0xff] %vm8840, %v8823
      %v8859 = vunpack.c.l.b16 %v7765
      %v8860 = vunpack.c.l.b16 %v7766
      %v8861 = vpack.c.b16 %v8860, %v8859
      %8862 = vrot.lane.b32.xlu0 %v7834, 96
      %v8863 = vpop.permute.xlu0 %8862
      %8864 = vrot.lane.b32.xlu0 %v7835, 96
      %v8865 = vpop.permute.xlu0 %8864
      %8866 = vrot.lane.b32.xlu0 %v7836, 96
      %v8867 = vpop.permute.xlu0 %8866
      %8868 = vrot.lane.b32.xlu0 %v7837, 96
      %v8869 = vpop.permute.xlu0 %8868
      %8870 = vrot.lane.b32.xlu0 %v7838, 96
      %v8871 = vpop.permute.xlu0 %8870
      %8872 = vrot.lane.b32.xlu0 %v7839, 96
      %v8873 = vpop.permute.xlu0 %8872
      %8874 = vrot.lane.b32.xlu0 %v7840, 96
      %v8875 = vpop.permute.xlu0 %8874
      %8876 = vrot.lane.b32.xlu0 %v7841, 96
      %v8877 = vpop.permute.xlu0 %8876
      %8878 = vrot.lane.b32.xlu0 %v7842, 96
      %v8879 = vpop.permute.xlu0 %8878
      %8880 = vrot.lane.b32.xlu0 %v7843, 96
      %v8881 = vpop.permute.xlu0 %8880
      %8882 = vrot.lane.b32.xlu0 %v7844, 96
      %v8883 = vpop.permute.xlu0 %8882
      %8884 = vrot.lane.b32.xlu0 %v7845, 96
      %v8885 = vpop.permute.xlu0 %8884
      %8886 = vrot.lane.b32.xlu0 %v7846, 96
      %v8887 = vpop.permute.xlu0 %8886
      %8888 = vrot.lane.b32.xlu0 %v7847, 96
      %v8889 = vpop.permute.xlu0 %8888
      %8890 = vrot.lane.b32.xlu0 %v8623, 96
      %v8891 = vpop.permute.xlu0 %8890
      %8892 = vrot.lane.b32.xlu0 %v8861, 96
      %v8893 = vpop.permute.xlu0 %8892
      %vm8910 = vcmask 917248
      %8911 = vst.msk [vmem:[#allocation6] sm:$0xff] %vm8910, %v8863
      %8912 = vst.msk [vmem:[#allocation6 + $0x18] sm:$0xff] %vm8910, %v8865
      %8913 = vst.msk [vmem:[#allocation6 + $0x30] sm:$0xff] %vm8910, %v8867
      %8914 = vst.msk [vmem:[#allocation6 + $0x48] sm:$0xff] %vm8910, %v8869
      %8915 = vst.msk [vmem:[#allocation6 + $0x60] sm:$0xff] %vm8910, %v8871
      %8916 = vst.msk [vmem:[#allocation6 + $0x78] sm:$0xff] %vm8910, %v8873
      %8917 = vst.msk [vmem:[#allocation6 + $0x90] sm:$0xff] %vm8910, %v8875
      %8918 = vst.msk [vmem:[#allocation6 + $0xa8] sm:$0xff] %vm8910, %v8877
      %8919 = vst.msk [vmem:[#allocation6 + $0xc0] sm:$0xff] %vm8910, %v8879
      %8920 = vst.msk [vmem:[#allocation6 + $0xd8] sm:$0xff] %vm8910, %v8881
      %8921 = vst.msk [vmem:[#allocation6 + $0xf0] sm:$0xff] %vm8910, %v8883
      %8922 = vst.msk [vmem:[#allocation6 + $0x108] sm:$0xff] %vm8910, %v8885
      %8923 = vst.msk [vmem:[#allocation6 + $0x120] sm:$0xff] %vm8910, %v8887
      %8924 = vst.msk [vmem:[#allocation6 + $0x138] sm:$0xff] %vm8910, %v8889
      %8925 = vst.msk [vmem:[#allocation6 + $0x150] sm:$0xff] %vm8910, %v8891
      %8926 = vst.msk [vmem:[#allocation6 + $0x168] sm:$0xff] %vm8910, %v8893
      %v8928 = vshrl.u32 %v7765, 16
      %v8930 = vrot.slane %v8928, 4
      %v8931 = vshll.u32 %v7765, 16
      %v8933 = vrot.slane %v8931, 5
      %v8934 = vor.u32 %v8930, %v8933
      %v8935 = vrot.slane %v8934, 4
      %v8937 = vshll.u32 %v7766, 16
      %v8939 = vrot.slane %v8937, 5
      %v8940 = vsel %vm575, %v8935, %v8939
      %v8941 = vshrl.u32 %v7766, 16
      %v8943 = vrot.slane %v8941, 4
      %v8944 = vor.u32 %v8943, %v8939
      %v8945 = vrot.slane %v8944, 4
      %v8947 = vshll.u32 %v7767, 16
      %v8949 = vrot.slane %v8947, 5
      %v8950 = vsel %vm575, %v8945, %v8949
      %v8951 = vunpack.c.l.b16 %v8940
      %v8952 = vunpack.c.l.b16 %v8950
      %v8953 = vpack.c.b16 %v8952, %v8951
      %8954 = vrot.lane.b32.xlu0 %v8299, 112
      %v8955 = vpop.permute.xlu0 %8954
      %8956 = vrot.lane.b32.xlu0 %v8300, 112
      %v8957 = vpop.permute.xlu0 %8956
      %8958 = vrot.lane.b32.xlu0 %v8301, 112
      %v8959 = vpop.permute.xlu0 %8958
      %8960 = vrot.lane.b32.xlu0 %v8302, 112
      %v8961 = vpop.permute.xlu0 %8960
      %8962 = vrot.lane.b32.xlu0 %v8303, 112
      %v8963 = vpop.permute.xlu0 %8962
      %8964 = vrot.lane.b32.xlu0 %v8304, 112
      %v8965 = vpop.permute.xlu0 %8964
      %8966 = vrot.lane.b32.xlu0 %v8305, 112
      %v8967 = vpop.permute.xlu0 %8966
      %8968 = vrot.lane.b32.xlu0 %v8306, 112
      %v8969 = vpop.permute.xlu0 %8968
      %8970 = vrot.lane.b32.xlu0 %v8307, 112
      %v8971 = vpop.permute.xlu0 %8970
      %8972 = vrot.lane.b32.xlu0 %v8308, 112
      %v8973 = vpop.permute.xlu0 %8972
      %8974 = vrot.lane.b32.xlu0 %v8309, 112
      %v8975 = vpop.permute.xlu0 %8974
      %8976 = vrot.lane.b32.xlu0 %v8310, 112
      %v8977 = vpop.permute.xlu0 %8976
      %8978 = vrot.lane.b32.xlu0 %v8311, 112
      %v8979 = vpop.permute.xlu0 %8978
      %8980 = vrot.lane.b32.xlu0 %v8312, 112
      %v8981 = vpop.permute.xlu0 %8980
      %8982 = vrot.lane.b32.xlu0 %v8715, 112
      %v8983 = vpop.permute.xlu0 %8982
      %8984 = vrot.lane.b32.xlu0 %v8953, 112
      %v8985 = vpop.permute.xlu0 %8984
      %vm9002 = vcmask 1048448
      %9003 = vst.msk [vmem:[#allocation6] sm:$0xff] %vm9002, %v8955
      %9004 = vst.msk [vmem:[#allocation6 + $0x18] sm:$0xff] %vm9002, %v8957
      %9005 = vst.msk [vmem:[#allocation6 + $0x30] sm:$0xff] %vm9002, %v8959
      %9006 = vst.msk [vmem:[#allocation6 + $0x48] sm:$0xff] %vm9002, %v8961
      %9007 = vst.msk [vmem:[#allocation6 + $0x60] sm:$0xff] %vm9002, %v8963
      %9008 = vst.msk [vmem:[#allocation6 + $0x78] sm:$0xff] %vm9002, %v8965
      %9009 = vst.msk [vmem:[#allocation6 + $0x90] sm:$0xff] %vm9002, %v8967
      %9010 = vst.msk [vmem:[#allocation6 + $0xa8] sm:$0xff] %vm9002, %v8969
      %9011 = vst.msk [vmem:[#allocation6 + $0xc0] sm:$0xff] %vm9002, %v8971
      %9012 = vst.msk [vmem:[#allocation6 + $0xd8] sm:$0xff] %vm9002, %v8973
      %9013 = vst.msk [vmem:[#allocation6 + $0xf0] sm:$0xff] %vm9002, %v8975
      %9014 = vst.msk [vmem:[#allocation6 + $0x108] sm:$0xff] %vm9002, %v8977
      %9015 = vst.msk [vmem:[#allocation6 + $0x120] sm:$0xff] %vm9002, %v8979
      %9016 = vst.msk [vmem:[#allocation6 + $0x138] sm:$0xff] %vm9002, %v8981
      %9017 = vst.msk [vmem:[#allocation6 + $0x150] sm:$0xff] %vm9002, %v8983
      %9018 = vst.msk [vmem:[#allocation6 + $0x168] sm:$0xff] %vm9002, %v8985
      %v9020 = vrot.slane %v7765, 5
      %v9021 = vrot.slane %v9020, 4
      %v9022 = vrot.slane %v7766, 5
      %v9023 = vsel %vm727, %v9021, %v9022
      %v9024 = vrot.slane %v9022, 4
      %v9025 = vrot.slane %v7767, 5
      %v9026 = vsel %vm727, %v9024, %v9025
      %v9027 = vunpack.c.l.b16 %v9023
      %v9028 = vunpack.c.l.b16 %v9026
      %v9029 = vpack.c.b16 %v9028, %v9027
      %9046 = vst.msk [vmem:[#allocation6 + $0x8] sm:$0xff] %vm7864, %v8540
      %9047 = vst.msk [vmem:[#allocation6 + $0x20] sm:$0xff] %vm7864, %v8541
      %9048 = vst.msk [vmem:[#allocation6 + $0x38] sm:$0xff] %vm7864, %v8542
      %9049 = vst.msk [vmem:[#allocation6 + $0x50] sm:$0xff] %vm7864, %v8543
      %9050 = vst.msk [vmem:[#allocation6 + $0x68] sm:$0xff] %vm7864, %v8544
      %9051 = vst.msk [vmem:[#allocation6 + $0x80] sm:$0xff] %vm7864, %v8545
      %9052 = vst.msk [vmem:[#allocation6 + $0x98] sm:$0xff] %vm7864, %v8546
      %9053 = vst.msk [vmem:[#allocation6 + $0xb0] sm:$0xff] %vm7864, %v8547
      %9054 = vst.msk [vmem:[#allocation6 + $0xc8] sm:$0xff] %vm7864, %v8548
      %9055 = vst.msk [vmem:[#allocation6 + $0xe0] sm:$0xff] %vm7864, %v8549
      %9056 = vst.msk [vmem:[#allocation6 + $0xf8] sm:$0xff] %vm7864, %v8550
      %9057 = vst.msk [vmem:[#allocation6 + $0x110] sm:$0xff] %vm7864, %v8551
      %9058 = vst.msk [vmem:[#allocation6 + $0x128] sm:$0xff] %vm7864, %v8552
      %9059 = vst.msk [vmem:[#allocation6 + $0x140] sm:$0xff] %vm7864, %v8553
      %9060 = vst.msk [vmem:[#allocation6 + $0x158] sm:$0xff] %vm7864, %v8791
      %9061 = vst.msk [vmem:[#allocation6 + $0x170] sm:$0xff] %vm7864, %v9029
      %v9062 = vld [vmem:[#allocation6] sm:$0xff]
      %v9063 = vld [vmem:[#allocation6 + $0x8] sm:$0xff]
      %v9064 = vld [vmem:[#allocation6 + $0x18] sm:$0xff]
      %v9065 = vld [vmem:[#allocation6 + $0x20] sm:$0xff]
      %v9066 = vld [vmem:[#allocation6 + $0x30] sm:$0xff]
      %v9067 = vld [vmem:[#allocation6 + $0x38] sm:$0xff]
      %v9068 = vld [vmem:[#allocation6 + $0x48] sm:$0xff]
      %v9069 = vld [vmem:[#allocation6 + $0x50] sm:$0xff]
      %v9070 = vld [vmem:[#allocation6 + $0x60] sm:$0xff]
      %v9071 = vld [vmem:[#allocation6 + $0x68] sm:$0xff]
      %v9072 = vld [vmem:[#allocation6 + $0x78] sm:$0xff]
      %v9073 = vld [vmem:[#allocation6 + $0x80] sm:$0xff]
      %v9074 = vld [vmem:[#allocation6 + $0x90] sm:$0xff]
      %v9075 = vld [vmem:[#allocation6 + $0x98] sm:$0xff]
      %v9076 = vld [vmem:[#allocation6 + $0xa8] sm:$0xff]
      %v9077 = vld [vmem:[#allocation6 + $0xb0] sm:$0xff]
      %v9078 = vld [vmem:[#allocation6 + $0xc0] sm:$0xff]
      %v9079 = vld [vmem:[#allocation6 + $0xc8] sm:$0xff]
      %v9080 = vld [vmem:[#allocation6 + $0xd8] sm:$0xff]
      %v9081 = vld [vmem:[#allocation6 + $0xe0] sm:$0xff]
      %v9082 = vld [vmem:[#allocation6 + $0xf0] sm:$0xff]
      %v9083 = vld [vmem:[#allocation6 + $0xf8] sm:$0xff]
      %v9084 = vld [vmem:[#allocation6 + $0x108] sm:$0xff]
      %v9085 = vld [vmem:[#allocation6 + $0x110] sm:$0xff]
      %v9086 = vld [vmem:[#allocation6 + $0x120] sm:$0xff]
      %v9087 = vld [vmem:[#allocation6 + $0x128] sm:$0xff]
      %v9088 = vld [vmem:[#allocation6 + $0x138] sm:$0xff]
      %v9089 = vld [vmem:[#allocation6 + $0x140] sm:$0xff]
      %v9090 = vld [vmem:[#allocation6 + $0x150] sm:$0xff]
      %v9091 = vld [vmem:[#allocation6 + $0x158] sm:$0xff]
      %v9092 = vld [vmem:[#allocation6 + $0x168] sm:$0xff]
      %v9093 = vld [vmem:[#allocation6 + $0x170] sm:$0xff]
      %v9094 = vld [vmem:[%s6] sm:$0xf]
      %v9095 = vld [vmem:[%s6 + $0x4] sm:$0xf]
      %v9096 = vld [vmem:[%s6 + $0x8] sm:$0xf]
      %v9097 = vld [vmem:[%s6 + $0xc] sm:$0xf]
      %v9098 = vld [vmem:[%s6 + $0x10] sm:$0xf]
      %v9099 = vld [vmem:[%s6 + $0x14] sm:$0xf]
      %v9100 = vld [vmem:[%s6 + $0x18] sm:$0xf]
      %v9101 = vld [vmem:[%s6 + $0x1c] sm:$0xf]
      %v9102 = vld [vmem:[%s6 + $0x20] sm:$0xf]
      %v9103 = vld [vmem:[%s6 + $0x24] sm:$0xf]
      %v9104 = vld [vmem:[%s6 + $0x28] sm:$0xf]
      %v9105 = vld [vmem:[%s6 + $0x2c] sm:$0xf]
      %v9106 = vld [vmem:[%s6 + $0x30] sm:$0xf]
      %v9107 = vld [vmem:[%s6 + $0x34] sm:$0xf]
      %v9108 = vld [vmem:[%s6 + $0x38] sm:$0xf]
      %v9109 = vld [vmem:[%s6 + $0x3c] sm:$0xf]
      %v9110 = vld [vmem:[%s6 + $0x40] sm:$0xf]
      %v9111 = vld [vmem:[%s6 + $0x44] sm:$0xf]
      %v9112 = vld [vmem:[%s7] sm:$0x1]
      %v9114 = vlaneseq
      %v9115 = vshrl.u32 %v9114, 7
      %v9116 = vsub.s32 0, %v9115
      %v9117 = vrot.slane %v9112, %v9116
      %v9137 = vunpack.c.l.b16 %v9094
      %v9138 = vunpack.c.l.b16 %v9095
      %v9139 = vunpack.c.l.b16 %v9096
      %v9140 = vunpack.c.l.b16 %v9097
      %v9141 = vunpack.c.l.b16 %v9098
      %v9142 = vunpack.c.l.b16 %v9099
      %v9143 = vunpack.c.l.b16 %v9100
      %v9144 = vunpack.c.l.b16 %v9101
      %v9145 = vunpack.c.l.b16 %v9102
      %v9146 = vunpack.c.l.b16 %v9103
      %v9147 = vunpack.c.l.b16 %v9104
      %v9148 = vunpack.c.l.b16 %v9105
      %v9149 = vunpack.c.l.b16 %v9106
      %v9150 = vunpack.c.l.b16 %v9107
      %v9151 = vunpack.c.l.b16 %v9108
      %v9152 = vunpack.c.l.b16 %v9109
      %v9153 = vunpack.c.l.b16 %v9110
      %v9154 = vunpack.c.l.b16 %v9111
      %v9155 = vpack.c.b16 %v9138, %v9137
      %v9156 = vpack.c.b16 %v9140, %v9139
      %v9157 = vpack.c.b16 %v9142, %v9141
      %v9158 = vpack.c.b16 %v9144, %v9143
      %v9159 = vpack.c.b16 %v9146, %v9145
      %v9160 = vpack.c.b16 %v9148, %v9147
      %v9161 = vpack.c.b16 %v9150, %v9149
      %v9162 = vpack.c.b16 %v9152, %v9151
      %v9163 = vpack.c.b16 %v9154, %v9153
      %v9174 = vsel %vm7864, %v9063, 0
      %v9177 = vsel %vm7864, %v9065, 0
      %v9180 = vsel %vm7864, %v9067, 0
      %v9183 = vsel %vm7864, %v9069, 0
      %v9186 = vsel %vm7864, %v9071, 0
      %v9189 = vsel %vm7864, %v9073, 0
      %v9192 = vsel %vm7864, %v9075, 0
      %v9195 = vsel %vm7864, %v9077, 0
      %v9198 = vsel %vm7864, %v9079, 0
      %v9201 = vsel %vm7864, %v9081, 0
      %v9204 = vsel %vm7864, %v9083, 0
      %v9207 = vsel %vm7864, %v9085, 0
      %v9210 = vsel %vm7864, %v9087, 0
      %v9213 = vsel %vm7864, %v9089, 0
      %v9216 = vsel %vm7864, %v9091, 0
      %v9219 = vsel %vm7864, %v9093, 0
      %9221 = vmatprep.subr.bf16.mxu0 0
      %9222 = vmatpush1.bf16.msra.mxu0 %v9155
      %9223 = vmatprep.subr.bf16.mxu0 0
      %9224 = vmatpush1.bf16.msra.mxu0 %v9156
      %9225 = vmatprep.subr.bf16.mxu0 0
      %9226 = vmatpush1.bf16.msra.mxu0 %v9157
      %9227 = vmatprep.subr.bf16.mxu0 0
      %9228 = vmatpush1.bf16.msra.mxu0 %v9158
      %9229 = vmatprep.subr.bf16.mxu0 0
      %9230 = vmatpush1.bf16.msra.mxu0 %v9159
      %9231 = vmatprep.subr.bf16.mxu0 0
      %9232 = vmatpush1.bf16.msra.mxu0 %v9160
      %9233 = vmatprep.subr.bf16.mxu0 0
      %9234 = vmatpush1.bf16.msra.mxu0 %v9161
      %9235 = vmatprep.subr.bf16.mxu0 0
      %9236 = vmatpush1.bf16.msra.mxu0 %v9162
      %9237 = vmatprep.subr.bf16.mxu0 0
      %9238 = vmatpush1.bf16.msra.mxu0 %v9163
      %9239 = vmatprep.subr.bf16.mxu0 0
      %9240 = vmatpush1.bf16.msra.mxu0 0
      %9241 = vmatprep.subr.bf16.mxu0 0
      %9242 = vmatpush1.bf16.msra.mxu0 0
      %9243 = vmatprep.subr.bf16.mxu0 0
      %9244 = vmatpush1.bf16.msra.mxu0 0
      %9245 = vmatprep.subr.bf16.mxu0 0
      %9246 = vmatpush1.bf16.msra.mxu0 0
      %9247 = vmatprep.subr.bf16.mxu0 0
      %9248 = vmatpush1.bf16.msra.mxu0 0
      %9249 = vmatprep.subr.bf16.mxu0 0
      %9250 = vmatpush1.bf16.msra.mxu0 0
      %9251 = vmatprep.subr.bf16.mxu0 0
      %9252 = vmatpush1.bf16.msra.mxu0 0
      %9253 = vmatprep.mubr.bf16.mxu0 %v9174
      %9254 = vmatmul.mubr.bf16.gmra.mrb[0].mxu0 %v9062
      %v9255 = vpop.f32.mrb[0].mxu0
      %v9256 = vadd.f32 %v9117, %v9255
      %v9257 = vpop.f32.mrb[0].mxu0
      %v9258 = vpop.f32.mrb[0].mxu0
      %v9259 = vadd.f32 %v9117, %v9258
      %v9260 = vpop.f32.mrb[0].mxu0
      %9261 = vmatprep.mubr.bf16.mxu0 %v9177
      %9262 = vmatmul.mubr.bf16.gmra.mrb[0].mxu0 %v9064
      %v9263 = vpop.f32.mrb[0].mxu0
      %v9264 = vadd.f32 %v9117, %v9263
      %v9265 = vpop.f32.mrb[0].mxu0
      %v9266 = vpop.f32.mrb[0].mxu0
      %v9267 = vadd.f32 %v9117, %v9266
      %v9268 = vpop.f32.mrb[0].mxu0
      %9269 = vmatprep.mubr.bf16.mxu0 %v9180
      %9270 = vmatmul.mubr.bf16.gmra.mrb[0].mxu0 %v9066
      %v9271 = vpop.f32.mrb[0].mxu0
      %v9272 = vadd.f32 %v9117, %v9271
      %v9273 = vpop.f32.mrb[0].mxu0
      %v9274 = vpop.f32.mrb[0].mxu0
      %v9275 = vadd.f32 %v9117, %v9274
      %v9276 = vpop.f32.mrb[0].mxu0
      %9277 = vmatprep.mubr.bf16.mxu0 %v9183
      %9278 = vmatmul.mubr.bf16.gmra.mrb[0].mxu0 %v9068
      %v9279 = vpop.f32.mrb[0].mxu0
      %v9280 = vadd.f32 %v9117, %v9279
      %v9281 = vpop.f32.mrb[0].mxu0
      %v9282 = vpop.f32.mrb[0].mxu0
      %v9283 = vadd.f32 %v9117, %v9282
      %v9284 = vpop.f32.mrb[0].mxu0
      %9285 = vmatprep.mubr.bf16.mxu0 %v9186
      %9286 = vmatmul.mubr.bf16.gmra.mrb[0].mxu0 %v9070
      %v9287 = vpop.f32.mrb[0].mxu0
      %v9288 = vadd.f32 %v9117, %v9287
      %v9289 = vpop.f32.mrb[0].mxu0
      %v9290 = vpop.f32.mrb[0].mxu0
      %v9291 = vadd.f32 %v9117, %v9290
      %v9292 = vpop.f32.mrb[0].mxu0
      %9293 = vmatprep.mubr.bf16.mxu0 %v9189
      %9294 = vmatmul.mubr.bf16.gmra.mrb[0].mxu0 %v9072
      %v9295 = vpop.f32.mrb[0].mxu0
      %v9296 = vadd.f32 %v9117, %v9295
      %v9297 = vpop.f32.mrb[0].mxu0
      %v9298 = vpop.f32.mrb[0].mxu0
      %v9299 = vadd.f32 %v9117, %v9298
      %v9300 = vpop.f32.mrb[0].mxu0
      %9301 = vmatprep.mubr.bf16.mxu0 %v9192
      %9302 = vmatmul.mubr.bf16.gmra.mrb[0].mxu0 %v9074
      %v9303 = vpop.f32.mrb[0].mxu0
      %v9304 = vadd.f32 %v9117, %v9303
      %v9305 = vpop.f32.mrb[0].mxu0
      %v9306 = vpop.f32.mrb[0].mxu0
      %v9307 = vadd.f32 %v9117, %v9306
      %v9308 = vpop.f32.mrb[0].mxu0
      %9309 = vmatprep.mubr.bf16.mxu0 %v9195
      %9310 = vmatmul.mubr.bf16.gmra.mrb[0].mxu0 %v9076
      %v9311 = vpop.f32.mrb[0].mxu0
      %v9312 = vadd.f32 %v9117, %v9311
      %v9313 = vpop.f32.mrb[0].mxu0
      %v9314 = vpop.f32.mrb[0].mxu0
      %v9315 = vadd.f32 %v9117, %v9314
      %v9316 = vpop.f32.mrb[0].mxu0
      %9317 = vmatprep.mubr.bf16.mxu0 %v9198
      %9318 = vmatmul.mubr.bf16.gmra.mrb[0].mxu0 %v9078
      %v9319 = vpop.f32.mrb[0].mxu0
      %v9320 = vadd.f32 %v9117, %v9319
      %v9321 = vpop.f32.mrb[0].mxu0
      %v9322 = vpop.f32.mrb[0].mxu0
      %v9323 = vadd.f32 %v9117, %v9322
      %v9324 = vpop.f32.mrb[0].mxu0
      %9325 = vmatprep.mubr.bf16.mxu0 %v9201
      %9326 = vmatmul.mubr.bf16.gmra.mrb[0].mxu0 %v9080
      %v9327 = vpop.f32.mrb[0].mxu0
      %v9328 = vadd.f32 %v9117, %v9327
      %v9329 = vpop.f32.mrb[0].mxu0
      %v9330 = vpop.f32.mrb[0].mxu0
      %v9331 = vadd.f32 %v9117, %v9330
      %v9332 = vpop.f32.mrb[0].mxu0
      %9333 = vmatprep.mubr.bf16.mxu0 %v9204
      %9334 = vmatmul.mubr.bf16.gmra.mrb[0].mxu0 %v9082
      %v9335 = vpop.f32.mrb[0].mxu0
      %v9336 = vadd.f32 %v9117, %v9335
      %v9337 = vpop.f32.mrb[0].mxu0
      %v9338 = vpop.f32.mrb[0].mxu0
      %v9339 = vadd.f32 %v9117, %v9338
      %v9340 = vpop.f32.mrb[0].mxu0
      %9341 = vmatprep.mubr.bf16.mxu0 %v9207
      %9342 = vmatmul.mubr.bf16.gmra.mrb[0].mxu0 %v9084
      %v9343 = vpop.f32.mrb[0].mxu0
      %v9344 = vadd.f32 %v9117, %v9343
      %v9345 = vpop.f32.mrb[0].mxu0
      %v9346 = vpop.f32.mrb[0].mxu0
      %v9347 = vadd.f32 %v9117, %v9346
      %v9348 = vpop.f32.mrb[0].mxu0
      %9349 = vmatprep.mubr.bf16.mxu0 %v9210
      %9350 = vmatmul.mubr.bf16.gmra.mrb[0].mxu0 %v9086
      %v9351 = vpop.f32.mrb[0].mxu0
      %v9352 = vadd.f32 %v9117, %v9351
      %v9353 = vpop.f32.mrb[0].mxu0
      %v9354 = vpop.f32.mrb[0].mxu0
      %v9355 = vadd.f32 %v9117, %v9354
      %v9356 = vpop.f32.mrb[0].mxu0
      %9357 = vmatprep.mubr.bf16.mxu0 %v9213
      %9358 = vmatmul.mubr.bf16.gmra.mrb[0].mxu0 %v9088
      %v9359 = vpop.f32.mrb[0].mxu0
      %v9360 = vadd.f32 %v9117, %v9359
      %v9361 = vpop.f32.mrb[0].mxu0
      %v9362 = vpop.f32.mrb[0].mxu0
      %v9363 = vadd.f32 %v9117, %v9362
      %v9364 = vpop.f32.mrb[0].mxu0
      %9365 = vmatprep.mubr.bf16.mxu0 %v9216
      %9366 = vmatmul.mubr.bf16.gmra.mrb[0].mxu0 %v9090
      %v9367 = vpop.f32.mrb[0].mxu0
      %v9368 = vadd.f32 %v9117, %v9367
      %v9369 = vpop.f32.mrb[0].mxu0
      %v9370 = vpop.f32.mrb[0].mxu0
      %v9371 = vadd.f32 %v9117, %v9370
      %v9372 = vpop.f32.mrb[0].mxu0
      %9373 = vmatprep.mubr.bf16.mxu0 %v9219
      %9374 = vmatmul.mubr.bf16.gmra.mrb[0].mxu0 %v9092
      %v9375 = vpop.f32.mrb[0].mxu0
      %v9376 = vadd.f32 %v9117, %v9375
      %v9377 = vpop.f32.mrb[0].mxu0
      %v9378 = vpop.f32.mrb[0].mxu0
      %v9379 = vadd.f32 %v9117, %v9378
      %v9380 = vpop.f32.mrb[0].mxu0
      %9381 = vdwg.mxu0
      %vm9382 = vcmp.gt.f32.partialorder %v9256, 0.0
      %vm9383 = vcmp.gt.f32.partialorder %v9259, 0.0
      %vm9384 = vcmp.gt.f32.partialorder %v9264, 0.0
      %vm9385 = vcmp.gt.f32.partialorder %v9267, 0.0
      %vm9386 = vcmp.gt.f32.partialorder %v9272, 0.0
      %vm9387 = vcmp.gt.f32.partialorder %v9275, 0.0
      %vm9388 = vcmp.gt.f32.partialorder %v9280, 0.0
      %vm9389 = vcmp.gt.f32.partialorder %v9283, 0.0
      %vm9390 = vcmp.gt.f32.partialorder %v9288, 0.0
      %vm9391 = vcmp.gt.f32.partialorder %v9291, 0.0
      %vm9392 = vcmp.gt.f32.partialorder %v9296, 0.0
      %vm9393 = vcmp.gt.f32.partialorder %v9299, 0.0
      %vm9394 = vcmp.gt.f32.partialorder %v9304, 0.0
      %vm9395 = vcmp.gt.f32.partialorder %v9307, 0.0
      %vm9396 = vcmp.gt.f32.partialorder %v9312, 0.0
      %vm9397 = vcmp.gt.f32.partialorder %v9315, 0.0
      %vm9398 = vcmp.gt.f32.partialorder %v9320, 0.0
      %vm9399 = vcmp.gt.f32.partialorder %v9323, 0.0
      %vm9400 = vcmp.gt.f32.partialorder %v9328, 0.0
      %vm9401 = vcmp.gt.f32.partialorder %v9331, 0.0
      %vm9402 = vcmp.gt.f32.partialorder %v9336, 0.0
      %vm9403 = vcmp.gt.f32.partialorder %v9339, 0.0
      %vm9404 = vcmp.gt.f32.partialorder %v9344, 0.0
      %vm9405 = vcmp.gt.f32.partialorder %v9347, 0.0
      %vm9406 = vcmp.gt.f32.partialorder %v9352, 0.0
      %vm9407 = vcmp.gt.f32.partialorder %v9355, 0.0
      %vm9408 = vcmp.gt.f32.partialorder %v9360, 0.0
      %vm9409 = vcmp.gt.f32.partialorder %v9363, 0.0
      %vm9410 = vcmp.gt.f32.partialorder %v9368, 0.0
      %vm9411 = vcmp.gt.f32.partialorder %v9371, 0.0
      %vm9412 = vcmp.gt.f32.partialorder %v9376, 0.0
      %vm9413 = vcmp.gt.f32.partialorder %v9379, 0.0
      %v9414 = vmul.f32 %v9256, 0.1
      %v9415 = vmul.f32 %v9259, 0.1
      %v9416 = vmul.f32 %v9264, 0.1
      %v9417 = vmul.f32 %v9267, 0.1
      %v9418 = vmul.f32 %v9272, 0.1
      %v9419 = vmul.f32 %v9275, 0.1
      %v9420 = vmul.f32 %v9280, 0.1
      %v9421 = vmul.f32 %v9283, 0.1
      %v9422 = vmul.f32 %v9288, 0.1
      %v9423 = vmul.f32 %v9291, 0.1
      %v9424 = vmul.f32 %v9296, 0.1
      %v9425 = vmul.f32 %v9299, 0.1
      %v9426 = vmul.f32 %v9304, 0.1
      %v9427 = vmul.f32 %v9307, 0.1
      %v9428 = vmul.f32 %v9312, 0.1
      %v9429 = vmul.f32 %v9315, 0.1
      %v9430 = vmul.f32 %v9320, 0.1
      %v9431 = vmul.f32 %v9323, 0.1
      %v9432 = vmul.f32 %v9328, 0.1
      %v9433 = vmul.f32 %v9331, 0.1
      %v9434 = vmul.f32 %v9336, 0.1
      %v9435 = vmul.f32 %v9339, 0.1
      %v9436 = vmul.f32 %v9344, 0.1
      %v9437 = vmul.f32 %v9347, 0.1
      %v9438 = vmul.f32 %v9352, 0.1
      %v9439 = vmul.f32 %v9355, 0.1
      %v9440 = vmul.f32 %v9360, 0.1
      %v9441 = vmul.f32 %v9363, 0.1
      %v9442 = vmul.f32 %v9368, 0.1
      %v9443 = vmul.f32 %v9371, 0.1
      %v9444 = vmul.f32 %v9376, 0.1
      %v9445 = vmul.f32 %v9379, 0.1
      %v9446 = vsel %vm9382, %v9256, %v9414
      %v9447 = vsel %vm9383, %v9259, %v9415
      %v9448 = vsel %vm9384, %v9264, %v9416
      %v9449 = vsel %vm9385, %v9267, %v9417
      %v9450 = vsel %vm9386, %v9272, %v9418
      %v9451 = vsel %vm9387, %v9275, %v9419
      %v9452 = vsel %vm9388, %v9280, %v9420
      %v9453 = vsel %vm9389, %v9283, %v9421
      %v9454 = vsel %vm9390, %v9288, %v9422
      %v9455 = vsel %vm9391, %v9291, %v9423
      %v9456 = vsel %vm9392, %v9296, %v9424
      %v9457 = vsel %vm9393, %v9299, %v9425
      %v9458 = vsel %vm9394, %v9304, %v9426
      %v9459 = vsel %vm9395, %v9307, %v9427
      %v9460 = vsel %vm9396, %v9312, %v9428
      %v9461 = vsel %vm9397, %v9315, %v9429
      %v9462 = vsel %vm9398, %v9320, %v9430
      %v9463 = vsel %vm9399, %v9323, %v9431
      %v9464 = vsel %vm9400, %v9328, %v9432
      %v9465 = vsel %vm9401, %v9331, %v9433
      %v9466 = vsel %vm9402, %v9336, %v9434
      %v9467 = vsel %vm9403, %v9339, %v9435
      %v9468 = vsel %vm9404, %v9344, %v9436
      %v9469 = vsel %vm9405, %v9347, %v9437
      %v9470 = vsel %vm9406, %v9352, %v9438
      %v9471 = vsel %vm9407, %v9355, %v9439
      %v9472 = vsel %vm9408, %v9360, %v9440
      %v9473 = vsel %vm9409, %v9363, %v9441
      %v9474 = vsel %vm9410, %v9368, %v9442
      %v9475 = vsel %vm9411, %v9371, %v9443
      %v9476 = vsel %vm9412, %v9376, %v9444
      %v9477 = vsel %vm9413, %v9379, %v9445
      %9478 = vst.msk [vmem:[%s325] sm:$0xff] %vm7864, %v9446
      %9479 = vst.msk [vmem:[%s325 + $0x8] sm:$0xff] %vm7864, %v9447
      %9480 = vst.msk [vmem:[%s325 + $0x10] sm:$0xff] %vm7864, %v9448
      %9481 = vst.msk [vmem:[%s325 + $0x18] sm:$0xff] %vm7864, %v9449
      %9482 = vst.msk [vmem:[%s325 + $0x20] sm:$0xff] %vm7864, %v9450
      %9483 = vst.msk [vmem:[%s325 + $0x28] sm:$0xff] %vm7864, %v9451
      %9484 = vst.msk [vmem:[%s325 + $0x30] sm:$0xff] %vm7864, %v9452
      %9485 = vst.msk [vmem:[%s325 + $0x38] sm:$0xff] %vm7864, %v9453
      %9486 = vst.msk [vmem:[%s325 + $0x40] sm:$0xff] %vm7864, %v9454
      %9487 = vst.msk [vmem:[%s325 + $0x48] sm:$0xff] %vm7864, %v9455
      %9488 = vst.msk [vmem:[%s325 + $0x50] sm:$0xff] %vm7864, %v9456
      %9489 = vst.msk [vmem:[%s325 + $0x58] sm:$0xff] %vm7864, %v9457
      %9490 = vst.msk [vmem:[%s325 + $0x60] sm:$0xff] %vm7864, %v9458
      %9491 = vst.msk [vmem:[%s325 + $0x68] sm:$0xff] %vm7864, %v9459
      %9492 = vst.msk [vmem:[%s325 + $0x70] sm:$0xff] %vm7864, %v9460
      %9493 = vst.msk [vmem:[%s325 + $0x78] sm:$0xff] %vm7864, %v9461
      %9494 = vst.msk [vmem:[%s325 + $0x80] sm:$0xff] %vm7864, %v9462
      %9495 = vst.msk [vmem:[%s325 + $0x88] sm:$0xff] %vm7864, %v9463
      %9496 = vst.msk [vmem:[%s325 + $0x90] sm:$0xff] %vm7864, %v9464
      %9497 = vst.msk [vmem:[%s325 + $0x98] sm:$0xff] %vm7864, %v9465
      %9498 = vst.msk [vmem:[%s325 + $0xa0] sm:$0xff] %vm7864, %v9466
      %9499 = vst.msk [vmem:[%s325 + $0xa8] sm:$0xff] %vm7864, %v9467
      %9500 = vst.msk [vmem:[%s325 + $0xb0] sm:$0xff] %vm7864, %v9468
      %9501 = vst.msk [vmem:[%s325 + $0xb8] sm:$0xff] %vm7864, %v9469
      %9502 = vst.msk [vmem:[%s325 + $0xc0] sm:$0xff] %vm7864, %v9470
      %9503 = vst.msk [vmem:[%s325 + $0xc8] sm:$0xff] %vm7864, %v9471
      %9504 = vst.msk [vmem:[%s325 + $0xd0] sm:$0xff] %vm7864, %v9472
      %9505 = vst.msk [vmem:[%s325 + $0xd8] sm:$0xff] %vm7864, %v9473
      %9506 = vst.msk [vmem:[%s325 + $0xe0] sm:$0xff] %vm7864, %v9474
      %9507 = vst.msk [vmem:[%s325 + $0xe8] sm:$0xff] %vm7864, %v9475
      %9508 = vst.msk [vmem:[%s325 + $0xf0] sm:$0xff] %vm7864, %v9476
      %9509 = vst.msk [vmem:[%s325 + $0xf8] sm:$0xff] %vm7864, %v9477
      %p9510 = scmp.lt.s32.totalorder %s19, 1
      %s9511 = scalar_select %p9510, %s19, 1
      %s9512 = smul.addr %s9511, 32
      %s9513 = smul.addr %s9512, 8
      %s9514 = scalar_lea.vmem %s8, %s9513
      // Predicated region
      $region53: #{up_forward.1} parent=51 // pred_check
        %p9515 = pneg %p215
      $region54: #{up_forward.1} parent=51 // pred_check_branch
        %9517 = sbr.rel (%p9515) target = $region56
      $region55: #{up_forward.1} parent=51 // pred_region
        _
      $region56: #{up_forward.1} parent=51 // pred_fallthru
        _
    $region52: #{up_forward.1} parent=5 // pred_fallthru
      _
    %p9518 = scmp.le.s32.totalorder 2, %s14
    // Predicated region
    $region57: #{up_forward.1} parent=5 // pred_check
      %p9519 = pneg %p9518
    $region58: #{up_forward.1} parent=5 // pred_check_branch
      %9521 = sbr.rel (%p9519) target = $region60
    $region59: #{up_forward.1} parent=5 // pred_region
      %s9522 = ssub.s32 %s14, 2
      // Predicated region
      $region61: #{up_forward.1} parent=59 // pred_check
        %p9523 = pneg %p221
      $region62: #{up_forward.1} parent=59 // pred_check_branch
        %9525 = sbr.rel (%p9523) target = $region64
      $region63: #{up_forward.1} parent=59 // pred_region
        %p9526 = scmp.lt.s32.totalorder %s20, 1
        %s9527 = scalar_select %p9526, %s20, 1
        %s9528 = smul.addr %s9527, 32
        %s9529 = smul.addr %s9528, 8
        %s9530 = scalar_lea.vmem %s8, %s9529
      $region64: #{up_forward.1} parent=59 // pred_fallthru
        _
    $region60: #{up_forward.1} parent=5 // pred_fallthru
      _
  $region6: #{up_forward.1} parent=0 // loop_footer
    %s18 = sadd.s32 1, %s14
  $region7: #{up_forward.1} parent=0 // loop_footer_branch
    %13 = sbr.rel target = $region3
  $region8: #{up_forward.1} parent=0 // loop_exit
    _

</llo_original>
